<compile_context>
chip_gen: v6e
topology: v6e:2x2x1
jax: 0.10.0
libtpu: 0.0.40
codegen_flags: <defaults>
</compile_context>

<pallas_src>
from functools import partial

import jax
import jax.numpy as jnp
from jax.experimental import pallas as pl
from jax.experimental.pallas import tpu as pltpu


# ----------------------------------------------------------------------------- #
# Small wrapper-side constant builders (constant-folded under jit)
# ----------------------------------------------------------------------------- #
def _round_up(x, m):
    return (x + m - 1) // m * m


def _tap_masks(H, W):
    """[9, H*W] f32 validity masks for the 3x3 taps (stride 1, pad 1), flat spatial."""
    idx = jnp.arange(H * W, dtype=jnp.int32)
    yy, xx = idx // W, idx % W
    rows = []
    for t in range(9):
        dy, dx = t // 3 - 1, t % 3 - 1
        rows.append((yy + dy >= 0) & (yy + dy < H) & (xx + dx >= 0) & (xx + dx < W))
    return jnp.stack(rows, axis=0).astype(jnp.float32)


def _pool_matrix(H, W):
    """[H*W, (H//2)*(W//2)] matrix P so that y @ P == 2x2 average pooling (stride 2)."""
    Ho, Wo = H // 2, W // 2
    idx = jnp.arange(H * W, dtype=jnp.int32)
    dst = (idx // W // 2) * Wo + (idx % W) // 2
    eye = (dst[:, None] == jnp.arange(Ho * Wo, dtype=jnp.int32)[None, :])
    return 0.25 * eye.astype(jnp.float32)


def _group_matrices(C, groups):
    """Channel->group one-hot membership matrices: m [C, G], mT [G, C]."""
    cpg = C // groups
    m = (jnp.arange(C)[:, None] // cpg == jnp.arange(groups)[None, :]).astype(jnp.float32)
    return m, jnp.transpose(m)


# ----------------------------------------------------------------------------- #
# Fused stage kernel:
#   [GroupNorm+SiLU (+emb bias)] -> [optional 2x2 avgpool] -> 3x3 conv -> [+residual]
# All activations are [C, H*W] tiles (channels on sublanes, spatial on the lane axis).
# ----------------------------------------------------------------------------- #
def _fused_stage_kernel(*refs, groups, eps, wo, has_gn, has_emb, has_pool, has_res):
    refs = list(refs)
    i = 0

    def take():
        nonlocal i
        r = refs[i]
        i += 1
        return r

    x_ref = take()                                           # [1, C1, HWin]
    if has_gn:
        gamma_ref, beta_ref, m_ref, mT_ref = take(), take(), take(), take()
    if has_emb:
        e_ref, we_ref, be_ref = take(), take(), take()
    if has_pool:
        pmat_ref = take()
    mask_ref, w2_ref, cb_ref = take(), take(), take()
    res_ref = take() if has_res else None
    o_ref = take()                                           # [1, C2, HWo]
    col_ref = take()                                         # VMEM scratch [9*C1p, HWo]

    C1, HWin = x_ref.shape[1], x_ref.shape[2]
    HWo = o_ref.shape[2]
    C1p = col_ref.shape[0] // 9

    x = x_ref[0].astype(jnp.float32)                         # [C1, HWin]

    if has_gn:
        if has_emb:
            # emb_layers: Linear(SiLU(emb)), fused as a per-channel additive bias.
            e = e_ref[0].astype(jnp.float32)                 # [emb_ch, 1]
            e = e * jax.nn.sigmoid(e)
            e_wide = jnp.broadcast_to(e, (e.shape[0], HWin))
            x = x + jnp.dot(we_ref[...], e_wide,
                            preferred_element_type=jnp.float32) + be_ref[...]
        # GroupNorm (two-pass, f32) + SiLU.  Group reduce / broadcast go through tiny
        # membership matmuls whose lane dimension stays wide (= HWin): MXU-friendly.
        m = m_ref[...]                                       # [C1, G]
        mT = mT_ref[...]                                     # [G, C1]
        cnt = jnp.float32(HWin * (C1 // groups))
        gsum = jnp.sum(jnp.dot(mT, x, preferred_element_type=jnp.float32),
                       axis=1, keepdims=True)                # [G, 1]
        mean = jnp.dot(m, jnp.broadcast_to(gsum / cnt, (groups, HWin)),
                       preferred_element_type=jnp.float32)   # [C1, HWin]
        xc = x - mean
        gss = jnp.sum(jnp.dot(mT, xc * xc, preferred_element_type=jnp.float32),
                      axis=1, keepdims=True)                 # [G, 1]
        inv = jnp.dot(m, jnp.broadcast_to(jax.lax.rsqrt(gss / cnt + eps), (groups, HWin)),
                      preferred_element_type=jnp.float32)    # [C1, HWin]
        y = xc * inv * gamma_ref[...] + beta_ref[...]
        y = y * jax.nn.sigmoid(y)                            # SiLU
    else:
        y = x

    if has_pool:
        # AvgPool2d(2, 2) as a [C1, HWin] @ [HWin, HWo] matmul.
        y = jnp.dot(y, pmat_ref[...], preferred_element_type=jnp.float32)   # [C1, HWo]

    # 3x3 conv (stride 1, pad 1) as a single im2col matmul.  Taps come from lane rolls;
    # image borders are masked in-kernel, so no padded activation ever touches HBM.
    if C1p != C1:
        col_ref[...] = jnp.zeros(col_ref.shape, col_ref.dtype)
    masks = mask_ref[...]                                    # [9, HWo]
    for t in range(9):
        dy, dx = t // 3 - 1, t % 3 - 1
        shift = (-(dy * wo + dx)) % HWo
        tap = pltpu.roll(y, shift=shift, axis=1) if shift else y
        col_ref[t * C1p:t * C1p + C1, :] = tap * masks[t:t + 1, :]

    acc = jnp.dot(w2_ref[...], col_ref[...].astype(w2_ref.dtype),
                  preferred_element_type=jnp.float32)        # [C2, HWo]
    acc = acc + cb_ref[...]
    if has_res:
        acc = acc + res_ref[0].astype(jnp.float32)
    o_ref[0] = acc.astype(o_ref.dtype)


def fused_stage(x, conv_p, *, H, W, gn=None, emb=None, pool=False, res=None,
                groups=4, eps=1e-5):
    """One fused TimeAdapter stage.

    x       : [N, C1, H*W] activations (channels on sublanes, flat spatial on lanes).
    conv_p  : {"w2": [C2, 9*round_up(C1,8)] bf16, "b": [C2, 1] f32}   (3x3 conv, pad 1).
    gn      : optional (gamma [C1,1], beta [C1,1]) -> GroupNorm + SiLU before the conv.
    emb     : optional (emb [N, emb_ch, 1], W [C1, emb_ch], b [C1,1]) -> fused
              Linear(SiLU(emb)) per-channel bias added before the GroupNorm.
    pool    : if True, 2x2 average pool (stride 2) between the norm and the conv.
    res     : optional [N, C2, Ho*Wo] residual added to the conv output.
    returns : [N, C2, Ho*Wo]
    """
    N, C1, HW = x.shape
    assert HW == H * W
    w2, cb = conv_p["w2"], conv_p["b"]
    C2 = w2.shape[0]
    C1p = w2.shape[1] // 9
    Ho, Wo = (H // 2, W // 2) if pool else (H, W)
    HWo = Ho * Wo

    args, in_specs = [x], [pl.BlockSpec((1, C1, HW), lambda n: (n, 0, 0))]

    def add_const(a):
        args.append(a)
        in_specs.append(pl.BlockSpec(a.shape, lambda n, nd=a.ndim: (0,) * nd))

    if gn is not None:
        gamma, beta = gn
        m, mT = _group_matrices(C1, groups)
        add_const(gamma); add_const(beta); add_const(m); add_const(mT)
    if emb is not None:
        e_col, we, be = emb
        args.append(e_col)
        in_specs.append(pl.BlockSpec((1,) + e_col.shape[1:], lambda n: (n, 0, 0)))
        add_const(we); add_const(be)
    if pool:
        add_const(_pool_matrix(H, W))
    add_const(_tap_masks(Ho, Wo))
    add_const(w2)
    add_const(cb)
    if res is not None:
        args.append(res)
        in_specs.append(pl.BlockSpec((1, C2, HWo), lambda n: (n, 0, 0)))

    kernel = partial(_fused_stage_kernel, groups=groups, eps=eps, wo=Wo,
                     has_gn=gn is not None, has_emb=emb is not None,
                     has_pool=pool, has_res=res is not None)
    return pl.pallas_call(
        kernel,
        out_shape=jax.ShapeDtypeStruct((N, C2, HWo), x.dtype),
        grid=(N,),
        in_specs=in_specs,
        out_specs=pl.BlockSpec((1, C2, HWo), lambda n: (n, 0, 0)),
        scratch_shapes=[pltpu.VMEM((9 * C1p, HWo), jnp.float32)],
        compiler_params=pltpu.CompilerParams(
            dimension_semantics=("parallel",)),   # megacore split over batch on v7x
    )(*args)


# ----------------------------------------------------------------------------- #
# ResBlock / TimeAdapter forward
# ----------------------------------------------------------------------------- #
def resblock_forward(p, x, emb_col, H, W, groups, down):
    """ResBlock (dropout=0). x: [N, C_in, H*W] -> ([N, C_out, Ho*Wo], Ho, Wo)."""
    # in_layers: GN -> SiLU -> (AvgPool2d(2) if down) -> conv3x3        (1 kernel)
    h = fused_stage(x, p["in_conv"], H=H, W=W,
                    gn=(p["in_norm_g"], p["in_norm_b"]), pool=down, groups=groups)
    Ho, Wo = (H // 2, W // 2) if down else (H, W)
    # h + emb_out ; out_layers: GN -> SiLU -> Dropout(0) -> conv3x3 ; (+x if Identity skip)
    h = fused_stage(h, p["out_conv"], H=Ho, W=Wo,
                    gn=(p["out_norm_g"], p["out_norm_b"]),
                    emb=(emb_col, p["emb_w"], p["emb_b"]),
                    res=None if down else x, groups=groups)
    if down:
        # skip_connection = conv3x3(AvgPool2d(2)(x)); residual add fused into the conv.
        h = fused_stage(x, p["skip_conv"], H=H, W=W, pool=True, res=h, groups=groups)
    return h, Ho, Wo


def time_adapter_forward(params, x_nchw, emb, *, channels, nums_rb, groups):
    N, _, H, W = x_nchw.shape
    x = x_nchw.reshape(N, x_nchw.shape[1], H * W)            # NCHW -> [N, C, H*W] (free)
    emb_col = emb.reshape(emb.shape[0], emb.shape[1], 1)     # [N, emb_ch, 1]
    x = fused_stage(x, params["conv_in"], H=H, W=W, groups=groups)
    features = []
    for i in range(len(channels)):
        for j in range(nums_rb):
            idx = i * nums_rb + j
            down = (i != 0 and j == 0)
            x, H, W = resblock_forward(params["body"][idx], x, emb_col, H, W, groups, down)
        features.append(x.reshape(N, channels[i], H, W))     # NCHW features (free reshape)
    return features


# ----------------------------------------------------------------------------- #
# Deterministic parameter init (shapes follow the module's __init__), kernel layout
# ----------------------------------------------------------------------------- #
def _prep_conv3x3(key, cin, cout, scale=0.05):
    """3x3 conv params in kernel layout: w2 [Cout, 9*round_up(Cin,8)] bf16, b [Cout,1]."""
    kw, kb = jax.random.split(key)
    w = scale * jax.random.normal(kw, (cout, 3, 3, cin), jnp.float32)   # (O, ky, kx, I)
    b = scale * jax.random.normal(kb, (cout,), jnp.float32)
    cin_p = _round_up(cin, 8)
    w2 = jnp.pad(w, ((0, 0), (0, 0), (0, 0), (0, cin_p - cin)))
    w2 = w2.reshape(cout, 9 * cin_p)          # K index = tap * cin_p + cin (matches im2col)
    return {"w2": w2.astype(jnp.bfloat16), "b": b.reshape(cout, 1)}


def init_time_adapter_params(key, cin, channels, nums_rb, emb_ch):
    n_blocks = len(channels) * nums_rb
    keys = iter(jax.random.split(key, 1 + 6 * n_blocks))
    nxt = lambda: next(keys)

    params = {"conv_in": _prep_conv3x3(nxt(), cin, channels[0])}
    body = []
    for i in range(len(channels)):
        for j in range(nums_rb):
            down = (i != 0 and j == 0)
            c_in = channels[i - 1] if down else channels[i]
            c_out = channels[i]
            p = {
                "in_norm_g": jnp.ones((c_in, 1), jnp.float32),
                "in_norm_b": jnp.zeros((c_in, 1), jnp.float32),
                "in_conv": _prep_conv3x3(nxt(), c_in, c_out),
                "emb_w": 0.05 * jax.random.normal(nxt(), (c_out, emb_ch), jnp.float32),
                "emb_b": 0.05 * jax.random.normal(nxt(), (c_out, 1), jnp.float32),
                "out_norm_g": jnp.ones((c_out, 1), jnp.float32),
                "out_norm_b": jnp.zeros((c_out, 1), jnp.float32),
                # zero_module() in PyTorch; small random values here so the kernels do
                # non-trivial work (forward graph semantics unchanged).
                "out_conv": _prep_conv3x3(nxt(), c_out, c_out),
            }
            if down:  # skip_connection = 3x3 conv (use_conv=True, channel change)
                p["skip_conv"] = _prep_conv3x3(nxt(), c_in, c_out)
            body.append(p)
    params["body"] = body
    return params


# ----------------------------------------------------------------------------- #
if __name__ == "__main__":
    # Small synthetic config consistent with TimeAdapter's structure:
    #   channels=[8, 16], nums_rb=2, cin=4, emb_ch=16, GroupNorm groups=4 (32 in ldm).
    N, cin, HS = 2, 4, 16
    channels = [8, 16]
    nums_rb = 2
    emb_ch = 16
    groups = 4

    key = jax.random.PRNGKey(0)
    kx, ke, kp = jax.random.split(key, 3)
    x_nchw = jax.random.normal(kx, (N, cin, HS, HS), jnp.float32)   # PyTorch NCHW input
    emb = jax.random.normal(ke, (N, emb_ch), jnp.float32)
    params = init_time_adapter_params(kp, cin, channels, nums_rb, emb_ch)

    fwd = jax.jit(partial(time_adapter_forward,
                          channels=tuple(channels), nums_rb=nums_rb, groups=groups))
    feats = fwd(params, x_nchw, emb)
    for f in feats:
        jax.block_until_ready(f)
    # expected feature shapes (NCHW): [2, 8, 16, 16], [2, 16, 8, 8]
    print("KERNEL_OK")
</pallas_src>

<mosaic_0001>
module attributes {stable_mosaic.version = 11 : i64} {
  func.func @_fused_stage_kernel(%arg0: i32, %arg1: memref<1x4x256xf32, #tpu.memory_space<vmem>>, %arg2: memref<9x256xf32, #tpu.memory_space<vmem>>, %arg3: memref<8x72xbf16, #tpu.memory_space<vmem>>, %arg4: memref<8x1xf32, #tpu.memory_space<vmem>>, %arg5: memref<1x8x256xf32, #tpu.memory_space<vmem>>, %arg6: memref<72x256xf32, #tpu.memory_space<vmem>>) attributes {dimension_semantics = [#tpu.dimension_semantics<parallel>], iteration_bounds = array<i64: 2>, scalar_prefetch = 0 : i64, scratch_operands = 1 : i64, tpu.core_type = #tpu.core_type<tc>, window_params = [{transform_indices = @transform_0, window_bounds = array<i64: 1, 4, 256>}, {pipeline_mode = #tpu.pipeline_mode<synchronous>, transform_indices = @transform_1, window_bounds = array<i64: 9, 256>}, {pipeline_mode = #tpu.pipeline_mode<synchronous>, transform_indices = @transform_2, window_bounds = array<i64: 8, 72>}, {pipeline_mode = #tpu.pipeline_mode<synchronous>, transform_indices = @transform_3, window_bounds = array<i64: 8, 1>}, {transform_indices = @transform_4, window_bounds = array<i64: 1, 8, 256>}]} {
    %c0 = arith.constant 0 : index
    %c0_0 = arith.constant 0 : index
    %c0_1 = arith.constant 0 : index
    %0 = vector.load %arg1[%c0, %c0_0, %c0_1] : memref<1x4x256xf32, #tpu.memory_space<vmem>>, vector<1x4x256xf32>
    %1 = vector.shape_cast %0 : vector<1x4x256xf32> to vector<4x256xf32>
    %cst = arith.constant 0.000000e+00 : f32
    %2 = vector.broadcast %cst : f32 to vector<72x256xf32>
    %c0_2 = arith.constant 0 : index
    %c0_3 = arith.constant 0 : index
    %3 = vector.load %arg6[%c0_2, %c0_3] : memref<72x256xf32, #tpu.memory_space<vmem>>, vector<72x256xf32>
    tpu.vector_store %arg6[%c0_2, %c0_3], %2 {strides = array<i32>} : memref<72x256xf32, #tpu.memory_space<vmem>>, vector<72x256xf32>,
    %c0_4 = arith.constant 0 : index
    %c0_5 = arith.constant 0 : index
    %4 = vector.load %arg2[%c0_4, %c0_5] : memref<9x256xf32, #tpu.memory_space<vmem>>, vector<9x256xf32>
    %c17_i32 = arith.constant 17 : i32
    %5 = tpu.dynamic_rotate %1 by %c17_i32 dim 1 : vector<4x256xf32>, i32 -> vector<4x256xf32>
    %6 = vector.extract_strided_slice %4 {offsets = [0, 0], sizes = [1, 256], strides = [1, 1]} : vector<9x256xf32> to vector<1x256xf32>
    %7 = vector.broadcast %6 : vector<1x256xf32> to vector<4x256xf32>
    %8 = arith.mulf %5, %7 : vector<4x256xf32>
    %c0_6 = arith.constant 0 : index
    %c0_7 = arith.constant 0 : index
    %9 = vector.load %arg6[%c0_6, %c0_7] : memref<72x256xf32, #tpu.memory_space<vmem>>, vector<4x256xf32>
    tpu.vector_store %arg6[%c0_6, %c0_7], %8 {strides = array<i32>} : memref<72x256xf32, #tpu.memory_space<vmem>>, vector<4x256xf32>,
    %c16_i32 = arith.constant 16 : i32
    %10 = tpu.dynamic_rotate %1 by %c16_i32 dim 1 : vector<4x256xf32>, i32 -> vector<4x256xf32>
    %11 = vector.extract_strided_slice %4 {offsets = [1, 0], sizes = [1, 256], strides = [1, 1]} : vector<9x256xf32> to vector<1x256xf32>
    %12 = vector.broadcast %11 : vector<1x256xf32> to vector<4x256xf32>
    %13 = arith.mulf %10, %12 : vector<4x256xf32>
    %c8 = arith.constant 8 : index
    %c0_8 = arith.constant 0 : index
    %14 = vector.load %arg6[%c8, %c0_8] : memref<72x256xf32, #tpu.memory_space<vmem>>, vector<4x256xf32>
    tpu.vector_store %arg6[%c8, %c0_8], %13 {strides = array<i32>} : memref<72x256xf32, #tpu.memory_space<vmem>>, vector<4x256xf32>,
    %c15_i32 = arith.constant 15 : i32
    %15 = tpu.dynamic_rotate %1 by %c15_i32 dim 1 : vector<4x256xf32>, i32 -> vector<4x256xf32>
    %16 = vector.extract_strided_slice %4 {offsets = [2, 0], sizes = [1, 256], strides = [1, 1]} : vector<9x256xf32> to vector<1x256xf32>
    %17 = vector.broadcast %16 : vector<1x256xf32> to vector<4x256xf32>
    %18 = arith.mulf %15, %17 : vector<4x256xf32>
    %c16 = arith.constant 16 : index
    %c0_9 = arith.constant 0 : index
    %19 = vector.load %arg6[%c16, %c0_9] : memref<72x256xf32, #tpu.memory_space<vmem>>, vector<4x256xf32>
    tpu.vector_store %arg6[%c16, %c0_9], %18 {strides = array<i32>} : memref<72x256xf32, #tpu.memory_space<vmem>>, vector<4x256xf32>,
    %c1_i32 = arith.constant 1 : i32
    %20 = tpu.dynamic_rotate %1 by %c1_i32 dim 1 : vector<4x256xf32>, i32 -> vector<4x256xf32>
    %21 = vector.extract_strided_slice %4 {offsets = [3, 0], sizes = [1, 256], strides = [1, 1]} : vector<9x256xf32> to vector<1x256xf32>
    %22 = vector.broadcast %21 : vector<1x256xf32> to vector<4x256xf32>
    %23 = arith.mulf %20, %22 : vector<4x256xf32>
    %c24 = arith.constant 24 : index
    %c0_10 = arith.constant 0 : index
    %24 = vector.load %arg6[%c24, %c0_10] : memref<72x256xf32, #tpu.memory_space<vmem>>, vector<4x256xf32>
    tpu.vector_store %arg6[%c24, %c0_10], %23 {strides = array<i32>} : memref<72x256xf32, #tpu.memory_space<vmem>>, vector<4x256xf32>,
    %25 = vector.extract_strided_slice %4 {offsets = [4, 0], sizes = [1, 256], strides = [1, 1]} : vector<9x256xf32> to vector<1x256xf32>
    %26 = vector.broadcast %25 : vector<1x256xf32> to vector<4x256xf32>
    %27 = arith.mulf %1, %26 : vector<4x256xf32>
    %c32 = arith.constant 32 : index
    %c0_11 = arith.constant 0 : index
    %28 = vector.load %arg6[%c32, %c0_11] : memref<72x256xf32, #tpu.memory_space<vmem>>, vector<4x256xf32>
    tpu.vector_store %arg6[%c32, %c0_11], %27 {strides = array<i32>} : memref<72x256xf32, #tpu.memory_space<vmem>>, vector<4x256xf32>,
    %c255_i32 = arith.constant 255 : i32
    %29 = tpu.dynamic_rotate %1 by %c255_i32 dim 1 : vector<4x256xf32>, i32 -> vector<4x256xf32>
    %30 = vector.extract_strided_slice %4 {offsets = [5, 0], sizes = [1, 256], strides = [1, 1]} : vector<9x256xf32> to vector<1x256xf32>
    %31 = vector.broadcast %30 : vector<1x256xf32> to vector<4x256xf32>
    %32 = arith.mulf %29, %31 : vector<4x256xf32>
    %c40 = arith.constant 40 : index
    %c0_12 = arith.constant 0 : index
    %33 = vector.load %arg6[%c40, %c0_12] : memref<72x256xf32, #tpu.memory_space<vmem>>, vector<4x256xf32>
    tpu.vector_store %arg6[%c40, %c0_12], %32 {strides = array<i32>} : memref<72x256xf32, #tpu.memory_space<vmem>>, vector<4x256xf32>,
    %c241_i32 = arith.constant 241 : i32
    %34 = tpu.dynamic_rotate %1 by %c241_i32 dim 1 : vector<4x256xf32>, i32 -> vector<4x256xf32>
    %35 = vector.extract_strided_slice %4 {offsets = [6, 0], sizes = [1, 256], strides = [1, 1]} : vector<9x256xf32> to vector<1x256xf32>
    %36 = vector.broadcast %35 : vector<1x256xf32> to vector<4x256xf32>
    %37 = arith.mulf %34, %36 : vector<4x256xf32>
    %c48 = arith.constant 48 : index
    %c0_13 = arith.constant 0 : index
    %38 = vector.load %arg6[%c48, %c0_13] : memref<72x256xf32, #tpu.memory_space<vmem>>, vector<4x256xf32>
    tpu.vector_store %arg6[%c48, %c0_13], %37 {strides = array<i32>} : memref<72x256xf32, #tpu.memory_space<vmem>>, vector<4x256xf32>,
    %c240_i32 = arith.constant 240 : i32
    %39 = tpu.dynamic_rotate %1 by %c240_i32 dim 1 : vector<4x256xf32>, i32 -> vector<4x256xf32>
    %40 = vector.extract_strided_slice %4 {offsets = [7, 0], sizes = [1, 256], strides = [1, 1]} : vector<9x256xf32> to vector<1x256xf32>
    %41 = vector.broadcast %40 : vector<1x256xf32> to vector<4x256xf32>
    %42 = arith.mulf %39, %41 : vector<4x256xf32>
    %c56 = arith.constant 56 : index
    %c0_14 = arith.constant 0 : index
    %43 = vector.load %arg6[%c56, %c0_14] : memref<72x256xf32, #tpu.memory_space<vmem>>, vector<4x256xf32>
    tpu.vector_store %arg6[%c56, %c0_14], %42 {strides = array<i32>} : memref<72x256xf32, #tpu.memory_space<vmem>>, vector<4x256xf32>,
    %c239_i32 = arith.constant 239 : i32
    %44 = tpu.dynamic_rotate %1 by %c239_i32 dim 1 : vector<4x256xf32>, i32 -> vector<4x256xf32>
    %45 = vector.extract_strided_slice %4 {offsets = [8, 0], sizes = [1, 256], strides = [1, 1]} : vector<9x256xf32> to vector<1x256xf32>
    %46 = vector.broadcast %45 : vector<1x256xf32> to vector<4x256xf32>
    %47 = arith.mulf %44, %46 : vector<4x256xf32>
    %c64 = arith.constant 64 : index
    %c0_15 = arith.constant 0 : index
    %48 = vector.load %arg6[%c64, %c0_15] : memref<72x256xf32, #tpu.memory_space<vmem>>, vector<4x256xf32>
    tpu.vector_store %arg6[%c64, %c0_15], %47 {strides = array<i32>} : memref<72x256xf32, #tpu.memory_space<vmem>>, vector<4x256xf32>,
    %c0_16 = arith.constant 0 : index
    %c0_17 = arith.constant 0 : index
    %49 = vector.load %arg3[%c0_16, %c0_17] : memref<8x72xbf16, #tpu.memory_space<vmem>>, vector<8x72xbf16>
    %c0_18 = arith.constant 0 : index
    %c0_19 = arith.constant 0 : index
    %50 = vector.load %arg6[%c0_18, %c0_19] : memref<72x256xf32, #tpu.memory_space<vmem>>, vector<72x256xf32>
    %51 = arith.truncf %50 : vector<72x256xf32> to vector<72x256xbf16>
    %cst_20 = arith.constant dense<0.000000e+00> : vector<8x256xf32>
    %52 = tpu.matmul %49, %51, %cst_20 {dimension_numbers = #tpu.dot_dimension_numbers<[1], [0], [0], [1], [0, 0, 1, 1], [], []>} : vector<8x72xbf16>, vector<72x256xbf16>, vector<8x256xf32> -> vector<8x256xf32>
    %c0_21 = arith.constant 0 : index
    %c0_22 = arith.constant 0 : index
    %53 = vector.load %arg4[%c0_21, %c0_22] : memref<8x1xf32, #tpu.memory_space<vmem>>, vector<8x1xf32>
    %54 = vector.broadcast %53 : vector<8x1xf32> to vector<8x256xf32>
    %55 = arith.addf %52, %54 : vector<8x256xf32>
    %c0_23 = arith.constant 0 : index
    %c0_24 = arith.constant 0 : index
    %c0_25 = arith.constant 0 : index
    %56 = vector.load %arg5[%c0_23, %c0_24, %c0_25] : memref<1x8x256xf32, #tpu.memory_space<vmem>>, vector<1x8x256xf32>
    %57 = vector.shape_cast %56 : vector<1x8x256xf32> to vector<8x256xf32>
    %58 = vector.shape_cast %55 : vector<8x256xf32> to vector<1x8x256xf32>
    tpu.vector_store %arg5[%c0_23, %c0_24, %c0_25], %58 {strides = array<i32>} : memref<1x8x256xf32, #tpu.memory_space<vmem>>, vector<1x8x256xf32>,
    return
  }
  func.func @transform_0(%arg0: i32) -> (i32, i32, i32) {
    %c0_i32 = arith.constant 0 : i32
    %c0_i32_0 = arith.constant 0 : i32
    %c0_i32_1 = arith.constant 0 : i32
    return %arg0, %c0_i32, %c0_i32_0 : i32, i32, i32
  }
  func.func @transform_1(%arg0: i32) -> (i32, i32) {
    %c0_i32 = arith.constant 0 : i32
    %c0_i32_0 = arith.constant 0 : i32
    %c0_i32_1 = arith.constant 0 : i32
    return %c0_i32, %c0_i32_0 : i32, i32
  }
  func.func @transform_2(%arg0: i32) -> (i32, i32) {
    %c0_i32 = arith.constant 0 : i32
    %c0_i32_0 = arith.constant 0 : i32
    %c0_i32_1 = arith.constant 0 : i32
    return %c0_i32, %c0_i32_0 : i32, i32
  }
  func.func @transform_3(%arg0: i32) -> (i32, i32) {
    %c0_i32 = arith.constant 0 : i32
    %c0_i32_0 = arith.constant 0 : i32
    %c0_i32_1 = arith.constant 0 : i32
    return %c0_i32, %c0_i32_0 : i32, i32
  }
  func.func @transform_4(%arg0: i32) -> (i32, i32, i32) {
    %c0_i32 = arith.constant 0 : i32
    %c0_i32_0 = arith.constant 0 : i32
    %c0_i32_1 = arith.constant 0 : i32
    return %arg0, %c0_i32, %c0_i32_0 : i32, i32, i32
  }
}

module attributes {stable_mosaic.version = 11 : i64} {
  func.func @_fused_stage_kernel(%arg0: i32, %arg1: memref<1x8x256xf32, #tpu.memory_space<vmem>>, %arg2: memref<8x1xf32, #tpu.memory_space<vmem>>, %arg3: memref<8x1xf32, #tpu.memory_space<vmem>>, %arg4: memref<8x4xf32, #tpu.memory_space<vmem>>, %arg5: memref<4x8xf32, #tpu.memory_space<vmem>>, %arg6: memref<9x256xf32, #tpu.memory_space<vmem>>, %arg7: memref<8x72xbf16, #tpu.memory_space<vmem>>, %arg8: memref<8x1xf32, #tpu.memory_space<vmem>>, %arg9: memref<1x8x256xf32, #tpu.memory_space<vmem>>, %arg10: memref<72x256xf32, #tpu.memory_space<vmem>>) attributes {dimension_semantics = [#tpu.dimension_semantics<parallel>], iteration_bounds = array<i64: 2>, scalar_prefetch = 0 : i64, scratch_operands = 1 : i64, tpu.core_type = #tpu.core_type<tc>, window_params = [{transform_indices = @transform_0, window_bounds = array<i64: 1, 8, 256>}, {pipeline_mode = #tpu.pipeline_mode<synchronous>, transform_indices = @transform_1, window_bounds = array<i64: 8, 1>}, {pipeline_mode = #tpu.pipeline_mode<synchronous>, transform_indices = @transform_2, window_bounds = array<i64: 8, 1>}, {pipeline_mode = #tpu.pipeline_mode<synchronous>, transform_indices = @transform_3, window_bounds = array<i64: 8, 4>}, {pipeline_mode = #tpu.pipeline_mode<synchronous>, transform_indices = @transform_4, window_bounds = array<i64: 4, 8>}, {pipeline_mode = #tpu.pipeline_mode<synchronous>, transform_indices = @transform_5, window_bounds = array<i64: 9, 256>}, {pipeline_mode = #tpu.pipeline_mode<synchronous>, transform_indices = @transform_6, window_bounds = array<i64: 8, 72>}, {pipeline_mode = #tpu.pipeline_mode<synchronous>, transform_indices = @transform_7, window_bounds = array<i64: 8, 1>}, {transform_indices = @transform_8, window_bounds = array<i64: 1, 8, 256>}]} {
    %c0 = arith.constant 0 : index
    %c0_0 = arith.constant 0 : index
    %c0_1 = arith.constant 0 : index
    %0 = vector.load %arg1[%c0, %c0_0, %c0_1] : memref<1x8x256xf32, #tpu.memory_space<vmem>>, vector<1x8x256xf32>
    %1 = vector.shape_cast %0 : vector<1x8x256xf32> to vector<8x256xf32>
    %c0_2 = arith.constant 0 : index
    %c0_3 = arith.constant 0 : index
    %2 = vector.load %arg4[%c0_2, %c0_3] : memref<8x4xf32, #tpu.memory_space<vmem>>, vector<8x4xf32>
    %c0_4 = arith.constant 0 : index
    %c0_5 = arith.constant 0 : index
    %3 = vector.load %arg5[%c0_4, %c0_5] : memref<4x8xf32, #tpu.memory_space<vmem>>, vector<4x8xf32>
    %cst = arith.constant dense<0.000000e+00> : vector<4x256xf32>
    %4 = tpu.matmul %3, %1, %cst {dimension_numbers = #tpu.dot_dimension_numbers<[1], [0], [0], [1], [0, 0, 1, 1], [], []>} : vector<4x8xf32>, vector<8x256xf32>, vector<4x256xf32> -> vector<4x256xf32>
    %cst_6 = arith.constant dense<0.000000e+00> : vector<4xf32>
    %5 = vector.multi_reduction <add>, %4, %cst_6 [1] : vector<4x256xf32> to vector<4xf32>
    %6 = vector.shape_cast %5 : vector<4xf32> to vector<4x1xf32>
    %cst_7 = arith.constant 5.120000e+02 : f32
    %7 = vector.broadcast %cst_7 : f32 to vector<4x1xf32>
    %8 = arith.divf %6, %7 : vector<4x1xf32>
    %9 = vector.shape_cast %8 : vector<4x1xf32> to vector<4x1xf32>
    %10 = vector.broadcast %9 : vector<4x1xf32> to vector<4x256xf32>
    %cst_8 = arith.constant dense<0.000000e+00> : vector<8x256xf32>
    %11 = tpu.matmul %2, %10, %cst_8 {dimension_numbers = #tpu.dot_dimension_numbers<[1], [0], [0], [1], [0, 0, 1, 1], [], []>} : vector<8x4xf32>, vector<4x256xf32>, vector<8x256xf32> -> vector<8x256xf32>
    %12 = arith.subf %1, %11 : vector<8x256xf32>
    %13 = arith.mulf %12, %12 : vector<8x256xf32>
    %cst_9 = arith.constant dense<0.000000e+00> : vector<4x256xf32>
    %14 = tpu.matmul %3, %13, %cst_9 {dimension_numbers = #tpu.dot_dimension_numbers<[1], [0], [0], [1], [0, 0, 1, 1], [], []>} : vector<4x8xf32>, vector<8x256xf32>, vector<4x256xf32> -> vector<4x256xf32>
    %cst_10 = arith.constant dense<0.000000e+00> : vector<4xf32>
    %15 = vector.multi_reduction <add>, %14, %cst_10 [1] : vector<4x256xf32> to vector<4xf32>
    %16 = vector.shape_cast %15 : vector<4xf32> to vector<4x1xf32>
    %cst_11 = arith.constant 5.120000e+02 : f32
    %17 = vector.broadcast %cst_11 : f32 to vector<4x1xf32>
    %18 = arith.divf %16, %17 : vector<4x1xf32>
    %cst_12 = arith.constant 9.99999974E-6 : f32
    %19 = vector.broadcast %cst_12 : f32 to vector<4x1xf32>
    %20 = arith.addf %18, %19 : vector<4x1xf32>
    %21 = math.rsqrt %20 : vector<4x1xf32>
    %22 = vector.shape_cast %21 : vector<4x1xf32> to vector<4x1xf32>
    %23 = vector.broadcast %22 : vector<4x1xf32> to vector<4x256xf32>
    %cst_13 = arith.constant dense<0.000000e+00> : vector<8x256xf32>
    %24 = tpu.matmul %2, %23, %cst_13 {dimension_numbers = #tpu.dot_dimension_numbers<[1], [0], [0], [1], [0, 0, 1, 1], [], []>} : vector<8x4xf32>, vector<4x256xf32>, vector<8x256xf32> -> vector<8x256xf32>
    %25 = arith.mulf %12, %24 : vector<8x256xf32>
    %c0_14 = arith.constant 0 : index
    %c0_15 = arith.constant 0 : index
    %26 = vector.load %arg2[%c0_14, %c0_15] : memref<8x1xf32, #tpu.memory_space<vmem>>, vector<8x1xf32>
    %27 = vector.broadcast %26 : vector<8x1xf32> to vector<8x256xf32>
    %28 = arith.mulf %25, %27 : vector<8x256xf32>
    %c0_16 = arith.constant 0 : index
    %c0_17 = arith.constant 0 : index
    %29 = vector.load %arg3[%c0_16, %c0_17] : memref<8x1xf32, #tpu.memory_space<vmem>>, vector<8x1xf32>
    %30 = vector.broadcast %29 : vector<8x1xf32> to vector<8x256xf32>
    %31 = arith.addf %28, %30 : vector<8x256xf32>
    %32 = arith.negf %31 : vector<8x256xf32>
    %33 = math.exp %32 : vector<8x256xf32>
    %cst_18 = arith.constant 1.000000e+00 : f32
    %34 = vector.broadcast %cst_18 : f32 to vector<8x256xf32>
    %35 = arith.addf %34, %33 : vector<8x256xf32>
    %36 = arith.divf %34, %35 : vector<8x256xf32>
    %37 = arith.mulf %31, %36 : vector<8x256xf32>
    %c0_19 = arith.constant 0 : index
    %c0_20 = arith.constant 0 : index
    %38 = vector.load %arg6[%c0_19, %c0_20] : memref<9x256xf32, #tpu.memory_space<vmem>>, vector<9x256xf32>
    %c17_i32 = arith.constant 17 : i32
    %39 = tpu.dynamic_rotate %37 by %c17_i32 dim 1 : vector<8x256xf32>, i32 -> vector<8x256xf32>
    %40 = vector.extract_strided_slice %38 {offsets = [0, 0], sizes = [1, 256], strides = [1, 1]} : vector<9x256xf32> to vector<1x256xf32>
    %41 = vector.broadcast %40 : vector<1x256xf32> to vector<8x256xf32>
    %42 = arith.mulf %39, %41 : vector<8x256xf32>
    %c0_21 = arith.constant 0 : index
    %c0_22 = arith.constant 0 : index
    %43 = vector.load %arg10[%c0_21, %c0_22] : memref<72x256xf32, #tpu.memory_space<vmem>>, vector<8x256xf32>
    tpu.vector_store %arg10[%c0_21, %c0_22], %42 {strides = array<i32>} : memref<72x256xf32, #tpu.memory_space<vmem>>, vector<8x256xf32>,
    %c16_i32 = arith.constant 16 : i32
    %44 = tpu.dynamic_rotate %37 by %c16_i32 dim 1 : vector<8x256xf32>, i32 -> vector<8x256xf32>
    %45 = vector.extract_strided_slice %38 {offsets = [1, 0], sizes = [1, 256], strides = [1, 1]} : vector<9x256xf32> to vector<1x256xf32>
    %46 = vector.broadcast %45 : vector<1x256xf32> to vector<8x256xf32>
    %47 = arith.mulf %44, %46 : vector<8x256xf32>
    %c8 = arith.constant 8 : index
    %c0_23 = arith.constant 0 : index
    %48 = vector.load %arg10[%c8, %c0_23] : memref<72x256xf32, #tpu.memory_space<vmem>>, vector<8x256xf32>
    tpu.vector_store %arg10[%c8, %c0_23], %47 {strides = array<i32>} : memref<72x256xf32, #tpu.memory_space<vmem>>, vector<8x256xf32>,
    %c15_i32 = arith.constant 15 : i32
    %49 = tpu.dynamic_rotate %37 by %c15_i32 dim 1 : vector<8x256xf32>, i32 -> vector<8x256xf32>
    %50 = vector.extract_strided_slice %38 {offsets = [2, 0], sizes = [1, 256], strides = [1, 1]} : vector<9x256xf32> to vector<1x256xf32>
    %51 = vector.broadcast %50 : vector<1x256xf32> to vector<8x256xf32>
    %52 = arith.mulf %49, %51 : vector<8x256xf32>
    %c16 = arith.constant 16 : index
    %c0_24 = arith.constant 0 : index
    %53 = vector.load %arg10[%c16, %c0_24] : memref<72x256xf32, #tpu.memory_space<vmem>>, vector<8x256xf32>
    tpu.vector_store %arg10[%c16, %c0_24], %52 {strides = array<i32>} : memref<72x256xf32, #tpu.memory_space<vmem>>, vector<8x256xf32>,
    %c1_i32 = arith.constant 1 : i32
    %54 = tpu.dynamic_rotate %37 by %c1_i32 dim 1 : vector<8x256xf32>, i32 -> vector<8x256xf32>
    %55 = vector.extract_strided_slice %38 {offsets = [3, 0], sizes = [1, 256], strides = [1, 1]} : vector<9x256xf32> to vector<1x256xf32>
    %56 = vector.broadcast %55 : vector<1x256xf32> to vector<8x256xf32>
    %57 = arith.mulf %54, %56 : vector<8x256xf32>
    %c24 = arith.constant 24 : index
    %c0_25 = arith.constant 0 : index
    %58 = vector.load %arg10[%c24, %c0_25] : memref<72x256xf32, #tpu.memory_space<vmem>>, vector<8x256xf32>
    tpu.vector_store %arg10[%c24, %c0_25], %57 {strides = array<i32>} : memref<72x256xf32, #tpu.memory_space<vmem>>, vector<8x256xf32>,
    %59 = vector.extract_strided_slice %38 {offsets = [4, 0], sizes = [1, 256], strides = [1, 1]} : vector<9x256xf32> to vector<1x256xf32>
    %60 = vector.broadcast %59 : vector<1x256xf32> to vector<8x256xf32>
    %61 = arith.mulf %37, %60 : vector<8x256xf32>
    %c32 = arith.constant 32 : index
    %c0_26 = arith.constant 0 : index
    %62 = vector.load %arg10[%c32, %c0_26] : memref<72x256xf32, #tpu.memory_space<vmem>>, vector<8x256xf32>
    tpu.vector_store %arg10[%c32, %c0_26], %61 {strides = array<i32>} : memref<72x256xf32, #tpu.memory_space<vmem>>, vector<8x256xf32>,
    %c255_i32 = arith.constant 255 : i32
    %63 = tpu.dynamic_rotate %37 by %c255_i32 dim 1 : vector<8x256xf32>, i32 -> vector<8x256xf32>
    %64 = vector.extract_strided_slice %38 {offsets = [5, 0], sizes = [1, 256], strides = [1, 1]} : vector<9x256xf32> to vector<1x256xf32>
    %65 = vector.broadcast %64 : vector<1x256xf32> to vector<8x256xf32>
    %66 = arith.mulf %63, %65 : vector<8x256xf32>
    %c40 = arith.constant 40 : index
    %c0_27 = arith.constant 0 : index
    %67 = vector.load %arg10[%c40, %c0_27] : memref<72x256xf32, #tpu.memory_space<vmem>>, vector<8x256xf32>
    tpu.vector_store %arg10[%c40, %c0_27], %66 {strides = array<i32>} : memref<72x256xf32, #tpu.memory_space<vmem>>, vector<8x256xf32>,
    %c241_i32 = arith.constant 241 : i32
    %68 = tpu.dynamic_rotate %37 by %c241_i32 dim 1 : vector<8x256xf32>, i32 -> vector<8x256xf32>
    %69 = vector.extract_strided_slice %38 {offsets = [6, 0], sizes = [1, 256], strides = [1, 1]} : vector<9x256xf32> to vector<1x256xf32>
    %70 = vector.broadcast %69 : vector<1x256xf32> to vector<8x256xf32>
    %71 = arith.mulf %68, %70 : vector<8x256xf32>
    %c48 = arith.constant 48 : index
    %c0_28 = arith.constant 0 : index
    %72 = vector.load %arg10[%c48, %c0_28] : memref<72x256xf32, #tpu.memory_space<vmem>>, vector<8x256xf32>
    tpu.vector_store %arg10[%c48, %c0_28], %71 {strides = array<i32>} : memref<72x256xf32, #tpu.memory_space<vmem>>, vector<8x256xf32>,
    %c240_i32 = arith.constant 240 : i32
    %73 = tpu.dynamic_rotate %37 by %c240_i32 dim 1 : vector<8x256xf32>, i32 -> vector<8x256xf32>
    %74 = vector.extract_strided_slice %38 {offsets = [7, 0], sizes = [1, 256], strides = [1, 1]} : vector<9x256xf32> to vector<1x256xf32>
    %75 = vector.broadcast %74 : vector<1x256xf32> to vector<8x256xf32>
    %76 = arith.mulf %73, %75 : vector<8x256xf32>
    %c56 = arith.constant 56 : index
    %c0_29 = arith.constant 0 : index
    %77 = vector.load %arg10[%c56, %c0_29] : memref<72x256xf32, #tpu.memory_space<vmem>>, vector<8x256xf32>
    tpu.vector_store %arg10[%c56, %c0_29], %76 {strides = array<i32>} : memref<72x256xf32, #tpu.memory_space<vmem>>, vector<8x256xf32>,
    %c239_i32 = arith.constant 239 : i32
    %78 = tpu.dynamic_rotate %37 by %c239_i32 dim 1 : vector<8x256xf32>, i32 -> vector<8x256xf32>
    %79 = vector.extract_strided_slice %38 {offsets = [8, 0], sizes = [1, 256], strides = [1, 1]} : vector<9x256xf32> to vector<1x256xf32>
    %80 = vector.broadcast %79 : vector<1x256xf32> to vector<8x256xf32>
    %81 = arith.mulf %78, %80 : vector<8x256xf32>
    %c64 = arith.constant 64 : index
    %c0_30 = arith.constant 0 : index
    %82 = vector.load %arg10[%c64, %c0_30] : memref<72x256xf32, #tpu.memory_space<vmem>>, vector<8x256xf32>
    tpu.vector_store %arg10[%c64, %c0_30], %81 {strides = array<i32>} : memref<72x256xf32, #tpu.memory_space<vmem>>, vector<8x256xf32>,
    %c0_31 = arith.constant 0 : index
    %c0_32 = arith.constant 0 : index
    %83 = vector.load %arg7[%c0_31, %c0_32] : memref<8x72xbf16, #tpu.memory_space<vmem>>, vector<8x72xbf16>
    %c0_33 = arith.constant 0 : index
    %c0_34 = arith.constant 0 : index
    %84 = vector.load %arg10[%c0_33, %c0_34] : memref<72x256xf32, #tpu.memory_space<vmem>>, vector<72x256xf32>
    %85 = arith.truncf %84 : vector<72x256xf32> to vector<72x256xbf16>
    %cst_35 = arith.constant dense<0.000000e+00> : vector<8x256xf32>
    %86 = tpu.matmul %83, %85, %cst_35 {dimension_numbers = #tpu.dot_dimension_numbers<[1], [0], [0], [1], [0, 0, 1, 1], [], []>} : vector<8x72xbf16>, vector<72x256xbf16>, vector<8x256xf32> -> vector<8x256xf32>
    %c0_36 = arith.constant 0 : index
    %c0_37 = arith.constant 0 : index
    %87 = vector.load %arg8[%c0_36, %c0_37] : memref<8x1xf32, #tpu.memory_space<vmem>>, vector<8x1xf32>
    %88 = vector.broadcast %87 : vector<8x1xf32> to vector<8x256xf32>
    %89 = arith.addf %86, %88 : vector<8x256xf32>
    %c0_38 = arith.constant 0 : index
    %c0_39 = arith.constant 0 : index
    %c0_40 = arith.constant 0 : index
    %90 = vector.load %arg9[%c0_38, %c0_39, %c0_40] : memref<1x8x256xf32, #tpu.memory_space<vmem>>, vector<1x8x256xf32>
    %91 = vector.shape_cast %90 : vector<1x8x256xf32> to vector<8x256xf32>
    %92 = vector.shape_cast %89 : vector<8x256xf32> to vector<1x8x256xf32>
    tpu.vector_store %arg9[%c0_38, %c0_39, %c0_40], %92 {strides = array<i32>} : memref<1x8x256xf32, #tpu.memory_space<vmem>>, vector<1x8x256xf32>,
    return
  }
  func.func @transform_0(%arg0: i32) -> (i32, i32, i32) {
    %c0_i32 = arith.constant 0 : i32
    %c0_i32_0 = arith.constant 0 : i32
    %c0_i32_1 = arith.constant 0 : i32
    return %arg0, %c0_i32, %c0_i32_0 : i32, i32, i32
  }
  func.func @transform_1(%arg0: i32) -> (i32, i32) {
    %c0_i32 = arith.constant 0 : i32
    %c0_i32_0 = arith.constant 0 : i32
    %c0_i32_1 = arith.constant 0 : i32
    return %c0_i32, %c0_i32_0 : i32, i32
  }
  func.func @transform_2(%arg0: i32) -> (i32, i32) {
    %c0_i32 = arith.constant 0 : i32
    %c0_i32_0 = arith.constant 0 : i32
    %c0_i32_1 = arith.constant 0 : i32
    return %c0_i32, %c0_i32_0 : i32, i32
  }
  func.func @transform_3(%arg0: i32) -> (i32, i32) {
    %c0_i32 = arith.constant 0 : i32
    %c0_i32_0 = arith.constant 0 : i32
    %c0_i32_1 = arith.constant 0 : i32
    return %c0_i32, %c0_i32_0 : i32, i32
  }
  func.func @transform_4(%arg0: i32) -> (i32, i32) {
    %c0_i32 = arith.constant 0 : i32
    %c0_i32_0 = arith.constant 0 : i32
    %c0_i32_1 = arith.constant 0 : i32
    return %c0_i32, %c0_i32_0 : i32, i32
  }
  func.func @transform_5(%arg0: i32) -> (i32, i32) {
    %c0_i32 = arith.constant 0 : i32
    %c0_i32_0 = arith.constant 0 : i32
    %c0_i32_1 = arith.constant 0 : i32
    return %c0_i32, %c0_i32_0 : i32, i32
  }
  func.func @transform_6(%arg0: i32) -> (i32, i32) {
    %c0_i32 = arith.constant 0 : i32
    %c0_i32_0 = arith.constant 0 : i32
    %c0_i32_1 = arith.constant 0 : i32
    return %c0_i32, %c0_i32_0 : i32, i32
  }
  func.func @transform_7(%arg0: i32) -> (i32, i32) {
    %c0_i32 = arith.constant 0 : i32
    %c0_i32_0 = arith.constant 0 : i32
    %c0_i32_1 = arith.constant 0 : i32
    return %c0_i32, %c0_i32_0 : i32, i32
  }
  func.func @transform_8(%arg0: i32) -> (i32, i32, i32) {
    %c0_i32 = arith.constant 0 : i32
    %c0_i32_0 = arith.constant 0 : i32
    %c0_i32_1 = arith.constant 0 : i32
    return %arg0, %c0_i32, %c0_i32_0 : i32, i32, i32
  }
}

module attributes {stable_mosaic.version = 11 : i64} {
  func.func @_fused_stage_kernel(%arg0: i32, %arg1: memref<1x8x256xf32, #tpu.memory_space<vmem>>, %arg2: memref<8x1xf32, #tpu.memory_space<vmem>>, %arg3: memref<8x1xf32, #tpu.memory_space<vmem>>, %arg4: memref<8x4xf32, #tpu.memory_space<vmem>>, %arg5: memref<4x8xf32, #tpu.memory_space<vmem>>, %arg6: memref<1x16x1xf32, #tpu.memory_space<vmem>>, %arg7: memref<8x16xf32, #tpu.memory_space<vmem>>, %arg8: memref<8x1xf32, #tpu.memory_space<vmem>>, %arg9: memref<9x256xf32, #tpu.memory_space<vmem>>, %arg10: memref<8x72xbf16, #tpu.memory_space<vmem>>, %arg11: memref<8x1xf32, #tpu.memory_space<vmem>>, %arg12: memref<1x8x256xf32, #tpu.memory_space<vmem>>, %arg13: memref<1x8x256xf32, #tpu.memory_space<vmem>>, %arg14: memref<72x256xf32, #tpu.memory_space<vmem>>) attributes {dimension_semantics = [#tpu.dimension_semantics<parallel>], iteration_bounds = array<i64: 2>, scalar_prefetch = 0 : i64, scratch_operands = 1 : i64, tpu.core_type = #tpu.core_type<tc>, window_params = [{transform_indices = @transform_0, window_bounds = array<i64: 1, 8, 256>}, {pipeline_mode = #tpu.pipeline_mode<synchronous>, transform_indices = @transform_1, window_bounds = array<i64: 8, 1>}, {pipeline_mode = #tpu.pipeline_mode<synchronous>, transform_indices = @transform_2, window_bounds = array<i64: 8, 1>}, {pipeline_mode = #tpu.pipeline_mode<synchronous>, transform_indices = @transform_3, window_bounds = array<i64: 8, 4>}, {pipeline_mode = #tpu.pipeline_mode<synchronous>, transform_indices = @transform_4, window_bounds = array<i64: 4, 8>}, {transform_indices = @transform_5, window_bounds = array<i64: 1, 16, 1>}, {pipeline_mode = #tpu.pipeline_mode<synchronous>, transform_indices = @transform_6, window_bounds = array<i64: 8, 16>}, {pipeline_mode = #tpu.pipeline_mode<synchronous>, transform_indices = @transform_7, window_bounds = array<i64: 8, 1>}, {pipeline_mode = #tpu.pipeline_mode<synchronous>, transform_indices = @transform_8, window_bounds = array<i64: 9, 256>}, {pipeline_mode = #tpu.pipeline_mode<synchronous>, transform_indices = @transform_9, window_bounds = array<i64: 8, 72>}, {pipeline_mode = #tpu.pipeline_mode<synchronous>, transform_indices = @transform_10, window_bounds = array<i64: 8, 1>}, {transform_indices = @transform_11, window_bounds = array<i64: 1, 8, 256>}, {transform_indices = @transform_12, window_bounds = array<i64: 1, 8, 256>}]} {
    %c0 = arith.constant 0 : index
    %c0_0 = arith.constant 0 : index
    %c0_1 = arith.constant 0 : index
    %0 = vector.load %arg1[%c0, %c0_0, %c0_1] : memref<1x8x256xf32, #tpu.memory_space<vmem>>, vector<1x8x256xf32>
    %1 = vector.shape_cast %0 : vector<1x8x256xf32> to vector<8x256xf32>
    %c0_2 = arith.constant 0 : index
    %c0_3 = arith.constant 0 : index
    %c0_4 = arith.constant 0 : index
    %2 = vector.load %arg6[%c0_2, %c0_3, %c0_4] : memref<1x16x1xf32, #tpu.memory_space<vmem>>, vector<1x16x1xf32>
    %3 = vector.shape_cast %2 : vector<1x16x1xf32> to vector<16x1xf32>
    %4 = arith.negf %3 : vector<16x1xf32>
    %5 = math.exp %4 : vector<16x1xf32>
    %cst = arith.constant 1.000000e+00 : f32
    %6 = vector.broadcast %cst : f32 to vector<16x1xf32>
    %7 = arith.addf %6, %5 : vector<16x1xf32>
    %8 = arith.divf %6, %7 : vector<16x1xf32>
    %9 = arith.mulf %3, %8 : vector<16x1xf32>
    %10 = vector.shape_cast %9 : vector<16x1xf32> to vector<16x1xf32>
    %11 = vector.broadcast %10 : vector<16x1xf32> to vector<16x256xf32>
    %c0_5 = arith.constant 0 : index
    %c0_6 = arith.constant 0 : index
    %12 = vector.load %arg7[%c0_5, %c0_6] : memref<8x16xf32, #tpu.memory_space<vmem>>, vector<8x16xf32>
    %cst_7 = arith.constant dense<0.000000e+00> : vector<8x256xf32>
    %13 = tpu.matmul %12, %11, %cst_7 {dimension_numbers = #tpu.dot_dimension_numbers<[1], [0], [0], [1], [0, 0, 1, 1], [], []>} : vector<8x16xf32>, vector<16x256xf32>, vector<8x256xf32> -> vector<8x256xf32>
    %14 = arith.addf %1, %13 : vector<8x256xf32>
    %c0_8 = arith.constant 0 : index
    %c0_9 = arith.constant 0 : index
    %15 = vector.load %arg8[%c0_8, %c0_9] : memref<8x1xf32, #tpu.memory_space<vmem>>, vector<8x1xf32>
    %16 = vector.broadcast %15 : vector<8x1xf32> to vector<8x256xf32>
    %17 = arith.addf %14, %16 : vector<8x256xf32>
    %c0_10 = arith.constant 0 : index
    %c0_11 = arith.constant 0 : index
    %18 = vector.load %arg4[%c0_10, %c0_11] : memref<8x4xf32, #tpu.memory_space<vmem>>, vector<8x4xf32>
    %c0_12 = arith.constant 0 : index
    %c0_13 = arith.constant 0 : index
    %19 = vector.load %arg5[%c0_12, %c0_13] : memref<4x8xf32, #tpu.memory_space<vmem>>, vector<4x8xf32>
    %cst_14 = arith.constant dense<0.000000e+00> : vector<4x256xf32>
    %20 = tpu.matmul %19, %17, %cst_14 {dimension_numbers = #tpu.dot_dimension_numbers<[1], [0], [0], [1], [0, 0, 1, 1], [], []>} : vector<4x8xf32>, vector<8x256xf32>, vector<4x256xf32> -> vector<4x256xf32>
    %cst_15 = arith.constant dense<0.000000e+00> : vector<4xf32>
    %21 = vector.multi_reduction <add>, %20, %cst_15 [1] : vector<4x256xf32> to vector<4xf32>
    %22 = vector.shape_cast %21 : vector<4xf32> to vector<4x1xf32>
    %cst_16 = arith.constant 5.120000e+02 : f32
    %23 = vector.broadcast %cst_16 : f32 to vector<4x1xf32>
    %24 = arith.divf %22, %23 : vector<4x1xf32>
    %25 = vector.shape_cast %24 : vector<4x1xf32> to vector<4x1xf32>
    %26 = vector.broadcast %25 : vector<4x1xf32> to vector<4x256xf32>
    %cst_17 = arith.constant dense<0.000000e+00> : vector<8x256xf32>
    %27 = tpu.matmul %18, %26, %cst_17 {dimension_numbers = #tpu.dot_dimension_numbers<[1], [0], [0], [1], [0, 0, 1, 1], [], []>} : vector<8x4xf32>, vector<4x256xf32>, vector<8x256xf32> -> vector<8x256xf32>
    %28 = arith.subf %17, %27 : vector<8x256xf32>
    %29 = arith.mulf %28, %28 : vector<8x256xf32>
    %cst_18 = arith.constant dense<0.000000e+00> : vector<4x256xf32>
    %30 = tpu.matmul %19, %29, %cst_18 {dimension_numbers = #tpu.dot_dimension_numbers<[1], [0], [0], [1], [0, 0, 1, 1], [], []>} : vector<4x8xf32>, vector<8x256xf32>, vector<4x256xf32> -> vector<4x256xf32>
    %cst_19 = arith.constant dense<0.000000e+00> : vector<4xf32>
    %31 = vector.multi_reduction <add>, %30, %cst_19 [1] : vector<4x256xf32> to vector<4xf32>
    %32 = vector.shape_cast %31 : vector<4xf32> to vector<4x1xf32>
    %cst_20 = arith.constant 5.120000e+02 : f32
    %33 = vector.broadcast %cst_20 : f32 to vector<4x1xf32>
    %34 = arith.divf %32, %33 : vector<4x1xf32>
    %cst_21 = arith.constant 9.99999974E-6 : f32
    %35 = vector.broadcast %cst_21 : f32 to vector<4x1xf32>
    %36 = arith.addf %34, %35 : vector<4x1xf32>
    %37 = math.rsqrt %36 : vector<4x1xf32>
    %38 = vector.shape_cast %37 : vector<4x1xf32> to vector<4x1xf32>
    %39 = vector.broadcast %38 : vector<4x1xf32> to vector<4x256xf32>
    %cst_22 = arith.constant dense<0.000000e+00> : vector<8x256xf32>
    %40 = tpu.matmul %18, %39, %cst_22 {dimension_numbers = #tpu.dot_dimension_numbers<[1], [0], [0], [1], [0, 0, 1, 1], [], []>} : vector<8x4xf32>, vector<4x256xf32>, vector<8x256xf32> -> vector<8x256xf32>
    %41 = arith.mulf %28, %40 : vector<8x256xf32>
    %c0_23 = arith.constant 0 : index
    %c0_24 = arith.constant 0 : index
    %42 = vector.load %arg2[%c0_23, %c0_24] : memref<8x1xf32, #tpu.memory_space<vmem>>, vector<8x1xf32>
    %43 = vector.broadcast %42 : vector<8x1xf32> to vector<8x256xf32>
    %44 = arith.mulf %41, %43 : vector<8x256xf32>
    %c0_25 = arith.constant 0 : index
    %c0_26 = arith.constant 0 : index
    %45 = vector.load %arg3[%c0_25, %c0_26] : memref<8x1xf32, #tpu.memory_space<vmem>>, vector<8x1xf32>
    %46 = vector.broadcast %45 : vector<8x1xf32> to vector<8x256xf32>
    %47 = arith.addf %44, %46 : vector<8x256xf32>
    %48 = arith.negf %47 : vector<8x256xf32>
    %49 = math.exp %48 : vector<8x256xf32>
    %cst_27 = arith.constant 1.000000e+00 : f32
    %50 = vector.broadcast %cst_27 : f32 to vector<8x256xf32>
    %51 = arith.addf %50, %49 : vector<8x256xf32>
    %52 = arith.divf %50, %51 : vector<8x256xf32>
    %53 = arith.mulf %47, %52 : vector<8x256xf32>
    %c0_28 = arith.constant 0 : index
    %c0_29 = arith.constant 0 : index
    %54 = vector.load %arg9[%c0_28, %c0_29] : memref<9x256xf32, #tpu.memory_space<vmem>>, vector<9x256xf32>
    %c17_i32 = arith.constant 17 : i32
    %55 = tpu.dynamic_rotate %53 by %c17_i32 dim 1 : vector<8x256xf32>, i32 -> vector<8x256xf32>
    %56 = vector.extract_strided_slice %54 {offsets = [0, 0], sizes = [1, 256], strides = [1, 1]} : vector<9x256xf32> to vector<1x256xf32>
    %57 = vector.broadcast %56 : vector<1x256xf32> to vector<8x256xf32>
    %58 = arith.mulf %55, %57 : vector<8x256xf32>
    %c0_30 = arith.constant 0 : index
    %c0_31 = arith.constant 0 : index
    %59 = vector.load %arg14[%c0_30, %c0_31] : memref<72x256xf32, #tpu.memory_space<vmem>>, vector<8x256xf32>
    tpu.vector_store %arg14[%c0_30, %c0_31], %58 {strides = array<i32>} : memref<72x256xf32, #tpu.memory_space<vmem>>, vector<8x256xf32>,
    %c16_i32 = arith.constant 16 : i32
    %60 = tpu.dynamic_rotate %53 by %c16_i32 dim 1 : vector<8x256xf32>, i32 -> vector<8x256xf32>
    %61 = vector.extract_strided_slice %54 {offsets = [1, 0], sizes = [1, 256], strides = [1, 1]} : vector<9x256xf32> to vector<1x256xf32>
    %62 = vector.broadcast %61 : vector<1x256xf32> to vector<8x256xf32>
    %63 = arith.mulf %60, %62 : vector<8x256xf32>
    %c8 = arith.constant 8 : index
    %c0_32 = arith.constant 0 : index
    %64 = vector.load %arg14[%c8, %c0_32] : memref<72x256xf32, #tpu.memory_space<vmem>>, vector<8x256xf32>
    tpu.vector_store %arg14[%c8, %c0_32], %63 {strides = array<i32>} : memref<72x256xf32, #tpu.memory_space<vmem>>, vector<8x256xf32>,
    %c15_i32 = arith.constant 15 : i32
    %65 = tpu.dynamic_rotate %53 by %c15_i32 dim 1 : vector<8x256xf32>, i32 -> vector<8x256xf32>
    %66 = vector.extract_strided_slice %54 {offsets = [2, 0], sizes = [1, 256], strides = [1, 1]} : vector<9x256xf32> to vector<1x256xf32>
    %67 = vector.broadcast %66 : vector<1x256xf32> to vector<8x256xf32>
    %68 = arith.mulf %65, %67 : vector<8x256xf32>
    %c16 = arith.constant 16 : index
    %c0_33 = arith.constant 0 : index
    %69 = vector.load %arg14[%c16, %c0_33] : memref<72x256xf32, #tpu.memory_space<vmem>>, vector<8x256xf32>
    tpu.vector_store %arg14[%c16, %c0_33], %68 {strides = array<i32>} : memref<72x256xf32, #tpu.memory_space<vmem>>, vector<8x256xf32>,
    %c1_i32 = arith.constant 1 : i32
    %70 = tpu.dynamic_rotate %53 by %c1_i32 dim 1 : vector<8x256xf32>, i32 -> vector<8x256xf32>
    %71 = vector.extract_strided_slice %54 {offsets = [3, 0], sizes = [1, 256], strides = [1, 1]} : vector<9x256xf32> to vector<1x256xf32>
    %72 = vector.broadcast %71 : vector<1x256xf32> to vector<8x256xf32>
    %73 = arith.mulf %70, %72 : vector<8x256xf32>
    %c24 = arith.constant 24 : index
    %c0_34 = arith.constant 0 : index
    %74 = vector.load %arg14[%c24, %c0_34] : memref<72x256xf32, #tpu.memory_space<vmem>>, vector<8x256xf32>
    tpu.vector_store %arg14[%c24, %c0_34], %73 {strides = array<i32>} : memref<72x256xf32, #tpu.memory_space<vmem>>, vector<8x256xf32>,
    %75 = vector.extract_strided_slice %54 {offsets = [4, 0], sizes = [1, 256], strides = [1, 1]} : vector<9x256xf32> to vector<1x256xf32>
    %76 = vector.broadcast %75 : vector<1x256xf32> to vector<8x256xf32>
    %77 = arith.mulf %53, %76 : vector<8x256xf32>
    %c32 = arith.constant 32 : index
    %c0_35 = arith.constant 0 : index
    %78 = vector.load %arg14[%c32, %c0_35] : memref<72x256xf32, #tpu.memory_space<vmem>>, vector<8x256xf32>
    tpu.vector_store %arg14[%c32, %c0_35], %77 {strides = array<i32>} : memref<72x256xf32, #tpu.memory_space<vmem>>, vector<8x256xf32>,
    %c255_i32 = arith.constant 255 : i32
    %79 = tpu.dynamic_rotate %53 by %c255_i32 dim 1 : vector<8x256xf32>, i32 -> vector<8x256xf32>
    %80 = vector.extract_strided_slice %54 {offsets = [5, 0], sizes = [1, 256], strides = [1, 1]} : vector<9x256xf32> to vector<1x256xf32>
    %81 = vector.broadcast %80 : vector<1x256xf32> to vector<8x256xf32>
    %82 = arith.mulf %79, %81 : vector<8x256xf32>
    %c40 = arith.constant 40 : index
    %c0_36 = arith.constant 0 : index
    %83 = vector.load %arg14[%c40, %c0_36] : memref<72x256xf32, #tpu.memory_space<vmem>>, vector<8x256xf32>
    tpu.vector_store %arg14[%c40, %c0_36], %82 {strides = array<i32>} : memref<72x256xf32, #tpu.memory_space<vmem>>, vector<8x256xf32>,
    %c241_i32 = arith.constant 241 : i32
    %84 = tpu.dynamic_rotate %53 by %c241_i32 dim 1 : vector<8x256xf32>, i32 -> vector<8x256xf32>
    %85 = vector.extract_strided_slice %54 {offsets = [6, 0], sizes = [1, 256], strides = [1, 1]} : vector<9x256xf32> to vector<1x256xf32>
    %86 = vector.broadcast %85 : vector<1x256xf32> to vector<8x256xf32>
    %87 = arith.mulf %84, %86 : vector<8x256xf32>
    %c48 = arith.constant 48 : index
    %c0_37 = arith.constant 0 : index
    %88 = vector.load %arg14[%c48, %c0_37] : memref<72x256xf32, #tpu.memory_space<vmem>>, vector<8x256xf32>
    tpu.vector_store %arg14[%c48, %c0_37], %87 {strides = array<i32>} : memref<72x256xf32, #tpu.memory_space<vmem>>, vector<8x256xf32>,
    %c240_i32 = arith.constant 240 : i32
    %89 = tpu.dynamic_rotate %53 by %c240_i32 dim 1 : vector<8x256xf32>, i32 -> vector<8x256xf32>
    %90 = vector.extract_strided_slice %54 {offsets = [7, 0], sizes = [1, 256], strides = [1, 1]} : vector<9x256xf32> to vector<1x256xf32>
    %91 = vector.broadcast %90 : vector<1x256xf32> to vector<8x256xf32>
    %92 = arith.mulf %89, %91 : vector<8x256xf32>
    %c56 = arith.constant 56 : index
    %c0_38 = arith.constant 0 : index
    %93 = vector.load %arg14[%c56, %c0_38] : memref<72x256xf32, #tpu.memory_space<vmem>>, vector<8x256xf32>
    tpu.vector_store %arg14[%c56, %c0_38], %92 {strides = array<i32>} : memref<72x256xf32, #tpu.memory_space<vmem>>, vector<8x256xf32>,
    %c239_i32 = arith.constant 239 : i32
    %94 = tpu.dynamic_rotate %53 by %c239_i32 dim 1 : vector<8x256xf32>, i32 -> vector<8x256xf32>
    %95 = vector.extract_strided_slice %54 {offsets = [8, 0], sizes = [1, 256], strides = [1, 1]} : vector<9x256xf32> to vector<1x256xf32>
    %96 = vector.broadcast %95 : vector<1x256xf32> to vector<8x256xf32>
    %97 = arith.mulf %94, %96 : vector<8x256xf32>
    %c64 = arith.constant 64 : index
    %c0_39 = arith.constant 0 : index
    %98 = vector.load %arg14[%c64, %c0_39] : memref<72x256xf32, #tpu.memory_space<vmem>>, vector<8x256xf32>
    tpu.vector_store %arg14[%c64, %c0_39], %97 {strides = array<i32>} : memref<72x256xf32, #tpu.memory_space<vmem>>, vector<8x256xf32>,
    %c0_40 = arith.constant 0 : index
    %c0_41 = arith.constant 0 : index
    %99 = vector.load %arg10[%c0_40, %c0_41] : memref<8x72xbf16, #tpu.memory_space<vmem>>, vector<8x72xbf16>
    %c0_42 = arith.constant 0 : index
    %c0_43 = arith.constant 0 : index
    %100 = vector.load %arg14[%c0_42, %c0_43] : memref<72x256xf32, #tpu.memory_space<vmem>>, vector<72x256xf32>
    %101 = arith.truncf %100 : vector<72x256xf32> to vector<72x256xbf16>
    %cst_44 = arith.constant dense<0.000000e+00> : vector<8x256xf32>
    %102 = tpu.matmul %99, %101, %cst_44 {dimension_numbers = #tpu.dot_dimension_numbers<[1], [0], [0], [1], [0, 0, 1, 1], [], []>} : vector<8x72xbf16>, vector<72x256xbf16>, vector<8x256xf32> -> vector<8x256xf32>
    %c0_45 = arith.constant 0 : index
    %c0_46 = arith.constant 0 : index
    %103 = vector.load %arg11[%c0_45, %c0_46] : memref<8x1xf32, #tpu.memory_space<vmem>>, vector<8x1xf32>
    %104 = vector.broadcast %103 : vector<8x1xf32> to vector<8x256xf32>
    %105 = arith.addf %102, %104 : vector<8x256xf32>
    %c0_47 = arith.constant 0 : index
    %c0_48 = arith.constant 0 : index
    %c0_49 = arith.constant 0 : index
    %106 = vector.load %arg12[%c0_47, %c0_48, %c0_49] : memref<1x8x256xf32, #tpu.memory_space<vmem>>, vector<1x8x256xf32>
    %107 = vector.shape_cast %106 : vector<1x8x256xf32> to vector<8x256xf32>
    %108 = arith.addf %105, %107 : vector<8x256xf32>
    %c0_50 = arith.constant 0 : index
    %c0_51 = arith.constant 0 : index
    %c0_52 = arith.constant 0 : index
    %109 = vector.load %arg13[%c0_50, %c0_51, %c0_52] : memref<1x8x256xf32, #tpu.memory_space<vmem>>, vector<1x8x256xf32>
    %110 = vector.shape_cast %109 : vector<1x8x256xf32> to vector<8x256xf32>
    %111 = vector.shape_cast %108 : vector<8x256xf32> to vector<1x8x256xf32>
    tpu.vector_store %arg13[%c0_50, %c0_51, %c0_52], %111 {strides = array<i32>} : memref<1x8x256xf32, #tpu.memory_space<vmem>>, vector<1x8x256xf32>,
    return
  }
  func.func @transform_0(%arg0: i32) -> (i32, i32, i32) {
    %c0_i32 = arith.constant 0 : i32
    %c0_i32_0 = arith.constant 0 : i32
    %c0_i32_1 = arith.constant 0 : i32
    return %arg0, %c0_i32, %c0_i32_0 : i32, i32, i32
  }
  func.func @transform_1(%arg0: i32) -> (i32, i32) {
    %c0_i32 = arith.constant 0 : i32
    %c0_i32_0 = arith.constant 0 : i32
    %c0_i32_1 = arith.constant 0 : i32
    return %c0_i32, %c0_i32_0 : i32, i32
  }
  func.func @transform_2(%arg0: i32) -> (i32, i32) {
    %c0_i32 = arith.constant 0 : i32
    %c0_i32_0 = arith.constant 0 : i32
    %c0_i32_1 = arith.constant 0 : i32
    return %c0_i32, %c0_i32_0 : i32, i32
  }
  func.func @transform_3(%arg0: i32) -> (i32, i32) {
    %c0_i32 = arith.constant 0 : i32
    %c0_i32_0 = arith.constant 0 : i32
    %c0_i32_1 = arith.constant 0 : i32
    return %c0_i32, %c0_i32_0 : i32, i32
  }
  func.func @transform_4(%arg0: i32) -> (i32, i32) {
    %c0_i32 = arith.constant 0 : i32
    %c0_i32_0 = arith.constant 0 : i32
    %c0_i32_1 = arith.constant 0 : i32
    return %c0_i32, %c0_i32_0 : i32, i32
  }
  func.func @transform_5(%arg0: i32) -> (i32, i32, i32) {
    %c0_i32 = arith.constant 0 : i32
    %c0_i32_0 = arith.constant 0 : i32
    %c0_i32_1 = arith.constant 0 : i32
    return %arg0, %c0_i32, %c0_i32_0 : i32, i32, i32
  }
  func.func @transform_6(%arg0: i32) -> (i32, i32) {
    %c0_i32 = arith.constant 0 : i32
    %c0_i32_0 = arith.constant 0 : i32
    %c0_i32_1 = arith.constant 0 : i32
    return %c0_i32, %c0_i32_0 : i32, i32
  }
  func.func @transform_7(%arg0: i32) -> (i32, i32) {
    %c0_i32 = arith.constant 0 : i32
    %c0_i32_0 = arith.constant 0 : i32
    %c0_i32_1 = arith.constant 0 : i32
    return %c0_i32, %c0_i32_0 : i32, i32
  }
  func.func @transform_8(%arg0: i32) -> (i32, i32) {
    %c0_i32 = arith.constant 0 : i32
    %c0_i32_0 = arith.constant 0 : i32
    %c0_i32_1 = arith.constant 0 : i32
    return %c0_i32, %c0_i32_0 : i32, i32
  }
  func.func @transform_9(%arg0: i32) -> (i32, i32) {
    %c0_i32 = arith.constant 0 : i32
    %c0_i32_0 = arith.constant 0 : i32
    %c0_i32_1 = arith.constant 0 : i32
    return %c0_i32, %c0_i32_0 : i32, i32
  }
  func.func @transform_10(%arg0: i32) -> (i32, i32) {
    %c0_i32 = arith.constant 0 : i32
    %c0_i32_0 = arith.constant 0 : i32
    %c0_i32_1 = arith.constant 0 : i32
    return %c0_i32, %c0_i32_0 : i32, i32
  }
  func.func @transform_11(%arg0: i32) -> (i32, i32, i32) {
    %c0_i32 = arith.constant 0 : i32
    %c0_i32_0 = arith.constant 0 : i32
    %c0_i32_1 = arith.constant 0 : i32
    return %arg0, %c0_i32, %c0_i32_0 : i32, i32, i32
  }
  func.func @transform_12(%arg0: i32) -> (i32, i32, i32) {
    %c0_i32 = arith.constant 0 : i32
    %c0_i32_0 = arith.constant 0 : i32
    %c0_i32_1 = arith.constant 0 : i32
    return %arg0, %c0_i32, %c0_i32_0 : i32, i32, i32
  }
}

module attributes {stable_mosaic.version = 11 : i64} {
  func.func @_fused_stage_kernel(%arg0: i32, %arg1: memref<1x8x256xf32, #tpu.memory_space<vmem>>, %arg2: memref<8x1xf32, #tpu.memory_space<vmem>>, %arg3: memref<8x1xf32, #tpu.memory_space<vmem>>, %arg4: memref<8x4xf32, #tpu.memory_space<vmem>>, %arg5: memref<4x8xf32, #tpu.memory_space<vmem>>, %arg6: memref<256x64xf32, #tpu.memory_space<vmem>>, %arg7: memref<9x64xf32, #tpu.memory_space<vmem>>, %arg8: memref<16x72xbf16, #tpu.memory_space<vmem>>, %arg9: memref<16x1xf32, #tpu.memory_space<vmem>>, %arg10: memref<1x16x64xf32, #tpu.memory_space<vmem>>, %arg11: memref<72x64xf32, #tpu.memory_space<vmem>>) attributes {dimension_semantics = [#tpu.dimension_semantics<parallel>], iteration_bounds = array<i64: 2>, scalar_prefetch = 0 : i64, scratch_operands = 1 : i64, tpu.core_type = #tpu.core_type<tc>, window_params = [{transform_indices = @transform_0, window_bounds = array<i64: 1, 8, 256>}, {pipeline_mode = #tpu.pipeline_mode<synchronous>, transform_indices = @transform_1, window_bounds = array<i64: 8, 1>}, {pipeline_mode = #tpu.pipeline_mode<synchronous>, transform_indices = @transform_2, window_bounds = array<i64: 8, 1>}, {pipeline_mode = #tpu.pipeline_mode<synchronous>, transform_indices = @transform_3, window_bounds = array<i64: 8, 4>}, {pipeline_mode = #tpu.pipeline_mode<synchronous>, transform_indices = @transform_4, window_bounds = array<i64: 4, 8>}, {pipeline_mode = #tpu.pipeline_mode<synchronous>, transform_indices = @transform_5, window_bounds = array<i64: 256, 64>}, {pipeline_mode = #tpu.pipeline_mode<synchronous>, transform_indices = @transform_6, window_bounds = array<i64: 9, 64>}, {pipeline_mode = #tpu.pipeline_mode<synchronous>, transform_indices = @transform_7, window_bounds = array<i64: 16, 72>}, {pipeline_mode = #tpu.pipeline_mode<synchronous>, transform_indices = @transform_8, window_bounds = array<i64: 16, 1>}, {transform_indices = @transform_9, window_bounds = array<i64: 1, 16, 64>}]} {
    %c0 = arith.constant 0 : index
    %c0_0 = arith.constant 0 : index
    %c0_1 = arith.constant 0 : index
    %0 = vector.load %arg1[%c0, %c0_0, %c0_1] : memref<1x8x256xf32, #tpu.memory_space<vmem>>, vector<1x8x256xf32>
    %1 = vector.shape_cast %0 : vector<1x8x256xf32> to vector<8x256xf32>
    %c0_2 = arith.constant 0 : index
    %c0_3 = arith.constant 0 : index
    %2 = vector.load %arg4[%c0_2, %c0_3] : memref<8x4xf32, #tpu.memory_space<vmem>>, vector<8x4xf32>
    %c0_4 = arith.constant 0 : index
    %c0_5 = arith.constant 0 : index
    %3 = vector.load %arg5[%c0_4, %c0_5] : memref<4x8xf32, #tpu.memory_space<vmem>>, vector<4x8xf32>
    %cst = arith.constant dense<0.000000e+00> : vector<4x256xf32>
    %4 = tpu.matmul %3, %1, %cst {dimension_numbers = #tpu.dot_dimension_numbers<[1], [0], [0], [1], [0, 0, 1, 1], [], []>} : vector<4x8xf32>, vector<8x256xf32>, vector<4x256xf32> -> vector<4x256xf32>
    %cst_6 = arith.constant dense<0.000000e+00> : vector<4xf32>
    %5 = vector.multi_reduction <add>, %4, %cst_6 [1] : vector<4x256xf32> to vector<4xf32>
    %6 = vector.shape_cast %5 : vector<4xf32> to vector<4x1xf32>
    %cst_7 = arith.constant 5.120000e+02 : f32
    %7 = vector.broadcast %cst_7 : f32 to vector<4x1xf32>
    %8 = arith.divf %6, %7 : vector<4x1xf32>
    %9 = vector.shape_cast %8 : vector<4x1xf32> to vector<4x1xf32>
    %10 = vector.broadcast %9 : vector<4x1xf32> to vector<4x256xf32>
    %cst_8 = arith.constant dense<0.000000e+00> : vector<8x256xf32>
    %11 = tpu.matmul %2, %10, %cst_8 {dimension_numbers = #tpu.dot_dimension_numbers<[1], [0], [0], [1], [0, 0, 1, 1], [], []>} : vector<8x4xf32>, vector<4x256xf32>, vector<8x256xf32> -> vector<8x256xf32>
    %12 = arith.subf %1, %11 : vector<8x256xf32>
    %13 = arith.mulf %12, %12 : vector<8x256xf32>
    %cst_9 = arith.constant dense<0.000000e+00> : vector<4x256xf32>
    %14 = tpu.matmul %3, %13, %cst_9 {dimension_numbers = #tpu.dot_dimension_numbers<[1], [0], [0], [1], [0, 0, 1, 1], [], []>} : vector<4x8xf32>, vector<8x256xf32>, vector<4x256xf32> -> vector<4x256xf32>
    %cst_10 = arith.constant dense<0.000000e+00> : vector<4xf32>
    %15 = vector.multi_reduction <add>, %14, %cst_10 [1] : vector<4x256xf32> to vector<4xf32>
    %16 = vector.shape_cast %15 : vector<4xf32> to vector<4x1xf32>
    %cst_11 = arith.constant 5.120000e+02 : f32
    %17 = vector.broadcast %cst_11 : f32 to vector<4x1xf32>
    %18 = arith.divf %16, %17 : vector<4x1xf32>
    %cst_12 = arith.constant 9.99999974E-6 : f32
    %19 = vector.broadcast %cst_12 : f32 to vector<4x1xf32>
    %20 = arith.addf %18, %19 : vector<4x1xf32>
    %21 = math.rsqrt %20 : vector<4x1xf32>
    %22 = vector.shape_cast %21 : vector<4x1xf32> to vector<4x1xf32>
    %23 = vector.broadcast %22 : vector<4x1xf32> to vector<4x256xf32>
    %cst_13 = arith.constant dense<0.000000e+00> : vector<8x256xf32>
    %24 = tpu.matmul %2, %23, %cst_13 {dimension_numbers = #tpu.dot_dimension_numbers<[1], [0], [0], [1], [0, 0, 1, 1], [], []>} : vector<8x4xf32>, vector<4x256xf32>, vector<8x256xf32> -> vector<8x256xf32>
    %25 = arith.mulf %12, %24 : vector<8x256xf32>
    %c0_14 = arith.constant 0 : index
    %c0_15 = arith.constant 0 : index
    %26 = vector.load %arg2[%c0_14, %c0_15] : memref<8x1xf32, #tpu.memory_space<vmem>>, vector<8x1xf32>
    %27 = vector.broadcast %26 : vector<8x1xf32> to vector<8x256xf32>
    %28 = arith.mulf %25, %27 : vector<8x256xf32>
    %c0_16 = arith.constant 0 : index
    %c0_17 = arith.constant 0 : index
    %29 = vector.load %arg3[%c0_16, %c0_17] : memref<8x1xf32, #tpu.memory_space<vmem>>, vector<8x1xf32>
    %30 = vector.broadcast %29 : vector<8x1xf32> to vector<8x256xf32>
    %31 = arith.addf %28, %30 : vector<8x256xf32>
    %32 = arith.negf %31 : vector<8x256xf32>
    %33 = math.exp %32 : vector<8x256xf32>
    %cst_18 = arith.constant 1.000000e+00 : f32
    %34 = vector.broadcast %cst_18 : f32 to vector<8x256xf32>
    %35 = arith.addf %34, %33 : vector<8x256xf32>
    %36 = arith.divf %34, %35 : vector<8x256xf32>
    %37 = arith.mulf %31, %36 : vector<8x256xf32>
    %c0_19 = arith.constant 0 : index
    %c0_20 = arith.constant 0 : index
    %38 = vector.load %arg6[%c0_19, %c0_20] : memref<256x64xf32, #tpu.memory_space<vmem>>, vector<256x64xf32>
    %cst_21 = arith.constant dense<0.000000e+00> : vector<8x64xf32>
    %39 = tpu.matmul %37, %38, %cst_21 {dimension_numbers = #tpu.dot_dimension_numbers<[1], [0], [0], [1], [0, 0, 1, 1], [], []>} : vector<8x256xf32>, vector<256x64xf32>, vector<8x64xf32> -> vector<8x64xf32>
    %c0_22 = arith.constant 0 : index
    %c0_23 = arith.constant 0 : index
    %40 = vector.load %arg7[%c0_22, %c0_23] : memref<9x64xf32, #tpu.memory_space<vmem>>, vector<9x64xf32>
    %c9_i32 = arith.constant 9 : i32
    %41 = tpu.dynamic_rotate %39 by %c9_i32 dim 1 : vector<8x64xf32>, i32 -> vector<8x64xf32>
    %42 = vector.extract_strided_slice %40 {offsets = [0, 0], sizes = [1, 64], strides = [1, 1]} : vector<9x64xf32> to vector<1x64xf32>
    %43 = vector.broadcast %42 : vector<1x64xf32> to vector<8x64xf32>
    %44 = arith.mulf %41, %43 : vector<8x64xf32>
    %c0_24 = arith.constant 0 : index
    %c0_25 = arith.constant 0 : index
    %45 = vector.load %arg11[%c0_24, %c0_25] : memref<72x64xf32, #tpu.memory_space<vmem>>, vector<8x64xf32>
    tpu.vector_store %arg11[%c0_24, %c0_25], %44 {strides = array<i32>} : memref<72x64xf32, #tpu.memory_space<vmem>>, vector<8x64xf32>,
    %c8_i32 = arith.constant 8 : i32
    %46 = tpu.dynamic_rotate %39 by %c8_i32 dim 1 : vector<8x64xf32>, i32 -> vector<8x64xf32>
    %47 = vector.extract_strided_slice %40 {offsets = [1, 0], sizes = [1, 64], strides = [1, 1]} : vector<9x64xf32> to vector<1x64xf32>
    %48 = vector.broadcast %47 : vector<1x64xf32> to vector<8x64xf32>
    %49 = arith.mulf %46, %48 : vector<8x64xf32>
    %c8 = arith.constant 8 : index
    %c0_26 = arith.constant 0 : index
    %50 = vector.load %arg11[%c8, %c0_26] : memref<72x64xf32, #tpu.memory_space<vmem>>, vector<8x64xf32>
    tpu.vector_store %arg11[%c8, %c0_26], %49 {strides = array<i32>} : memref<72x64xf32, #tpu.memory_space<vmem>>, vector<8x64xf32>,
    %c7_i32 = arith.constant 7 : i32
    %51 = tpu.dynamic_rotate %39 by %c7_i32 dim 1 : vector<8x64xf32>, i32 -> vector<8x64xf32>
    %52 = vector.extract_strided_slice %40 {offsets = [2, 0], sizes = [1, 64], strides = [1, 1]} : vector<9x64xf32> to vector<1x64xf32>
    %53 = vector.broadcast %52 : vector<1x64xf32> to vector<8x64xf32>
    %54 = arith.mulf %51, %53 : vector<8x64xf32>
    %c16 = arith.constant 16 : index
    %c0_27 = arith.constant 0 : index
    %55 = vector.load %arg11[%c16, %c0_27] : memref<72x64xf32, #tpu.memory_space<vmem>>, vector<8x64xf32>
    tpu.vector_store %arg11[%c16, %c0_27], %54 {strides = array<i32>} : memref<72x64xf32, #tpu.memory_space<vmem>>, vector<8x64xf32>,
    %c1_i32 = arith.constant 1 : i32
    %56 = tpu.dynamic_rotate %39 by %c1_i32 dim 1 : vector<8x64xf32>, i32 -> vector<8x64xf32>
    %57 = vector.extract_strided_slice %40 {offsets = [3, 0], sizes = [1, 64], strides = [1, 1]} : vector<9x64xf32> to vector<1x64xf32>
    %58 = vector.broadcast %57 : vector<1x64xf32> to vector<8x64xf32>
    %59 = arith.mulf %56, %58 : vector<8x64xf32>
    %c24 = arith.constant 24 : index
    %c0_28 = arith.constant 0 : index
    %60 = vector.load %arg11[%c24, %c0_28] : memref<72x64xf32, #tpu.memory_space<vmem>>, vector<8x64xf32>
    tpu.vector_store %arg11[%c24, %c0_28], %59 {strides = array<i32>} : memref<72x64xf32, #tpu.memory_space<vmem>>, vector<8x64xf32>,
    %61 = vector.extract_strided_slice %40 {offsets = [4, 0], sizes = [1, 64], strides = [1, 1]} : vector<9x64xf32> to vector<1x64xf32>
    %62 = vector.broadcast %61 : vector<1x64xf32> to vector<8x64xf32>
    %63 = arith.mulf %39, %62 : vector<8x64xf32>
    %c32 = arith.constant 32 : index
    %c0_29 = arith.constant 0 : index
    %64 = vector.load %arg11[%c32, %c0_29] : memref<72x64xf32, #tpu.memory_space<vmem>>, vector<8x64xf32>
    tpu.vector_store %arg11[%c32, %c0_29], %63 {strides = array<i32>} : memref<72x64xf32, #tpu.memory_space<vmem>>, vector<8x64xf32>,
    %c63_i32 = arith.constant 63 : i32
    %65 = tpu.dynamic_rotate %39 by %c63_i32 dim 1 : vector<8x64xf32>, i32 -> vector<8x64xf32>
    %66 = vector.extract_strided_slice %40 {offsets = [5, 0], sizes = [1, 64], strides = [1, 1]} : vector<9x64xf32> to vector<1x64xf32>
    %67 = vector.broadcast %66 : vector<1x64xf32> to vector<8x64xf32>
    %68 = arith.mulf %65, %67 : vector<8x64xf32>
    %c40 = arith.constant 40 : index
    %c0_30 = arith.constant 0 : index
    %69 = vector.load %arg11[%c40, %c0_30] : memref<72x64xf32, #tpu.memory_space<vmem>>, vector<8x64xf32>
    tpu.vector_store %arg11[%c40, %c0_30], %68 {strides = array<i32>} : memref<72x64xf32, #tpu.memory_space<vmem>>, vector<8x64xf32>,
    %c57_i32 = arith.constant 57 : i32
    %70 = tpu.dynamic_rotate %39 by %c57_i32 dim 1 : vector<8x64xf32>, i32 -> vector<8x64xf32>
    %71 = vector.extract_strided_slice %40 {offsets = [6, 0], sizes = [1, 64], strides = [1, 1]} : vector<9x64xf32> to vector<1x64xf32>
    %72 = vector.broadcast %71 : vector<1x64xf32> to vector<8x64xf32>
    %73 = arith.mulf %70, %72 : vector<8x64xf32>
    %c48 = arith.constant 48 : index
    %c0_31 = arith.constant 0 : index
    %74 = vector.load %arg11[%c48, %c0_31] : memref<72x64xf32, #tpu.memory_space<vmem>>, vector<8x64xf32>
    tpu.vector_store %arg11[%c48, %c0_31], %73 {strides = array<i32>} : memref<72x64xf32, #tpu.memory_space<vmem>>, vector<8x64xf32>,
    %c56_i32 = arith.constant 56 : i32
    %75 = tpu.dynamic_rotate %39 by %c56_i32 dim 1 : vector<8x64xf32>, i32 -> vector<8x64xf32>
    %76 = vector.extract_strided_slice %40 {offsets = [7, 0], sizes = [1, 64], strides = [1, 1]} : vector<9x64xf32> to vector<1x64xf32>
    %77 = vector.broadcast %76 : vector<1x64xf32> to vector<8x64xf32>
    %78 = arith.mulf %75, %77 : vector<8x64xf32>
    %c56 = arith.constant 56 : index
    %c0_32 = arith.constant 0 : index
    %79 = vector.load %arg11[%c56, %c0_32] : memref<72x64xf32, #tpu.memory_space<vmem>>, vector<8x64xf32>
    tpu.vector_store %arg11[%c56, %c0_32], %78 {strides = array<i32>} : memref<72x64xf32, #tpu.memory_space<vmem>>, vector<8x64xf32>,
    %c55_i32 = arith.constant 55 : i32
    %80 = tpu.dynamic_rotate %39 by %c55_i32 dim 1 : vector<8x64xf32>, i32 -> vector<8x64xf32>
    %81 = vector.extract_strided_slice %40 {offsets = [8, 0], sizes = [1, 64], strides = [1, 1]} : vector<9x64xf32> to vector<1x64xf32>
    %82 = vector.broadcast %81 : vector<1x64xf32> to vector<8x64xf32>
    %83 = arith.mulf %80, %82 : vector<8x64xf32>
    %c64 = arith.constant 64 : index
    %c0_33 = arith.constant 0 : index
    %84 = vector.load %arg11[%c64, %c0_33] : memref<72x64xf32, #tpu.memory_space<vmem>>, vector<8x64xf32>
    tpu.vector_store %arg11[%c64, %c0_33], %83 {strides = array<i32>} : memref<72x64xf32, #tpu.memory_space<vmem>>, vector<8x64xf32>,
    %c0_34 = arith.constant 0 : index
    %c0_35 = arith.constant 0 : index
    %85 = vector.load %arg8[%c0_34, %c0_35] : memref<16x72xbf16, #tpu.memory_space<vmem>>, vector<16x72xbf16>
    %c0_36 = arith.constant 0 : index
    %c0_37 = arith.constant 0 : index
    %86 = vector.load %arg11[%c0_36, %c0_37] : memref<72x64xf32, #tpu.memory_space<vmem>>, vector<72x64xf32>
    %87 = arith.truncf %86 : vector<72x64xf32> to vector<72x64xbf16>
    %cst_38 = arith.constant dense<0.000000e+00> : vector<16x64xf32>
    %88 = tpu.matmul %85, %87, %cst_38 {dimension_numbers = #tpu.dot_dimension_numbers<[1], [0], [0], [1], [0, 0, 1, 1], [], []>} : vector<16x72xbf16>, vector<72x64xbf16>, vector<16x64xf32> -> vector<16x64xf32>
    %c0_39 = arith.constant 0 : index
    %c0_40 = arith.constant 0 : index
    %89 = vector.load %arg9[%c0_39, %c0_40] : memref<16x1xf32, #tpu.memory_space<vmem>>, vector<16x1xf32>
    %90 = vector.broadcast %89 : vector<16x1xf32> to vector<16x64xf32>
    %91 = arith.addf %88, %90 : vector<16x64xf32>
    %c0_41 = arith.constant 0 : index
    %c0_42 = arith.constant 0 : index
    %c0_43 = arith.constant 0 : index
    %92 = vector.load %arg10[%c0_41, %c0_42, %c0_43] : memref<1x16x64xf32, #tpu.memory_space<vmem>>, vector<1x16x64xf32>
    %93 = vector.shape_cast %92 : vector<1x16x64xf32> to vector<16x64xf32>
    %94 = vector.shape_cast %91 : vector<16x64xf32> to vector<1x16x64xf32>
    tpu.vector_store %arg10[%c0_41, %c0_42, %c0_43], %94 {strides = array<i32>} : memref<1x16x64xf32, #tpu.memory_space<vmem>>, vector<1x16x64xf32>,
    return
  }
  func.func @transform_0(%arg0: i32) -> (i32, i32, i32) {
    %c0_i32 = arith.constant 0 : i32
    %c0_i32_0 = arith.constant 0 : i32
    %c0_i32_1 = arith.constant 0 : i32
    return %arg0, %c0_i32, %c0_i32_0 : i32, i32, i32
  }
  func.func @transform_1(%arg0: i32) -> (i32, i32) {
    %c0_i32 = arith.constant 0 : i32
    %c0_i32_0 = arith.constant 0 : i32
    %c0_i32_1 = arith.constant 0 : i32
    return %c0_i32, %c0_i32_0 : i32, i32
  }
  func.func @transform_2(%arg0: i32) -> (i32, i32) {
    %c0_i32 = arith.constant 0 : i32
    %c0_i32_0 = arith.constant 0 : i32
    %c0_i32_1 = arith.constant 0 : i32
    return %c0_i32, %c0_i32_0 : i32, i32
  }
  func.func @transform_3(%arg0: i32) -> (i32, i32) {
    %c0_i32 = arith.constant 0 : i32
    %c0_i32_0 = arith.constant 0 : i32
    %c0_i32_1 = arith.constant 0 : i32
    return %c0_i32, %c0_i32_0 : i32, i32
  }
  func.func @transform_4(%arg0: i32) -> (i32, i32) {
    %c0_i32 = arith.constant 0 : i32
    %c0_i32_0 = arith.constant 0 : i32
    %c0_i32_1 = arith.constant 0 : i32
    return %c0_i32, %c0_i32_0 : i32, i32
  }
  func.func @transform_5(%arg0: i32) -> (i32, i32) {
    %c0_i32 = arith.constant 0 : i32
    %c0_i32_0 = arith.constant 0 : i32
    %c0_i32_1 = arith.constant 0 : i32
    return %c0_i32, %c0_i32_0 : i32, i32
  }
  func.func @transform_6(%arg0: i32) -> (i32, i32) {
    %c0_i32 = arith.constant 0 : i32
    %c0_i32_0 = arith.constant 0 : i32
    %c0_i32_1 = arith.constant 0 : i32
    return %c0_i32, %c0_i32_0 : i32, i32
  }
  func.func @transform_7(%arg0: i32) -> (i32, i32) {
    %c0_i32 = arith.constant 0 : i32
    %c0_i32_0 = arith.constant 0 : i32
    %c0_i32_1 = arith.constant 0 : i32
    return %c0_i32, %c0_i32_0 : i32, i32
  }
  func.func @transform_8(%arg0: i32) -> (i32, i32) {
    %c0_i32 = arith.constant 0 : i32
    %c0_i32_0 = arith.constant 0 : i32
    %c0_i32_1 = arith.constant 0 : i32
    return %c0_i32, %c0_i32_0 : i32, i32
  }
  func.func @transform_9(%arg0: i32) -> (i32, i32, i32) {
    %c0_i32 = arith.constant 0 : i32
    %c0_i32_0 = arith.constant 0 : i32
    %c0_i32_1 = arith.constant 0 : i32
    return %arg0, %c0_i32, %c0_i32_0 : i32, i32, i32
  }
}

module attributes {stable_mosaic.version = 11 : i64} {
  func.func @_fused_stage_kernel(%arg0: i32, %arg1: memref<1x16x64xf32, #tpu.memory_space<vmem>>, %arg2: memref<16x1xf32, #tpu.memory_space<vmem>>, %arg3: memref<16x1xf32, #tpu.memory_space<vmem>>, %arg4: memref<16x4xf32, #tpu.memory_space<vmem>>, %arg5: memref<4x16xf32, #tpu.memory_space<vmem>>, %arg6: memref<1x16x1xf32, #tpu.memory_space<vmem>>, %arg7: memref<16x16xf32, #tpu.memory_space<vmem>>, %arg8: memref<16x1xf32, #tpu.memory_space<vmem>>, %arg9: memref<9x64xf32, #tpu.memory_space<vmem>>, %arg10: memref<16x144xbf16, #tpu.memory_space<vmem>>, %arg11: memref<16x1xf32, #tpu.memory_space<vmem>>, %arg12: memref<1x16x64xf32, #tpu.memory_space<vmem>>, %arg13: memref<144x64xf32, #tpu.memory_space<vmem>>) attributes {dimension_semantics = [#tpu.dimension_semantics<parallel>], iteration_bounds = array<i64: 2>, scalar_prefetch = 0 : i64, scratch_operands = 1 : i64, tpu.core_type = #tpu.core_type<tc>, window_params = [{transform_indices = @transform_0, window_bounds = array<i64: 1, 16, 64>}, {pipeline_mode = #tpu.pipeline_mode<synchronous>, transform_indices = @transform_1, window_bounds = array<i64: 16, 1>}, {pipeline_mode = #tpu.pipeline_mode<synchronous>, transform_indices = @transform_2, window_bounds = array<i64: 16, 1>}, {pipeline_mode = #tpu.pipeline_mode<synchronous>, transform_indices = @transform_3, window_bounds = array<i64: 16, 4>}, {pipeline_mode = #tpu.pipeline_mode<synchronous>, transform_indices = @transform_4, window_bounds = array<i64: 4, 16>}, {transform_indices = @transform_5, window_bounds = array<i64: 1, 16, 1>}, {pipeline_mode = #tpu.pipeline_mode<synchronous>, transform_indices = @transform_6, window_bounds = array<i64: 16, 16>}, {pipeline_mode = #tpu.pipeline_mode<synchronous>, transform_indices = @transform_7, window_bounds = array<i64: 16, 1>}, {pipeline_mode = #tpu.pipeline_mode<synchronous>, transform_indices = @transform_8, window_bounds = array<i64: 9, 64>}, {pipeline_mode = #tpu.pipeline_mode<synchronous>, transform_indices = @transform_9, window_bounds = array<i64: 16, 144>}, {pipeline_mode = #tpu.pipeline_mode<synchronous>, transform_indices = @transform_10, window_bounds = array<i64: 16, 1>}, {transform_indices = @transform_11, window_bounds = array<i64: 1, 16, 64>}]} {
    %c0 = arith.constant 0 : index
    %c0_0 = arith.constant 0 : index
    %c0_1 = arith.constant 0 : index
    %0 = vector.load %arg1[%c0, %c0_0, %c0_1] : memref<1x16x64xf32, #tpu.memory_space<vmem>>, vector<1x16x64xf32>
    %1 = vector.shape_cast %0 : vector<1x16x64xf32> to vector<16x64xf32>
    %c0_2 = arith.constant 0 : index
    %c0_3 = arith.constant 0 : index
    %c0_4 = arith.constant 0 : index
    %2 = vector.load %arg6[%c0_2, %c0_3, %c0_4] : memref<1x16x1xf32, #tpu.memory_space<vmem>>, vector<1x16x1xf32>
    %3 = vector.shape_cast %2 : vector<1x16x1xf32> to vector<16x1xf32>
    %4 = arith.negf %3 : vector<16x1xf32>
    %5 = math.exp %4 : vector<16x1xf32>
    %cst = arith.constant 1.000000e+00 : f32
    %6 = vector.broadcast %cst : f32 to vector<16x1xf32>
    %7 = arith.addf %6, %5 : vector<16x1xf32>
    %8 = arith.divf %6, %7 : vector<16x1xf32>
    %9 = arith.mulf %3, %8 : vector<16x1xf32>
    %10 = vector.shape_cast %9 : vector<16x1xf32> to vector<16x1xf32>
    %11 = vector.broadcast %10 : vector<16x1xf32> to vector<16x64xf32>
    %c0_5 = arith.constant 0 : index
    %c0_6 = arith.constant 0 : index
    %12 = vector.load %arg7[%c0_5, %c0_6] : memref<16x16xf32, #tpu.memory_space<vmem>>, vector<16x16xf32>
    %cst_7 = arith.constant dense<0.000000e+00> : vector<16x64xf32>
    %13 = tpu.matmul %12, %11, %cst_7 {dimension_numbers = #tpu.dot_dimension_numbers<[1], [0], [0], [1], [0, 0, 1, 1], [], []>} : vector<16x16xf32>, vector<16x64xf32>, vector<16x64xf32> -> vector<16x64xf32>
    %14 = arith.addf %1, %13 : vector<16x64xf32>
    %c0_8 = arith.constant 0 : index
    %c0_9 = arith.constant 0 : index
    %15 = vector.load %arg8[%c0_8, %c0_9] : memref<16x1xf32, #tpu.memory_space<vmem>>, vector<16x1xf32>
    %16 = vector.broadcast %15 : vector<16x1xf32> to vector<16x64xf32>
    %17 = arith.addf %14, %16 : vector<16x64xf32>
    %c0_10 = arith.constant 0 : index
    %c0_11 = arith.constant 0 : index
    %18 = vector.load %arg4[%c0_10, %c0_11] : memref<16x4xf32, #tpu.memory_space<vmem>>, vector<16x4xf32>
    %c0_12 = arith.constant 0 : index
    %c0_13 = arith.constant 0 : index
    %19 = vector.load %arg5[%c0_12, %c0_13] : memref<4x16xf32, #tpu.memory_space<vmem>>, vector<4x16xf32>
    %cst_14 = arith.constant dense<0.000000e+00> : vector<4x64xf32>
    %20 = tpu.matmul %19, %17, %cst_14 {dimension_numbers = #tpu.dot_dimension_numbers<[1], [0], [0], [1], [0, 0, 1, 1], [], []>} : vector<4x16xf32>, vector<16x64xf32>, vector<4x64xf32> -> vector<4x64xf32>
    %cst_15 = arith.constant dense<0.000000e+00> : vector<4xf32>
    %21 = vector.multi_reduction <add>, %20, %cst_15 [1] : vector<4x64xf32> to vector<4xf32>
    %22 = vector.shape_cast %21 : vector<4xf32> to vector<4x1xf32>
    %cst_16 = arith.constant 2.560000e+02 : f32
    %23 = vector.broadcast %cst_16 : f32 to vector<4x1xf32>
    %24 = arith.divf %22, %23 : vector<4x1xf32>
    %25 = vector.shape_cast %24 : vector<4x1xf32> to vector<4x1xf32>
    %26 = vector.broadcast %25 : vector<4x1xf32> to vector<4x64xf32>
    %cst_17 = arith.constant dense<0.000000e+00> : vector<16x64xf32>
    %27 = tpu.matmul %18, %26, %cst_17 {dimension_numbers = #tpu.dot_dimension_numbers<[1], [0], [0], [1], [0, 0, 1, 1], [], []>} : vector<16x4xf32>, vector<4x64xf32>, vector<16x64xf32> -> vector<16x64xf32>
    %28 = arith.subf %17, %27 : vector<16x64xf32>
    %29 = arith.mulf %28, %28 : vector<16x64xf32>
    %cst_18 = arith.constant dense<0.000000e+00> : vector<4x64xf32>
    %30 = tpu.matmul %19, %29, %cst_18 {dimension_numbers = #tpu.dot_dimension_numbers<[1], [0], [0], [1], [0, 0, 1, 1], [], []>} : vector<4x16xf32>, vector<16x64xf32>, vector<4x64xf32> -> vector<4x64xf32>
    %cst_19 = arith.constant dense<0.000000e+00> : vector<4xf32>
    %31 = vector.multi_reduction <add>, %30, %cst_19 [1] : vector<4x64xf32> to vector<4xf32>
    %32 = vector.shape_cast %31 : vector<4xf32> to vector<4x1xf32>
    %cst_20 = arith.constant 2.560000e+02 : f32
    %33 = vector.broadcast %cst_20 : f32 to vector<4x1xf32>
    %34 = arith.divf %32, %33 : vector<4x1xf32>
    %cst_21 = arith.constant 9.99999974E-6 : f32
    %35 = vector.broadcast %cst_21 : f32 to vector<4x1xf32>
    %36 = arith.addf %34, %35 : vector<4x1xf32>
    %37 = math.rsqrt %36 : vector<4x1xf32>
    %38 = vector.shape_cast %37 : vector<4x1xf32> to vector<4x1xf32>
    %39 = vector.broadcast %38 : vector<4x1xf32> to vector<4x64xf32>
    %cst_22 = arith.constant dense<0.000000e+00> : vector<16x64xf32>
    %40 = tpu.matmul %18, %39, %cst_22 {dimension_numbers = #tpu.dot_dimension_numbers<[1], [0], [0], [1], [0, 0, 1, 1], [], []>} : vector<16x4xf32>, vector<4x64xf32>, vector<16x64xf32> -> vector<16x64xf32>
    %41 = arith.mulf %28, %40 : vector<16x64xf32>
    %c0_23 = arith.constant 0 : index
    %c0_24 = arith.constant 0 : index
    %42 = vector.load %arg2[%c0_23, %c0_24] : memref<16x1xf32, #tpu.memory_space<vmem>>, vector<16x1xf32>
    %43 = vector.broadcast %42 : vector<16x1xf32> to vector<16x64xf32>
    %44 = arith.mulf %41, %43 : vector<16x64xf32>
    %c0_25 = arith.constant 0 : index
    %c0_26 = arith.constant 0 : index
    %45 = vector.load %arg3[%c0_25, %c0_26] : memref<16x1xf32, #tpu.memory_space<vmem>>, vector<16x1xf32>
    %46 = vector.broadcast %45 : vector<16x1xf32> to vector<16x64xf32>
    %47 = arith.addf %44, %46 : vector<16x64xf32>
    %48 = arith.negf %47 : vector<16x64xf32>
    %49 = math.exp %48 : vector<16x64xf32>
    %cst_27 = arith.constant 1.000000e+00 : f32
    %50 = vector.broadcast %cst_27 : f32 to vector<16x64xf32>
    %51 = arith.addf %50, %49 : vector<16x64xf32>
    %52 = arith.divf %50, %51 : vector<16x64xf32>
    %53 = arith.mulf %47, %52 : vector<16x64xf32>
    %c0_28 = arith.constant 0 : index
    %c0_29 = arith.constant 0 : index
    %54 = vector.load %arg9[%c0_28, %c0_29] : memref<9x64xf32, #tpu.memory_space<vmem>>, vector<9x64xf32>
    %c9_i32 = arith.constant 9 : i32
    %55 = tpu.dynamic_rotate %53 by %c9_i32 dim 1 : vector<16x64xf32>, i32 -> vector<16x64xf32>
    %56 = vector.extract_strided_slice %54 {offsets = [0, 0], sizes = [1, 64], strides = [1, 1]} : vector<9x64xf32> to vector<1x64xf32>
    %57 = vector.broadcast %56 : vector<1x64xf32> to vector<16x64xf32>
    %58 = arith.mulf %55, %57 : vector<16x64xf32>
    %c0_30 = arith.constant 0 : index
    %c0_31 = arith.constant 0 : index
    %59 = vector.load %arg13[%c0_30, %c0_31] : memref<144x64xf32, #tpu.memory_space<vmem>>, vector<16x64xf32>
    tpu.vector_store %arg13[%c0_30, %c0_31], %58 {strides = array<i32>} : memref<144x64xf32, #tpu.memory_space<vmem>>, vector<16x64xf32>,
    %c8_i32 = arith.constant 8 : i32
    %60 = tpu.dynamic_rotate %53 by %c8_i32 dim 1 : vector<16x64xf32>, i32 -> vector<16x64xf32>
    %61 = vector.extract_strided_slice %54 {offsets = [1, 0], sizes = [1, 64], strides = [1, 1]} : vector<9x64xf32> to vector<1x64xf32>
    %62 = vector.broadcast %61 : vector<1x64xf32> to vector<16x64xf32>
    %63 = arith.mulf %60, %62 : vector<16x64xf32>
    %c16 = arith.constant 16 : index
    %c0_32 = arith.constant 0 : index
    %64 = vector.load %arg13[%c16, %c0_32] : memref<144x64xf32, #tpu.memory_space<vmem>>, vector<16x64xf32>
    tpu.vector_store %arg13[%c16, %c0_32], %63 {strides = array<i32>} : memref<144x64xf32, #tpu.memory_space<vmem>>, vector<16x64xf32>,
    %c7_i32 = arith.constant 7 : i32
    %65 = tpu.dynamic_rotate %53 by %c7_i32 dim 1 : vector<16x64xf32>, i32 -> vector<16x64xf32>
    %66 = vector.extract_strided_slice %54 {offsets = [2, 0], sizes = [1, 64], strides = [1, 1]} : vector<9x64xf32> to vector<1x64xf32>
    %67 = vector.broadcast %66 : vector<1x64xf32> to vector<16x64xf32>
    %68 = arith.mulf %65, %67 : vector<16x64xf32>
    %c32 = arith.constant 32 : index
    %c0_33 = arith.constant 0 : index
    %69 = vector.load %arg13[%c32, %c0_33] : memref<144x64xf32, #tpu.memory_space<vmem>>, vector<16x64xf32>
    tpu.vector_store %arg13[%c32, %c0_33], %68 {strides = array<i32>} : memref<144x64xf32, #tpu.memory_space<vmem>>, vector<16x64xf32>,
    %c1_i32 = arith.constant 1 : i32
    %70 = tpu.dynamic_rotate %53 by %c1_i32 dim 1 : vector<16x64xf32>, i32 -> vector<16x64xf32>
    %71 = vector.extract_strided_slice %54 {offsets = [3, 0], sizes = [1, 64], strides = [1, 1]} : vector<9x64xf32> to vector<1x64xf32>
    %72 = vector.broadcast %71 : vector<1x64xf32> to vector<16x64xf32>
    %73 = arith.mulf %70, %72 : vector<16x64xf32>
    %c48 = arith.constant 48 : index
    %c0_34 = arith.constant 0 : index
    %74 = vector.load %arg13[%c48, %c0_34] : memref<144x64xf32, #tpu.memory_space<vmem>>, vector<16x64xf32>
    tpu.vector_store %arg13[%c48, %c0_34], %73 {strides = array<i32>} : memref<144x64xf32, #tpu.memory_space<vmem>>, vector<16x64xf32>,
    %75 = vector.extract_strided_slice %54 {offsets = [4, 0], sizes = [1, 64], strides = [1, 1]} : vector<9x64xf32> to vector<1x64xf32>
    %76 = vector.broadcast %75 : vector<1x64xf32> to vector<16x64xf32>
    %77 = arith.mulf %53, %76 : vector<16x64xf32>
    %c64 = arith.constant 64 : index
    %c0_35 = arith.constant 0 : index
    %78 = vector.load %arg13[%c64, %c0_35] : memref<144x64xf32, #tpu.memory_space<vmem>>, vector<16x64xf32>
    tpu.vector_store %arg13[%c64, %c0_35], %77 {strides = array<i32>} : memref<144x64xf32, #tpu.memory_space<vmem>>, vector<16x64xf32>,
    %c63_i32 = arith.constant 63 : i32
    %79 = tpu.dynamic_rotate %53 by %c63_i32 dim 1 : vector<16x64xf32>, i32 -> vector<16x64xf32>
    %80 = vector.extract_strided_slice %54 {offsets = [5, 0], sizes = [1, 64], strides = [1, 1]} : vector<9x64xf32> to vector<1x64xf32>
    %81 = vector.broadcast %80 : vector<1x64xf32> to vector<16x64xf32>
    %82 = arith.mulf %79, %81 : vector<16x64xf32>
    %c80 = arith.constant 80 : index
    %c0_36 = arith.constant 0 : index
    %83 = vector.load %arg13[%c80, %c0_36] : memref<144x64xf32, #tpu.memory_space<vmem>>, vector<16x64xf32>
    tpu.vector_store %arg13[%c80, %c0_36], %82 {strides = array<i32>} : memref<144x64xf32, #tpu.memory_space<vmem>>, vector<16x64xf32>,
    %c57_i32 = arith.constant 57 : i32
    %84 = tpu.dynamic_rotate %53 by %c57_i32 dim 1 : vector<16x64xf32>, i32 -> vector<16x64xf32>
    %85 = vector.extract_strided_slice %54 {offsets = [6, 0], sizes = [1, 64], strides = [1, 1]} : vector<9x64xf32> to vector<1x64xf32>
    %86 = vector.broadcast %85 : vector<1x64xf32> to vector<16x64xf32>
    %87 = arith.mulf %84, %86 : vector<16x64xf32>
    %c96 = arith.constant 96 : index
    %c0_37 = arith.constant 0 : index
    %88 = vector.load %arg13[%c96, %c0_37] : memref<144x64xf32, #tpu.memory_space<vmem>>, vector<16x64xf32>
    tpu.vector_store %arg13[%c96, %c0_37], %87 {strides = array<i32>} : memref<144x64xf32, #tpu.memory_space<vmem>>, vector<16x64xf32>,
    %c56_i32 = arith.constant 56 : i32
    %89 = tpu.dynamic_rotate %53 by %c56_i32 dim 1 : vector<16x64xf32>, i32 -> vector<16x64xf32>
    %90 = vector.extract_strided_slice %54 {offsets = [7, 0], sizes = [1, 64], strides = [1, 1]} : vector<9x64xf32> to vector<1x64xf32>
    %91 = vector.broadcast %90 : vector<1x64xf32> to vector<16x64xf32>
    %92 = arith.mulf %89, %91 : vector<16x64xf32>
    %c112 = arith.constant 112 : index
    %c0_38 = arith.constant 0 : index
    %93 = vector.load %arg13[%c112, %c0_38] : memref<144x64xf32, #tpu.memory_space<vmem>>, vector<16x64xf32>
    tpu.vector_store %arg13[%c112, %c0_38], %92 {strides = array<i32>} : memref<144x64xf32, #tpu.memory_space<vmem>>, vector<16x64xf32>,
    %c55_i32 = arith.constant 55 : i32
    %94 = tpu.dynamic_rotate %53 by %c55_i32 dim 1 : vector<16x64xf32>, i32 -> vector<16x64xf32>
    %95 = vector.extract_strided_slice %54 {offsets = [8, 0], sizes = [1, 64], strides = [1, 1]} : vector<9x64xf32> to vector<1x64xf32>
    %96 = vector.broadcast %95 : vector<1x64xf32> to vector<16x64xf32>
    %97 = arith.mulf %94, %96 : vector<16x64xf32>
    %c128 = arith.constant 128 : index
    %c0_39 = arith.constant 0 : index
    %98 = vector.load %arg13[%c128, %c0_39] : memref<144x64xf32, #tpu.memory_space<vmem>>, vector<16x64xf32>
    tpu.vector_store %arg13[%c128, %c0_39], %97 {strides = array<i32>} : memref<144x64xf32, #tpu.memory_space<vmem>>, vector<16x64xf32>,
    %c0_40 = arith.constant 0 : index
    %c0_41 = arith.constant 0 : index
    %99 = vector.load %arg10[%c0_40, %c0_41] : memref<16x144xbf16, #tpu.memory_space<vmem>>, vector<16x144xbf16>
    %c0_42 = arith.constant 0 : index
    %c0_43 = arith.constant 0 : index
    %100 = vector.load %arg13[%c0_42, %c0_43] : memref<144x64xf32, #tpu.memory_space<vmem>>, vector<144x64xf32>
    %101 = arith.truncf %100 : vector<144x64xf32> to vector<144x64xbf16>
    %cst_44 = arith.constant dense<0.000000e+00> : vector<16x64xf32>
    %102 = tpu.matmul %99, %101, %cst_44 {dimension_numbers = #tpu.dot_dimension_numbers<[1], [0], [0], [1], [0, 0, 1, 1], [], []>} : vector<16x144xbf16>, vector<144x64xbf16>, vector<16x64xf32> -> vector<16x64xf32>
    %c0_45 = arith.constant 0 : index
    %c0_46 = arith.constant 0 : index
    %103 = vector.load %arg11[%c0_45, %c0_46] : memref<16x1xf32, #tpu.memory_space<vmem>>, vector<16x1xf32>
    %104 = vector.broadcast %103 : vector<16x1xf32> to vector<16x64xf32>
    %105 = arith.addf %102, %104 : vector<16x64xf32>
    %c0_47 = arith.constant 0 : index
    %c0_48 = arith.constant 0 : index
    %c0_49 = arith.constant 0 : index
    %106 = vector.load %arg12[%c0_47, %c0_48, %c0_49] : memref<1x16x64xf32, #tpu.memory_space<vmem>>, vector<1x16x64xf32>
    %107 = vector.shape_cast %106 : vector<1x16x64xf32> to vector<16x64xf32>
    %108 = vector.shape_cast %105 : vector<16x64xf32> to vector<1x16x64xf32>
    tpu.vector_store %arg12[%c0_47, %c0_48, %c0_49], %108 {strides = array<i32>} : memref<1x16x64xf32, #tpu.memory_space<vmem>>, vector<1x16x64xf32>,
    return
  }
  func.func @transform_0(%arg0: i32) -> (i32, i32, i32) {
    %c0_i32 = arith.constant 0 : i32
    %c0_i32_0 = arith.constant 0 : i32
    %c0_i32_1 = arith.constant 0 : i32
    return %arg0, %c0_i32, %c0_i32_0 : i32, i32, i32
  }
  func.func @transform_1(%arg0: i32) -> (i32, i32) {
    %c0_i32 = arith.constant 0 : i32
    %c0_i32_0 = arith.constant 0 : i32
    %c0_i32_1 = arith.constant 0 : i32
    return %c0_i32, %c0_i32_0 : i32, i32
  }
  func.func @transform_2(%arg0: i32) -> (i32, i32) {
    %c0_i32 = arith.constant 0 : i32
    %c0_i32_0 = arith.constant 0 : i32
    %c0_i32_1 = arith.constant 0 : i32
    return %c0_i32, %c0_i32_0 : i32, i32
  }
  func.func @transform_3(%arg0: i32) -> (i32, i32) {
    %c0_i32 = arith.constant 0 : i32
    %c0_i32_0 = arith.constant 0 : i32
    %c0_i32_1 = arith.constant 0 : i32
    return %c0_i32, %c0_i32_0 : i32, i32
  }
  func.func @transform_4(%arg0: i32) -> (i32, i32) {
    %c0_i32 = arith.constant 0 : i32
    %c0_i32_0 = arith.constant 0 : i32
    %c0_i32_1 = arith.constant 0 : i32
    return %c0_i32, %c0_i32_0 : i32, i32
  }
  func.func @transform_5(%arg0: i32) -> (i32, i32, i32) {
    %c0_i32 = arith.constant 0 : i32
    %c0_i32_0 = arith.constant 0 : i32
    %c0_i32_1 = arith.constant 0 : i32
    return %arg0, %c0_i32, %c0_i32_0 : i32, i32, i32
  }
  func.func @transform_6(%arg0: i32) -> (i32, i32) {
    %c0_i32 = arith.constant 0 : i32
    %c0_i32_0 = arith.constant 0 : i32
    %c0_i32_1 = arith.constant 0 : i32
    return %c0_i32, %c0_i32_0 : i32, i32
  }
  func.func @transform_7(%arg0: i32) -> (i32, i32) {
    %c0_i32 = arith.constant 0 : i32
    %c0_i32_0 = arith.constant 0 : i32
    %c0_i32_1 = arith.constant 0 : i32
    return %c0_i32, %c0_i32_0 : i32, i32
  }
  func.func @transform_8(%arg0: i32) -> (i32, i32) {
    %c0_i32 = arith.constant 0 : i32
    %c0_i32_0 = arith.constant 0 : i32
    %c0_i32_1 = arith.constant 0 : i32
    return %c0_i32, %c0_i32_0 : i32, i32
  }
  func.func @transform_9(%arg0: i32) -> (i32, i32) {
    %c0_i32 = arith.constant 0 : i32
    %c0_i32_0 = arith.constant 0 : i32
    %c0_i32_1 = arith.constant 0 : i32
    return %c0_i32, %c0_i32_0 : i32, i32
  }
  func.func @transform_10(%arg0: i32) -> (i32, i32) {
    %c0_i32 = arith.constant 0 : i32
    %c0_i32_0 = arith.constant 0 : i32
    %c0_i32_1 = arith.constant 0 : i32
    return %c0_i32, %c0_i32_0 : i32, i32
  }
  func.func @transform_11(%arg0: i32) -> (i32, i32, i32) {
    %c0_i32 = arith.constant 0 : i32
    %c0_i32_0 = arith.constant 0 : i32
    %c0_i32_1 = arith.constant 0 : i32
    return %arg0, %c0_i32, %c0_i32_0 : i32, i32, i32
  }
}

module attributes {stable_mosaic.version = 11 : i64} {
  func.func @_fused_stage_kernel(%arg0: i32, %arg1: memref<1x8x256xf32, #tpu.memory_space<vmem>>, %arg2: memref<256x64xf32, #tpu.memory_space<vmem>>, %arg3: memref<9x64xf32, #tpu.memory_space<vmem>>, %arg4: memref<16x72xbf16, #tpu.memory_space<vmem>>, %arg5: memref<16x1xf32, #tpu.memory_space<vmem>>, %arg6: memref<1x16x64xf32, #tpu.memory_space<vmem>>, %arg7: memref<1x16x64xf32, #tpu.memory_space<vmem>>, %arg8: memref<72x64xf32, #tpu.memory_space<vmem>>) attributes {dimension_semantics = [#tpu.dimension_semantics<parallel>], iteration_bounds = array<i64: 2>, scalar_prefetch = 0 : i64, scratch_operands = 1 : i64, tpu.core_type = #tpu.core_type<tc>, window_params = [{transform_indices = @transform_0, window_bounds = array<i64: 1, 8, 256>}, {pipeline_mode = #tpu.pipeline_mode<synchronous>, transform_indices = @transform_1, window_bounds = array<i64: 256, 64>}, {pipeline_mode = #tpu.pipeline_mode<synchronous>, transform_indices = @transform_2, window_bounds = array<i64: 9, 64>}, {pipeline_mode = #tpu.pipeline_mode<synchronous>, transform_indices = @transform_3, window_bounds = array<i64: 16, 72>}, {pipeline_mode = #tpu.pipeline_mode<synchronous>, transform_indices = @transform_4, window_bounds = array<i64: 16, 1>}, {transform_indices = @transform_5, window_bounds = array<i64: 1, 16, 64>}, {transform_indices = @transform_6, window_bounds = array<i64: 1, 16, 64>}]} {
    %c0 = arith.constant 0 : index
    %c0_0 = arith.constant 0 : index
    %c0_1 = arith.constant 0 : index
    %0 = vector.load %arg1[%c0, %c0_0, %c0_1] : memref<1x8x256xf32, #tpu.memory_space<vmem>>, vector<1x8x256xf32>
    %1 = vector.shape_cast %0 : vector<1x8x256xf32> to vector<8x256xf32>
    %c0_2 = arith.constant 0 : index
    %c0_3 = arith.constant 0 : index
    %2 = vector.load %arg2[%c0_2, %c0_3] : memref<256x64xf32, #tpu.memory_space<vmem>>, vector<256x64xf32>
    %cst = arith.constant dense<0.000000e+00> : vector<8x64xf32>
    %3 = tpu.matmul %1, %2, %cst {dimension_numbers = #tpu.dot_dimension_numbers<[1], [0], [0], [1], [0, 0, 1, 1], [], []>} : vector<8x256xf32>, vector<256x64xf32>, vector<8x64xf32> -> vector<8x64xf32>
    %c0_4 = arith.constant 0 : index
    %c0_5 = arith.constant 0 : index
    %4 = vector.load %arg3[%c0_4, %c0_5] : memref<9x64xf32, #tpu.memory_space<vmem>>, vector<9x64xf32>
    %c9_i32 = arith.constant 9 : i32
    %5 = tpu.dynamic_rotate %3 by %c9_i32 dim 1 : vector<8x64xf32>, i32 -> vector<8x64xf32>
    %6 = vector.extract_strided_slice %4 {offsets = [0, 0], sizes = [1, 64], strides = [1, 1]} : vector<9x64xf32> to vector<1x64xf32>
    %7 = vector.broadcast %6 : vector<1x64xf32> to vector<8x64xf32>
    %8 = arith.mulf %5, %7 : vector<8x64xf32>
    %c0_6 = arith.constant 0 : index
    %c0_7 = arith.constant 0 : index
    %9 = vector.load %arg8[%c0_6, %c0_7] : memref<72x64xf32, #tpu.memory_space<vmem>>, vector<8x64xf32>
    tpu.vector_store %arg8[%c0_6, %c0_7], %8 {strides = array<i32>} : memref<72x64xf32, #tpu.memory_space<vmem>>, vector<8x64xf32>,
    %c8_i32 = arith.constant 8 : i32
    %10 = tpu.dynamic_rotate %3 by %c8_i32 dim 1 : vector<8x64xf32>, i32 -> vector<8x64xf32>
    %11 = vector.extract_strided_slice %4 {offsets = [1, 0], sizes = [1, 64], strides = [1, 1]} : vector<9x64xf32> to vector<1x64xf32>
    %12 = vector.broadcast %11 : vector<1x64xf32> to vector<8x64xf32>
    %13 = arith.mulf %10, %12 : vector<8x64xf32>
    %c8 = arith.constant 8 : index
    %c0_8 = arith.constant 0 : index
    %14 = vector.load %arg8[%c8, %c0_8] : memref<72x64xf32, #tpu.memory_space<vmem>>, vector<8x64xf32>
    tpu.vector_store %arg8[%c8, %c0_8], %13 {strides = array<i32>} : memref<72x64xf32, #tpu.memory_space<vmem>>, vector<8x64xf32>,
    %c7_i32 = arith.constant 7 : i32
    %15 = tpu.dynamic_rotate %3 by %c7_i32 dim 1 : vector<8x64xf32>, i32 -> vector<8x64xf32>
    %16 = vector.extract_strided_slice %4 {offsets = [2, 0], sizes = [1, 64], strides = [1, 1]} : vector<9x64xf32> to vector<1x64xf32>
    %17 = vector.broadcast %16 : vector<1x64xf32> to vector<8x64xf32>
    %18 = arith.mulf %15, %17 : vector<8x64xf32>
    %c16 = arith.constant 16 : index
    %c0_9 = arith.constant 0 : index
    %19 = vector.load %arg8[%c16, %c0_9] : memref<72x64xf32, #tpu.memory_space<vmem>>, vector<8x64xf32>
    tpu.vector_store %arg8[%c16, %c0_9], %18 {strides = array<i32>} : memref<72x64xf32, #tpu.memory_space<vmem>>, vector<8x64xf32>,
    %c1_i32 = arith.constant 1 : i32
    %20 = tpu.dynamic_rotate %3 by %c1_i32 dim 1 : vector<8x64xf32>, i32 -> vector<8x64xf32>
    %21 = vector.extract_strided_slice %4 {offsets = [3, 0], sizes = [1, 64], strides = [1, 1]} : vector<9x64xf32> to vector<1x64xf32>
    %22 = vector.broadcast %21 : vector<1x64xf32> to vector<8x64xf32>
    %23 = arith.mulf %20, %22 : vector<8x64xf32>
    %c24 = arith.constant 24 : index
    %c0_10 = arith.constant 0 : index
    %24 = vector.load %arg8[%c24, %c0_10] : memref<72x64xf32, #tpu.memory_space<vmem>>, vector<8x64xf32>
    tpu.vector_store %arg8[%c24, %c0_10], %23 {strides = array<i32>} : memref<72x64xf32, #tpu.memory_space<vmem>>, vector<8x64xf32>,
    %25 = vector.extract_strided_slice %4 {offsets = [4, 0], sizes = [1, 64], strides = [1, 1]} : vector<9x64xf32> to vector<1x64xf32>
    %26 = vector.broadcast %25 : vector<1x64xf32> to vector<8x64xf32>
    %27 = arith.mulf %3, %26 : vector<8x64xf32>
    %c32 = arith.constant 32 : index
    %c0_11 = arith.constant 0 : index
    %28 = vector.load %arg8[%c32, %c0_11] : memref<72x64xf32, #tpu.memory_space<vmem>>, vector<8x64xf32>
    tpu.vector_store %arg8[%c32, %c0_11], %27 {strides = array<i32>} : memref<72x64xf32, #tpu.memory_space<vmem>>, vector<8x64xf32>,
    %c63_i32 = arith.constant 63 : i32
    %29 = tpu.dynamic_rotate %3 by %c63_i32 dim 1 : vector<8x64xf32>, i32 -> vector<8x64xf32>
    %30 = vector.extract_strided_slice %4 {offsets = [5, 0], sizes = [1, 64], strides = [1, 1]} : vector<9x64xf32> to vector<1x64xf32>
    %31 = vector.broadcast %30 : vector<1x64xf32> to vector<8x64xf32>
    %32 = arith.mulf %29, %31 : vector<8x64xf32>
    %c40 = arith.constant 40 : index
    %c0_12 = arith.constant 0 : index
    %33 = vector.load %arg8[%c40, %c0_12] : memref<72x64xf32, #tpu.memory_space<vmem>>, vector<8x64xf32>
    tpu.vector_store %arg8[%c40, %c0_12], %32 {strides = array<i32>} : memref<72x64xf32, #tpu.memory_space<vmem>>, vector<8x64xf32>,
    %c57_i32 = arith.constant 57 : i32
    %34 = tpu.dynamic_rotate %3 by %c57_i32 dim 1 : vector<8x64xf32>, i32 -> vector<8x64xf32>
    %35 = vector.extract_strided_slice %4 {offsets = [6, 0], sizes = [1, 64], strides = [1, 1]} : vector<9x64xf32> to vector<1x64xf32>
    %36 = vector.broadcast %35 : vector<1x64xf32> to vector<8x64xf32>
    %37 = arith.mulf %34, %36 : vector<8x64xf32>
    %c48 = arith.constant 48 : index
    %c0_13 = arith.constant 0 : index
    %38 = vector.load %arg8[%c48, %c0_13] : memref<72x64xf32, #tpu.memory_space<vmem>>, vector<8x64xf32>
    tpu.vector_store %arg8[%c48, %c0_13], %37 {strides = array<i32>} : memref<72x64xf32, #tpu.memory_space<vmem>>, vector<8x64xf32>,
    %c56_i32 = arith.constant 56 : i32
    %39 = tpu.dynamic_rotate %3 by %c56_i32 dim 1 : vector<8x64xf32>, i32 -> vector<8x64xf32>
    %40 = vector.extract_strided_slice %4 {offsets = [7, 0], sizes = [1, 64], strides = [1, 1]} : vector<9x64xf32> to vector<1x64xf32>
    %41 = vector.broadcast %40 : vector<1x64xf32> to vector<8x64xf32>
    %42 = arith.mulf %39, %41 : vector<8x64xf32>
    %c56 = arith.constant 56 : index
    %c0_14 = arith.constant 0 : index
    %43 = vector.load %arg8[%c56, %c0_14] : memref<72x64xf32, #tpu.memory_space<vmem>>, vector<8x64xf32>
    tpu.vector_store %arg8[%c56, %c0_14], %42 {strides = array<i32>} : memref<72x64xf32, #tpu.memory_space<vmem>>, vector<8x64xf32>,
    %c55_i32 = arith.constant 55 : i32
    %44 = tpu.dynamic_rotate %3 by %c55_i32 dim 1 : vector<8x64xf32>, i32 -> vector<8x64xf32>
    %45 = vector.extract_strided_slice %4 {offsets = [8, 0], sizes = [1, 64], strides = [1, 1]} : vector<9x64xf32> to vector<1x64xf32>
    %46 = vector.broadcast %45 : vector<1x64xf32> to vector<8x64xf32>
    %47 = arith.mulf %44, %46 : vector<8x64xf32>
    %c64 = arith.constant 64 : index
    %c0_15 = arith.constant 0 : index
    %48 = vector.load %arg8[%c64, %c0_15] : memref<72x64xf32, #tpu.memory_space<vmem>>, vector<8x64xf32>
    tpu.vector_store %arg8[%c64, %c0_15], %47 {strides = array<i32>} : memref<72x64xf32, #tpu.memory_space<vmem>>, vector<8x64xf32>,
    %c0_16 = arith.constant 0 : index
    %c0_17 = arith.constant 0 : index
    %49 = vector.load %arg4[%c0_16, %c0_17] : memref<16x72xbf16, #tpu.memory_space<vmem>>, vector<16x72xbf16>
    %c0_18 = arith.constant 0 : index
    %c0_19 = arith.constant 0 : index
    %50 = vector.load %arg8[%c0_18, %c0_19] : memref<72x64xf32, #tpu.memory_space<vmem>>, vector<72x64xf32>
    %51 = arith.truncf %50 : vector<72x64xf32> to vector<72x64xbf16>
    %cst_20 = arith.constant dense<0.000000e+00> : vector<16x64xf32>
    %52 = tpu.matmul %49, %51, %cst_20 {dimension_numbers = #tpu.dot_dimension_numbers<[1], [0], [0], [1], [0, 0, 1, 1], [], []>} : vector<16x72xbf16>, vector<72x64xbf16>, vector<16x64xf32> -> vector<16x64xf32>
    %c0_21 = arith.constant 0 : index
    %c0_22 = arith.constant 0 : index
    %53 = vector.load %arg5[%c0_21, %c0_22] : memref<16x1xf32, #tpu.memory_space<vmem>>, vector<16x1xf32>
    %54 = vector.broadcast %53 : vector<16x1xf32> to vector<16x64xf32>
    %55 = arith.addf %52, %54 : vector<16x64xf32>
    %c0_23 = arith.constant 0 : index
    %c0_24 = arith.constant 0 : index
    %c0_25 = arith.constant 0 : index
    %56 = vector.load %arg6[%c0_23, %c0_24, %c0_25] : memref<1x16x64xf32, #tpu.memory_space<vmem>>, vector<1x16x64xf32>
    %57 = vector.shape_cast %56 : vector<1x16x64xf32> to vector<16x64xf32>
    %58 = arith.addf %55, %57 : vector<16x64xf32>
    %c0_26 = arith.constant 0 : index
    %c0_27 = arith.constant 0 : index
    %c0_28 = arith.constant 0 : index
    %59 = vector.load %arg7[%c0_26, %c0_27, %c0_28] : memref<1x16x64xf32, #tpu.memory_space<vmem>>, vector<1x16x64xf32>
    %60 = vector.shape_cast %59 : vector<1x16x64xf32> to vector<16x64xf32>
    %61 = vector.shape_cast %58 : vector<16x64xf32> to vector<1x16x64xf32>
    tpu.vector_store %arg7[%c0_26, %c0_27, %c0_28], %61 {strides = array<i32>} : memref<1x16x64xf32, #tpu.memory_space<vmem>>, vector<1x16x64xf32>,
    return
  }
  func.func @transform_0(%arg0: i32) -> (i32, i32, i32) {
    %c0_i32 = arith.constant 0 : i32
    %c0_i32_0 = arith.constant 0 : i32
    %c0_i32_1 = arith.constant 0 : i32
    return %arg0, %c0_i32, %c0_i32_0 : i32, i32, i32
  }
  func.func @transform_1(%arg0: i32) -> (i32, i32) {
    %c0_i32 = arith.constant 0 : i32
    %c0_i32_0 = arith.constant 0 : i32
    %c0_i32_1 = arith.constant 0 : i32
    return %c0_i32, %c0_i32_0 : i32, i32
  }
  func.func @transform_2(%arg0: i32) -> (i32, i32) {
    %c0_i32 = arith.constant 0 : i32
    %c0_i32_0 = arith.constant 0 : i32
    %c0_i32_1 = arith.constant 0 : i32
    return %c0_i32, %c0_i32_0 : i32, i32
  }
  func.func @transform_3(%arg0: i32) -> (i32, i32) {
    %c0_i32 = arith.constant 0 : i32
    %c0_i32_0 = arith.constant 0 : i32
    %c0_i32_1 = arith.constant 0 : i32
    return %c0_i32, %c0_i32_0 : i32, i32
  }
  func.func @transform_4(%arg0: i32) -> (i32, i32) {
    %c0_i32 = arith.constant 0 : i32
    %c0_i32_0 = arith.constant 0 : i32
    %c0_i32_1 = arith.constant 0 : i32
    return %c0_i32, %c0_i32_0 : i32, i32
  }
  func.func @transform_5(%arg0: i32) -> (i32, i32, i32) {
    %c0_i32 = arith.constant 0 : i32
    %c0_i32_0 = arith.constant 0 : i32
    %c0_i32_1 = arith.constant 0 : i32
    return %arg0, %c0_i32, %c0_i32_0 : i32, i32, i32
  }
  func.func @transform_6(%arg0: i32) -> (i32, i32, i32) {
    %c0_i32 = arith.constant 0 : i32
    %c0_i32_0 = arith.constant 0 : i32
    %c0_i32_1 = arith.constant 0 : i32
    return %arg0, %c0_i32, %c0_i32_0 : i32, i32, i32
  }
}

module attributes {stable_mosaic.version = 11 : i64} {
  func.func @_fused_stage_kernel(%arg0: i32, %arg1: memref<1x16x64xf32, #tpu.memory_space<vmem>>, %arg2: memref<16x1xf32, #tpu.memory_space<vmem>>, %arg3: memref<16x1xf32, #tpu.memory_space<vmem>>, %arg4: memref<16x4xf32, #tpu.memory_space<vmem>>, %arg5: memref<4x16xf32, #tpu.memory_space<vmem>>, %arg6: memref<1x16x1xf32, #tpu.memory_space<vmem>>, %arg7: memref<16x16xf32, #tpu.memory_space<vmem>>, %arg8: memref<16x1xf32, #tpu.memory_space<vmem>>, %arg9: memref<9x64xf32, #tpu.memory_space<vmem>>, %arg10: memref<16x144xbf16, #tpu.memory_space<vmem>>, %arg11: memref<16x1xf32, #tpu.memory_space<vmem>>, %arg12: memref<1x16x64xf32, #tpu.memory_space<vmem>>, %arg13: memref<1x16x64xf32, #tpu.memory_space<vmem>>, %arg14: memref<144x64xf32, #tpu.memory_space<vmem>>) attributes {dimension_semantics = [#tpu.dimension_semantics<parallel>], iteration_bounds = array<i64: 2>, scalar_prefetch = 0 : i64, scratch_operands = 1 : i64, tpu.core_type = #tpu.core_type<tc>, window_params = [{transform_indices = @transform_0, window_bounds = array<i64: 1, 16, 64>}, {pipeline_mode = #tpu.pipeline_mode<synchronous>, transform_indices = @transform_1, window_bounds = array<i64: 16, 1>}, {pipeline_mode = #tpu.pipeline_mode<synchronous>, transform_indices = @transform_2, window_bounds = array<i64: 16, 1>}, {pipeline_mode = #tpu.pipeline_mode<synchronous>, transform_indices = @transform_3, window_bounds = array<i64: 16, 4>}, {pipeline_mode = #tpu.pipeline_mode<synchronous>, transform_indices = @transform_4, window_bounds = array<i64: 4, 16>}, {transform_indices = @transform_5, window_bounds = array<i64: 1, 16, 1>}, {pipeline_mode = #tpu.pipeline_mode<synchronous>, transform_indices = @transform_6, window_bounds = array<i64: 16, 16>}, {pipeline_mode = #tpu.pipeline_mode<synchronous>, transform_indices = @transform_7, window_bounds = array<i64: 16, 1>}, {pipeline_mode = #tpu.pipeline_mode<synchronous>, transform_indices = @transform_8, window_bounds = array<i64: 9, 64>}, {pipeline_mode = #tpu.pipeline_mode<synchronous>, transform_indices = @transform_9, window_bounds = array<i64: 16, 144>}, {pipeline_mode = #tpu.pipeline_mode<synchronous>, transform_indices = @transform_10, window_bounds = array<i64: 16, 1>}, {transform_indices = @transform_11, window_bounds = array<i64: 1, 16, 64>}, {transform_indices = @transform_12, window_bounds = array<i64: 1, 16, 64>}]} {
    %c0 = arith.constant 0 : index
    %c0_0 = arith.constant 0 : index
    %c0_1 = arith.constant 0 : index
    %0 = vector.load %arg1[%c0, %c0_0, %c0_1] : memref<1x16x64xf32, #tpu.memory_space<vmem>>, vector<1x16x64xf32>
    %1 = vector.shape_cast %0 : vector<1x16x64xf32> to vector<16x64xf32>
    %c0_2 = arith.constant 0 : index
    %c0_3 = arith.constant 0 : index
    %c0_4 = arith.constant 0 : index
    %2 = vector.load %arg6[%c0_2, %c0_3, %c0_4] : memref<1x16x1xf32, #tpu.memory_space<vmem>>, vector<1x16x1xf32>
    %3 = vector.shape_cast %2 : vector<1x16x1xf32> to vector<16x1xf32>
    %4 = arith.negf %3 : vector<16x1xf32>
    %5 = math.exp %4 : vector<16x1xf32>
    %cst = arith.constant 1.000000e+00 : f32
    %6 = vector.broadcast %cst : f32 to vector<16x1xf32>
    %7 = arith.addf %6, %5 : vector<16x1xf32>
    %8 = arith.divf %6, %7 : vector<16x1xf32>
    %9 = arith.mulf %3, %8 : vector<16x1xf32>
    %10 = vector.shape_cast %9 : vector<16x1xf32> to vector<16x1xf32>
    %11 = vector.broadcast %10 : vector<16x1xf32> to vector<16x64xf32>
    %c0_5 = arith.constant 0 : index
    %c0_6 = arith.constant 0 : index
    %12 = vector.load %arg7[%c0_5, %c0_6] : memref<16x16xf32, #tpu.memory_space<vmem>>, vector<16x16xf32>
    %cst_7 = arith.constant dense<0.000000e+00> : vector<16x64xf32>
    %13 = tpu.matmul %12, %11, %cst_7 {dimension_numbers = #tpu.dot_dimension_numbers<[1], [0], [0], [1], [0, 0, 1, 1], [], []>} : vector<16x16xf32>, vector<16x64xf32>, vector<16x64xf32> -> vector<16x64xf32>
    %14 = arith.addf %1, %13 : vector<16x64xf32>
    %c0_8 = arith.constant 0 : index
    %c0_9 = arith.constant 0 : index
    %15 = vector.load %arg8[%c0_8, %c0_9] : memref<16x1xf32, #tpu.memory_space<vmem>>, vector<16x1xf32>
    %16 = vector.broadcast %15 : vector<16x1xf32> to vector<16x64xf32>
    %17 = arith.addf %14, %16 : vector<16x64xf32>
    %c0_10 = arith.constant 0 : index
    %c0_11 = arith.constant 0 : index
    %18 = vector.load %arg4[%c0_10, %c0_11] : memref<16x4xf32, #tpu.memory_space<vmem>>, vector<16x4xf32>
    %c0_12 = arith.constant 0 : index
    %c0_13 = arith.constant 0 : index
    %19 = vector.load %arg5[%c0_12, %c0_13] : memref<4x16xf32, #tpu.memory_space<vmem>>, vector<4x16xf32>
    %cst_14 = arith.constant dense<0.000000e+00> : vector<4x64xf32>
    %20 = tpu.matmul %19, %17, %cst_14 {dimension_numbers = #tpu.dot_dimension_numbers<[1], [0], [0], [1], [0, 0, 1, 1], [], []>} : vector<4x16xf32>, vector<16x64xf32>, vector<4x64xf32> -> vector<4x64xf32>
    %cst_15 = arith.constant dense<0.000000e+00> : vector<4xf32>
    %21 = vector.multi_reduction <add>, %20, %cst_15 [1] : vector<4x64xf32> to vector<4xf32>
    %22 = vector.shape_cast %21 : vector<4xf32> to vector<4x1xf32>
    %cst_16 = arith.constant 2.560000e+02 : f32
    %23 = vector.broadcast %cst_16 : f32 to vector<4x1xf32>
    %24 = arith.divf %22, %23 : vector<4x1xf32>
    %25 = vector.shape_cast %24 : vector<4x1xf32> to vector<4x1xf32>
    %26 = vector.broadcast %25 : vector<4x1xf32> to vector<4x64xf32>
    %cst_17 = arith.constant dense<0.000000e+00> : vector<16x64xf32>
    %27 = tpu.matmul %18, %26, %cst_17 {dimension_numbers = #tpu.dot_dimension_numbers<[1], [0], [0], [1], [0, 0, 1, 1], [], []>} : vector<16x4xf32>, vector<4x64xf32>, vector<16x64xf32> -> vector<16x64xf32>
    %28 = arith.subf %17, %27 : vector<16x64xf32>
    %29 = arith.mulf %28, %28 : vector<16x64xf32>
    %cst_18 = arith.constant dense<0.000000e+00> : vector<4x64xf32>
    %30 = tpu.matmul %19, %29, %cst_18 {dimension_numbers = #tpu.dot_dimension_numbers<[1], [0], [0], [1], [0, 0, 1, 1], [], []>} : vector<4x16xf32>, vector<16x64xf32>, vector<4x64xf32> -> vector<4x64xf32>
    %cst_19 = arith.constant dense<0.000000e+00> : vector<4xf32>
    %31 = vector.multi_reduction <add>, %30, %cst_19 [1] : vector<4x64xf32> to vector<4xf32>
    %32 = vector.shape_cast %31 : vector<4xf32> to vector<4x1xf32>
    %cst_20 = arith.constant 2.560000e+02 : f32
    %33 = vector.broadcast %cst_20 : f32 to vector<4x1xf32>
    %34 = arith.divf %32, %33 : vector<4x1xf32>
    %cst_21 = arith.constant 9.99999974E-6 : f32
    %35 = vector.broadcast %cst_21 : f32 to vector<4x1xf32>
    %36 = arith.addf %34, %35 : vector<4x1xf32>
    %37 = math.rsqrt %36 : vector<4x1xf32>
    %38 = vector.shape_cast %37 : vector<4x1xf32> to vector<4x1xf32>
    %39 = vector.broadcast %38 : vector<4x1xf32> to vector<4x64xf32>
    %cst_22 = arith.constant dense<0.000000e+00> : vector<16x64xf32>
    %40 = tpu.matmul %18, %39, %cst_22 {dimension_numbers = #tpu.dot_dimension_numbers<[1], [0], [0], [1], [0, 0, 1, 1], [], []>} : vector<16x4xf32>, vector<4x64xf32>, vector<16x64xf32> -> vector<16x64xf32>
    %41 = arith.mulf %28, %40 : vector<16x64xf32>
    %c0_23 = arith.constant 0 : index
    %c0_24 = arith.constant 0 : index
    %42 = vector.load %arg2[%c0_23, %c0_24] : memref<16x1xf32, #tpu.memory_space<vmem>>, vector<16x1xf32>
    %43 = vector.broadcast %42 : vector<16x1xf32> to vector<16x64xf32>
    %44 = arith.mulf %41, %43 : vector<16x64xf32>
    %c0_25 = arith.constant 0 : index
    %c0_26 = arith.constant 0 : index
    %45 = vector.load %arg3[%c0_25, %c0_26] : memref<16x1xf32, #tpu.memory_space<vmem>>, vector<16x1xf32>
    %46 = vector.broadcast %45 : vector<16x1xf32> to vector<16x64xf32>
    %47 = arith.addf %44, %46 : vector<16x64xf32>
    %48 = arith.negf %47 : vector<16x64xf32>
    %49 = math.exp %48 : vector<16x64xf32>
    %cst_27 = arith.constant 1.000000e+00 : f32
    %50 = vector.broadcast %cst_27 : f32 to vector<16x64xf32>
    %51 = arith.addf %50, %49 : vector<16x64xf32>
    %52 = arith.divf %50, %51 : vector<16x64xf32>
    %53 = arith.mulf %47, %52 : vector<16x64xf32>
    %c0_28 = arith.constant 0 : index
    %c0_29 = arith.constant 0 : index
    %54 = vector.load %arg9[%c0_28, %c0_29] : memref<9x64xf32, #tpu.memory_space<vmem>>, vector<9x64xf32>
    %c9_i32 = arith.constant 9 : i32
    %55 = tpu.dynamic_rotate %53 by %c9_i32 dim 1 : vector<16x64xf32>, i32 -> vector<16x64xf32>
    %56 = vector.extract_strided_slice %54 {offsets = [0, 0], sizes = [1, 64], strides = [1, 1]} : vector<9x64xf32> to vector<1x64xf32>
    %57 = vector.broadcast %56 : vector<1x64xf32> to vector<16x64xf32>
    %58 = arith.mulf %55, %57 : vector<16x64xf32>
    %c0_30 = arith.constant 0 : index
    %c0_31 = arith.constant 0 : index
    %59 = vector.load %arg14[%c0_30, %c0_31] : memref<144x64xf32, #tpu.memory_space<vmem>>, vector<16x64xf32>
    tpu.vector_store %arg14[%c0_30, %c0_31], %58 {strides = array<i32>} : memref<144x64xf32, #tpu.memory_space<vmem>>, vector<16x64xf32>,
    %c8_i32 = arith.constant 8 : i32
    %60 = tpu.dynamic_rotate %53 by %c8_i32 dim 1 : vector<16x64xf32>, i32 -> vector<16x64xf32>
    %61 = vector.extract_strided_slice %54 {offsets = [1, 0], sizes = [1, 64], strides = [1, 1]} : vector<9x64xf32> to vector<1x64xf32>
    %62 = vector.broadcast %61 : vector<1x64xf32> to vector<16x64xf32>
    %63 = arith.mulf %60, %62 : vector<16x64xf32>
    %c16 = arith.constant 16 : index
    %c0_32 = arith.constant 0 : index
    %64 = vector.load %arg14[%c16, %c0_32] : memref<144x64xf32, #tpu.memory_space<vmem>>, vector<16x64xf32>
    tpu.vector_store %arg14[%c16, %c0_32], %63 {strides = array<i32>} : memref<144x64xf32, #tpu.memory_space<vmem>>, vector<16x64xf32>,
    %c7_i32 = arith.constant 7 : i32
    %65 = tpu.dynamic_rotate %53 by %c7_i32 dim 1 : vector<16x64xf32>, i32 -> vector<16x64xf32>
    %66 = vector.extract_strided_slice %54 {offsets = [2, 0], sizes = [1, 64], strides = [1, 1]} : vector<9x64xf32> to vector<1x64xf32>
    %67 = vector.broadcast %66 : vector<1x64xf32> to vector<16x64xf32>
    %68 = arith.mulf %65, %67 : vector<16x64xf32>
    %c32 = arith.constant 32 : index
    %c0_33 = arith.constant 0 : index
    %69 = vector.load %arg14[%c32, %c0_33] : memref<144x64xf32, #tpu.memory_space<vmem>>, vector<16x64xf32>
    tpu.vector_store %arg14[%c32, %c0_33], %68 {strides = array<i32>} : memref<144x64xf32, #tpu.memory_space<vmem>>, vector<16x64xf32>,
    %c1_i32 = arith.constant 1 : i32
    %70 = tpu.dynamic_rotate %53 by %c1_i32 dim 1 : vector<16x64xf32>, i32 -> vector<16x64xf32>
    %71 = vector.extract_strided_slice %54 {offsets = [3, 0], sizes = [1, 64], strides = [1, 1]} : vector<9x64xf32> to vector<1x64xf32>
    %72 = vector.broadcast %71 : vector<1x64xf32> to vector<16x64xf32>
    %73 = arith.mulf %70, %72 : vector<16x64xf32>
    %c48 = arith.constant 48 : index
    %c0_34 = arith.constant 0 : index
    %74 = vector.load %arg14[%c48, %c0_34] : memref<144x64xf32, #tpu.memory_space<vmem>>, vector<16x64xf32>
    tpu.vector_store %arg14[%c48, %c0_34], %73 {strides = array<i32>} : memref<144x64xf32, #tpu.memory_space<vmem>>, vector<16x64xf32>,
    %75 = vector.extract_strided_slice %54 {offsets = [4, 0], sizes = [1, 64], strides = [1, 1]} : vector<9x64xf32> to vector<1x64xf32>
    %76 = vector.broadcast %75 : vector<1x64xf32> to vector<16x64xf32>
    %77 = arith.mulf %53, %76 : vector<16x64xf32>
    %c64 = arith.constant 64 : index
    %c0_35 = arith.constant 0 : index
    %78 = vector.load %arg14[%c64, %c0_35] : memref<144x64xf32, #tpu.memory_space<vmem>>, vector<16x64xf32>
    tpu.vector_store %arg14[%c64, %c0_35], %77 {strides = array<i32>} : memref<144x64xf32, #tpu.memory_space<vmem>>, vector<16x64xf32>,
    %c63_i32 = arith.constant 63 : i32
    %79 = tpu.dynamic_rotate %53 by %c63_i32 dim 1 : vector<16x64xf32>, i32 -> vector<16x64xf32>
    %80 = vector.extract_strided_slice %54 {offsets = [5, 0], sizes = [1, 64], strides = [1, 1]} : vector<9x64xf32> to vector<1x64xf32>
    %81 = vector.broadcast %80 : vector<1x64xf32> to vector<16x64xf32>
    %82 = arith.mulf %79, %81 : vector<16x64xf32>
    %c80 = arith.constant 80 : index
    %c0_36 = arith.constant 0 : index
    %83 = vector.load %arg14[%c80, %c0_36] : memref<144x64xf32, #tpu.memory_space<vmem>>, vector<16x64xf32>
    tpu.vector_store %arg14[%c80, %c0_36], %82 {strides = array<i32>} : memref<144x64xf32, #tpu.memory_space<vmem>>, vector<16x64xf32>,
    %c57_i32 = arith.constant 57 : i32
    %84 = tpu.dynamic_rotate %53 by %c57_i32 dim 1 : vector<16x64xf32>, i32 -> vector<16x64xf32>
    %85 = vector.extract_strided_slice %54 {offsets = [6, 0], sizes = [1, 64], strides = [1, 1]} : vector<9x64xf32> to vector<1x64xf32>
    %86 = vector.broadcast %85 : vector<1x64xf32> to vector<16x64xf32>
    %87 = arith.mulf %84, %86 : vector<16x64xf32>
    %c96 = arith.constant 96 : index
    %c0_37 = arith.constant 0 : index
    %88 = vector.load %arg14[%c96, %c0_37] : memref<144x64xf32, #tpu.memory_space<vmem>>, vector<16x64xf32>
    tpu.vector_store %arg14[%c96, %c0_37], %87 {strides = array<i32>} : memref<144x64xf32, #tpu.memory_space<vmem>>, vector<16x64xf32>,
    %c56_i32 = arith.constant 56 : i32
    %89 = tpu.dynamic_rotate %53 by %c56_i32 dim 1 : vector<16x64xf32>, i32 -> vector<16x64xf32>
    %90 = vector.extract_strided_slice %54 {offsets = [7, 0], sizes = [1, 64], strides = [1, 1]} : vector<9x64xf32> to vector<1x64xf32>
    %91 = vector.broadcast %90 : vector<1x64xf32> to vector<16x64xf32>
    %92 = arith.mulf %89, %91 : vector<16x64xf32>
    %c112 = arith.constant 112 : index
    %c0_38 = arith.constant 0 : index
    %93 = vector.load %arg14[%c112, %c0_38] : memref<144x64xf32, #tpu.memory_space<vmem>>, vector<16x64xf32>
    tpu.vector_store %arg14[%c112, %c0_38], %92 {strides = array<i32>} : memref<144x64xf32, #tpu.memory_space<vmem>>, vector<16x64xf32>,
    %c55_i32 = arith.constant 55 : i32
    %94 = tpu.dynamic_rotate %53 by %c55_i32 dim 1 : vector<16x64xf32>, i32 -> vector<16x64xf32>
    %95 = vector.extract_strided_slice %54 {offsets = [8, 0], sizes = [1, 64], strides = [1, 1]} : vector<9x64xf32> to vector<1x64xf32>
    %96 = vector.broadcast %95 : vector<1x64xf32> to vector<16x64xf32>
    %97 = arith.mulf %94, %96 : vector<16x64xf32>
    %c128 = arith.constant 128 : index
    %c0_39 = arith.constant 0 : index
    %98 = vector.load %arg14[%c128, %c0_39] : memref<144x64xf32, #tpu.memory_space<vmem>>, vector<16x64xf32>
    tpu.vector_store %arg14[%c128, %c0_39], %97 {strides = array<i32>} : memref<144x64xf32, #tpu.memory_space<vmem>>, vector<16x64xf32>,
    %c0_40 = arith.constant 0 : index
    %c0_41 = arith.constant 0 : index
    %99 = vector.load %arg10[%c0_40, %c0_41] : memref<16x144xbf16, #tpu.memory_space<vmem>>, vector<16x144xbf16>
    %c0_42 = arith.constant 0 : index
    %c0_43 = arith.constant 0 : index
    %100 = vector.load %arg14[%c0_42, %c0_43] : memref<144x64xf32, #tpu.memory_space<vmem>>, vector<144x64xf32>
    %101 = arith.truncf %100 : vector<144x64xf32> to vector<144x64xbf16>
    %cst_44 = arith.constant dense<0.000000e+00> : vector<16x64xf32>
    %102 = tpu.matmul %99, %101, %cst_44 {dimension_numbers = #tpu.dot_dimension_numbers<[1], [0], [0], [1], [0, 0, 1, 1], [], []>} : vector<16x144xbf16>, vector<144x64xbf16>, vector<16x64xf32> -> vector<16x64xf32>
    %c0_45 = arith.constant 0 : index
    %c0_46 = arith.constant 0 : index
    %103 = vector.load %arg11[%c0_45, %c0_46] : memref<16x1xf32, #tpu.memory_space<vmem>>, vector<16x1xf32>
    %104 = vector.broadcast %103 : vector<16x1xf32> to vector<16x64xf32>
    %105 = arith.addf %102, %104 : vector<16x64xf32>
    %c0_47 = arith.constant 0 : index
    %c0_48 = arith.constant 0 : index
    %c0_49 = arith.constant 0 : index
    %106 = vector.load %arg12[%c0_47, %c0_48, %c0_49] : memref<1x16x64xf32, #tpu.memory_space<vmem>>, vector<1x16x64xf32>
    %107 = vector.shape_cast %106 : vector<1x16x64xf32> to vector<16x64xf32>
    %108 = arith.addf %105, %107 : vector<16x64xf32>
    %c0_50 = arith.constant 0 : index
    %c0_51 = arith.constant 0 : index
    %c0_52 = arith.constant 0 : index
    %109 = vector.load %arg13[%c0_50, %c0_51, %c0_52] : memref<1x16x64xf32, #tpu.memory_space<vmem>>, vector<1x16x64xf32>
    %110 = vector.shape_cast %109 : vector<1x16x64xf32> to vector<16x64xf32>
    %111 = vector.shape_cast %108 : vector<16x64xf32> to vector<1x16x64xf32>
    tpu.vector_store %arg13[%c0_50, %c0_51, %c0_52], %111 {strides = array<i32>} : memref<1x16x64xf32, #tpu.memory_space<vmem>>, vector<1x16x64xf32>,
    return
  }
  func.func @transform_0(%arg0: i32) -> (i32, i32, i32) {
    %c0_i32 = arith.constant 0 : i32
    %c0_i32_0 = arith.constant 0 : i32
    %c0_i32_1 = arith.constant 0 : i32
    return %arg0, %c0_i32, %c0_i32_0 : i32, i32, i32
  }
  func.func @transform_1(%arg0: i32) -> (i32, i32) {
    %c0_i32 = arith.constant 0 : i32
    %c0_i32_0 = arith.constant 0 : i32
    %c0_i32_1 = arith.constant 0 : i32
    return %c0_i32, %c0_i32_0 : i32, i32
  }
  func.func @transform_2(%arg0: i32) -> (i32, i32) {
    %c0_i32 = arith.constant 0 : i32
    %c0_i32_0 = arith.constant 0 : i32
    %c0_i32_1 = arith.constant 0 : i32
    return %c0_i32, %c0_i32_0 : i32, i32
  }
  func.func @transform_3(%arg0: i32) -> (i32, i32) {
    %c0_i32 = arith.constant 0 : i32
    %c0_i32_0 = arith.constant 0 : i32
    %c0_i32_1 = arith.constant 0 : i32
    return %c0_i32, %c0_i32_0 : i32, i32
  }
  func.func @transform_4(%arg0: i32) -> (i32, i32) {
    %c0_i32 = arith.constant 0 : i32
    %c0_i32_0 = arith.constant 0 : i32
    %c0_i32_1 = arith.constant 0 : i32
    return %c0_i32, %c0_i32_0 : i32, i32
  }
  func.func @transform_5(%arg0: i32) -> (i32, i32, i32) {
    %c0_i32 = arith.constant 0 : i32
    %c0_i32_0 = arith.constant 0 : i32
    %c0_i32_1 = arith.constant 0 : i32
    return %arg0, %c0_i32, %c0_i32_0 : i32, i32, i32
  }
  func.func @transform_6(%arg0: i32) -> (i32, i32) {
    %c0_i32 = arith.constant 0 : i32
    %c0_i32_0 = arith.constant 0 : i32
    %c0_i32_1 = arith.constant 0 : i32
    return %c0_i32, %c0_i32_0 : i32, i32
  }
  func.func @transform_7(%arg0: i32) -> (i32, i32) {
    %c0_i32 = arith.constant 0 : i32
    %c0_i32_0 = arith.constant 0 : i32
    %c0_i32_1 = arith.constant 0 : i32
    return %c0_i32, %c0_i32_0 : i32, i32
  }
  func.func @transform_8(%arg0: i32) -> (i32, i32) {
    %c0_i32 = arith.constant 0 : i32
    %c0_i32_0 = arith.constant 0 : i32
    %c0_i32_1 = arith.constant 0 : i32
    return %c0_i32, %c0_i32_0 : i32, i32
  }
  func.func @transform_9(%arg0: i32) -> (i32, i32) {
    %c0_i32 = arith.constant 0 : i32
    %c0_i32_0 = arith.constant 0 : i32
    %c0_i32_1 = arith.constant 0 : i32
    return %c0_i32, %c0_i32_0 : i32, i32
  }
  func.func @transform_10(%arg0: i32) -> (i32, i32) {
    %c0_i32 = arith.constant 0 : i32
    %c0_i32_0 = arith.constant 0 : i32
    %c0_i32_1 = arith.constant 0 : i32
    return %c0_i32, %c0_i32_0 : i32, i32
  }
  func.func @transform_11(%arg0: i32) -> (i32, i32, i32) {
    %c0_i32 = arith.constant 0 : i32
    %c0_i32_0 = arith.constant 0 : i32
    %c0_i32_1 = arith.constant 0 : i32
    return %arg0, %c0_i32, %c0_i32_0 : i32, i32, i32
  }
  func.func @transform_12(%arg0: i32) -> (i32, i32, i32) {
    %c0_i32 = arith.constant 0 : i32
    %c0_i32_0 = arith.constant 0 : i32
    %c0_i32_1 = arith.constant 0 : i32
    return %arg0, %c0_i32, %c0_i32_0 : i32, i32, i32
  }
}

module attributes {stable_mosaic.version = 11 : i64} {
  func.func @_fused_stage_kernel(%arg0: i32, %arg1: memref<1x16x64xf32, #tpu.memory_space<vmem>>, %arg2: memref<16x1xf32, #tpu.memory_space<vmem>>, %arg3: memref<16x1xf32, #tpu.memory_space<vmem>>, %arg4: memref<16x4xf32, #tpu.memory_space<vmem>>, %arg5: memref<4x16xf32, #tpu.memory_space<vmem>>, %arg6: memref<9x64xf32, #tpu.memory_space<vmem>>, %arg7: memref<16x144xbf16, #tpu.memory_space<vmem>>, %arg8: memref<16x1xf32, #tpu.memory_space<vmem>>, %arg9: memref<1x16x64xf32, #tpu.memory_space<vmem>>, %arg10: memref<144x64xf32, #tpu.memory_space<vmem>>) attributes {dimension_semantics = [#tpu.dimension_semantics<parallel>], iteration_bounds = array<i64: 2>, scalar_prefetch = 0 : i64, scratch_operands = 1 : i64, tpu.core_type = #tpu.core_type<tc>, window_params = [{transform_indices = @transform_0, window_bounds = array<i64: 1, 16, 64>}, {pipeline_mode = #tpu.pipeline_mode<synchronous>, transform_indices = @transform_1, window_bounds = array<i64: 16, 1>}, {pipeline_mode = #tpu.pipeline_mode<synchronous>, transform_indices = @transform_2, window_bounds = array<i64: 16, 1>}, {pipeline_mode = #tpu.pipeline_mode<synchronous>, transform_indices = @transform_3, window_bounds = array<i64: 16, 4>}, {pipeline_mode = #tpu.pipeline_mode<synchronous>, transform_indices = @transform_4, window_bounds = array<i64: 4, 16>}, {pipeline_mode = #tpu.pipeline_mode<synchronous>, transform_indices = @transform_5, window_bounds = array<i64: 9, 64>}, {pipeline_mode = #tpu.pipeline_mode<synchronous>, transform_indices = @transform_6, window_bounds = array<i64: 16, 144>}, {pipeline_mode = #tpu.pipeline_mode<synchronous>, transform_indices = @transform_7, window_bounds = array<i64: 16, 1>}, {transform_indices = @transform_8, window_bounds = array<i64: 1, 16, 64>}]} {
    %c0 = arith.constant 0 : index
    %c0_0 = arith.constant 0 : index
    %c0_1 = arith.constant 0 : index
    %0 = vector.load %arg1[%c0, %c0_0, %c0_1] : memref<1x16x64xf32, #tpu.memory_space<vmem>>, vector<1x16x64xf32>
    %1 = vector.shape_cast %0 : vector<1x16x64xf32> to vector<16x64xf32>
    %c0_2 = arith.constant 0 : index
    %c0_3 = arith.constant 0 : index
    %2 = vector.load %arg4[%c0_2, %c0_3] : memref<16x4xf32, #tpu.memory_space<vmem>>, vector<16x4xf32>
    %c0_4 = arith.constant 0 : index
    %c0_5 = arith.constant 0 : index
    %3 = vector.load %arg5[%c0_4, %c0_5] : memref<4x16xf32, #tpu.memory_space<vmem>>, vector<4x16xf32>
    %cst = arith.constant dense<0.000000e+00> : vector<4x64xf32>
    %4 = tpu.matmul %3, %1, %cst {dimension_numbers = #tpu.dot_dimension_numbers<[1], [0], [0], [1], [0, 0, 1, 1], [], []>} : vector<4x16xf32>, vector<16x64xf32>, vector<4x64xf32> -> vector<4x64xf32>
    %cst_6 = arith.constant dense<0.000000e+00> : vector<4xf32>
    %5 = vector.multi_reduction <add>, %4, %cst_6 [1] : vector<4x64xf32> to vector<4xf32>
    %6 = vector.shape_cast %5 : vector<4xf32> to vector<4x1xf32>
    %cst_7 = arith.constant 2.560000e+02 : f32
    %7 = vector.broadcast %cst_7 : f32 to vector<4x1xf32>
    %8 = arith.divf %6, %7 : vector<4x1xf32>
    %9 = vector.shape_cast %8 : vector<4x1xf32> to vector<4x1xf32>
    %10 = vector.broadcast %9 : vector<4x1xf32> to vector<4x64xf32>
    %cst_8 = arith.constant dense<0.000000e+00> : vector<16x64xf32>
    %11 = tpu.matmul %2, %10, %cst_8 {dimension_numbers = #tpu.dot_dimension_numbers<[1], [0], [0], [1], [0, 0, 1, 1], [], []>} : vector<16x4xf32>, vector<4x64xf32>, vector<16x64xf32> -> vector<16x64xf32>
    %12 = arith.subf %1, %11 : vector<16x64xf32>
    %13 = arith.mulf %12, %12 : vector<16x64xf32>
    %cst_9 = arith.constant dense<0.000000e+00> : vector<4x64xf32>
    %14 = tpu.matmul %3, %13, %cst_9 {dimension_numbers = #tpu.dot_dimension_numbers<[1], [0], [0], [1], [0, 0, 1, 1], [], []>} : vector<4x16xf32>, vector<16x64xf32>, vector<4x64xf32> -> vector<4x64xf32>
    %cst_10 = arith.constant dense<0.000000e+00> : vector<4xf32>
    %15 = vector.multi_reduction <add>, %14, %cst_10 [1] : vector<4x64xf32> to vector<4xf32>
    %16 = vector.shape_cast %15 : vector<4xf32> to vector<4x1xf32>
    %cst_11 = arith.constant 2.560000e+02 : f32
    %17 = vector.broadcast %cst_11 : f32 to vector<4x1xf32>
    %18 = arith.divf %16, %17 : vector<4x1xf32>
    %cst_12 = arith.constant 9.99999974E-6 : f32
    %19 = vector.broadcast %cst_12 : f32 to vector<4x1xf32>
    %20 = arith.addf %18, %19 : vector<4x1xf32>
    %21 = math.rsqrt %20 : vector<4x1xf32>
    %22 = vector.shape_cast %21 : vector<4x1xf32> to vector<4x1xf32>
    %23 = vector.broadcast %22 : vector<4x1xf32> to vector<4x64xf32>
    %cst_13 = arith.constant dense<0.000000e+00> : vector<16x64xf32>
    %24 = tpu.matmul %2, %23, %cst_13 {dimension_numbers = #tpu.dot_dimension_numbers<[1], [0], [0], [1], [0, 0, 1, 1], [], []>} : vector<16x4xf32>, vector<4x64xf32>, vector<16x64xf32> -> vector<16x64xf32>
    %25 = arith.mulf %12, %24 : vector<16x64xf32>
    %c0_14 = arith.constant 0 : index
    %c0_15 = arith.constant 0 : index
    %26 = vector.load %arg2[%c0_14, %c0_15] : memref<16x1xf32, #tpu.memory_space<vmem>>, vector<16x1xf32>
    %27 = vector.broadcast %26 : vector<16x1xf32> to vector<16x64xf32>
    %28 = arith.mulf %25, %27 : vector<16x64xf32>
    %c0_16 = arith.constant 0 : index
    %c0_17 = arith.constant 0 : index
    %29 = vector.load %arg3[%c0_16, %c0_17] : memref<16x1xf32, #tpu.memory_space<vmem>>, vector<16x1xf32>
    %30 = vector.broadcast %29 : vector<16x1xf32> to vector<16x64xf32>
    %31 = arith.addf %28, %30 : vector<16x64xf32>
    %32 = arith.negf %31 : vector<16x64xf32>
    %33 = math.exp %32 : vector<16x64xf32>
    %cst_18 = arith.constant 1.000000e+00 : f32
    %34 = vector.broadcast %cst_18 : f32 to vector<16x64xf32>
    %35 = arith.addf %34, %33 : vector<16x64xf32>
    %36 = arith.divf %34, %35 : vector<16x64xf32>
    %37 = arith.mulf %31, %36 : vector<16x64xf32>
    %c0_19 = arith.constant 0 : index
    %c0_20 = arith.constant 0 : index
    %38 = vector.load %arg6[%c0_19, %c0_20] : memref<9x64xf32, #tpu.memory_space<vmem>>, vector<9x64xf32>
    %c9_i32 = arith.constant 9 : i32
    %39 = tpu.dynamic_rotate %37 by %c9_i32 dim 1 : vector<16x64xf32>, i32 -> vector<16x64xf32>
    %40 = vector.extract_strided_slice %38 {offsets = [0, 0], sizes = [1, 64], strides = [1, 1]} : vector<9x64xf32> to vector<1x64xf32>
    %41 = vector.broadcast %40 : vector<1x64xf32> to vector<16x64xf32>
    %42 = arith.mulf %39, %41 : vector<16x64xf32>
    %c0_21 = arith.constant 0 : index
    %c0_22 = arith.constant 0 : index
    %43 = vector.load %arg10[%c0_21, %c0_22] : memref<144x64xf32, #tpu.memory_space<vmem>>, vector<16x64xf32>
    tpu.vector_store %arg10[%c0_21, %c0_22], %42 {strides = array<i32>} : memref<144x64xf32, #tpu.memory_space<vmem>>, vector<16x64xf32>,
    %c8_i32 = arith.constant 8 : i32
    %44 = tpu.dynamic_rotate %37 by %c8_i32 dim 1 : vector<16x64xf32>, i32 -> vector<16x64xf32>
    %45 = vector.extract_strided_slice %38 {offsets = [1, 0], sizes = [1, 64], strides = [1, 1]} : vector<9x64xf32> to vector<1x64xf32>
    %46 = vector.broadcast %45 : vector<1x64xf32> to vector<16x64xf32>
    %47 = arith.mulf %44, %46 : vector<16x64xf32>
    %c16 = arith.constant 16 : index
    %c0_23 = arith.constant 0 : index
    %48 = vector.load %arg10[%c16, %c0_23] : memref<144x64xf32, #tpu.memory_space<vmem>>, vector<16x64xf32>
    tpu.vector_store %arg10[%c16, %c0_23], %47 {strides = array<i32>} : memref<144x64xf32, #tpu.memory_space<vmem>>, vector<16x64xf32>,
    %c7_i32 = arith.constant 7 : i32
    %49 = tpu.dynamic_rotate %37 by %c7_i32 dim 1 : vector<16x64xf32>, i32 -> vector<16x64xf32>
    %50 = vector.extract_strided_slice %38 {offsets = [2, 0], sizes = [1, 64], strides = [1, 1]} : vector<9x64xf32> to vector<1x64xf32>
    %51 = vector.broadcast %50 : vector<1x64xf32> to vector<16x64xf32>
    %52 = arith.mulf %49, %51 : vector<16x64xf32>
    %c32 = arith.constant 32 : index
    %c0_24 = arith.constant 0 : index
    %53 = vector.load %arg10[%c32, %c0_24] : memref<144x64xf32, #tpu.memory_space<vmem>>, vector<16x64xf32>
    tpu.vector_store %arg10[%c32, %c0_24], %52 {strides = array<i32>} : memref<144x64xf32, #tpu.memory_space<vmem>>, vector<16x64xf32>,
    %c1_i32 = arith.constant 1 : i32
    %54 = tpu.dynamic_rotate %37 by %c1_i32 dim 1 : vector<16x64xf32>, i32 -> vector<16x64xf32>
    %55 = vector.extract_strided_slice %38 {offsets = [3, 0], sizes = [1, 64], strides = [1, 1]} : vector<9x64xf32> to vector<1x64xf32>
    %56 = vector.broadcast %55 : vector<1x64xf32> to vector<16x64xf32>
    %57 = arith.mulf %54, %56 : vector<16x64xf32>
    %c48 = arith.constant 48 : index
    %c0_25 = arith.constant 0 : index
    %58 = vector.load %arg10[%c48, %c0_25] : memref<144x64xf32, #tpu.memory_space<vmem>>, vector<16x64xf32>
    tpu.vector_store %arg10[%c48, %c0_25], %57 {strides = array<i32>} : memref<144x64xf32, #tpu.memory_space<vmem>>, vector<16x64xf32>,
    %59 = vector.extract_strided_slice %38 {offsets = [4, 0], sizes = [1, 64], strides = [1, 1]} : vector<9x64xf32> to vector<1x64xf32>
    %60 = vector.broadcast %59 : vector<1x64xf32> to vector<16x64xf32>
    %61 = arith.mulf %37, %60 : vector<16x64xf32>
    %c64 = arith.constant 64 : index
    %c0_26 = arith.constant 0 : index
    %62 = vector.load %arg10[%c64, %c0_26] : memref<144x64xf32, #tpu.memory_space<vmem>>, vector<16x64xf32>
    tpu.vector_store %arg10[%c64, %c0_26], %61 {strides = array<i32>} : memref<144x64xf32, #tpu.memory_space<vmem>>, vector<16x64xf32>,
    %c63_i32 = arith.constant 63 : i32
    %63 = tpu.dynamic_rotate %37 by %c63_i32 dim 1 : vector<16x64xf32>, i32 -> vector<16x64xf32>
    %64 = vector.extract_strided_slice %38 {offsets = [5, 0], sizes = [1, 64], strides = [1, 1]} : vector<9x64xf32> to vector<1x64xf32>
    %65 = vector.broadcast %64 : vector<1x64xf32> to vector<16x64xf32>
    %66 = arith.mulf %63, %65 : vector<16x64xf32>
    %c80 = arith.constant 80 : index
    %c0_27 = arith.constant 0 : index
    %67 = vector.load %arg10[%c80, %c0_27] : memref<144x64xf32, #tpu.memory_space<vmem>>, vector<16x64xf32>
    tpu.vector_store %arg10[%c80, %c0_27], %66 {strides = array<i32>} : memref<144x64xf32, #tpu.memory_space<vmem>>, vector<16x64xf32>,
    %c57_i32 = arith.constant 57 : i32
    %68 = tpu.dynamic_rotate %37 by %c57_i32 dim 1 : vector<16x64xf32>, i32 -> vector<16x64xf32>
    %69 = vector.extract_strided_slice %38 {offsets = [6, 0], sizes = [1, 64], strides = [1, 1]} : vector<9x64xf32> to vector<1x64xf32>
    %70 = vector.broadcast %69 : vector<1x64xf32> to vector<16x64xf32>
    %71 = arith.mulf %68, %70 : vector<16x64xf32>
    %c96 = arith.constant 96 : index
    %c0_28 = arith.constant 0 : index
    %72 = vector.load %arg10[%c96, %c0_28] : memref<144x64xf32, #tpu.memory_space<vmem>>, vector<16x64xf32>
    tpu.vector_store %arg10[%c96, %c0_28], %71 {strides = array<i32>} : memref<144x64xf32, #tpu.memory_space<vmem>>, vector<16x64xf32>,
    %c56_i32 = arith.constant 56 : i32
    %73 = tpu.dynamic_rotate %37 by %c56_i32 dim 1 : vector<16x64xf32>, i32 -> vector<16x64xf32>
    %74 = vector.extract_strided_slice %38 {offsets = [7, 0], sizes = [1, 64], strides = [1, 1]} : vector<9x64xf32> to vector<1x64xf32>
    %75 = vector.broadcast %74 : vector<1x64xf32> to vector<16x64xf32>
    %76 = arith.mulf %73, %75 : vector<16x64xf32>
    %c112 = arith.constant 112 : index
    %c0_29 = arith.constant 0 : index
    %77 = vector.load %arg10[%c112, %c0_29] : memref<144x64xf32, #tpu.memory_space<vmem>>, vector<16x64xf32>
    tpu.vector_store %arg10[%c112, %c0_29], %76 {strides = array<i32>} : memref<144x64xf32, #tpu.memory_space<vmem>>, vector<16x64xf32>,
    %c55_i32 = arith.constant 55 : i32
    %78 = tpu.dynamic_rotate %37 by %c55_i32 dim 1 : vector<16x64xf32>, i32 -> vector<16x64xf32>
    %79 = vector.extract_strided_slice %38 {offsets = [8, 0], sizes = [1, 64], strides = [1, 1]} : vector<9x64xf32> to vector<1x64xf32>
    %80 = vector.broadcast %79 : vector<1x64xf32> to vector<16x64xf32>
    %81 = arith.mulf %78, %80 : vector<16x64xf32>
    %c128 = arith.constant 128 : index
    %c0_30 = arith.constant 0 : index
    %82 = vector.load %arg10[%c128, %c0_30] : memref<144x64xf32, #tpu.memory_space<vmem>>, vector<16x64xf32>
    tpu.vector_store %arg10[%c128, %c0_30], %81 {strides = array<i32>} : memref<144x64xf32, #tpu.memory_space<vmem>>, vector<16x64xf32>,
    %c0_31 = arith.constant 0 : index
    %c0_32 = arith.constant 0 : index
    %83 = vector.load %arg7[%c0_31, %c0_32] : memref<16x144xbf16, #tpu.memory_space<vmem>>, vector<16x144xbf16>
    %c0_33 = arith.constant 0 : index
    %c0_34 = arith.constant 0 : index
    %84 = vector.load %arg10[%c0_33, %c0_34] : memref<144x64xf32, #tpu.memory_space<vmem>>, vector<144x64xf32>
    %85 = arith.truncf %84 : vector<144x64xf32> to vector<144x64xbf16>
    %cst_35 = arith.constant dense<0.000000e+00> : vector<16x64xf32>
    %86 = tpu.matmul %83, %85, %cst_35 {dimension_numbers = #tpu.dot_dimension_numbers<[1], [0], [0], [1], [0, 0, 1, 1], [], []>} : vector<16x144xbf16>, vector<144x64xbf16>, vector<16x64xf32> -> vector<16x64xf32>
    %c0_36 = arith.constant 0 : index
    %c0_37 = arith.constant 0 : index
    %87 = vector.load %arg8[%c0_36, %c0_37] : memref<16x1xf32, #tpu.memory_space<vmem>>, vector<16x1xf32>
    %88 = vector.broadcast %87 : vector<16x1xf32> to vector<16x64xf32>
    %89 = arith.addf %86, %88 : vector<16x64xf32>
    %c0_38 = arith.constant 0 : index
    %c0_39 = arith.constant 0 : index
    %c0_40 = arith.constant 0 : index
    %90 = vector.load %arg9[%c0_38, %c0_39, %c0_40] : memref<1x16x64xf32, #tpu.memory_space<vmem>>, vector<1x16x64xf32>
    %91 = vector.shape_cast %90 : vector<1x16x64xf32> to vector<16x64xf32>
    %92 = vector.shape_cast %89 : vector<16x64xf32> to vector<1x16x64xf32>
    tpu.vector_store %arg9[%c0_38, %c0_39, %c0_40], %92 {strides = array<i32>} : memref<1x16x64xf32, #tpu.memory_space<vmem>>, vector<1x16x64xf32>,
    return
  }
  func.func @transform_0(%arg0: i32) -> (i32, i32, i32) {
    %c0_i32 = arith.constant 0 : i32
    %c0_i32_0 = arith.constant 0 : i32
    %c0_i32_1 = arith.constant 0 : i32
    return %arg0, %c0_i32, %c0_i32_0 : i32, i32, i32
  }
  func.func @transform_1(%arg0: i32) -> (i32, i32) {
    %c0_i32 = arith.constant 0 : i32
    %c0_i32_0 = arith.constant 0 : i32
    %c0_i32_1 = arith.constant 0 : i32
    return %c0_i32, %c0_i32_0 : i32, i32
  }
  func.func @transform_2(%arg0: i32) -> (i32, i32) {
    %c0_i32 = arith.constant 0 : i32
    %c0_i32_0 = arith.constant 0 : i32
    %c0_i32_1 = arith.constant 0 : i32
    return %c0_i32, %c0_i32_0 : i32, i32
  }
  func.func @transform_3(%arg0: i32) -> (i32, i32) {
    %c0_i32 = arith.constant 0 : i32
    %c0_i32_0 = arith.constant 0 : i32
    %c0_i32_1 = arith.constant 0 : i32
    return %c0_i32, %c0_i32_0 : i32, i32
  }
  func.func @transform_4(%arg0: i32) -> (i32, i32) {
    %c0_i32 = arith.constant 0 : i32
    %c0_i32_0 = arith.constant 0 : i32
    %c0_i32_1 = arith.constant 0 : i32
    return %c0_i32, %c0_i32_0 : i32, i32
  }
  func.func @transform_5(%arg0: i32) -> (i32, i32) {
    %c0_i32 = arith.constant 0 : i32
    %c0_i32_0 = arith.constant 0 : i32
    %c0_i32_1 = arith.constant 0 : i32
    return %c0_i32, %c0_i32_0 : i32, i32
  }
  func.func @transform_6(%arg0: i32) -> (i32, i32) {
    %c0_i32 = arith.constant 0 : i32
    %c0_i32_0 = arith.constant 0 : i32
    %c0_i32_1 = arith.constant 0 : i32
    return %c0_i32, %c0_i32_0 : i32, i32
  }
  func.func @transform_7(%arg0: i32) -> (i32, i32) {
    %c0_i32 = arith.constant 0 : i32
    %c0_i32_0 = arith.constant 0 : i32
    %c0_i32_1 = arith.constant 0 : i32
    return %c0_i32, %c0_i32_0 : i32, i32
  }
  func.func @transform_8(%arg0: i32) -> (i32, i32, i32) {
    %c0_i32 = arith.constant 0 : i32
    %c0_i32_0 = arith.constant 0 : i32
    %c0_i32_1 = arith.constant 0 : i32
    return %arg0, %c0_i32, %c0_i32_0 : i32, i32, i32
  }
}

</mosaic_0001>

<llo_original>
// kernel: time_adapter_forward.11
$region0: #{time_adapter_forward.11}
  #allocation0 [shape = 'u32[]', space=smem, size = 0x4, offset = 0x4, fixed_abs, tag = 'smem constant byte address 0x4 - core index']
  #allocation1 [shape = 'u32[144,128]{1,0:T(1,128)}', space=vmem, size = 0x12000, scoped, tag = 'internal scratch']
  #allocation2 [shape = 'f32[72,256]{1,0:T(8,128)}', space=vmem, size = 0x12000, scoped, tag = 'scratch operand']
  %s0 = inlined_call_operand.vmem [shape: f32[2,8,256], index: 0, kind: input, shape index: {}]
  %s1 = inlined_call_operand.vmem [shape: f32[8,1], index: 1, kind: input, shape index: {}]
  %s2 = inlined_call_operand.vmem [shape: f32[8,1], index: 2, kind: input, shape index: {}]
  %s3 = inlined_call_operand.vmem [shape: f32[8,4], index: 3, kind: input, shape index: {}]
  %s4 = inlined_call_operand.vmem [shape: f32[4,8], index: 4, kind: input, shape index: {}]
  %s5 = inlined_call_operand.vmem [shape: f32[9,256], index: 5, kind: input, shape index: {}]
  %s6 = inlined_call_operand.vmem [shape: bf16[8,72], index: 6, kind: input, shape index: {}]
  %s7 = inlined_call_operand.vmem [shape: f32[8,1], index: 7, kind: input, shape index: {}]
  %s8 = inlined_call_operand.vmem [shape: f32[2,8,256], index: 8, kind: output, shape index: {}]
  %s9 = sld [smem:[#allocation0]]
  $region65: #{time_adapter_forward.11} parent=0
    _
  %s11 = ssub.s32 1, %s9
  %s12 = scalar_select 0, %s11, %s9
  loop: start=0, step=1, limit=4
  $region2: #{time_adapter_forward.11} parent=0 // loop_pre_header
    _
  $region3: #{time_adapter_forward.11} parent=0 // loop_header
    %s14 = sphi 0, %s18
    %p15 = scmp.ge.s32.totalorder %s14, 4
    %s24 = sphi 0, %s26
    %s27 = sphi 0, %s24
    %s28 = sphi 0, %s27
    %s44 = sphi 0, %s28
    %s48 = sphi 0, %s48
    %s50 = sphi 0, %s48
    %s51 = sphi 0, %s50
    %s65 = sphi 0, %s51
    %s69 = sphi 0, %s69
    %s71 = sphi 0, %s69
    %s72 = sphi 0, %s71
    %s86 = sphi 0, %s72
    %s90 = sphi 0, %s90
    %s92 = sphi 0, %s90
    %s93 = sphi 0, %s92
    %s107 = sphi 0, %s93
    %s111 = sphi 0, %s111
    %s113 = sphi 0, %s111
    %s114 = sphi 0, %s113
    %s128 = sphi 0, %s114
    %s132 = sphi 0, %s132
    %s134 = sphi 0, %s132
    %s135 = sphi 0, %s134
    %s149 = sphi 0, %s135
    %s153 = sphi 0, %s153
    %s155 = sphi 0, %s153
    %s156 = sphi 0, %s155
    %s170 = sphi 0, %s156
    %s174 = sphi 0, %s174
    %s176 = sphi 0, %s174
    %s177 = sphi 0, %s176
    %s191 = sphi 0, %s177
    %s197 = sphi 0, %s199
    %s200 = sphi 0, %s197
    %s201 = sphi 0, %s200
    %s217 = sphi 0, %s201
  $region4: #{time_adapter_forward.11} parent=0 // loop_header_branch
    %17 = sbr.rel (%p15) target = $region8
  $region5: #{time_adapter_forward.11} parent=0 // loop_body
    %s19 = ssub.s32 %s14, 1
    %s20 = ssub.s32 %s14, 2
    %s21 = sadd.s32 %s14, 1
    %s22 = ssub.s32 %s14, %s21
    %p23 = scmp.eq.s32.totalorder %s22, 0
    %s25 = sadd.s32 %s24, 1
    %s26 = scalar_select %p23, %s24, %s25
    %p29 = pneg %p23
    %p30 = scmp.eq.s32.totalorder %s14, 1
    %p31 = por %p29, %p30
    %p32 = scmp.ne.s32.totalorder %s24, %s27
    %p33 = scmp.eq.s32.totalorder %s14, 0
    %p34 = por %p32, %p33
    %p35 = scmp.ne.s32.totalorder %s24, %s27
    %p36 = scmp.eq.s32.totalorder %s19, 1
    %p37 = por %p35, %p36
    %p38 = scmp.ne.s32.totalorder %s27, %s28
    %p39 = scmp.eq.s32.totalorder %s19, 0
    %p40 = por %p38, %p39
    %p41 = scmp.ne.s32.totalorder %s27, %s28
    %p42 = scmp.eq.s32.totalorder %s20, 1
    %p43 = por %p41, %p42
    %p45 = scmp.ne.s32.totalorder %s28, %s44
    %p46 = scmp.eq.s32.totalorder %s20, 0
    %p47 = por %p45, %p46
    %s49 = sadd.s32 %s48, 1
    %p52 = scmp.eq.s32.totalorder %s14, 1
    %p53 = scmp.ne.s32.totalorder %s48, %s50
    %p54 = scmp.eq.s32.totalorder %s14, 0
    %p55 = por %p53, %p54
    %p56 = scmp.ne.s32.totalorder %s48, %s50
    %p57 = scmp.eq.s32.totalorder %s19, 1
    %p58 = por %p56, %p57
    %p59 = scmp.ne.s32.totalorder %s50, %s51
    %p60 = scmp.eq.s32.totalorder %s19, 0
    %p61 = por %p59, %p60
    %p62 = scmp.ne.s32.totalorder %s50, %s51
    %p63 = scmp.eq.s32.totalorder %s20, 1
    %p64 = por %p62, %p63
    %p66 = scmp.ne.s32.totalorder %s51, %s65
    %p67 = scmp.eq.s32.totalorder %s20, 0
    %p68 = por %p66, %p67
    %s70 = sadd.s32 %s69, 1
    %p73 = scmp.eq.s32.totalorder %s14, 1
    %p74 = scmp.ne.s32.totalorder %s69, %s71
    %p75 = scmp.eq.s32.totalorder %s14, 0
    %p76 = por %p74, %p75
    %p77 = scmp.ne.s32.totalorder %s69, %s71
    %p78 = scmp.eq.s32.totalorder %s19, 1
    %p79 = por %p77, %p78
    %p80 = scmp.ne.s32.totalorder %s71, %s72
    %p81 = scmp.eq.s32.totalorder %s19, 0
    %p82 = por %p80, %p81
    %p83 = scmp.ne.s32.totalorder %s71, %s72
    %p84 = scmp.eq.s32.totalorder %s20, 1
    %p85 = por %p83, %p84
    %p87 = scmp.ne.s32.totalorder %s72, %s86
    %p88 = scmp.eq.s32.totalorder %s20, 0
    %p89 = por %p87, %p88
    %s91 = sadd.s32 %s90, 1
    %p94 = scmp.eq.s32.totalorder %s14, 1
    %p95 = scmp.ne.s32.totalorder %s90, %s92
    %p96 = scmp.eq.s32.totalorder %s14, 0
    %p97 = por %p95, %p96
    %p98 = scmp.ne.s32.totalorder %s90, %s92
    %p99 = scmp.eq.s32.totalorder %s19, 1
    %p100 = por %p98, %p99
    %p101 = scmp.ne.s32.totalorder %s92, %s93
    %p102 = scmp.eq.s32.totalorder %s19, 0
    %p103 = por %p101, %p102
    %p104 = scmp.ne.s32.totalorder %s92, %s93
    %p105 = scmp.eq.s32.totalorder %s20, 1
    %p106 = por %p104, %p105
    %p108 = scmp.ne.s32.totalorder %s93, %s107
    %p109 = scmp.eq.s32.totalorder %s20, 0
    %p110 = por %p108, %p109
    %s112 = sadd.s32 %s111, 1
    %p115 = scmp.eq.s32.totalorder %s14, 1
    %p116 = scmp.ne.s32.totalorder %s111, %s113
    %p117 = scmp.eq.s32.totalorder %s14, 0
    %p118 = por %p116, %p117
    %p119 = scmp.ne.s32.totalorder %s111, %s113
    %p120 = scmp.eq.s32.totalorder %s19, 1
    %p121 = por %p119, %p120
    %p122 = scmp.ne.s32.totalorder %s113, %s114
    %p123 = scmp.eq.s32.totalorder %s19, 0
    %p124 = por %p122, %p123
    %p125 = scmp.ne.s32.totalorder %s113, %s114
    %p126 = scmp.eq.s32.totalorder %s20, 1
    %p127 = por %p125, %p126
    %p129 = scmp.ne.s32.totalorder %s114, %s128
    %p130 = scmp.eq.s32.totalorder %s20, 0
    %p131 = por %p129, %p130
    %s133 = sadd.s32 %s132, 1
    %p136 = scmp.eq.s32.totalorder %s14, 1
    %p137 = scmp.ne.s32.totalorder %s132, %s134
    %p138 = scmp.eq.s32.totalorder %s14, 0
    %p139 = por %p137, %p138
    %p140 = scmp.ne.s32.totalorder %s132, %s134
    %p141 = scmp.eq.s32.totalorder %s19, 1
    %p142 = por %p140, %p141
    %p143 = scmp.ne.s32.totalorder %s134, %s135
    %p144 = scmp.eq.s32.totalorder %s19, 0
    %p145 = por %p143, %p144
    %p146 = scmp.ne.s32.totalorder %s134, %s135
    %p147 = scmp.eq.s32.totalorder %s20, 1
    %p148 = por %p146, %p147
    %p150 = scmp.ne.s32.totalorder %s135, %s149
    %p151 = scmp.eq.s32.totalorder %s20, 0
    %p152 = por %p150, %p151
    %s154 = sadd.s32 %s153, 1
    %p157 = scmp.eq.s32.totalorder %s14, 1
    %p158 = scmp.ne.s32.totalorder %s153, %s155
    %p159 = scmp.eq.s32.totalorder %s14, 0
    %p160 = por %p158, %p159
    %p161 = scmp.ne.s32.totalorder %s153, %s155
    %p162 = scmp.eq.s32.totalorder %s19, 1
    %p163 = por %p161, %p162
    %p164 = scmp.ne.s32.totalorder %s155, %s156
    %p165 = scmp.eq.s32.totalorder %s19, 0
    %p166 = por %p164, %p165
    %p167 = scmp.ne.s32.totalorder %s155, %s156
    %p168 = scmp.eq.s32.totalorder %s20, 1
    %p169 = por %p167, %p168
    %p171 = scmp.ne.s32.totalorder %s156, %s170
    %p172 = scmp.eq.s32.totalorder %s20, 0
    %p173 = por %p171, %p172
    %s175 = sadd.s32 %s174, 1
    %p178 = scmp.eq.s32.totalorder %s14, 1
    %p179 = scmp.ne.s32.totalorder %s174, %s176
    %p180 = scmp.eq.s32.totalorder %s14, 0
    %p181 = por %p179, %p180
    %p182 = scmp.ne.s32.totalorder %s174, %s176
    %p183 = scmp.eq.s32.totalorder %s19, 1
    %p184 = por %p182, %p183
    %p185 = scmp.ne.s32.totalorder %s176, %s177
    %p186 = scmp.eq.s32.totalorder %s19, 0
    %p187 = por %p185, %p186
    %p188 = scmp.ne.s32.totalorder %s176, %s177
    %p189 = scmp.eq.s32.totalorder %s20, 1
    %p190 = por %p188, %p189
    %p192 = scmp.ne.s32.totalorder %s177, %s191
    %p193 = scmp.eq.s32.totalorder %s20, 0
    %p194 = por %p192, %p193
    %s195 = ssub.s32 %s14, %s21
    %p196 = scmp.eq.s32.totalorder %s195, 0
    %s198 = sadd.s32 %s197, 1
    %s199 = scalar_select %p196, %s197, %s198
    %p202 = pneg %p196
    %p203 = scmp.eq.s32.totalorder %s14, 1
    %p204 = por %p202, %p203
    %p205 = scmp.ne.s32.totalorder %s197, %s200
    %p206 = scmp.eq.s32.totalorder %s14, 0
    %p207 = por %p205, %p206
    %p208 = scmp.ne.s32.totalorder %s197, %s200
    %p209 = scmp.eq.s32.totalorder %s19, 1
    %p210 = por %p208, %p209
    %p211 = scmp.ne.s32.totalorder %s200, %s201
    %p212 = scmp.eq.s32.totalorder %s19, 0
    %p213 = por %p211, %p212
    %p214 = scmp.ne.s32.totalorder %s200, %s201
    %p215 = scmp.eq.s32.totalorder %s20, 1
    %p216 = por %p214, %p215
    %p218 = scmp.ne.s32.totalorder %s201, %s217
    %p219 = scmp.eq.s32.totalorder %s20, 0
    %p220 = por %p218, %p219
    %p221 = scmp.le.s32.totalorder 1, %s14
    %p222 = scmp.lt.s32.totalorder %s14, 3
    %p223 = pnand %p221, %p222
    %p224 = pneg %p223
    // Predicated region
    $region9: #{time_adapter_forward.11} parent=5 // pred_check
      _
    $region10: #{time_adapter_forward.11} parent=5 // pred_check_branch
      %226 = sbr.rel (%p223) target = $region12
    $region11: #{time_adapter_forward.11} parent=5 // pred_region
      %s227 = ssub.s32 %s14, 1
      // Predicated region
      $region13: #{time_adapter_forward.11} parent=11 // pred_check
        %p228 = pneg %p61
      $region14: #{time_adapter_forward.11} parent=11 // pred_check_branch
        %230 = sbr.rel (%p228) target = $region16
      $region15: #{time_adapter_forward.11} parent=11 // pred_region
        _
      $region16: #{time_adapter_forward.11} parent=11 // pred_fallthru
        _
      // Predicated region
      $region17: #{time_adapter_forward.11} parent=11 // pred_check
        %p231 = pneg %p82
      $region18: #{time_adapter_forward.11} parent=11 // pred_check_branch
        %233 = sbr.rel (%p231) target = $region20
      $region19: #{time_adapter_forward.11} parent=11 // pred_region
        _
      $region20: #{time_adapter_forward.11} parent=11 // pred_fallthru
        _
      // Predicated region
      $region21: #{time_adapter_forward.11} parent=11 // pred_check
        %p234 = pneg %p103
      $region22: #{time_adapter_forward.11} parent=11 // pred_check_branch
        %236 = sbr.rel (%p234) target = $region24
      $region23: #{time_adapter_forward.11} parent=11 // pred_region
        _
      $region24: #{time_adapter_forward.11} parent=11 // pred_fallthru
        _
      // Predicated region
      $region25: #{time_adapter_forward.11} parent=11 // pred_check
        %p237 = pneg %p124
      $region26: #{time_adapter_forward.11} parent=11 // pred_check_branch
        %239 = sbr.rel (%p237) target = $region28
      $region27: #{time_adapter_forward.11} parent=11 // pred_region
        _
      $region28: #{time_adapter_forward.11} parent=11 // pred_fallthru
        _
      // Predicated region
      $region29: #{time_adapter_forward.11} parent=11 // pred_check
        %p240 = pneg %p145
      $region30: #{time_adapter_forward.11} parent=11 // pred_check_branch
        %242 = sbr.rel (%p240) target = $region32
      $region31: #{time_adapter_forward.11} parent=11 // pred_region
        _
      $region32: #{time_adapter_forward.11} parent=11 // pred_fallthru
        _
      // Predicated region
      $region33: #{time_adapter_forward.11} parent=11 // pred_check
        %p243 = pneg %p166
      $region34: #{time_adapter_forward.11} parent=11 // pred_check_branch
        %245 = sbr.rel (%p243) target = $region36
      $region35: #{time_adapter_forward.11} parent=11 // pred_region
        _
      $region36: #{time_adapter_forward.11} parent=11 // pred_fallthru
        _
      // Predicated region
      $region37: #{time_adapter_forward.11} parent=11 // pred_check
        %p246 = pneg %p187
      $region38: #{time_adapter_forward.11} parent=11 // pred_check_branch
        %248 = sbr.rel (%p246) target = $region40
      $region39: #{time_adapter_forward.11} parent=11 // pred_region
        _
      $region40: #{time_adapter_forward.11} parent=11 // pred_fallthru
        _
    $region12: #{time_adapter_forward.11} parent=5 // pred_fallthru
      _
    %p249 = scmp.lt.s32.totalorder %s14, 2
    // Predicated region
    $region41: #{time_adapter_forward.11} parent=5 // pred_check
      %p250 = pneg %p249
    $region42: #{time_adapter_forward.11} parent=5 // pred_check_branch
      %252 = sbr.rel (%p250) target = $region44
    $region43: #{time_adapter_forward.11} parent=5 // pred_region
      // Predicated region
      $region45: #{time_adapter_forward.11} parent=43 // pred_check
        %p253 = pneg %p34
      $region46: #{time_adapter_forward.11} parent=43 // pred_check_branch
        %255 = sbr.rel (%p253) target = $region48
      $region47: #{time_adapter_forward.11} parent=43 // pred_region
        %p256 = scmp.lt.s32.totalorder %s14, 1
        %s257 = scalar_select %p256, %s14, 1
        %s258 = smul.addr %s257, 2
        %s259 = smul.addr %s258, 8
        %s260 = scalar_lea.vmem %s0, %s259
      $region48: #{time_adapter_forward.11} parent=43 // pred_fallthru
        _
    $region44: #{time_adapter_forward.11} parent=5 // pred_fallthru
      _
    %p261 = scmp.le.s32.totalorder 1, %s14
    %p262 = scmp.lt.s32.totalorder %s14, 3
    %p263 = pnand %p261, %p262
    %p264 = pneg %p263
    // Predicated region
    $region49: #{time_adapter_forward.11} parent=5 // pred_check
      _
    $region50: #{time_adapter_forward.11} parent=5 // pred_check_branch
      %266 = sbr.rel (%p263) target = $region52
    $region51: #{time_adapter_forward.11} parent=5 // pred_region
      %s267 = ssub.s32 %s14, 1
      %p268 = scmp.lt.s32.totalorder %s19, 1
      %s269 = scalar_select %p268, %s19, 1
      %s270 = smul.addr %s269, 2
      %s271 = smul.addr %s270, 8
      %s272 = scalar_lea.vmem %s0, %s271
      %p273 = pneg %p40
      %p274 = pneg %p37
      %p275 = pneg %p61
      %p276 = pneg %p58
      %p277 = pneg %p82
      %p278 = pneg %p79
      %p279 = pneg %p103
      %p280 = pneg %p100
      %p281 = pneg %p124
      %p282 = pneg %p121
      %p283 = pneg %p145
      %p284 = pneg %p142
      %p285 = pneg %p166
      %p286 = pneg %p163
      %p287 = pneg %p187
      %p288 = pneg %p184
      %p289 = pneg %p213
      %p290 = pneg %p210
      %p291 = scmp.lt.s32.totalorder %s19, 1
      %s292 = scalar_select %p291, %s19, 1
      %s293 = smul.addr %s292, 2
      %s294 = smul.addr %s293, 8
      %s295 = scalar_lea.vmem %s8, %s294
      %p296 = scmp.lt.s32.totalorder %s19, 1
      %s297 = scalar_select %p296, %s19, 1
      %s298 = smul.addr %s297, 2
      %s299 = smul.addr %s298, 8
      %s300 = scalar_lea.vmem %s0, %s299
      %p301 = scmp.lt.s32.totalorder %s19, 1
      %s302 = scalar_select %p301, %s19, 1
      %s303 = smul.addr %s302, 2
      %s304 = smul.addr %s303, 8
      %s305 = scalar_lea.vmem %s8, %s304
      %v307 = vld [vmem:[%s300] sm:$0xff]
      %v308 = vld [vmem:[%s300 + $0x8] sm:$0xff]
      %v309 = vld [vmem:[%s3] sm:$0xff]
      %v310 = vld [vmem:[%s4] sm:$0xf]
      %vm311 = vcmask 64512
      %v313 = vsel %vm311, %v310, 0
      %315 = vmatprep.subr.mxu0 0.0
      %316 = vmatpush1.msra.mxu0 0.0
      %317 = vmatprep.subr.mxu0 0.0
      %318 = vmatpush1.msra.mxu0 0.0
      %319 = vmatprep.subr.mxu0 0.0
      %320 = vmatpush1.msra.mxu0 0.0
      %321 = vmatprep.subr.mxu0 0.0
      %322 = vmatpush1.msra.mxu0 0.0
      %323 = vmatprep.subr.mxu0 0.0
      %324 = vmatpush1.msra.mxu0 0.0
      %325 = vmatprep.subr.mxu0 0.0
      %326 = vmatpush1.msra.mxu0 0.0
      %327 = vmatprep.subr.mxu0 0.0
      %328 = vmatpush1.msra.mxu0 0.0
      %329 = vmatprep.subr.mxu0 0.0
      %330 = vmatpush1.msra.mxu0 0.0
      %331 = vmatprep.subr.mxu0 0.0
      %332 = vmatpush1.msra.mxu0 0.0
      %333 = vmatprep.subr.mxu0 0.0
      %334 = vmatpush1.msra.mxu0 0.0
      %335 = vmatprep.subr.mxu0 0.0
      %336 = vmatpush1.msra.mxu0 0.0
      %337 = vmatprep.subr.mxu0 0.0
      %338 = vmatpush1.msra.mxu0 0.0
      %339 = vmatprep.subr.mxu0 0.0
      %340 = vmatpush1.msra.mxu0 0.0
      %341 = vmatprep.subr.mxu0 0.0
      %342 = vmatpush1.msra.mxu0 0.0
      %343 = vmatprep.subr.mxu0 0.0
      %344 = vmatpush1.msra.mxu0 0.0
      %345 = vmatprep.subr.mxu0 %v308
      %346 = vmatpush1.msra.mxu0 %v307
      %347 = vmatprep.subr.mxu0 0.0
      %348 = vmatpush2.msra.mxu0 0.0
      %349 = vmatprep.subr.mxu0 0.0
      %350 = vmatpush2.msra.mxu0 0.0
      %351 = vmatprep.subr.mxu0 0.0
      %352 = vmatpush2.msra.mxu0 0.0
      %353 = vmatprep.subr.mxu0 0.0
      %354 = vmatpush2.msra.mxu0 0.0
      %355 = vmatprep.subr.mxu0 0.0
      %356 = vmatpush2.msra.mxu0 0.0
      %357 = vmatprep.subr.mxu0 0.0
      %358 = vmatpush2.msra.mxu0 0.0
      %359 = vmatprep.subr.mxu0 0.0
      %360 = vmatpush2.msra.mxu0 0.0
      %361 = vmatprep.subr.mxu0 0.0
      %362 = vmatpush2.msra.mxu0 0.0
      %363 = vmatprep.subr.mxu0 0.0
      %364 = vmatpush2.msra.mxu0 0.0
      %365 = vmatprep.subr.mxu0 0.0
      %366 = vmatpush2.msra.mxu0 0.0
      %367 = vmatprep.subr.mxu0 0.0
      %368 = vmatpush2.msra.mxu0 0.0
      %369 = vmatprep.subr.mxu0 0.0
      %370 = vmatpush2.msra.mxu0 0.0
      %371 = vmatprep.subr.mxu0 0.0
      %372 = vmatpush2.msra.mxu0 0.0
      %373 = vmatprep.subr.mxu0 0.0
      %374 = vmatpush2.msra.mxu0 0.0
      %375 = vmatprep.subr.mxu0 0.0
      %376 = vmatpush2.msra.mxu0 0.0
      %377 = vmatprep.subr.mxu0 0.0
      %378 = vmatpush2.msra.mxu0 0.0
      %379 = vmatprep.mubr.f32.mxu0 0.0
      %380 = vmatmul.mubr.f32.gmra.mxu0 %v313
      %v381 = vpop.f32.mrf.mxu0
      %v382 = vadd.f32 0.0, %v381
      %v383 = vpop.f32.mrf.mxu0
      %v384 = vadd.f32 0.0, %v383
      %385 = vdwg.mxu0
      %vm386 = vcmask 1043456
      %v387 = vsel %vm386, %v382, 0.0
      %v388 = vsel %vm386, %v384, 0.0
      %v389 = vadd.f32 %v387, %v388
      %390 = vadd.xlane.f32.xlu0 %v389
      %v391 = vpop.xlane.xlu0 %390
      %v392 = vrcp.pop 512.0
      %v393 = vmul.f32 %v391, %v392
      %vm395 = vcmask 31744
      %v397 = vsel %vm395, %v309, 0
      %v399 = vsel %vm386, %v393, 0
      %401 = vmatprep.subr.mxu0 0.0
      %402 = vmatpush1.msra.mxu0 0.0
      %403 = vmatprep.subr.mxu0 0.0
      %404 = vmatpush1.msra.mxu0 0.0
      %405 = vmatprep.subr.mxu0 0.0
      %406 = vmatpush1.msra.mxu0 0.0
      %407 = vmatprep.subr.mxu0 0.0
      %408 = vmatpush1.msra.mxu0 0.0
      %409 = vmatprep.subr.mxu0 0.0
      %410 = vmatpush1.msra.mxu0 0.0
      %411 = vmatprep.subr.mxu0 0.0
      %412 = vmatpush1.msra.mxu0 0.0
      %413 = vmatprep.subr.mxu0 0.0
      %414 = vmatpush1.msra.mxu0 0.0
      %415 = vmatprep.subr.mxu0 0.0
      %416 = vmatpush1.msra.mxu0 0.0
      %417 = vmatprep.subr.mxu0 0.0
      %418 = vmatpush1.msra.mxu0 0.0
      %419 = vmatprep.subr.mxu0 0.0
      %420 = vmatpush1.msra.mxu0 0.0
      %421 = vmatprep.subr.mxu0 0.0
      %422 = vmatpush1.msra.mxu0 0.0
      %423 = vmatprep.subr.mxu0 0.0
      %424 = vmatpush1.msra.mxu0 0.0
      %425 = vmatprep.subr.mxu0 0.0
      %426 = vmatpush1.msra.mxu0 0.0
      %427 = vmatprep.subr.mxu0 0.0
      %428 = vmatpush1.msra.mxu0 0.0
      %429 = vmatprep.subr.mxu0 0.0
      %430 = vmatpush1.msra.mxu0 0.0
      %431 = vmatprep.subr.mxu0 %v399
      %432 = vmatpush1.msra.mxu0 %v399
      %433 = vmatprep.subr.mxu0 0.0
      %434 = vmatpush2.msra.mxu0 0.0
      %435 = vmatprep.subr.mxu0 0.0
      %436 = vmatpush2.msra.mxu0 0.0
      %437 = vmatprep.subr.mxu0 0.0
      %438 = vmatpush2.msra.mxu0 0.0
      %439 = vmatprep.subr.mxu0 0.0
      %440 = vmatpush2.msra.mxu0 0.0
      %441 = vmatprep.subr.mxu0 0.0
      %442 = vmatpush2.msra.mxu0 0.0
      %443 = vmatprep.subr.mxu0 0.0
      %444 = vmatpush2.msra.mxu0 0.0
      %445 = vmatprep.subr.mxu0 0.0
      %446 = vmatpush2.msra.mxu0 0.0
      %447 = vmatprep.subr.mxu0 0.0
      %448 = vmatpush2.msra.mxu0 0.0
      %449 = vmatprep.subr.mxu0 0.0
      %450 = vmatpush2.msra.mxu0 0.0
      %451 = vmatprep.subr.mxu0 0.0
      %452 = vmatpush2.msra.mxu0 0.0
      %453 = vmatprep.subr.mxu0 0.0
      %454 = vmatpush2.msra.mxu0 0.0
      %455 = vmatprep.subr.mxu0 0.0
      %456 = vmatpush2.msra.mxu0 0.0
      %457 = vmatprep.subr.mxu0 0.0
      %458 = vmatpush2.msra.mxu0 0.0
      %459 = vmatprep.subr.mxu0 0.0
      %460 = vmatpush2.msra.mxu0 0.0
      %461 = vmatprep.subr.mxu0 0.0
      %462 = vmatpush2.msra.mxu0 0.0
      %463 = vmatprep.subr.mxu0 0.0
      %464 = vmatpush2.msra.mxu0 0.0
      %465 = vmatprep.mubr.f32.mxu0 0.0
      %466 = vmatmul.mubr.f32.gmra.mxu0 %v397
      %v467 = vpop.f32.mrf.mxu0
      %v468 = vadd.f32 0.0, %v467
      %v469 = vpop.f32.mrf.mxu0
      %v470 = vadd.f32 0.0, %v469
      %471 = vdwg.mxu0
      %v472 = vsub.f32 %v307, %v468
      %v473 = vsub.f32 %v308, %v470
      %v474 = vmul.f32 %v472, %v472
      %v475 = vmul.f32 %v473, %v473
      %476 = vmatprep.subr.mxu0 0.0
      %477 = vmatpush1.msra.mxu0 0.0
      %478 = vmatprep.subr.mxu0 0.0
      %479 = vmatpush1.msra.mxu0 0.0
      %480 = vmatprep.subr.mxu0 0.0
      %481 = vmatpush1.msra.mxu0 0.0
      %482 = vmatprep.subr.mxu0 0.0
      %483 = vmatpush1.msra.mxu0 0.0
      %484 = vmatprep.subr.mxu0 0.0
      %485 = vmatpush1.msra.mxu0 0.0
      %486 = vmatprep.subr.mxu0 0.0
      %487 = vmatpush1.msra.mxu0 0.0
      %488 = vmatprep.subr.mxu0 0.0
      %489 = vmatpush1.msra.mxu0 0.0
      %490 = vmatprep.subr.mxu0 0.0
      %491 = vmatpush1.msra.mxu0 0.0
      %492 = vmatprep.subr.mxu0 0.0
      %493 = vmatpush1.msra.mxu0 0.0
      %494 = vmatprep.subr.mxu0 0.0
      %495 = vmatpush1.msra.mxu0 0.0
      %496 = vmatprep.subr.mxu0 0.0
      %497 = vmatpush1.msra.mxu0 0.0
      %498 = vmatprep.subr.mxu0 0.0
      %499 = vmatpush1.msra.mxu0 0.0
      %500 = vmatprep.subr.mxu0 0.0
      %501 = vmatpush1.msra.mxu0 0.0
      %502 = vmatprep.subr.mxu0 0.0
      %503 = vmatpush1.msra.mxu0 0.0
      %504 = vmatprep.subr.mxu0 0.0
      %505 = vmatpush1.msra.mxu0 0.0
      %506 = vmatprep.subr.mxu0 %v475
      %507 = vmatpush1.msra.mxu0 %v474
      %508 = vmatprep.subr.mxu0 0.0
      %509 = vmatpush2.msra.mxu0 0.0
      %510 = vmatprep.subr.mxu0 0.0
      %511 = vmatpush2.msra.mxu0 0.0
      %512 = vmatprep.subr.mxu0 0.0
      %513 = vmatpush2.msra.mxu0 0.0
      %514 = vmatprep.subr.mxu0 0.0
      %515 = vmatpush2.msra.mxu0 0.0
      %516 = vmatprep.subr.mxu0 0.0
      %517 = vmatpush2.msra.mxu0 0.0
      %518 = vmatprep.subr.mxu0 0.0
      %519 = vmatpush2.msra.mxu0 0.0
      %520 = vmatprep.subr.mxu0 0.0
      %521 = vmatpush2.msra.mxu0 0.0
      %522 = vmatprep.subr.mxu0 0.0
      %523 = vmatpush2.msra.mxu0 0.0
      %524 = vmatprep.subr.mxu0 0.0
      %525 = vmatpush2.msra.mxu0 0.0
      %526 = vmatprep.subr.mxu0 0.0
      %527 = vmatpush2.msra.mxu0 0.0
      %528 = vmatprep.subr.mxu0 0.0
      %529 = vmatpush2.msra.mxu0 0.0
      %530 = vmatprep.subr.mxu0 0.0
      %531 = vmatpush2.msra.mxu0 0.0
      %532 = vmatprep.subr.mxu0 0.0
      %533 = vmatpush2.msra.mxu0 0.0
      %534 = vmatprep.subr.mxu0 0.0
      %535 = vmatpush2.msra.mxu0 0.0
      %536 = vmatprep.subr.mxu0 0.0
      %537 = vmatpush2.msra.mxu0 0.0
      %538 = vmatprep.subr.mxu0 0.0
      %539 = vmatpush2.msra.mxu0 0.0
      %540 = vmatprep.mubr.f32.mxu0 0.0
      %541 = vmatmul.mubr.f32.gmra.mxu0 %v313
      %v542 = vpop.f32.mrf.mxu0
      %v543 = vadd.f32 0.0, %v542
      %v544 = vpop.f32.mrf.mxu0
      %v545 = vadd.f32 0.0, %v544
      %546 = vdwg.mxu0
      %v547 = vsel %vm386, %v543, 0.0
      %v548 = vsel %vm386, %v545, 0.0
      %v549 = vadd.f32 %v547, %v548
      %550 = vadd.xlane.f32.xlu0 %v549
      %v551 = vpop.xlane.xlu0 %550
      %v552 = vmul.f32 %v551, %v392
      %v553 = vadd.f32 %v552, 1e-05
      %v554 = vrsqrt.pop %v553
      %v556 = vsel %vm386, %v554, 0
      %558 = vmatprep.subr.mxu0 0.0
      %559 = vmatpush1.msra.mxu0 0.0
      %560 = vmatprep.subr.mxu0 0.0
      %561 = vmatpush1.msra.mxu0 0.0
      %562 = vmatprep.subr.mxu0 0.0
      %563 = vmatpush1.msra.mxu0 0.0
      %564 = vmatprep.subr.mxu0 0.0
      %565 = vmatpush1.msra.mxu0 0.0
      %566 = vmatprep.subr.mxu0 0.0
      %567 = vmatpush1.msra.mxu0 0.0
      %568 = vmatprep.subr.mxu0 0.0
      %569 = vmatpush1.msra.mxu0 0.0
      %570 = vmatprep.subr.mxu0 0.0
      %571 = vmatpush1.msra.mxu0 0.0
      %572 = vmatprep.subr.mxu0 0.0
      %573 = vmatpush1.msra.mxu0 0.0
      %574 = vmatprep.subr.mxu0 0.0
      %575 = vmatpush1.msra.mxu0 0.0
      %576 = vmatprep.subr.mxu0 0.0
      %577 = vmatpush1.msra.mxu0 0.0
      %578 = vmatprep.subr.mxu0 0.0
      %579 = vmatpush1.msra.mxu0 0.0
      %580 = vmatprep.subr.mxu0 0.0
      %581 = vmatpush1.msra.mxu0 0.0
      %582 = vmatprep.subr.mxu0 0.0
      %583 = vmatpush1.msra.mxu0 0.0
      %584 = vmatprep.subr.mxu0 0.0
      %585 = vmatpush1.msra.mxu0 0.0
      %586 = vmatprep.subr.mxu0 0.0
      %587 = vmatpush1.msra.mxu0 0.0
      %588 = vmatprep.subr.mxu0 %v556
      %589 = vmatpush1.msra.mxu0 %v556
      %590 = vmatprep.subr.mxu0 0.0
      %591 = vmatpush2.msra.mxu0 0.0
      %592 = vmatprep.subr.mxu0 0.0
      %593 = vmatpush2.msra.mxu0 0.0
      %594 = vmatprep.subr.mxu0 0.0
      %595 = vmatpush2.msra.mxu0 0.0
      %596 = vmatprep.subr.mxu0 0.0
      %597 = vmatpush2.msra.mxu0 0.0
      %598 = vmatprep.subr.mxu0 0.0
      %599 = vmatpush2.msra.mxu0 0.0
      %600 = vmatprep.subr.mxu0 0.0
      %601 = vmatpush2.msra.mxu0 0.0
      %602 = vmatprep.subr.mxu0 0.0
      %603 = vmatpush2.msra.mxu0 0.0
      %604 = vmatprep.subr.mxu0 0.0
      %605 = vmatpush2.msra.mxu0 0.0
      %606 = vmatprep.subr.mxu0 0.0
      %607 = vmatpush2.msra.mxu0 0.0
      %608 = vmatprep.subr.mxu0 0.0
      %609 = vmatpush2.msra.mxu0 0.0
      %610 = vmatprep.subr.mxu0 0.0
      %611 = vmatpush2.msra.mxu0 0.0
      %612 = vmatprep.subr.mxu0 0.0
      %613 = vmatpush2.msra.mxu0 0.0
      %614 = vmatprep.subr.mxu0 0.0
      %615 = vmatpush2.msra.mxu0 0.0
      %616 = vmatprep.subr.mxu0 0.0
      %617 = vmatpush2.msra.mxu0 0.0
      %618 = vmatprep.subr.mxu0 0.0
      %619 = vmatpush2.msra.mxu0 0.0
      %620 = vmatprep.subr.mxu0 0.0
      %621 = vmatpush2.msra.mxu0 0.0
      %622 = vmatprep.mubr.f32.mxu0 0.0
      %623 = vmatmul.mubr.f32.gmra.mxu0 %v397
      %v624 = vpop.f32.mrf.mxu0
      %v625 = vadd.f32 0.0, %v624
      %v626 = vpop.f32.mrf.mxu0
      %v627 = vadd.f32 0.0, %v626
      %628 = vdwg.mxu0
      %v629 = vmul.f32 %v472, %v625
      %v630 = vmul.f32 %v473, %v627
      %v631 = vld [vmem:[%s1] sm:$0xff]
      %633 = vset.pattern.permute.xlu0 0
      %634 = vperm.xlu0 %633, %v631
      %v635 = vpop.permute.xlu0 %634
      %v637 = vmul.f32 %v629, %v635
      %v638 = vmul.f32 %v630, %v635
      %v639 = vld [vmem:[%s2] sm:$0xff]
      %641 = vset.pattern.permute.xlu0 0
      %642 = vperm.xlu0 %641, %v639
      %v643 = vpop.permute.xlu0 %642
      %v645 = vadd.f32 %v637, %v643
      %v646 = vadd.f32 %v638, %v643
      %v647 = vxor.u32 %v645, 2147483648
      %v648 = vxor.u32 %v646, 2147483648
      %v649 = vmul.f32 %v647, 1.442695
      %v650 = vpow.pop %v649
      %v651 = vmul.f32 %v648, 1.442695
      %v652 = vpow.pop %v651
      %v653 = vadd.f32 %v650, 1.0
      %v654 = vadd.f32 %v652, 1.0
      %v655 = vrcp.pop %v653
      %v656 = vmul.f32 1.0, %v655
      %v657 = vrcp.pop %v654
      %v658 = vmul.f32 1.0, %v657
      %v659 = vmul.f32 %v645, %v656
      %v660 = vmul.f32 %v646, %v658
      %v661 = vld [vmem:[%s5] sm:$0xff]
      %v662 = vld [vmem:[%s5 + $0x8] sm:$0xff]
      %v663 = vld [vmem:[%s5 + $0x10] sm:$0x1]
      %v664 = vld [vmem:[%s5 + $0x18] sm:$0x1]
      %665 = vrot.lane.b32.xlu0 %v659, 17
      %v666 = vpop.permute.xlu0 %665
      %667 = vrot.lane.b32.xlu0 %v660, 17
      %v668 = vpop.permute.xlu0 %667
      %v669 = vlaneseq
      %v670 = vand.u32 %v669, 127
      %vm671 = vcmp.lt.s32.totalorder %v670, 17
      %v672 = vsel %vm671, %v666, %v668
      %v673 = vsel %vm671, %v668, %v666
      %v674 = vlaneseq
      %v675 = vshrl.u32 %v674, 7
      %v676 = vsub.s32 0, %v675
      %v677 = vrot.slane %v661, %v676
      %v678 = vlaneseq
      %v679 = vshrl.u32 %v678, 7
      %v680 = vsub.s32 0, %v679
      %v681 = vrot.slane %v662, %v680
      %v682 = vmul.f32 %v673, %v677
      %v683 = vmul.f32 %v672, %v681
      %684 = vst [vmem:[#allocation2] sm:$0xff] %v682
      %685 = vst [vmem:[#allocation2 + $0x8] sm:$0xff] %v683
      %686 = vrot.lane.b32.xlu0 %v659, 16
      %v687 = vpop.permute.xlu0 %686
      %688 = vrot.lane.b32.xlu0 %v660, 16
      %v689 = vpop.permute.xlu0 %688
      %vm690 = vcmp.lt.s32.totalorder %v670, 16
      %v691 = vsel %vm690, %v687, %v689
      %v692 = vsel %vm690, %v689, %v687
      %v693 = vlaneseq
      %v694 = vshrl.u32 %v693, 7
      %v695 = vsub.s32 1, %v694
      %v696 = vrot.slane %v661, %v695
      %v697 = vlaneseq
      %v698 = vshrl.u32 %v697, 7
      %v699 = vsub.s32 1, %v698
      %v700 = vrot.slane %v662, %v699
      %v701 = vmul.f32 %v692, %v696
      %v702 = vmul.f32 %v691, %v700
      %703 = vst [vmem:[#allocation2 + $0x10] sm:$0xff] %v701
      %704 = vst [vmem:[#allocation2 + $0x18] sm:$0xff] %v702
      %705 = vrot.lane.b32.xlu0 %v659, 15
      %v706 = vpop.permute.xlu0 %705
      %707 = vrot.lane.b32.xlu0 %v660, 15
      %v708 = vpop.permute.xlu0 %707
      %vm709 = vcmp.lt.s32.totalorder %v670, 15
      %v710 = vsel %vm709, %v706, %v708
      %v711 = vsel %vm709, %v708, %v706
      %v712 = vlaneseq
      %v713 = vshrl.u32 %v712, 7
      %v714 = vsub.s32 2, %v713
      %v715 = vrot.slane %v661, %v714
      %v716 = vlaneseq
      %v717 = vshrl.u32 %v716, 7
      %v718 = vsub.s32 2, %v717
      %v719 = vrot.slane %v662, %v718
      %v720 = vmul.f32 %v711, %v715
      %v721 = vmul.f32 %v710, %v719
      %722 = vst [vmem:[#allocation2 + $0x20] sm:$0xff] %v720
      %723 = vst [vmem:[#allocation2 + $0x28] sm:$0xff] %v721
      %724 = vrot.lane.b32.xlu0 %v659, 1
      %v725 = vpop.permute.xlu0 %724
      %726 = vrot.lane.b32.xlu0 %v660, 1
      %v727 = vpop.permute.xlu0 %726
      %vm728 = vcmp.lt.s32.totalorder %v670, 1
      %v729 = vsel %vm728, %v725, %v727
      %v730 = vsel %vm728, %v727, %v725
      %v731 = vlaneseq
      %v732 = vshrl.u32 %v731, 7
      %v733 = vsub.s32 3, %v732
      %v734 = vrot.slane %v661, %v733
      %v735 = vlaneseq
      %v736 = vshrl.u32 %v735, 7
      %v737 = vsub.s32 3, %v736
      %v738 = vrot.slane %v662, %v737
      %v739 = vmul.f32 %v730, %v734
      %v740 = vmul.f32 %v729, %v738
      %741 = vst [vmem:[#allocation2 + $0x30] sm:$0xff] %v739
      %742 = vst [vmem:[#allocation2 + $0x38] sm:$0xff] %v740
      %v743 = vlaneseq
      %v744 = vshrl.u32 %v743, 7
      %v745 = vsub.s32 4, %v744
      %v746 = vrot.slane %v661, %v745
      %v747 = vlaneseq
      %v748 = vshrl.u32 %v747, 7
      %v749 = vsub.s32 4, %v748
      %v750 = vrot.slane %v662, %v749
      %v751 = vmul.f32 %v659, %v746
      %v752 = vmul.f32 %v660, %v750
      %753 = vst [vmem:[#allocation2 + $0x40] sm:$0xff] %v751
      %754 = vst [vmem:[#allocation2 + $0x48] sm:$0xff] %v752
      %755 = vrot.lane.b32.xlu0 %v659, 127
      %v756 = vpop.permute.xlu0 %755
      %757 = vrot.lane.b32.xlu0 %v660, 127
      %v758 = vpop.permute.xlu0 %757
      %vm759 = vcmp.lt.s32.totalorder %v670, 127
      %v760 = vsel %vm759, %v756, %v758
      %v761 = vsel %vm759, %v758, %v756
      %v762 = vlaneseq
      %v763 = vshrl.u32 %v762, 7
      %v764 = vsub.s32 5, %v763
      %v765 = vrot.slane %v661, %v764
      %v766 = vlaneseq
      %v767 = vshrl.u32 %v766, 7
      %v768 = vsub.s32 5, %v767
      %v769 = vrot.slane %v662, %v768
      %v770 = vmul.f32 %v760, %v765
      %v771 = vmul.f32 %v761, %v769
      %772 = vst [vmem:[#allocation2 + $0x50] sm:$0xff] %v770
      %773 = vst [vmem:[#allocation2 + $0x58] sm:$0xff] %v771
      %774 = vrot.lane.b32.xlu0 %v659, 113
      %v775 = vpop.permute.xlu0 %774
      %776 = vrot.lane.b32.xlu0 %v660, 113
      %v777 = vpop.permute.xlu0 %776
      %vm778 = vcmp.lt.s32.totalorder %v670, 113
      %v779 = vsel %vm778, %v775, %v777
      %v780 = vsel %vm778, %v777, %v775
      %v781 = vlaneseq
      %v782 = vshrl.u32 %v781, 7
      %v783 = vsub.s32 6, %v782
      %v784 = vrot.slane %v661, %v783
      %v785 = vlaneseq
      %v786 = vshrl.u32 %v785, 7
      %v787 = vsub.s32 6, %v786
      %v788 = vrot.slane %v662, %v787
      %v789 = vmul.f32 %v779, %v784
      %v790 = vmul.f32 %v780, %v788
      %791 = vst [vmem:[#allocation2 + $0x60] sm:$0xff] %v789
      %792 = vst [vmem:[#allocation2 + $0x68] sm:$0xff] %v790
      %793 = vrot.lane.b32.xlu0 %v659, 112
      %v794 = vpop.permute.xlu0 %793
      %795 = vrot.lane.b32.xlu0 %v660, 112
      %v796 = vpop.permute.xlu0 %795
      %vm797 = vcmp.lt.s32.totalorder %v670, 112
      %v798 = vsel %vm797, %v794, %v796
      %v799 = vsel %vm797, %v796, %v794
      %v800 = vlaneseq
      %v801 = vshrl.u32 %v800, 7
      %v802 = vsub.s32 7, %v801
      %v803 = vrot.slane %v661, %v802
      %v804 = vlaneseq
      %v805 = vshrl.u32 %v804, 7
      %v806 = vsub.s32 7, %v805
      %v807 = vrot.slane %v662, %v806
      %v808 = vmul.f32 %v798, %v803
      %v809 = vmul.f32 %v799, %v807
      %810 = vst [vmem:[#allocation2 + $0x70] sm:$0xff] %v808
      %811 = vst [vmem:[#allocation2 + $0x78] sm:$0xff] %v809
      %812 = vrot.lane.b32.xlu0 %v659, 111
      %v813 = vpop.permute.xlu0 %812
      %814 = vrot.lane.b32.xlu0 %v660, 111
      %v815 = vpop.permute.xlu0 %814
      %vm816 = vcmp.lt.s32.totalorder %v670, 111
      %v817 = vsel %vm816, %v813, %v815
      %v818 = vsel %vm816, %v815, %v813
      %v819 = vlaneseq
      %v820 = vshrl.u32 %v819, 7
      %v821 = vsub.s32 0, %v820
      %v822 = vrot.slane %v663, %v821
      %v823 = vlaneseq
      %v824 = vshrl.u32 %v823, 7
      %v825 = vsub.s32 0, %v824
      %v826 = vrot.slane %v664, %v825
      %v827 = vmul.f32 %v817, %v822
      %v828 = vmul.f32 %v818, %v826
      %829 = vst [vmem:[#allocation2 + $0x80] sm:$0xff] %v827
      %830 = vst [vmem:[#allocation2 + $0x88] sm:$0xff] %v828
      %v831 = vld [vmem:[%s6] sm:$0xf]
      %v832 = vld [vmem:[#allocation2] sm:$0xff]
      %v833 = vld [vmem:[#allocation2 + $0x8] sm:$0xff]
      %v834 = vld [vmem:[#allocation2 + $0x10] sm:$0xff]
      %v835 = vld [vmem:[#allocation2 + $0x18] sm:$0xff]
      %v836 = vld [vmem:[#allocation2 + $0x20] sm:$0xff]
      %v837 = vld [vmem:[#allocation2 + $0x28] sm:$0xff]
      %v838 = vld [vmem:[#allocation2 + $0x30] sm:$0xff]
      %v839 = vld [vmem:[#allocation2 + $0x38] sm:$0xff]
      %v840 = vld [vmem:[#allocation2 + $0x40] sm:$0xff]
      %v841 = vld [vmem:[#allocation2 + $0x48] sm:$0xff]
      %v842 = vld [vmem:[#allocation2 + $0x50] sm:$0xff]
      %v843 = vld [vmem:[#allocation2 + $0x58] sm:$0xff]
      %v844 = vld [vmem:[#allocation2 + $0x60] sm:$0xff]
      %v845 = vld [vmem:[#allocation2 + $0x68] sm:$0xff]
      %v846 = vld [vmem:[#allocation2 + $0x70] sm:$0xff]
      %v847 = vld [vmem:[#allocation2 + $0x78] sm:$0xff]
      %v848 = vld [vmem:[#allocation2 + $0x80] sm:$0xff]
      %v849 = vld [vmem:[#allocation2 + $0x88] sm:$0xff]
      %v850 = vpack.c.bf16 %v834, %v832
      %v851 = vpack.c.bf16 %v835, %v833
      %v852 = vpack.c.bf16 %v838, %v836
      %v853 = vpack.c.bf16 %v839, %v837
      %v854 = vpack.c.bf16 %v842, %v840
      %v855 = vpack.c.bf16 %v843, %v841
      %v856 = vpack.c.bf16 %v846, %v844
      %v857 = vpack.c.bf16 %v847, %v845
      %v858 = vpack.c.bf16 %v848, %v848
      %v859 = vpack.c.bf16 %v849, %v849
      %v860 = vld [vmem:[%s7] sm:$0xff]
      %862 = vset.pattern.permute.xlu0 0
      %863 = vperm.xlu0 %862, %v860
      %v864 = vpop.permute.xlu0 %863
      %vm866 = vcmask 588800
      %v868 = vsel %vm866, %v831, 0
      %v871 = vsel %vm386, %v858, 0
      %v874 = vsel %vm386, %v859, 0
      %876 = vmatprep.subr.bf16.mxu0 0
      %877 = vmatpush1.bf16.msra.mxu0 0
      %878 = vmatprep.subr.bf16.mxu0 0
      %879 = vmatpush1.bf16.msra.mxu0 0
      %880 = vmatprep.subr.bf16.mxu0 0
      %881 = vmatpush1.bf16.msra.mxu0 0
      %882 = vmatprep.subr.bf16.mxu0 %v874
      %883 = vmatpush1.bf16.msra.mxu0 %v871
      %884 = vmatprep.subr.bf16.mxu0 %v857
      %885 = vmatpush1.bf16.msra.mxu0 %v856
      %886 = vmatprep.subr.bf16.mxu0 %v855
      %887 = vmatpush1.bf16.msra.mxu0 %v854
      %888 = vmatprep.subr.bf16.mxu0 %v853
      %889 = vmatpush1.bf16.msra.mxu0 %v852
      %890 = vmatprep.subr.bf16.mxu0 %v851
      %891 = vmatpush1.bf16.msra.mxu0 %v850
      %892 = vmatprep.subr.bf16.mxu0 0
      %893 = vmatpush2.bf16.msra.mxu0 0
      %894 = vmatprep.subr.bf16.mxu0 0
      %895 = vmatpush2.bf16.msra.mxu0 0
      %896 = vmatprep.subr.bf16.mxu0 0
      %897 = vmatpush2.bf16.msra.mxu0 0
      %898 = vmatprep.subr.bf16.mxu0 0
      %899 = vmatpush2.bf16.msra.mxu0 0
      %900 = vmatprep.subr.bf16.mxu0 0
      %901 = vmatpush2.bf16.msra.mxu0 0
      %902 = vmatprep.subr.bf16.mxu0 0
      %903 = vmatpush2.bf16.msra.mxu0 0
      %904 = vmatprep.subr.bf16.mxu0 0
      %905 = vmatpush2.bf16.msra.mxu0 0
      %906 = vmatprep.subr.bf16.mxu0 0
      %907 = vmatpush2.bf16.msra.mxu0 0
      %908 = vmatprep.mubr.bf16.mxu0 0
      %909 = vmatmul.mubr.bf16.gmra.mxu0 %v868
      %v910 = vpop.f32.mrf.mxu0
      %v911 = vadd.f32 %v864, %v910
      %v912 = vpop.f32.mrf.mxu0
      %v913 = vadd.f32 %v864, %v912
      %v914 = vpop.f32.mrf.mxu0
      %v915 = vpop.f32.mrf.mxu0
      %916 = vdwg.mxu0
      %917 = vst [vmem:[%s305] sm:$0xff] %v911
      %918 = vst [vmem:[%s305 + $0x8] sm:$0xff] %v913
      %p919 = scmp.lt.s32.totalorder %s19, 1
      %s920 = scalar_select %p919, %s19, 1
      %s921 = smul.addr %s920, 2
      %s922 = smul.addr %s921, 8
      %s923 = scalar_lea.vmem %s8, %s922
      // Predicated region
      $region53: #{time_adapter_forward.11} parent=51 // pred_check
        %p924 = pneg %p210
      $region54: #{time_adapter_forward.11} parent=51 // pred_check_branch
        %926 = sbr.rel (%p924) target = $region56
      $region55: #{time_adapter_forward.11} parent=51 // pred_region
        _
      $region56: #{time_adapter_forward.11} parent=51 // pred_fallthru
        _
    $region52: #{time_adapter_forward.11} parent=5 // pred_fallthru
      _
    %p927 = scmp.le.s32.totalorder 2, %s14
    // Predicated region
    $region57: #{time_adapter_forward.11} parent=5 // pred_check
      %p928 = pneg %p927
    $region58: #{time_adapter_forward.11} parent=5 // pred_check_branch
      %930 = sbr.rel (%p928) target = $region60
    $region59: #{time_adapter_forward.11} parent=5 // pred_region
      %s931 = ssub.s32 %s14, 2
      // Predicated region
      $region61: #{time_adapter_forward.11} parent=59 // pred_check
        %p932 = pneg %p216
      $region62: #{time_adapter_forward.11} parent=59 // pred_check_branch
        %934 = sbr.rel (%p932) target = $region64
      $region63: #{time_adapter_forward.11} parent=59 // pred_region
        %p935 = scmp.lt.s32.totalorder %s20, 1
        %s936 = scalar_select %p935, %s20, 1
        %s937 = smul.addr %s936, 2
        %s938 = smul.addr %s937, 8
        %s939 = scalar_lea.vmem %s8, %s938
      $region64: #{time_adapter_forward.11} parent=59 // pred_fallthru
        _
    $region60: #{time_adapter_forward.11} parent=5 // pred_fallthru
      _
  $region6: #{time_adapter_forward.11} parent=0 // loop_footer
    %s18 = sadd.s32 1, %s14
  $region7: #{time_adapter_forward.11} parent=0 // loop_footer_branch
    %13 = sbr.rel target = $region3
  $region8: #{time_adapter_forward.11} parent=0 // loop_exit
    _

// kernel: time_adapter_forward.10
$region0: #{time_adapter_forward.10}
  #allocation0 [shape = 'u32[]', space=smem, size = 0x4, offset = 0x4, fixed_abs, tag = 'smem constant byte address 0x4 - core index']
  #allocation1 [shape = 'u32[144,128]{1,0:T(1,128)}', space=vmem, size = 0x12000, scoped, tag = 'internal scratch']
  #allocation2 [shape = 'f32[72,256]{1,0:T(8,128)}', space=vmem, size = 0x12000, scoped, tag = 'scratch operand']
  %s0 = inlined_call_operand.vmem [shape: f32[2,4,256], index: 0, kind: input, shape index: {}]
  %s1 = inlined_call_operand.vmem [shape: f32[9,256], index: 1, kind: input, shape index: {}]
  %s2 = inlined_call_operand.vmem [shape: bf16[8,72], index: 2, kind: input, shape index: {}]
  %s3 = inlined_call_operand.vmem [shape: f32[8,1], index: 3, kind: input, shape index: {}]
  %s4 = inlined_call_operand.vmem [shape: f32[2,8,256], index: 4, kind: output, shape index: {}]
  %s5 = sld [smem:[#allocation0]]
  $region49: #{time_adapter_forward.10} parent=0
    _
  %s7 = ssub.s32 1, %s5
  %s8 = scalar_select 0, %s7, %s5
  loop: start=0, step=1, limit=4
  $region2: #{time_adapter_forward.10} parent=0 // loop_pre_header
    _
  $region3: #{time_adapter_forward.10} parent=0 // loop_header
    %s10 = sphi 0, %s14
    %p11 = scmp.ge.s32.totalorder %s10, 4
    %s20 = sphi 0, %s22
    %s23 = sphi 0, %s20
    %s24 = sphi 0, %s23
    %s40 = sphi 0, %s24
    %s44 = sphi 0, %s44
    %s46 = sphi 0, %s44
    %s47 = sphi 0, %s46
    %s61 = sphi 0, %s47
    %s65 = sphi 0, %s65
    %s67 = sphi 0, %s65
    %s68 = sphi 0, %s67
    %s82 = sphi 0, %s68
    %s86 = sphi 0, %s86
    %s88 = sphi 0, %s86
    %s89 = sphi 0, %s88
    %s103 = sphi 0, %s89
    %s109 = sphi 0, %s111
    %s112 = sphi 0, %s109
    %s113 = sphi 0, %s112
    %s129 = sphi 0, %s113
  $region4: #{time_adapter_forward.10} parent=0 // loop_header_branch
    %13 = sbr.rel (%p11) target = $region8
  $region5: #{time_adapter_forward.10} parent=0 // loop_body
    %s15 = ssub.s32 %s10, 1
    %s16 = ssub.s32 %s10, 2
    %s17 = sadd.s32 %s10, 1
    %s18 = ssub.s32 %s10, %s17
    %p19 = scmp.eq.s32.totalorder %s18, 0
    %s21 = sadd.s32 %s20, 1
    %s22 = scalar_select %p19, %s20, %s21
    %p25 = pneg %p19
    %p26 = scmp.eq.s32.totalorder %s10, 1
    %p27 = por %p25, %p26
    %p28 = scmp.ne.s32.totalorder %s20, %s23
    %p29 = scmp.eq.s32.totalorder %s10, 0
    %p30 = por %p28, %p29
    %p31 = scmp.ne.s32.totalorder %s20, %s23
    %p32 = scmp.eq.s32.totalorder %s15, 1
    %p33 = por %p31, %p32
    %p34 = scmp.ne.s32.totalorder %s23, %s24
    %p35 = scmp.eq.s32.totalorder %s15, 0
    %p36 = por %p34, %p35
    %p37 = scmp.ne.s32.totalorder %s23, %s24
    %p38 = scmp.eq.s32.totalorder %s16, 1
    %p39 = por %p37, %p38
    %p41 = scmp.ne.s32.totalorder %s24, %s40
    %p42 = scmp.eq.s32.totalorder %s16, 0
    %p43 = por %p41, %p42
    %s45 = sadd.s32 %s44, 1
    %p48 = scmp.eq.s32.totalorder %s10, 1
    %p49 = scmp.ne.s32.totalorder %s44, %s46
    %p50 = scmp.eq.s32.totalorder %s10, 0
    %p51 = por %p49, %p50
    %p52 = scmp.ne.s32.totalorder %s44, %s46
    %p53 = scmp.eq.s32.totalorder %s15, 1
    %p54 = por %p52, %p53
    %p55 = scmp.ne.s32.totalorder %s46, %s47
    %p56 = scmp.eq.s32.totalorder %s15, 0
    %p57 = por %p55, %p56
    %p58 = scmp.ne.s32.totalorder %s46, %s47
    %p59 = scmp.eq.s32.totalorder %s16, 1
    %p60 = por %p58, %p59
    %p62 = scmp.ne.s32.totalorder %s47, %s61
    %p63 = scmp.eq.s32.totalorder %s16, 0
    %p64 = por %p62, %p63
    %s66 = sadd.s32 %s65, 1
    %p69 = scmp.eq.s32.totalorder %s10, 1
    %p70 = scmp.ne.s32.totalorder %s65, %s67
    %p71 = scmp.eq.s32.totalorder %s10, 0
    %p72 = por %p70, %p71
    %p73 = scmp.ne.s32.totalorder %s65, %s67
    %p74 = scmp.eq.s32.totalorder %s15, 1
    %p75 = por %p73, %p74
    %p76 = scmp.ne.s32.totalorder %s67, %s68
    %p77 = scmp.eq.s32.totalorder %s15, 0
    %p78 = por %p76, %p77
    %p79 = scmp.ne.s32.totalorder %s67, %s68
    %p80 = scmp.eq.s32.totalorder %s16, 1
    %p81 = por %p79, %p80
    %p83 = scmp.ne.s32.totalorder %s68, %s82
    %p84 = scmp.eq.s32.totalorder %s16, 0
    %p85 = por %p83, %p84
    %s87 = sadd.s32 %s86, 1
    %p90 = scmp.eq.s32.totalorder %s10, 1
    %p91 = scmp.ne.s32.totalorder %s86, %s88
    %p92 = scmp.eq.s32.totalorder %s10, 0
    %p93 = por %p91, %p92
    %p94 = scmp.ne.s32.totalorder %s86, %s88
    %p95 = scmp.eq.s32.totalorder %s15, 1
    %p96 = por %p94, %p95
    %p97 = scmp.ne.s32.totalorder %s88, %s89
    %p98 = scmp.eq.s32.totalorder %s15, 0
    %p99 = por %p97, %p98
    %p100 = scmp.ne.s32.totalorder %s88, %s89
    %p101 = scmp.eq.s32.totalorder %s16, 1
    %p102 = por %p100, %p101
    %p104 = scmp.ne.s32.totalorder %s89, %s103
    %p105 = scmp.eq.s32.totalorder %s16, 0
    %p106 = por %p104, %p105
    %s107 = ssub.s32 %s10, %s17
    %p108 = scmp.eq.s32.totalorder %s107, 0
    %s110 = sadd.s32 %s109, 1
    %s111 = scalar_select %p108, %s109, %s110
    %p114 = pneg %p108
    %p115 = scmp.eq.s32.totalorder %s10, 1
    %p116 = por %p114, %p115
    %p117 = scmp.ne.s32.totalorder %s109, %s112
    %p118 = scmp.eq.s32.totalorder %s10, 0
    %p119 = por %p117, %p118
    %p120 = scmp.ne.s32.totalorder %s109, %s112
    %p121 = scmp.eq.s32.totalorder %s15, 1
    %p122 = por %p120, %p121
    %p123 = scmp.ne.s32.totalorder %s112, %s113
    %p124 = scmp.eq.s32.totalorder %s15, 0
    %p125 = por %p123, %p124
    %p126 = scmp.ne.s32.totalorder %s112, %s113
    %p127 = scmp.eq.s32.totalorder %s16, 1
    %p128 = por %p126, %p127
    %p130 = scmp.ne.s32.totalorder %s113, %s129
    %p131 = scmp.eq.s32.totalorder %s16, 0
    %p132 = por %p130, %p131
    %p133 = scmp.le.s32.totalorder 1, %s10
    %p134 = scmp.lt.s32.totalorder %s10, 3
    %p135 = pnand %p133, %p134
    %p136 = pneg %p135
    // Predicated region
    $region9: #{time_adapter_forward.10} parent=5 // pred_check
      _
    $region10: #{time_adapter_forward.10} parent=5 // pred_check_branch
      %138 = sbr.rel (%p135) target = $region12
    $region11: #{time_adapter_forward.10} parent=5 // pred_region
      %s139 = ssub.s32 %s10, 1
      // Predicated region
      $region13: #{time_adapter_forward.10} parent=11 // pred_check
        %p140 = pneg %p57
      $region14: #{time_adapter_forward.10} parent=11 // pred_check_branch
        %142 = sbr.rel (%p140) target = $region16
      $region15: #{time_adapter_forward.10} parent=11 // pred_region
        _
      $region16: #{time_adapter_forward.10} parent=11 // pred_fallthru
        _
      // Predicated region
      $region17: #{time_adapter_forward.10} parent=11 // pred_check
        %p143 = pneg %p78
      $region18: #{time_adapter_forward.10} parent=11 // pred_check_branch
        %145 = sbr.rel (%p143) target = $region20
      $region19: #{time_adapter_forward.10} parent=11 // pred_region
        _
      $region20: #{time_adapter_forward.10} parent=11 // pred_fallthru
        _
      // Predicated region
      $region21: #{time_adapter_forward.10} parent=11 // pred_check
        %p146 = pneg %p99
      $region22: #{time_adapter_forward.10} parent=11 // pred_check_branch
        %148 = sbr.rel (%p146) target = $region24
      $region23: #{time_adapter_forward.10} parent=11 // pred_region
        _
      $region24: #{time_adapter_forward.10} parent=11 // pred_fallthru
        _
    $region12: #{time_adapter_forward.10} parent=5 // pred_fallthru
      _
    %p149 = scmp.lt.s32.totalorder %s10, 2
    // Predicated region
    $region25: #{time_adapter_forward.10} parent=5 // pred_check
      %p150 = pneg %p149
    $region26: #{time_adapter_forward.10} parent=5 // pred_check_branch
      %152 = sbr.rel (%p150) target = $region28
    $region27: #{time_adapter_forward.10} parent=5 // pred_region
      // Predicated region
      $region29: #{time_adapter_forward.10} parent=27 // pred_check
        %p153 = pneg %p30
      $region30: #{time_adapter_forward.10} parent=27 // pred_check_branch
        %155 = sbr.rel (%p153) target = $region32
      $region31: #{time_adapter_forward.10} parent=27 // pred_region
        %p156 = scmp.lt.s32.totalorder %s10, 1
        %s157 = scalar_select %p156, %s10, 1
        %s158 = smul.addr %s157, 2
        %s159 = smul.addr %s158, 4
        %s160 = scalar_lea.vmem %s0, %s159
      $region32: #{time_adapter_forward.10} parent=27 // pred_fallthru
        _
    $region28: #{time_adapter_forward.10} parent=5 // pred_fallthru
      _
    %p161 = scmp.le.s32.totalorder 1, %s10
    %p162 = scmp.lt.s32.totalorder %s10, 3
    %p163 = pnand %p161, %p162
    %p164 = pneg %p163
    // Predicated region
    $region33: #{time_adapter_forward.10} parent=5 // pred_check
      _
    $region34: #{time_adapter_forward.10} parent=5 // pred_check_branch
      %166 = sbr.rel (%p163) target = $region36
    $region35: #{time_adapter_forward.10} parent=5 // pred_region
      %s167 = ssub.s32 %s10, 1
      %p168 = scmp.lt.s32.totalorder %s15, 1
      %s169 = scalar_select %p168, %s15, 1
      %s170 = smul.addr %s169, 2
      %s171 = smul.addr %s170, 4
      %s172 = scalar_lea.vmem %s0, %s171
      %p173 = pneg %p36
      %p174 = pneg %p33
      %p175 = pneg %p57
      %p176 = pneg %p54
      %p177 = pneg %p78
      %p178 = pneg %p75
      %p179 = pneg %p99
      %p180 = pneg %p96
      %p181 = pneg %p125
      %p182 = pneg %p122
      %p183 = scmp.lt.s32.totalorder %s15, 1
      %s184 = scalar_select %p183, %s15, 1
      %s185 = smul.addr %s184, 2
      %s186 = smul.addr %s185, 8
      %s187 = scalar_lea.vmem %s4, %s186
      %p188 = scmp.lt.s32.totalorder %s15, 1
      %s189 = scalar_select %p188, %s15, 1
      %s190 = smul.addr %s189, 2
      %s191 = smul.addr %s190, 4
      %s192 = scalar_lea.vmem %s0, %s191
      %p193 = scmp.lt.s32.totalorder %s15, 1
      %s194 = scalar_select %p193, %s15, 1
      %s195 = smul.addr %s194, 2
      %s196 = smul.addr %s195, 8
      %s197 = scalar_lea.vmem %s4, %s196
      %v199 = vld [vmem:[%s192] sm:$0xff]
      %200 = vst [vmem:[#allocation2] sm:$0xff] 0.0
      %201 = vst [vmem:[#allocation2 + $0x8] sm:$0xff] 0.0
      %202 = vst [vmem:[#allocation2 + $0x10] sm:$0xff] 0.0
      %203 = vst [vmem:[#allocation2 + $0x18] sm:$0xff] 0.0
      %204 = vst [vmem:[#allocation2 + $0x20] sm:$0xff] 0.0
      %205 = vst [vmem:[#allocation2 + $0x28] sm:$0xff] 0.0
      %206 = vst [vmem:[#allocation2 + $0x30] sm:$0xff] 0.0
      %207 = vst [vmem:[#allocation2 + $0x38] sm:$0xff] 0.0
      %208 = vst [vmem:[#allocation2 + $0x40] sm:$0xff] 0.0
      %209 = vst [vmem:[#allocation2 + $0x48] sm:$0xff] 0.0
      %210 = vst [vmem:[#allocation2 + $0x50] sm:$0xff] 0.0
      %211 = vst [vmem:[#allocation2 + $0x58] sm:$0xff] 0.0
      %212 = vst [vmem:[#allocation2 + $0x60] sm:$0xff] 0.0
      %213 = vst [vmem:[#allocation2 + $0x68] sm:$0xff] 0.0
      %214 = vst [vmem:[#allocation2 + $0x70] sm:$0xff] 0.0
      %215 = vst [vmem:[#allocation2 + $0x78] sm:$0xff] 0.0
      %216 = vst [vmem:[#allocation2 + $0x80] sm:$0xff] 0.0
      %217 = vst [vmem:[#allocation2 + $0x88] sm:$0xff] 0.0
      %v218 = vld [vmem:[%s1] sm:$0xff]
      %v219 = vld [vmem:[%s1 + $0x8] sm:$0xff]
      %v220 = vld [vmem:[%s1 + $0x10] sm:$0x1]
      %v221 = vld [vmem:[%s1 + $0x18] sm:$0x1]
      %v223 = vcombine.high %v199, %v199
      %225 = vrot.lane.b32.xlu0 %v199, 17
      %v226 = vpop.permute.xlu0 %225
      %227 = vrot.lane.b32.xlu0 %v223, 17
      %v228 = vpop.permute.xlu0 %227
      %v229 = vlaneseq
      %v230 = vand.u32 %v229, 127
      %vm231 = vcmp.lt.s32.totalorder %v230, 17
      %v232 = vsel %vm231, %v226, %v228
      %v233 = vsel %vm231, %v228, %v226
      %v234 = vlaneseq
      %v235 = vshrl.u32 %v234, 7
      %v236 = vsub.s32 0, %v235
      %v237 = vrot.slane %v218, %v236
      %v238 = vlaneseq
      %v239 = vshrl.u32 %v238, 7
      %v240 = vsub.s32 0, %v239
      %v241 = vrot.slane %v219, %v240
      %v242 = vmul.f32 %v233, %v237
      %v243 = vmul.f32 %v232, %v241
      %244 = vst [vmem:[#allocation2] sm:$0xf] %v242
      %245 = vst [vmem:[#allocation2 + $0x8] sm:$0xf] %v243
      %246 = vrot.lane.b32.xlu0 %v199, 16
      %v247 = vpop.permute.xlu0 %246
      %248 = vrot.lane.b32.xlu0 %v223, 16
      %v249 = vpop.permute.xlu0 %248
      %vm250 = vcmp.lt.s32.totalorder %v230, 16
      %v251 = vsel %vm250, %v247, %v249
      %v252 = vsel %vm250, %v249, %v247
      %v253 = vlaneseq
      %v254 = vshrl.u32 %v253, 7
      %v255 = vsub.s32 1, %v254
      %v256 = vrot.slane %v218, %v255
      %v257 = vlaneseq
      %v258 = vshrl.u32 %v257, 7
      %v259 = vsub.s32 1, %v258
      %v260 = vrot.slane %v219, %v259
      %v261 = vmul.f32 %v252, %v256
      %v262 = vmul.f32 %v251, %v260
      %263 = vst [vmem:[#allocation2 + $0x10] sm:$0xf] %v261
      %264 = vst [vmem:[#allocation2 + $0x18] sm:$0xf] %v262
      %265 = vrot.lane.b32.xlu0 %v199, 15
      %v266 = vpop.permute.xlu0 %265
      %267 = vrot.lane.b32.xlu0 %v223, 15
      %v268 = vpop.permute.xlu0 %267
      %vm269 = vcmp.lt.s32.totalorder %v230, 15
      %v270 = vsel %vm269, %v266, %v268
      %v271 = vsel %vm269, %v268, %v266
      %v272 = vlaneseq
      %v273 = vshrl.u32 %v272, 7
      %v274 = vsub.s32 2, %v273
      %v275 = vrot.slane %v218, %v274
      %v276 = vlaneseq
      %v277 = vshrl.u32 %v276, 7
      %v278 = vsub.s32 2, %v277
      %v279 = vrot.slane %v219, %v278
      %v280 = vmul.f32 %v271, %v275
      %v281 = vmul.f32 %v270, %v279
      %282 = vst [vmem:[#allocation2 + $0x20] sm:$0xf] %v280
      %283 = vst [vmem:[#allocation2 + $0x28] sm:$0xf] %v281
      %284 = vrot.lane.b32.xlu0 %v199, 1
      %v285 = vpop.permute.xlu0 %284
      %286 = vrot.lane.b32.xlu0 %v223, 1
      %v287 = vpop.permute.xlu0 %286
      %vm288 = vcmp.lt.s32.totalorder %v230, 1
      %v289 = vsel %vm288, %v285, %v287
      %v290 = vsel %vm288, %v287, %v285
      %v291 = vlaneseq
      %v292 = vshrl.u32 %v291, 7
      %v293 = vsub.s32 3, %v292
      %v294 = vrot.slane %v218, %v293
      %v295 = vlaneseq
      %v296 = vshrl.u32 %v295, 7
      %v297 = vsub.s32 3, %v296
      %v298 = vrot.slane %v219, %v297
      %v299 = vmul.f32 %v290, %v294
      %v300 = vmul.f32 %v289, %v298
      %301 = vst [vmem:[#allocation2 + $0x30] sm:$0xf] %v299
      %302 = vst [vmem:[#allocation2 + $0x38] sm:$0xf] %v300
      %v303 = vlaneseq
      %v304 = vshrl.u32 %v303, 7
      %v305 = vsub.s32 4, %v304
      %v306 = vrot.slane %v218, %v305
      %v307 = vlaneseq
      %v308 = vshrl.u32 %v307, 7
      %v309 = vsub.s32 4, %v308
      %v310 = vrot.slane %v219, %v309
      %v313 = vcombine.low %v306, %v310
      %v315 = vmul.f32 %v199, %v313
      %v317 = vcombine.high %v315, %v315
      %319 = vst [vmem:[#allocation2 + $0x40] sm:$0xf] %v315
      %320 = vst [vmem:[#allocation2 + $0x48] sm:$0xf] %v317
      %321 = vrot.lane.b32.xlu0 %v199, 127
      %v322 = vpop.permute.xlu0 %321
      %323 = vrot.lane.b32.xlu0 %v223, 127
      %v324 = vpop.permute.xlu0 %323
      %vm325 = vcmp.lt.s32.totalorder %v230, 127
      %v326 = vsel %vm325, %v322, %v324
      %v327 = vsel %vm325, %v324, %v322
      %v328 = vlaneseq
      %v329 = vshrl.u32 %v328, 7
      %v330 = vsub.s32 5, %v329
      %v331 = vrot.slane %v218, %v330
      %v332 = vlaneseq
      %v333 = vshrl.u32 %v332, 7
      %v334 = vsub.s32 5, %v333
      %v335 = vrot.slane %v219, %v334
      %v336 = vmul.f32 %v326, %v331
      %v337 = vmul.f32 %v327, %v335
      %338 = vst [vmem:[#allocation2 + $0x50] sm:$0xf] %v336
      %339 = vst [vmem:[#allocation2 + $0x58] sm:$0xf] %v337
      %340 = vrot.lane.b32.xlu0 %v199, 113
      %v341 = vpop.permute.xlu0 %340
      %342 = vrot.lane.b32.xlu0 %v223, 113
      %v343 = vpop.permute.xlu0 %342
      %vm344 = vcmp.lt.s32.totalorder %v230, 113
      %v345 = vsel %vm344, %v341, %v343
      %v346 = vsel %vm344, %v343, %v341
      %v347 = vlaneseq
      %v348 = vshrl.u32 %v347, 7
      %v349 = vsub.s32 6, %v348
      %v350 = vrot.slane %v218, %v349
      %v351 = vlaneseq
      %v352 = vshrl.u32 %v351, 7
      %v353 = vsub.s32 6, %v352
      %v354 = vrot.slane %v219, %v353
      %v355 = vmul.f32 %v345, %v350
      %v356 = vmul.f32 %v346, %v354
      %357 = vst [vmem:[#allocation2 + $0x60] sm:$0xf] %v355
      %358 = vst [vmem:[#allocation2 + $0x68] sm:$0xf] %v356
      %359 = vrot.lane.b32.xlu0 %v199, 112
      %v360 = vpop.permute.xlu0 %359
      %361 = vrot.lane.b32.xlu0 %v223, 112
      %v362 = vpop.permute.xlu0 %361
      %vm363 = vcmp.lt.s32.totalorder %v230, 112
      %v364 = vsel %vm363, %v360, %v362
      %v365 = vsel %vm363, %v362, %v360
      %v366 = vlaneseq
      %v367 = vshrl.u32 %v366, 7
      %v368 = vsub.s32 7, %v367
      %v369 = vrot.slane %v218, %v368
      %v370 = vlaneseq
      %v371 = vshrl.u32 %v370, 7
      %v372 = vsub.s32 7, %v371
      %v373 = vrot.slane %v219, %v372
      %v374 = vmul.f32 %v364, %v369
      %v375 = vmul.f32 %v365, %v373
      %376 = vst [vmem:[#allocation2 + $0x70] sm:$0xf] %v374
      %377 = vst [vmem:[#allocation2 + $0x78] sm:$0xf] %v375
      %378 = vrot.lane.b32.xlu0 %v199, 111
      %v379 = vpop.permute.xlu0 %378
      %380 = vrot.lane.b32.xlu0 %v223, 111
      %v381 = vpop.permute.xlu0 %380
      %vm382 = vcmp.lt.s32.totalorder %v230, 111
      %v383 = vsel %vm382, %v379, %v381
      %v384 = vsel %vm382, %v381, %v379
      %v385 = vlaneseq
      %v386 = vshrl.u32 %v385, 7
      %v387 = vsub.s32 0, %v386
      %v388 = vrot.slane %v220, %v387
      %v389 = vlaneseq
      %v390 = vshrl.u32 %v389, 7
      %v391 = vsub.s32 0, %v390
      %v392 = vrot.slane %v221, %v391
      %v393 = vmul.f32 %v383, %v388
      %v394 = vmul.f32 %v384, %v392
      %395 = vst [vmem:[#allocation2 + $0x80] sm:$0xf] %v393
      %396 = vst [vmem:[#allocation2 + $0x88] sm:$0xf] %v394
      %v397 = vld [vmem:[%s2] sm:$0xf]
      %v398 = vld [vmem:[#allocation2] sm:$0xff]
      %v399 = vld [vmem:[#allocation2 + $0x8] sm:$0xff]
      %v400 = vld [vmem:[#allocation2 + $0x10] sm:$0xff]
      %v401 = vld [vmem:[#allocation2 + $0x18] sm:$0xff]
      %v402 = vld [vmem:[#allocation2 + $0x20] sm:$0xff]
      %v403 = vld [vmem:[#allocation2 + $0x28] sm:$0xff]
      %v404 = vld [vmem:[#allocation2 + $0x30] sm:$0xff]
      %v405 = vld [vmem:[#allocation2 + $0x38] sm:$0xff]
      %v406 = vld [vmem:[#allocation2 + $0x40] sm:$0xff]
      %v407 = vld [vmem:[#allocation2 + $0x48] sm:$0xff]
      %v408 = vld [vmem:[#allocation2 + $0x50] sm:$0xff]
      %v409 = vld [vmem:[#allocation2 + $0x58] sm:$0xff]
      %v410 = vld [vmem:[#allocation2 + $0x60] sm:$0xff]
      %v411 = vld [vmem:[#allocation2 + $0x68] sm:$0xff]
      %v412 = vld [vmem:[#allocation2 + $0x70] sm:$0xff]
      %v413 = vld [vmem:[#allocation2 + $0x78] sm:$0xff]
      %v414 = vld [vmem:[#allocation2 + $0x80] sm:$0xff]
      %v415 = vld [vmem:[#allocation2 + $0x88] sm:$0xff]
      %v416 = vpack.c.bf16 %v400, %v398
      %v417 = vpack.c.bf16 %v401, %v399
      %v418 = vpack.c.bf16 %v404, %v402
      %v419 = vpack.c.bf16 %v405, %v403
      %v420 = vpack.c.bf16 %v408, %v406
      %v421 = vpack.c.bf16 %v409, %v407
      %v422 = vpack.c.bf16 %v412, %v410
      %v423 = vpack.c.bf16 %v413, %v411
      %v424 = vpack.c.bf16 %v414, %v414
      %v425 = vpack.c.bf16 %v415, %v415
      %v426 = vld [vmem:[%s3] sm:$0xff]
      %428 = vset.pattern.permute.xlu0 0
      %429 = vperm.xlu0 %428, %v426
      %v430 = vpop.permute.xlu0 %429
      %vm432 = vcmask 588800
      %v434 = vsel %vm432, %v397, 0
      %vm436 = vcmask 1043456
      %v438 = vsel %vm436, %v424, 0
      %v441 = vsel %vm436, %v425, 0
      %443 = vmatprep.subr.bf16.mxu0 0
      %444 = vmatpush1.bf16.msra.mxu0 0
      %445 = vmatprep.subr.bf16.mxu0 0
      %446 = vmatpush1.bf16.msra.mxu0 0
      %447 = vmatprep.subr.bf16.mxu0 0
      %448 = vmatpush1.bf16.msra.mxu0 0
      %449 = vmatprep.subr.bf16.mxu0 %v441
      %450 = vmatpush1.bf16.msra.mxu0 %v438
      %451 = vmatprep.subr.bf16.mxu0 %v423
      %452 = vmatpush1.bf16.msra.mxu0 %v422
      %453 = vmatprep.subr.bf16.mxu0 %v421
      %454 = vmatpush1.bf16.msra.mxu0 %v420
      %455 = vmatprep.subr.bf16.mxu0 %v419
      %456 = vmatpush1.bf16.msra.mxu0 %v418
      %457 = vmatprep.subr.bf16.mxu0 %v417
      %458 = vmatpush1.bf16.msra.mxu0 %v416
      %459 = vmatprep.subr.bf16.mxu0 0
      %460 = vmatpush2.bf16.msra.mxu0 0
      %461 = vmatprep.subr.bf16.mxu0 0
      %462 = vmatpush2.bf16.msra.mxu0 0
      %463 = vmatprep.subr.bf16.mxu0 0
      %464 = vmatpush2.bf16.msra.mxu0 0
      %465 = vmatprep.subr.bf16.mxu0 0
      %466 = vmatpush2.bf16.msra.mxu0 0
      %467 = vmatprep.subr.bf16.mxu0 0
      %468 = vmatpush2.bf16.msra.mxu0 0
      %469 = vmatprep.subr.bf16.mxu0 0
      %470 = vmatpush2.bf16.msra.mxu0 0
      %471 = vmatprep.subr.bf16.mxu0 0
      %472 = vmatpush2.bf16.msra.mxu0 0
      %473 = vmatprep.subr.bf16.mxu0 0
      %474 = vmatpush2.bf16.msra.mxu0 0
      %475 = vmatprep.mubr.bf16.mxu0 0
      %476 = vmatmul.mubr.bf16.gmra.mxu0 %v434
      %v477 = vpop.f32.mrf.mxu0
      %v478 = vadd.f32 %v430, %v477
      %v479 = vpop.f32.mrf.mxu0
      %v480 = vadd.f32 %v430, %v479
      %v481 = vpop.f32.mrf.mxu0
      %v482 = vpop.f32.mrf.mxu0
      %483 = vdwg.mxu0
      %484 = vst [vmem:[%s197] sm:$0xff] %v478
      %485 = vst [vmem:[%s197 + $0x8] sm:$0xff] %v480
      %p486 = scmp.lt.s32.totalorder %s15, 1
      %s487 = scalar_select %p486, %s15, 1
      %s488 = smul.addr %s487, 2
      %s489 = smul.addr %s488, 8
      %s490 = scalar_lea.vmem %s4, %s489
      // Predicated region
      $region37: #{time_adapter_forward.10} parent=35 // pred_check
        %p491 = pneg %p122
      $region38: #{time_adapter_forward.10} parent=35 // pred_check_branch
        %493 = sbr.rel (%p491) target = $region40
      $region39: #{time_adapter_forward.10} parent=35 // pred_region
        _
      $region40: #{time_adapter_forward.10} parent=35 // pred_fallthru
        _
    $region36: #{time_adapter_forward.10} parent=5 // pred_fallthru
      _
    %p494 = scmp.le.s32.totalorder 2, %s10
    // Predicated region
    $region41: #{time_adapter_forward.10} parent=5 // pred_check
      %p495 = pneg %p494
    $region42: #{time_adapter_forward.10} parent=5 // pred_check_branch
      %497 = sbr.rel (%p495) target = $region44
    $region43: #{time_adapter_forward.10} parent=5 // pred_region
      %s498 = ssub.s32 %s10, 2
      // Predicated region
      $region45: #{time_adapter_forward.10} parent=43 // pred_check
        %p499 = pneg %p128
      $region46: #{time_adapter_forward.10} parent=43 // pred_check_branch
        %501 = sbr.rel (%p499) target = $region48
      $region47: #{time_adapter_forward.10} parent=43 // pred_region
        %p502 = scmp.lt.s32.totalorder %s16, 1
        %s503 = scalar_select %p502, %s16, 1
        %s504 = smul.addr %s503, 2
        %s505 = smul.addr %s504, 8
        %s506 = scalar_lea.vmem %s4, %s505
      $region48: #{time_adapter_forward.10} parent=43 // pred_fallthru
        _
    $region44: #{time_adapter_forward.10} parent=5 // pred_fallthru
      _
  $region6: #{time_adapter_forward.10} parent=0 // loop_footer
    %s14 = sadd.s32 1, %s10
  $region7: #{time_adapter_forward.10} parent=0 // loop_footer_branch
    %9 = sbr.rel target = $region3
  $region8: #{time_adapter_forward.10} parent=0 // loop_exit
    _

// kernel: time_adapter_forward.12
$region0: #{time_adapter_forward.12}
  #allocation0 [shape = 'u32[]', space=smem, size = 0x4, offset = 0x4, fixed_abs, tag = 'smem constant byte address 0x4 - core index']
  #allocation1 [shape = 'u32[144,128]{1,0:T(1,128)}', space=vmem, size = 0x12000, scoped, tag = 'internal scratch']
  #allocation2 [shape = 'f32[72,256]{1,0:T(8,128)}', space=vmem, size = 0x12000, scoped, tag = 'scratch operand']
  %s0 = inlined_call_operand.vmem [shape: f32[2,8,256], index: 0, kind: input, shape index: {}]
  %s1 = inlined_call_operand.vmem [shape: f32[8,1], index: 1, kind: input, shape index: {}]
  %s2 = inlined_call_operand.vmem [shape: f32[8,1], index: 2, kind: input, shape index: {}]
  %s3 = inlined_call_operand.vmem [shape: f32[8,4], index: 3, kind: input, shape index: {}]
  %s4 = inlined_call_operand.vmem [shape: f32[4,8], index: 4, kind: input, shape index: {}]
  %s5 = inlined_call_operand.vmem [shape: f32[2,16,1], index: 5, kind: input, shape index: {}]
  %s6 = inlined_call_operand.vmem [shape: f32[8,16], index: 6, kind: input, shape index: {}]
  %s7 = inlined_call_operand.vmem [shape: f32[8,1], index: 7, kind: input, shape index: {}]
  %s8 = inlined_call_operand.vmem [shape: f32[9,256], index: 8, kind: input, shape index: {}]
  %s9 = inlined_call_operand.vmem [shape: bf16[8,72], index: 9, kind: input, shape index: {}]
  %s10 = inlined_call_operand.vmem [shape: f32[8,1], index: 10, kind: input, shape index: {}]
  %s11 = inlined_call_operand.vmem [shape: f32[2,8,256], index: 11, kind: input, shape index: {}]
  %s12 = inlined_call_operand.vmem [shape: f32[2,8,256], index: 12, kind: output, shape index: {}]
  %s13 = sld [smem:[#allocation0]]
  $region81: #{time_adapter_forward.12} parent=0
    _
  %s15 = ssub.s32 1, %s13
  %s16 = scalar_select 0, %s15, %s13
  loop: start=0, step=1, limit=4
  $region2: #{time_adapter_forward.12} parent=0 // loop_pre_header
    _
  $region3: #{time_adapter_forward.12} parent=0 // loop_header
    %s18 = sphi 0, %s22
    %p19 = scmp.ge.s32.totalorder %s18, 4
    %s28 = sphi 0, %s30
    %s31 = sphi 0, %s28
    %s32 = sphi 0, %s31
    %s48 = sphi 0, %s32
    %s52 = sphi 0, %s52
    %s54 = sphi 0, %s52
    %s55 = sphi 0, %s54
    %s69 = sphi 0, %s55
    %s73 = sphi 0, %s73
    %s75 = sphi 0, %s73
    %s76 = sphi 0, %s75
    %s90 = sphi 0, %s76
    %s94 = sphi 0, %s94
    %s96 = sphi 0, %s94
    %s97 = sphi 0, %s96
    %s111 = sphi 0, %s97
    %s115 = sphi 0, %s115
    %s117 = sphi 0, %s115
    %s118 = sphi 0, %s117
    %s132 = sphi 0, %s118
    %s138 = sphi 0, %s140
    %s141 = sphi 0, %s138
    %s142 = sphi 0, %s141
    %s158 = sphi 0, %s142
    %s162 = sphi 0, %s162
    %s164 = sphi 0, %s162
    %s165 = sphi 0, %s164
    %s179 = sphi 0, %s165
    %s183 = sphi 0, %s183
    %s185 = sphi 0, %s183
    %s186 = sphi 0, %s185
    %s200 = sphi 0, %s186
    %s204 = sphi 0, %s204
    %s206 = sphi 0, %s204
    %s207 = sphi 0, %s206
    %s221 = sphi 0, %s207
    %s225 = sphi 0, %s225
    %s227 = sphi 0, %s225
    %s228 = sphi 0, %s227
    %s242 = sphi 0, %s228
    %s246 = sphi 0, %s246
    %s248 = sphi 0, %s246
    %s249 = sphi 0, %s248
    %s263 = sphi 0, %s249
    %s269 = sphi 0, %s271
    %s272 = sphi 0, %s269
    %s273 = sphi 0, %s272
    %s289 = sphi 0, %s273
    %s295 = sphi 0, %s297
    %s298 = sphi 0, %s295
    %s299 = sphi 0, %s298
    %s315 = sphi 0, %s299
  $region4: #{time_adapter_forward.12} parent=0 // loop_header_branch
    %21 = sbr.rel (%p19) target = $region8
  $region5: #{time_adapter_forward.12} parent=0 // loop_body
    %s23 = ssub.s32 %s18, 1
    %s24 = ssub.s32 %s18, 2
    %s25 = sadd.s32 %s18, 1
    %s26 = ssub.s32 %s18, %s25
    %p27 = scmp.eq.s32.totalorder %s26, 0
    %s29 = sadd.s32 %s28, 1
    %s30 = scalar_select %p27, %s28, %s29
    %p33 = pneg %p27
    %p34 = scmp.eq.s32.totalorder %s18, 1
    %p35 = por %p33, %p34
    %p36 = scmp.ne.s32.totalorder %s28, %s31
    %p37 = scmp.eq.s32.totalorder %s18, 0
    %p38 = por %p36, %p37
    %p39 = scmp.ne.s32.totalorder %s28, %s31
    %p40 = scmp.eq.s32.totalorder %s23, 1
    %p41 = por %p39, %p40
    %p42 = scmp.ne.s32.totalorder %s31, %s32
    %p43 = scmp.eq.s32.totalorder %s23, 0
    %p44 = por %p42, %p43
    %p45 = scmp.ne.s32.totalorder %s31, %s32
    %p46 = scmp.eq.s32.totalorder %s24, 1
    %p47 = por %p45, %p46
    %p49 = scmp.ne.s32.totalorder %s32, %s48
    %p50 = scmp.eq.s32.totalorder %s24, 0
    %p51 = por %p49, %p50
    %s53 = sadd.s32 %s52, 1
    %p56 = scmp.eq.s32.totalorder %s18, 1
    %p57 = scmp.ne.s32.totalorder %s52, %s54
    %p58 = scmp.eq.s32.totalorder %s18, 0
    %p59 = por %p57, %p58
    %p60 = scmp.ne.s32.totalorder %s52, %s54
    %p61 = scmp.eq.s32.totalorder %s23, 1
    %p62 = por %p60, %p61
    %p63 = scmp.ne.s32.totalorder %s54, %s55
    %p64 = scmp.eq.s32.totalorder %s23, 0
    %p65 = por %p63, %p64
    %p66 = scmp.ne.s32.totalorder %s54, %s55
    %p67 = scmp.eq.s32.totalorder %s24, 1
    %p68 = por %p66, %p67
    %p70 = scmp.ne.s32.totalorder %s55, %s69
    %p71 = scmp.eq.s32.totalorder %s24, 0
    %p72 = por %p70, %p71
    %s74 = sadd.s32 %s73, 1
    %p77 = scmp.eq.s32.totalorder %s18, 1
    %p78 = scmp.ne.s32.totalorder %s73, %s75
    %p79 = scmp.eq.s32.totalorder %s18, 0
    %p80 = por %p78, %p79
    %p81 = scmp.ne.s32.totalorder %s73, %s75
    %p82 = scmp.eq.s32.totalorder %s23, 1
    %p83 = por %p81, %p82
    %p84 = scmp.ne.s32.totalorder %s75, %s76
    %p85 = scmp.eq.s32.totalorder %s23, 0
    %p86 = por %p84, %p85
    %p87 = scmp.ne.s32.totalorder %s75, %s76
    %p88 = scmp.eq.s32.totalorder %s24, 1
    %p89 = por %p87, %p88
    %p91 = scmp.ne.s32.totalorder %s76, %s90
    %p92 = scmp.eq.s32.totalorder %s24, 0
    %p93 = por %p91, %p92
    %s95 = sadd.s32 %s94, 1
    %p98 = scmp.eq.s32.totalorder %s18, 1
    %p99 = scmp.ne.s32.totalorder %s94, %s96
    %p100 = scmp.eq.s32.totalorder %s18, 0
    %p101 = por %p99, %p100
    %p102 = scmp.ne.s32.totalorder %s94, %s96
    %p103 = scmp.eq.s32.totalorder %s23, 1
    %p104 = por %p102, %p103
    %p105 = scmp.ne.s32.totalorder %s96, %s97
    %p106 = scmp.eq.s32.totalorder %s23, 0
    %p107 = por %p105, %p106
    %p108 = scmp.ne.s32.totalorder %s96, %s97
    %p109 = scmp.eq.s32.totalorder %s24, 1
    %p110 = por %p108, %p109
    %p112 = scmp.ne.s32.totalorder %s97, %s111
    %p113 = scmp.eq.s32.totalorder %s24, 0
    %p114 = por %p112, %p113
    %s116 = sadd.s32 %s115, 1
    %p119 = scmp.eq.s32.totalorder %s18, 1
    %p120 = scmp.ne.s32.totalorder %s115, %s117
    %p121 = scmp.eq.s32.totalorder %s18, 0
    %p122 = por %p120, %p121
    %p123 = scmp.ne.s32.totalorder %s115, %s117
    %p124 = scmp.eq.s32.totalorder %s23, 1
    %p125 = por %p123, %p124
    %p126 = scmp.ne.s32.totalorder %s117, %s118
    %p127 = scmp.eq.s32.totalorder %s23, 0
    %p128 = por %p126, %p127
    %p129 = scmp.ne.s32.totalorder %s117, %s118
    %p130 = scmp.eq.s32.totalorder %s24, 1
    %p131 = por %p129, %p130
    %p133 = scmp.ne.s32.totalorder %s118, %s132
    %p134 = scmp.eq.s32.totalorder %s24, 0
    %p135 = por %p133, %p134
    %s136 = ssub.s32 %s18, %s25
    %p137 = scmp.eq.s32.totalorder %s136, 0
    %s139 = sadd.s32 %s138, 1
    %s140 = scalar_select %p137, %s138, %s139
    %p143 = pneg %p137
    %p144 = scmp.eq.s32.totalorder %s18, 1
    %p145 = por %p143, %p144
    %p146 = scmp.ne.s32.totalorder %s138, %s141
    %p147 = scmp.eq.s32.totalorder %s18, 0
    %p148 = por %p146, %p147
    %p149 = scmp.ne.s32.totalorder %s138, %s141
    %p150 = scmp.eq.s32.totalorder %s23, 1
    %p151 = por %p149, %p150
    %p152 = scmp.ne.s32.totalorder %s141, %s142
    %p153 = scmp.eq.s32.totalorder %s23, 0
    %p154 = por %p152, %p153
    %p155 = scmp.ne.s32.totalorder %s141, %s142
    %p156 = scmp.eq.s32.totalorder %s24, 1
    %p157 = por %p155, %p156
    %p159 = scmp.ne.s32.totalorder %s142, %s158
    %p160 = scmp.eq.s32.totalorder %s24, 0
    %p161 = por %p159, %p160
    %s163 = sadd.s32 %s162, 1
    %p166 = scmp.eq.s32.totalorder %s18, 1
    %p167 = scmp.ne.s32.totalorder %s162, %s164
    %p168 = scmp.eq.s32.totalorder %s18, 0
    %p169 = por %p167, %p168
    %p170 = scmp.ne.s32.totalorder %s162, %s164
    %p171 = scmp.eq.s32.totalorder %s23, 1
    %p172 = por %p170, %p171
    %p173 = scmp.ne.s32.totalorder %s164, %s165
    %p174 = scmp.eq.s32.totalorder %s23, 0
    %p175 = por %p173, %p174
    %p176 = scmp.ne.s32.totalorder %s164, %s165
    %p177 = scmp.eq.s32.totalorder %s24, 1
    %p178 = por %p176, %p177
    %p180 = scmp.ne.s32.totalorder %s165, %s179
    %p181 = scmp.eq.s32.totalorder %s24, 0
    %p182 = por %p180, %p181
    %s184 = sadd.s32 %s183, 1
    %p187 = scmp.eq.s32.totalorder %s18, 1
    %p188 = scmp.ne.s32.totalorder %s183, %s185
    %p189 = scmp.eq.s32.totalorder %s18, 0
    %p190 = por %p188, %p189
    %p191 = scmp.ne.s32.totalorder %s183, %s185
    %p192 = scmp.eq.s32.totalorder %s23, 1
    %p193 = por %p191, %p192
    %p194 = scmp.ne.s32.totalorder %s185, %s186
    %p195 = scmp.eq.s32.totalorder %s23, 0
    %p196 = por %p194, %p195
    %p197 = scmp.ne.s32.totalorder %s185, %s186
    %p198 = scmp.eq.s32.totalorder %s24, 1
    %p199 = por %p197, %p198
    %p201 = scmp.ne.s32.totalorder %s186, %s200
    %p202 = scmp.eq.s32.totalorder %s24, 0
    %p203 = por %p201, %p202
    %s205 = sadd.s32 %s204, 1
    %p208 = scmp.eq.s32.totalorder %s18, 1
    %p209 = scmp.ne.s32.totalorder %s204, %s206
    %p210 = scmp.eq.s32.totalorder %s18, 0
    %p211 = por %p209, %p210
    %p212 = scmp.ne.s32.totalorder %s204, %s206
    %p213 = scmp.eq.s32.totalorder %s23, 1
    %p214 = por %p212, %p213
    %p215 = scmp.ne.s32.totalorder %s206, %s207
    %p216 = scmp.eq.s32.totalorder %s23, 0
    %p217 = por %p215, %p216
    %p218 = scmp.ne.s32.totalorder %s206, %s207
    %p219 = scmp.eq.s32.totalorder %s24, 1
    %p220 = por %p218, %p219
    %p222 = scmp.ne.s32.totalorder %s207, %s221
    %p223 = scmp.eq.s32.totalorder %s24, 0
    %p224 = por %p222, %p223
    %s226 = sadd.s32 %s225, 1
    %p229 = scmp.eq.s32.totalorder %s18, 1
    %p230 = scmp.ne.s32.totalorder %s225, %s227
    %p231 = scmp.eq.s32.totalorder %s18, 0
    %p232 = por %p230, %p231
    %p233 = scmp.ne.s32.totalorder %s225, %s227
    %p234 = scmp.eq.s32.totalorder %s23, 1
    %p235 = por %p233, %p234
    %p236 = scmp.ne.s32.totalorder %s227, %s228
    %p237 = scmp.eq.s32.totalorder %s23, 0
    %p238 = por %p236, %p237
    %p239 = scmp.ne.s32.totalorder %s227, %s228
    %p240 = scmp.eq.s32.totalorder %s24, 1
    %p241 = por %p239, %p240
    %p243 = scmp.ne.s32.totalorder %s228, %s242
    %p244 = scmp.eq.s32.totalorder %s24, 0
    %p245 = por %p243, %p244
    %s247 = sadd.s32 %s246, 1
    %p250 = scmp.eq.s32.totalorder %s18, 1
    %p251 = scmp.ne.s32.totalorder %s246, %s248
    %p252 = scmp.eq.s32.totalorder %s18, 0
    %p253 = por %p251, %p252
    %p254 = scmp.ne.s32.totalorder %s246, %s248
    %p255 = scmp.eq.s32.totalorder %s23, 1
    %p256 = por %p254, %p255
    %p257 = scmp.ne.s32.totalorder %s248, %s249
    %p258 = scmp.eq.s32.totalorder %s23, 0
    %p259 = por %p257, %p258
    %p260 = scmp.ne.s32.totalorder %s248, %s249
    %p261 = scmp.eq.s32.totalorder %s24, 1
    %p262 = por %p260, %p261
    %p264 = scmp.ne.s32.totalorder %s249, %s263
    %p265 = scmp.eq.s32.totalorder %s24, 0
    %p266 = por %p264, %p265
    %s267 = ssub.s32 %s18, %s25
    %p268 = scmp.eq.s32.totalorder %s267, 0
    %s270 = sadd.s32 %s269, 1
    %s271 = scalar_select %p268, %s269, %s270
    %p274 = pneg %p268
    %p275 = scmp.eq.s32.totalorder %s18, 1
    %p276 = por %p274, %p275
    %p277 = scmp.ne.s32.totalorder %s269, %s272
    %p278 = scmp.eq.s32.totalorder %s18, 0
    %p279 = por %p277, %p278
    %p280 = scmp.ne.s32.totalorder %s269, %s272
    %p281 = scmp.eq.s32.totalorder %s23, 1
    %p282 = por %p280, %p281
    %p283 = scmp.ne.s32.totalorder %s272, %s273
    %p284 = scmp.eq.s32.totalorder %s23, 0
    %p285 = por %p283, %p284
    %p286 = scmp.ne.s32.totalorder %s272, %s273
    %p287 = scmp.eq.s32.totalorder %s24, 1
    %p288 = por %p286, %p287
    %p290 = scmp.ne.s32.totalorder %s273, %s289
    %p291 = scmp.eq.s32.totalorder %s24, 0
    %p292 = por %p290, %p291
    %s293 = ssub.s32 %s18, %s25
    %p294 = scmp.eq.s32.totalorder %s293, 0
    %s296 = sadd.s32 %s295, 1
    %s297 = scalar_select %p294, %s295, %s296
    %p300 = pneg %p294
    %p301 = scmp.eq.s32.totalorder %s18, 1
    %p302 = por %p300, %p301
    %p303 = scmp.ne.s32.totalorder %s295, %s298
    %p304 = scmp.eq.s32.totalorder %s18, 0
    %p305 = por %p303, %p304
    %p306 = scmp.ne.s32.totalorder %s295, %s298
    %p307 = scmp.eq.s32.totalorder %s23, 1
    %p308 = por %p306, %p307
    %p309 = scmp.ne.s32.totalorder %s298, %s299
    %p310 = scmp.eq.s32.totalorder %s23, 0
    %p311 = por %p309, %p310
    %p312 = scmp.ne.s32.totalorder %s298, %s299
    %p313 = scmp.eq.s32.totalorder %s24, 1
    %p314 = por %p312, %p313
    %p316 = scmp.ne.s32.totalorder %s299, %s315
    %p317 = scmp.eq.s32.totalorder %s24, 0
    %p318 = por %p316, %p317
    %p319 = scmp.le.s32.totalorder 1, %s18
    %p320 = scmp.lt.s32.totalorder %s18, 3
    %p321 = pnand %p319, %p320
    %p322 = pneg %p321
    // Predicated region
    $region9: #{time_adapter_forward.12} parent=5 // pred_check
      _
    $region10: #{time_adapter_forward.12} parent=5 // pred_check_branch
      %324 = sbr.rel (%p321) target = $region12
    $region11: #{time_adapter_forward.12} parent=5 // pred_region
      %s325 = ssub.s32 %s18, 1
      // Predicated region
      $region13: #{time_adapter_forward.12} parent=11 // pred_check
        %p326 = pneg %p65
      $region14: #{time_adapter_forward.12} parent=11 // pred_check_branch
        %328 = sbr.rel (%p326) target = $region16
      $region15: #{time_adapter_forward.12} parent=11 // pred_region
        _
      $region16: #{time_adapter_forward.12} parent=11 // pred_fallthru
        _
      // Predicated region
      $region17: #{time_adapter_forward.12} parent=11 // pred_check
        %p329 = pneg %p86
      $region18: #{time_adapter_forward.12} parent=11 // pred_check_branch
        %331 = sbr.rel (%p329) target = $region20
      $region19: #{time_adapter_forward.12} parent=11 // pred_region
        _
      $region20: #{time_adapter_forward.12} parent=11 // pred_fallthru
        _
      // Predicated region
      $region21: #{time_adapter_forward.12} parent=11 // pred_check
        %p332 = pneg %p107
      $region22: #{time_adapter_forward.12} parent=11 // pred_check_branch
        %334 = sbr.rel (%p332) target = $region24
      $region23: #{time_adapter_forward.12} parent=11 // pred_region
        _
      $region24: #{time_adapter_forward.12} parent=11 // pred_fallthru
        _
      // Predicated region
      $region25: #{time_adapter_forward.12} parent=11 // pred_check
        %p335 = pneg %p128
      $region26: #{time_adapter_forward.12} parent=11 // pred_check_branch
        %337 = sbr.rel (%p335) target = $region28
      $region27: #{time_adapter_forward.12} parent=11 // pred_region
        _
      $region28: #{time_adapter_forward.12} parent=11 // pred_fallthru
        _
      // Predicated region
      $region29: #{time_adapter_forward.12} parent=11 // pred_check
        %p338 = pneg %p175
      $region30: #{time_adapter_forward.12} parent=11 // pred_check_branch
        %340 = sbr.rel (%p338) target = $region32
      $region31: #{time_adapter_forward.12} parent=11 // pred_region
        _
      $region32: #{time_adapter_forward.12} parent=11 // pred_fallthru
        _
      // Predicated region
      $region33: #{time_adapter_forward.12} parent=11 // pred_check
        %p341 = pneg %p196
      $region34: #{time_adapter_forward.12} parent=11 // pred_check_branch
        %343 = sbr.rel (%p341) target = $region36
      $region35: #{time_adapter_forward.12} parent=11 // pred_region
        _
      $region36: #{time_adapter_forward.12} parent=11 // pred_fallthru
        _
      // Predicated region
      $region37: #{time_adapter_forward.12} parent=11 // pred_check
        %p344 = pneg %p217
      $region38: #{time_adapter_forward.12} parent=11 // pred_check_branch
        %346 = sbr.rel (%p344) target = $region40
      $region39: #{time_adapter_forward.12} parent=11 // pred_region
        _
      $region40: #{time_adapter_forward.12} parent=11 // pred_fallthru
        _
      // Predicated region
      $region41: #{time_adapter_forward.12} parent=11 // pred_check
        %p347 = pneg %p238
      $region42: #{time_adapter_forward.12} parent=11 // pred_check_branch
        %349 = sbr.rel (%p347) target = $region44
      $region43: #{time_adapter_forward.12} parent=11 // pred_region
        _
      $region44: #{time_adapter_forward.12} parent=11 // pred_fallthru
        _
      // Predicated region
      $region45: #{time_adapter_forward.12} parent=11 // pred_check
        %p350 = pneg %p259
      $region46: #{time_adapter_forward.12} parent=11 // pred_check_branch
        %352 = sbr.rel (%p350) target = $region48
      $region47: #{time_adapter_forward.12} parent=11 // pred_region
        _
      $region48: #{time_adapter_forward.12} parent=11 // pred_fallthru
        _
    $region12: #{time_adapter_forward.12} parent=5 // pred_fallthru
      _
    %p353 = scmp.lt.s32.totalorder %s18, 2
    // Predicated region
    $region49: #{time_adapter_forward.12} parent=5 // pred_check
      %p354 = pneg %p353
    $region50: #{time_adapter_forward.12} parent=5 // pred_check_branch
      %356 = sbr.rel (%p354) target = $region52
    $region51: #{time_adapter_forward.12} parent=5 // pred_region
      // Predicated region
      $region53: #{time_adapter_forward.12} parent=51 // pred_check
        %p357 = pneg %p38
      $region54: #{time_adapter_forward.12} parent=51 // pred_check_branch
        %359 = sbr.rel (%p357) target = $region56
      $region55: #{time_adapter_forward.12} parent=51 // pred_region
        %p360 = scmp.lt.s32.totalorder %s18, 1
        %s361 = scalar_select %p360, %s18, 1
        %s362 = smul.addr %s361, 2
        %s363 = smul.addr %s362, 8
        %s364 = scalar_lea.vmem %s0, %s363
      $region56: #{time_adapter_forward.12} parent=51 // pred_fallthru
        _
      // Predicated region
      $region57: #{time_adapter_forward.12} parent=51 // pred_check
        %p365 = pneg %p148
      $region58: #{time_adapter_forward.12} parent=51 // pred_check_branch
        %367 = sbr.rel (%p365) target = $region60
      $region59: #{time_adapter_forward.12} parent=51 // pred_region
        %p368 = scmp.lt.s32.totalorder %s18, 1
        %s369 = scalar_select %p368, %s18, 1
        %s370 = smul.addr %s369, 2
        %s371 = smul.addr %s370, 8
        %s372 = scalar_lea.vmem %s5, %s371
      $region60: #{time_adapter_forward.12} parent=51 // pred_fallthru
        _
      // Predicated region
      $region61: #{time_adapter_forward.12} parent=51 // pred_check
        %p373 = pneg %p279
      $region62: #{time_adapter_forward.12} parent=51 // pred_check_branch
        %375 = sbr.rel (%p373) target = $region64
      $region63: #{time_adapter_forward.12} parent=51 // pred_region
        %p376 = scmp.lt.s32.totalorder %s18, 1
        %s377 = scalar_select %p376, %s18, 1
        %s378 = smul.addr %s377, 2
        %s379 = smul.addr %s378, 8
        %s380 = scalar_lea.vmem %s11, %s379
      $region64: #{time_adapter_forward.12} parent=51 // pred_fallthru
        _
    $region52: #{time_adapter_forward.12} parent=5 // pred_fallthru
      _
    %p381 = scmp.le.s32.totalorder 1, %s18
    %p382 = scmp.lt.s32.totalorder %s18, 3
    %p383 = pnand %p381, %p382
    %p384 = pneg %p383
    // Predicated region
    $region65: #{time_adapter_forward.12} parent=5 // pred_check
      _
    $region66: #{time_adapter_forward.12} parent=5 // pred_check_branch
      %386 = sbr.rel (%p383) target = $region68
    $region67: #{time_adapter_forward.12} parent=5 // pred_region
      %s387 = ssub.s32 %s18, 1
      %p388 = scmp.lt.s32.totalorder %s23, 1
      %s389 = scalar_select %p388, %s23, 1
      %s390 = smul.addr %s389, 2
      %s391 = smul.addr %s390, 8
      %s392 = scalar_lea.vmem %s0, %s391
      %p393 = pneg %p44
      %p394 = pneg %p41
      %p395 = pneg %p65
      %p396 = pneg %p62
      %p397 = pneg %p86
      %p398 = pneg %p83
      %p399 = pneg %p107
      %p400 = pneg %p104
      %p401 = pneg %p128
      %p402 = pneg %p125
      %p403 = scmp.lt.s32.totalorder %s23, 1
      %s404 = scalar_select %p403, %s23, 1
      %s405 = smul.addr %s404, 2
      %s406 = smul.addr %s405, 8
      %s407 = scalar_lea.vmem %s5, %s406
      %p408 = pneg %p154
      %p409 = pneg %p151
      %p410 = pneg %p175
      %p411 = pneg %p172
      %p412 = pneg %p196
      %p413 = pneg %p193
      %p414 = pneg %p217
      %p415 = pneg %p214
      %p416 = pneg %p238
      %p417 = pneg %p235
      %p418 = pneg %p259
      %p419 = pneg %p256
      %p420 = scmp.lt.s32.totalorder %s23, 1
      %s421 = scalar_select %p420, %s23, 1
      %s422 = smul.addr %s421, 2
      %s423 = smul.addr %s422, 8
      %s424 = scalar_lea.vmem %s11, %s423
      %p425 = pneg %p285
      %p426 = pneg %p282
      %p427 = pneg %p311
      %p428 = pneg %p308
      %p429 = scmp.lt.s32.totalorder %s23, 1
      %s430 = scalar_select %p429, %s23, 1
      %s431 = smul.addr %s430, 2
      %s432 = smul.addr %s431, 8
      %s433 = scalar_lea.vmem %s12, %s432
      %p434 = scmp.lt.s32.totalorder %s23, 1
      %s435 = scalar_select %p434, %s23, 1
      %s436 = smul.addr %s435, 2
      %s437 = smul.addr %s436, 8
      %s438 = scalar_lea.vmem %s0, %s437
      %p439 = scmp.lt.s32.totalorder %s23, 1
      %s440 = scalar_select %p439, %s23, 1
      %s441 = smul.addr %s440, 2
      %s442 = smul.addr %s441, 8
      %s443 = scalar_lea.vmem %s5, %s442
      %p444 = scmp.lt.s32.totalorder %s23, 1
      %s445 = scalar_select %p444, %s23, 1
      %s446 = smul.addr %s445, 2
      %s447 = smul.addr %s446, 8
      %s448 = scalar_lea.vmem %s11, %s447
      %p449 = scmp.lt.s32.totalorder %s23, 1
      %s450 = scalar_select %p449, %s23, 1
      %s451 = smul.addr %s450, 2
      %s452 = smul.addr %s451, 8
      %s453 = scalar_lea.vmem %s12, %s452
      %v455 = vld [vmem:[%s438] sm:$0xff]
      %v456 = vld [vmem:[%s438 + $0x8] sm:$0xff]
      %v457 = vld [vmem:[%s443] sm:$0xff]
      %v458 = vld [vmem:[%s443 + $0x8] sm:$0xff]
      %v459 = vxor.u32 %v457, 2147483648
      %v460 = vxor.u32 %v458, 2147483648
      %v461 = vmul.f32 %v459, 1.442695
      %v462 = vpow.pop %v461
      %v463 = vmul.f32 %v460, 1.442695
      %v464 = vpow.pop %v463
      %v465 = vadd.f32 %v462, 1.0
      %v466 = vadd.f32 %v464, 1.0
      %v467 = vrcp.pop %v465
      %v468 = vmul.f32 1.0, %v467
      %v469 = vrcp.pop %v466
      %v470 = vmul.f32 1.0, %v469
      %v471 = vmul.f32 %v457, %v468
      %v472 = vmul.f32 %v458, %v470
      %474 = vset.pattern.permute.xlu0 0
      %475 = vperm.xlu0 %474, %v471
      %v476 = vpop.permute.xlu0 %475
      %479 = vset.pattern.permute.xlu0 0
      %480 = vperm.xlu0 %479, %v472
      %v481 = vpop.permute.xlu0 %480
      %v483 = vld [vmem:[%s6] sm:$0xff]
      %vm484 = vcmask 130048
      %v486 = vsel %vm484, %v483, 0
      %488 = vmatprep.subr.mxu0 0.0
      %489 = vmatpush1.msra.mxu0 0.0
      %490 = vmatprep.subr.mxu0 0.0
      %491 = vmatpush1.msra.mxu0 0.0
      %492 = vmatprep.subr.mxu0 0.0
      %493 = vmatpush1.msra.mxu0 0.0
      %494 = vmatprep.subr.mxu0 0.0
      %495 = vmatpush1.msra.mxu0 0.0
      %496 = vmatprep.subr.mxu0 0.0
      %497 = vmatpush1.msra.mxu0 0.0
      %498 = vmatprep.subr.mxu0 0.0
      %499 = vmatpush1.msra.mxu0 0.0
      %500 = vmatprep.subr.mxu0 0.0
      %501 = vmatpush1.msra.mxu0 0.0
      %502 = vmatprep.subr.mxu0 0.0
      %503 = vmatpush1.msra.mxu0 0.0
      %504 = vmatprep.subr.mxu0 0.0
      %505 = vmatpush1.msra.mxu0 0.0
      %506 = vmatprep.subr.mxu0 0.0
      %507 = vmatpush1.msra.mxu0 0.0
      %508 = vmatprep.subr.mxu0 0.0
      %509 = vmatpush1.msra.mxu0 0.0
      %510 = vmatprep.subr.mxu0 0.0
      %511 = vmatpush1.msra.mxu0 0.0
      %512 = vmatprep.subr.mxu0 0.0
      %513 = vmatpush1.msra.mxu0 0.0
      %514 = vmatprep.subr.mxu0 0.0
      %515 = vmatpush1.msra.mxu0 0.0
      %516 = vmatprep.subr.mxu0 %v481
      %517 = vmatpush1.msra.mxu0 %v481
      %518 = vmatprep.subr.mxu0 %v476
      %519 = vmatpush1.msra.mxu0 %v476
      %520 = vmatprep.subr.mxu0 0.0
      %521 = vmatpush2.msra.mxu0 0.0
      %522 = vmatprep.subr.mxu0 0.0
      %523 = vmatpush2.msra.mxu0 0.0
      %524 = vmatprep.subr.mxu0 0.0
      %525 = vmatpush2.msra.mxu0 0.0
      %526 = vmatprep.subr.mxu0 0.0
      %527 = vmatpush2.msra.mxu0 0.0
      %528 = vmatprep.subr.mxu0 0.0
      %529 = vmatpush2.msra.mxu0 0.0
      %530 = vmatprep.subr.mxu0 0.0
      %531 = vmatpush2.msra.mxu0 0.0
      %532 = vmatprep.subr.mxu0 0.0
      %533 = vmatpush2.msra.mxu0 0.0
      %534 = vmatprep.subr.mxu0 0.0
      %535 = vmatpush2.msra.mxu0 0.0
      %536 = vmatprep.subr.mxu0 0.0
      %537 = vmatpush2.msra.mxu0 0.0
      %538 = vmatprep.subr.mxu0 0.0
      %539 = vmatpush2.msra.mxu0 0.0
      %540 = vmatprep.subr.mxu0 0.0
      %541 = vmatpush2.msra.mxu0 0.0
      %542 = vmatprep.subr.mxu0 0.0
      %543 = vmatpush2.msra.mxu0 0.0
      %544 = vmatprep.subr.mxu0 0.0
      %545 = vmatpush2.msra.mxu0 0.0
      %546 = vmatprep.subr.mxu0 0.0
      %547 = vmatpush2.msra.mxu0 0.0
      %548 = vmatprep.subr.mxu0 0.0
      %549 = vmatpush2.msra.mxu0 0.0
      %550 = vmatprep.subr.mxu0 0.0
      %551 = vmatpush2.msra.mxu0 0.0
      %552 = vmatprep.mubr.f32.mxu0 0.0
      %553 = vmatmul.mubr.f32.gmra.mxu0 %v486
      %v554 = vpop.f32.mrf.mxu0
      %v555 = vadd.f32 0.0, %v554
      %v556 = vpop.f32.mrf.mxu0
      %v557 = vadd.f32 0.0, %v556
      %558 = vdwg.mxu0
      %v559 = vadd.f32 %v455, %v555
      %v560 = vadd.f32 %v456, %v557
      %v561 = vld [vmem:[%s7] sm:$0xff]
      %563 = vset.pattern.permute.xlu0 0
      %564 = vperm.xlu0 %563, %v561
      %v565 = vpop.permute.xlu0 %564
      %v567 = vadd.f32 %v559, %v565
      %v568 = vadd.f32 %v560, %v565
      %v569 = vld [vmem:[%s3] sm:$0xff]
      %v570 = vld [vmem:[%s4] sm:$0xf]
      %vm571 = vcmask 64512
      %v573 = vsel %vm571, %v570, 0
      %575 = vmatprep.subr.mxu0 0.0
      %576 = vmatpush1.msra.mxu0 0.0
      %577 = vmatprep.subr.mxu0 0.0
      %578 = vmatpush1.msra.mxu0 0.0
      %579 = vmatprep.subr.mxu0 0.0
      %580 = vmatpush1.msra.mxu0 0.0
      %581 = vmatprep.subr.mxu0 0.0
      %582 = vmatpush1.msra.mxu0 0.0
      %583 = vmatprep.subr.mxu0 0.0
      %584 = vmatpush1.msra.mxu0 0.0
      %585 = vmatprep.subr.mxu0 0.0
      %586 = vmatpush1.msra.mxu0 0.0
      %587 = vmatprep.subr.mxu0 0.0
      %588 = vmatpush1.msra.mxu0 0.0
      %589 = vmatprep.subr.mxu0 0.0
      %590 = vmatpush1.msra.mxu0 0.0
      %591 = vmatprep.subr.mxu0 0.0
      %592 = vmatpush1.msra.mxu0 0.0
      %593 = vmatprep.subr.mxu0 0.0
      %594 = vmatpush1.msra.mxu0 0.0
      %595 = vmatprep.subr.mxu0 0.0
      %596 = vmatpush1.msra.mxu0 0.0
      %597 = vmatprep.subr.mxu0 0.0
      %598 = vmatpush1.msra.mxu0 0.0
      %599 = vmatprep.subr.mxu0 0.0
      %600 = vmatpush1.msra.mxu0 0.0
      %601 = vmatprep.subr.mxu0 0.0
      %602 = vmatpush1.msra.mxu0 0.0
      %603 = vmatprep.subr.mxu0 0.0
      %604 = vmatpush1.msra.mxu0 0.0
      %605 = vmatprep.subr.mxu0 %v568
      %606 = vmatpush1.msra.mxu0 %v567
      %607 = vmatprep.subr.mxu0 0.0
      %608 = vmatpush2.msra.mxu0 0.0
      %609 = vmatprep.subr.mxu0 0.0
      %610 = vmatpush2.msra.mxu0 0.0
      %611 = vmatprep.subr.mxu0 0.0
      %612 = vmatpush2.msra.mxu0 0.0
      %613 = vmatprep.subr.mxu0 0.0
      %614 = vmatpush2.msra.mxu0 0.0
      %615 = vmatprep.subr.mxu0 0.0
      %616 = vmatpush2.msra.mxu0 0.0
      %617 = vmatprep.subr.mxu0 0.0
      %618 = vmatpush2.msra.mxu0 0.0
      %619 = vmatprep.subr.mxu0 0.0
      %620 = vmatpush2.msra.mxu0 0.0
      %621 = vmatprep.subr.mxu0 0.0
      %622 = vmatpush2.msra.mxu0 0.0
      %623 = vmatprep.subr.mxu0 0.0
      %624 = vmatpush2.msra.mxu0 0.0
      %625 = vmatprep.subr.mxu0 0.0
      %626 = vmatpush2.msra.mxu0 0.0
      %627 = vmatprep.subr.mxu0 0.0
      %628 = vmatpush2.msra.mxu0 0.0
      %629 = vmatprep.subr.mxu0 0.0
      %630 = vmatpush2.msra.mxu0 0.0
      %631 = vmatprep.subr.mxu0 0.0
      %632 = vmatpush2.msra.mxu0 0.0
      %633 = vmatprep.subr.mxu0 0.0
      %634 = vmatpush2.msra.mxu0 0.0
      %635 = vmatprep.subr.mxu0 0.0
      %636 = vmatpush2.msra.mxu0 0.0
      %637 = vmatprep.subr.mxu0 0.0
      %638 = vmatpush2.msra.mxu0 0.0
      %639 = vmatprep.mubr.f32.mxu0 0.0
      %640 = vmatmul.mubr.f32.gmra.mxu0 %v573
      %v641 = vpop.f32.mrf.mxu0
      %v642 = vadd.f32 0.0, %v641
      %v643 = vpop.f32.mrf.mxu0
      %v644 = vadd.f32 0.0, %v643
      %645 = vdwg.mxu0
      %vm646 = vcmask 1043456
      %v647 = vsel %vm646, %v642, 0.0
      %v648 = vsel %vm646, %v644, 0.0
      %v649 = vadd.f32 %v647, %v648
      %650 = vadd.xlane.f32.xlu0 %v649
      %v651 = vpop.xlane.xlu0 %650
      %v652 = vrcp.pop 512.0
      %v653 = vmul.f32 %v651, %v652
      %vm655 = vcmask 31744
      %v657 = vsel %vm655, %v569, 0
      %v659 = vsel %vm646, %v653, 0
      %661 = vmatprep.subr.mxu0 0.0
      %662 = vmatpush1.msra.mxu0 0.0
      %663 = vmatprep.subr.mxu0 0.0
      %664 = vmatpush1.msra.mxu0 0.0
      %665 = vmatprep.subr.mxu0 0.0
      %666 = vmatpush1.msra.mxu0 0.0
      %667 = vmatprep.subr.mxu0 0.0
      %668 = vmatpush1.msra.mxu0 0.0
      %669 = vmatprep.subr.mxu0 0.0
      %670 = vmatpush1.msra.mxu0 0.0
      %671 = vmatprep.subr.mxu0 0.0
      %672 = vmatpush1.msra.mxu0 0.0
      %673 = vmatprep.subr.mxu0 0.0
      %674 = vmatpush1.msra.mxu0 0.0
      %675 = vmatprep.subr.mxu0 0.0
      %676 = vmatpush1.msra.mxu0 0.0
      %677 = vmatprep.subr.mxu0 0.0
      %678 = vmatpush1.msra.mxu0 0.0
      %679 = vmatprep.subr.mxu0 0.0
      %680 = vmatpush1.msra.mxu0 0.0
      %681 = vmatprep.subr.mxu0 0.0
      %682 = vmatpush1.msra.mxu0 0.0
      %683 = vmatprep.subr.mxu0 0.0
      %684 = vmatpush1.msra.mxu0 0.0
      %685 = vmatprep.subr.mxu0 0.0
      %686 = vmatpush1.msra.mxu0 0.0
      %687 = vmatprep.subr.mxu0 0.0
      %688 = vmatpush1.msra.mxu0 0.0
      %689 = vmatprep.subr.mxu0 0.0
      %690 = vmatpush1.msra.mxu0 0.0
      %691 = vmatprep.subr.mxu0 %v659
      %692 = vmatpush1.msra.mxu0 %v659
      %693 = vmatprep.subr.mxu0 0.0
      %694 = vmatpush2.msra.mxu0 0.0
      %695 = vmatprep.subr.mxu0 0.0
      %696 = vmatpush2.msra.mxu0 0.0
      %697 = vmatprep.subr.mxu0 0.0
      %698 = vmatpush2.msra.mxu0 0.0
      %699 = vmatprep.subr.mxu0 0.0
      %700 = vmatpush2.msra.mxu0 0.0
      %701 = vmatprep.subr.mxu0 0.0
      %702 = vmatpush2.msra.mxu0 0.0
      %703 = vmatprep.subr.mxu0 0.0
      %704 = vmatpush2.msra.mxu0 0.0
      %705 = vmatprep.subr.mxu0 0.0
      %706 = vmatpush2.msra.mxu0 0.0
      %707 = vmatprep.subr.mxu0 0.0
      %708 = vmatpush2.msra.mxu0 0.0
      %709 = vmatprep.subr.mxu0 0.0
      %710 = vmatpush2.msra.mxu0 0.0
      %711 = vmatprep.subr.mxu0 0.0
      %712 = vmatpush2.msra.mxu0 0.0
      %713 = vmatprep.subr.mxu0 0.0
      %714 = vmatpush2.msra.mxu0 0.0
      %715 = vmatprep.subr.mxu0 0.0
      %716 = vmatpush2.msra.mxu0 0.0
      %717 = vmatprep.subr.mxu0 0.0
      %718 = vmatpush2.msra.mxu0 0.0
      %719 = vmatprep.subr.mxu0 0.0
      %720 = vmatpush2.msra.mxu0 0.0
      %721 = vmatprep.subr.mxu0 0.0
      %722 = vmatpush2.msra.mxu0 0.0
      %723 = vmatprep.subr.mxu0 0.0
      %724 = vmatpush2.msra.mxu0 0.0
      %725 = vmatprep.mubr.f32.mxu0 0.0
      %726 = vmatmul.mubr.f32.gmra.mxu0 %v657
      %v727 = vpop.f32.mrf.mxu0
      %v728 = vadd.f32 0.0, %v727
      %v729 = vpop.f32.mrf.mxu0
      %v730 = vadd.f32 0.0, %v729
      %731 = vdwg.mxu0
      %v732 = vsub.f32 %v567, %v728
      %v733 = vsub.f32 %v568, %v730
      %v734 = vmul.f32 %v732, %v732
      %v735 = vmul.f32 %v733, %v733
      %736 = vmatprep.subr.mxu0 0.0
      %737 = vmatpush1.msra.mxu0 0.0
      %738 = vmatprep.subr.mxu0 0.0
      %739 = vmatpush1.msra.mxu0 0.0
      %740 = vmatprep.subr.mxu0 0.0
      %741 = vmatpush1.msra.mxu0 0.0
      %742 = vmatprep.subr.mxu0 0.0
      %743 = vmatpush1.msra.mxu0 0.0
      %744 = vmatprep.subr.mxu0 0.0
      %745 = vmatpush1.msra.mxu0 0.0
      %746 = vmatprep.subr.mxu0 0.0
      %747 = vmatpush1.msra.mxu0 0.0
      %748 = vmatprep.subr.mxu0 0.0
      %749 = vmatpush1.msra.mxu0 0.0
      %750 = vmatprep.subr.mxu0 0.0
      %751 = vmatpush1.msra.mxu0 0.0
      %752 = vmatprep.subr.mxu0 0.0
      %753 = vmatpush1.msra.mxu0 0.0
      %754 = vmatprep.subr.mxu0 0.0
      %755 = vmatpush1.msra.mxu0 0.0
      %756 = vmatprep.subr.mxu0 0.0
      %757 = vmatpush1.msra.mxu0 0.0
      %758 = vmatprep.subr.mxu0 0.0
      %759 = vmatpush1.msra.mxu0 0.0
      %760 = vmatprep.subr.mxu0 0.0
      %761 = vmatpush1.msra.mxu0 0.0
      %762 = vmatprep.subr.mxu0 0.0
      %763 = vmatpush1.msra.mxu0 0.0
      %764 = vmatprep.subr.mxu0 0.0
      %765 = vmatpush1.msra.mxu0 0.0
      %766 = vmatprep.subr.mxu0 %v735
      %767 = vmatpush1.msra.mxu0 %v734
      %768 = vmatprep.subr.mxu0 0.0
      %769 = vmatpush2.msra.mxu0 0.0
      %770 = vmatprep.subr.mxu0 0.0
      %771 = vmatpush2.msra.mxu0 0.0
      %772 = vmatprep.subr.mxu0 0.0
      %773 = vmatpush2.msra.mxu0 0.0
      %774 = vmatprep.subr.mxu0 0.0
      %775 = vmatpush2.msra.mxu0 0.0
      %776 = vmatprep.subr.mxu0 0.0
      %777 = vmatpush2.msra.mxu0 0.0
      %778 = vmatprep.subr.mxu0 0.0
      %779 = vmatpush2.msra.mxu0 0.0
      %780 = vmatprep.subr.mxu0 0.0
      %781 = vmatpush2.msra.mxu0 0.0
      %782 = vmatprep.subr.mxu0 0.0
      %783 = vmatpush2.msra.mxu0 0.0
      %784 = vmatprep.subr.mxu0 0.0
      %785 = vmatpush2.msra.mxu0 0.0
      %786 = vmatprep.subr.mxu0 0.0
      %787 = vmatpush2.msra.mxu0 0.0
      %788 = vmatprep.subr.mxu0 0.0
      %789 = vmatpush2.msra.mxu0 0.0
      %790 = vmatprep.subr.mxu0 0.0
      %791 = vmatpush2.msra.mxu0 0.0
      %792 = vmatprep.subr.mxu0 0.0
      %793 = vmatpush2.msra.mxu0 0.0
      %794 = vmatprep.subr.mxu0 0.0
      %795 = vmatpush2.msra.mxu0 0.0
      %796 = vmatprep.subr.mxu0 0.0
      %797 = vmatpush2.msra.mxu0 0.0
      %798 = vmatprep.subr.mxu0 0.0
      %799 = vmatpush2.msra.mxu0 0.0
      %800 = vmatprep.mubr.f32.mxu0 0.0
      %801 = vmatmul.mubr.f32.gmra.mxu0 %v573
      %v802 = vpop.f32.mrf.mxu0
      %v803 = vadd.f32 0.0, %v802
      %v804 = vpop.f32.mrf.mxu0
      %v805 = vadd.f32 0.0, %v804
      %806 = vdwg.mxu0
      %v807 = vsel %vm646, %v803, 0.0
      %v808 = vsel %vm646, %v805, 0.0
      %v809 = vadd.f32 %v807, %v808
      %810 = vadd.xlane.f32.xlu0 %v809
      %v811 = vpop.xlane.xlu0 %810
      %v812 = vmul.f32 %v811, %v652
      %v813 = vadd.f32 %v812, 1e-05
      %v814 = vrsqrt.pop %v813
      %v816 = vsel %vm646, %v814, 0
      %818 = vmatprep.subr.mxu0 0.0
      %819 = vmatpush1.msra.mxu0 0.0
      %820 = vmatprep.subr.mxu0 0.0
      %821 = vmatpush1.msra.mxu0 0.0
      %822 = vmatprep.subr.mxu0 0.0
      %823 = vmatpush1.msra.mxu0 0.0
      %824 = vmatprep.subr.mxu0 0.0
      %825 = vmatpush1.msra.mxu0 0.0
      %826 = vmatprep.subr.mxu0 0.0
      %827 = vmatpush1.msra.mxu0 0.0
      %828 = vmatprep.subr.mxu0 0.0
      %829 = vmatpush1.msra.mxu0 0.0
      %830 = vmatprep.subr.mxu0 0.0
      %831 = vmatpush1.msra.mxu0 0.0
      %832 = vmatprep.subr.mxu0 0.0
      %833 = vmatpush1.msra.mxu0 0.0
      %834 = vmatprep.subr.mxu0 0.0
      %835 = vmatpush1.msra.mxu0 0.0
      %836 = vmatprep.subr.mxu0 0.0
      %837 = vmatpush1.msra.mxu0 0.0
      %838 = vmatprep.subr.mxu0 0.0
      %839 = vmatpush1.msra.mxu0 0.0
      %840 = vmatprep.subr.mxu0 0.0
      %841 = vmatpush1.msra.mxu0 0.0
      %842 = vmatprep.subr.mxu0 0.0
      %843 = vmatpush1.msra.mxu0 0.0
      %844 = vmatprep.subr.mxu0 0.0
      %845 = vmatpush1.msra.mxu0 0.0
      %846 = vmatprep.subr.mxu0 0.0
      %847 = vmatpush1.msra.mxu0 0.0
      %848 = vmatprep.subr.mxu0 %v816
      %849 = vmatpush1.msra.mxu0 %v816
      %850 = vmatprep.subr.mxu0 0.0
      %851 = vmatpush2.msra.mxu0 0.0
      %852 = vmatprep.subr.mxu0 0.0
      %853 = vmatpush2.msra.mxu0 0.0
      %854 = vmatprep.subr.mxu0 0.0
      %855 = vmatpush2.msra.mxu0 0.0
      %856 = vmatprep.subr.mxu0 0.0
      %857 = vmatpush2.msra.mxu0 0.0
      %858 = vmatprep.subr.mxu0 0.0
      %859 = vmatpush2.msra.mxu0 0.0
      %860 = vmatprep.subr.mxu0 0.0
      %861 = vmatpush2.msra.mxu0 0.0
      %862 = vmatprep.subr.mxu0 0.0
      %863 = vmatpush2.msra.mxu0 0.0
      %864 = vmatprep.subr.mxu0 0.0
      %865 = vmatpush2.msra.mxu0 0.0
      %866 = vmatprep.subr.mxu0 0.0
      %867 = vmatpush2.msra.mxu0 0.0
      %868 = vmatprep.subr.mxu0 0.0
      %869 = vmatpush2.msra.mxu0 0.0
      %870 = vmatprep.subr.mxu0 0.0
      %871 = vmatpush2.msra.mxu0 0.0
      %872 = vmatprep.subr.mxu0 0.0
      %873 = vmatpush2.msra.mxu0 0.0
      %874 = vmatprep.subr.mxu0 0.0
      %875 = vmatpush2.msra.mxu0 0.0
      %876 = vmatprep.subr.mxu0 0.0
      %877 = vmatpush2.msra.mxu0 0.0
      %878 = vmatprep.subr.mxu0 0.0
      %879 = vmatpush2.msra.mxu0 0.0
      %880 = vmatprep.subr.mxu0 0.0
      %881 = vmatpush2.msra.mxu0 0.0
      %882 = vmatprep.mubr.f32.mxu0 0.0
      %883 = vmatmul.mubr.f32.gmra.mxu0 %v657
      %v884 = vpop.f32.mrf.mxu0
      %v885 = vadd.f32 0.0, %v884
      %v886 = vpop.f32.mrf.mxu0
      %v887 = vadd.f32 0.0, %v886
      %888 = vdwg.mxu0
      %v889 = vmul.f32 %v732, %v885
      %v890 = vmul.f32 %v733, %v887
      %v891 = vld [vmem:[%s1] sm:$0xff]
      %893 = vset.pattern.permute.xlu0 0
      %894 = vperm.xlu0 %893, %v891
      %v895 = vpop.permute.xlu0 %894
      %v897 = vmul.f32 %v889, %v895
      %v898 = vmul.f32 %v890, %v895
      %v899 = vld [vmem:[%s2] sm:$0xff]
      %901 = vset.pattern.permute.xlu0 0
      %902 = vperm.xlu0 %901, %v899
      %v903 = vpop.permute.xlu0 %902
      %v905 = vadd.f32 %v897, %v903
      %v906 = vadd.f32 %v898, %v903
      %v907 = vxor.u32 %v905, 2147483648
      %v908 = vxor.u32 %v906, 2147483648
      %v909 = vmul.f32 %v907, 1.442695
      %v910 = vpow.pop %v909
      %v911 = vmul.f32 %v908, 1.442695
      %v912 = vpow.pop %v911
      %v913 = vadd.f32 %v910, 1.0
      %v914 = vadd.f32 %v912, 1.0
      %v915 = vrcp.pop %v913
      %v916 = vmul.f32 1.0, %v915
      %v917 = vrcp.pop %v914
      %v918 = vmul.f32 1.0, %v917
      %v919 = vmul.f32 %v905, %v916
      %v920 = vmul.f32 %v906, %v918
      %v921 = vld [vmem:[%s8] sm:$0xff]
      %v922 = vld [vmem:[%s8 + $0x8] sm:$0xff]
      %v923 = vld [vmem:[%s8 + $0x10] sm:$0x1]
      %v924 = vld [vmem:[%s8 + $0x18] sm:$0x1]
      %925 = vrot.lane.b32.xlu0 %v919, 17
      %v926 = vpop.permute.xlu0 %925
      %927 = vrot.lane.b32.xlu0 %v920, 17
      %v928 = vpop.permute.xlu0 %927
      %v929 = vlaneseq
      %v930 = vand.u32 %v929, 127
      %vm931 = vcmp.lt.s32.totalorder %v930, 17
      %v932 = vsel %vm931, %v926, %v928
      %v933 = vsel %vm931, %v928, %v926
      %v934 = vlaneseq
      %v935 = vshrl.u32 %v934, 7
      %v936 = vsub.s32 0, %v935
      %v937 = vrot.slane %v921, %v936
      %v938 = vlaneseq
      %v939 = vshrl.u32 %v938, 7
      %v940 = vsub.s32 0, %v939
      %v941 = vrot.slane %v922, %v940
      %v942 = vmul.f32 %v933, %v937
      %v943 = vmul.f32 %v932, %v941
      %944 = vst [vmem:[#allocation2] sm:$0xff] %v942
      %945 = vst [vmem:[#allocation2 + $0x8] sm:$0xff] %v943
      %946 = vrot.lane.b32.xlu0 %v919, 16
      %v947 = vpop.permute.xlu0 %946
      %948 = vrot.lane.b32.xlu0 %v920, 16
      %v949 = vpop.permute.xlu0 %948
      %vm950 = vcmp.lt.s32.totalorder %v930, 16
      %v951 = vsel %vm950, %v947, %v949
      %v952 = vsel %vm950, %v949, %v947
      %v953 = vlaneseq
      %v954 = vshrl.u32 %v953, 7
      %v955 = vsub.s32 1, %v954
      %v956 = vrot.slane %v921, %v955
      %v957 = vlaneseq
      %v958 = vshrl.u32 %v957, 7
      %v959 = vsub.s32 1, %v958
      %v960 = vrot.slane %v922, %v959
      %v961 = vmul.f32 %v952, %v956
      %v962 = vmul.f32 %v951, %v960
      %963 = vst [vmem:[#allocation2 + $0x10] sm:$0xff] %v961
      %964 = vst [vmem:[#allocation2 + $0x18] sm:$0xff] %v962
      %965 = vrot.lane.b32.xlu0 %v919, 15
      %v966 = vpop.permute.xlu0 %965
      %967 = vrot.lane.b32.xlu0 %v920, 15
      %v968 = vpop.permute.xlu0 %967
      %vm969 = vcmp.lt.s32.totalorder %v930, 15
      %v970 = vsel %vm969, %v966, %v968
      %v971 = vsel %vm969, %v968, %v966
      %v972 = vlaneseq
      %v973 = vshrl.u32 %v972, 7
      %v974 = vsub.s32 2, %v973
      %v975 = vrot.slane %v921, %v974
      %v976 = vlaneseq
      %v977 = vshrl.u32 %v976, 7
      %v978 = vsub.s32 2, %v977
      %v979 = vrot.slane %v922, %v978
      %v980 = vmul.f32 %v971, %v975
      %v981 = vmul.f32 %v970, %v979
      %982 = vst [vmem:[#allocation2 + $0x20] sm:$0xff] %v980
      %983 = vst [vmem:[#allocation2 + $0x28] sm:$0xff] %v981
      %984 = vrot.lane.b32.xlu0 %v919, 1
      %v985 = vpop.permute.xlu0 %984
      %986 = vrot.lane.b32.xlu0 %v920, 1
      %v987 = vpop.permute.xlu0 %986
      %vm988 = vcmp.lt.s32.totalorder %v930, 1
      %v989 = vsel %vm988, %v985, %v987
      %v990 = vsel %vm988, %v987, %v985
      %v991 = vlaneseq
      %v992 = vshrl.u32 %v991, 7
      %v993 = vsub.s32 3, %v992
      %v994 = vrot.slane %v921, %v993
      %v995 = vlaneseq
      %v996 = vshrl.u32 %v995, 7
      %v997 = vsub.s32 3, %v996
      %v998 = vrot.slane %v922, %v997
      %v999 = vmul.f32 %v990, %v994
      %v1000 = vmul.f32 %v989, %v998
      %1001 = vst [vmem:[#allocation2 + $0x30] sm:$0xff] %v999
      %1002 = vst [vmem:[#allocation2 + $0x38] sm:$0xff] %v1000
      %v1003 = vlaneseq
      %v1004 = vshrl.u32 %v1003, 7
      %v1005 = vsub.s32 4, %v1004
      %v1006 = vrot.slane %v921, %v1005
      %v1007 = vlaneseq
      %v1008 = vshrl.u32 %v1007, 7
      %v1009 = vsub.s32 4, %v1008
      %v1010 = vrot.slane %v922, %v1009
      %v1011 = vmul.f32 %v919, %v1006
      %v1012 = vmul.f32 %v920, %v1010
      %1013 = vst [vmem:[#allocation2 + $0x40] sm:$0xff] %v1011
      %1014 = vst [vmem:[#allocation2 + $0x48] sm:$0xff] %v1012
      %1015 = vrot.lane.b32.xlu0 %v919, 127
      %v1016 = vpop.permute.xlu0 %1015
      %1017 = vrot.lane.b32.xlu0 %v920, 127
      %v1018 = vpop.permute.xlu0 %1017
      %vm1019 = vcmp.lt.s32.totalorder %v930, 127
      %v1020 = vsel %vm1019, %v1016, %v1018
      %v1021 = vsel %vm1019, %v1018, %v1016
      %v1022 = vlaneseq
      %v1023 = vshrl.u32 %v1022, 7
      %v1024 = vsub.s32 5, %v1023
      %v1025 = vrot.slane %v921, %v1024
      %v1026 = vlaneseq
      %v1027 = vshrl.u32 %v1026, 7
      %v1028 = vsub.s32 5, %v1027
      %v1029 = vrot.slane %v922, %v1028
      %v1030 = vmul.f32 %v1020, %v1025
      %v1031 = vmul.f32 %v1021, %v1029
      %1032 = vst [vmem:[#allocation2 + $0x50] sm:$0xff] %v1030
      %1033 = vst [vmem:[#allocation2 + $0x58] sm:$0xff] %v1031
      %1034 = vrot.lane.b32.xlu0 %v919, 113
      %v1035 = vpop.permute.xlu0 %1034
      %1036 = vrot.lane.b32.xlu0 %v920, 113
      %v1037 = vpop.permute.xlu0 %1036
      %vm1038 = vcmp.lt.s32.totalorder %v930, 113
      %v1039 = vsel %vm1038, %v1035, %v1037
      %v1040 = vsel %vm1038, %v1037, %v1035
      %v1041 = vlaneseq
      %v1042 = vshrl.u32 %v1041, 7
      %v1043 = vsub.s32 6, %v1042
      %v1044 = vrot.slane %v921, %v1043
      %v1045 = vlaneseq
      %v1046 = vshrl.u32 %v1045, 7
      %v1047 = vsub.s32 6, %v1046
      %v1048 = vrot.slane %v922, %v1047
      %v1049 = vmul.f32 %v1039, %v1044
      %v1050 = vmul.f32 %v1040, %v1048
      %1051 = vst [vmem:[#allocation2 + $0x60] sm:$0xff] %v1049
      %1052 = vst [vmem:[#allocation2 + $0x68] sm:$0xff] %v1050
      %1053 = vrot.lane.b32.xlu0 %v919, 112
      %v1054 = vpop.permute.xlu0 %1053
      %1055 = vrot.lane.b32.xlu0 %v920, 112
      %v1056 = vpop.permute.xlu0 %1055
      %vm1057 = vcmp.lt.s32.totalorder %v930, 112
      %v1058 = vsel %vm1057, %v1054, %v1056
      %v1059 = vsel %vm1057, %v1056, %v1054
      %v1060 = vlaneseq
      %v1061 = vshrl.u32 %v1060, 7
      %v1062 = vsub.s32 7, %v1061
      %v1063 = vrot.slane %v921, %v1062
      %v1064 = vlaneseq
      %v1065 = vshrl.u32 %v1064, 7
      %v1066 = vsub.s32 7, %v1065
      %v1067 = vrot.slane %v922, %v1066
      %v1068 = vmul.f32 %v1058, %v1063
      %v1069 = vmul.f32 %v1059, %v1067
      %1070 = vst [vmem:[#allocation2 + $0x70] sm:$0xff] %v1068
      %1071 = vst [vmem:[#allocation2 + $0x78] sm:$0xff] %v1069
      %1072 = vrot.lane.b32.xlu0 %v919, 111
      %v1073 = vpop.permute.xlu0 %1072
      %1074 = vrot.lane.b32.xlu0 %v920, 111
      %v1075 = vpop.permute.xlu0 %1074
      %vm1076 = vcmp.lt.s32.totalorder %v930, 111
      %v1077 = vsel %vm1076, %v1073, %v1075
      %v1078 = vsel %vm1076, %v1075, %v1073
      %v1079 = vlaneseq
      %v1080 = vshrl.u32 %v1079, 7
      %v1081 = vsub.s32 0, %v1080
      %v1082 = vrot.slane %v923, %v1081
      %v1083 = vlaneseq
      %v1084 = vshrl.u32 %v1083, 7
      %v1085 = vsub.s32 0, %v1084
      %v1086 = vrot.slane %v924, %v1085
      %v1087 = vmul.f32 %v1077, %v1082
      %v1088 = vmul.f32 %v1078, %v1086
      %1089 = vst [vmem:[#allocation2 + $0x80] sm:$0xff] %v1087
      %1090 = vst [vmem:[#allocation2 + $0x88] sm:$0xff] %v1088
      %v1091 = vld [vmem:[%s9] sm:$0xf]
      %v1092 = vld [vmem:[#allocation2] sm:$0xff]
      %v1093 = vld [vmem:[#allocation2 + $0x8] sm:$0xff]
      %v1094 = vld [vmem:[#allocation2 + $0x10] sm:$0xff]
      %v1095 = vld [vmem:[#allocation2 + $0x18] sm:$0xff]
      %v1096 = vld [vmem:[#allocation2 + $0x20] sm:$0xff]
      %v1097 = vld [vmem:[#allocation2 + $0x28] sm:$0xff]
      %v1098 = vld [vmem:[#allocation2 + $0x30] sm:$0xff]
      %v1099 = vld [vmem:[#allocation2 + $0x38] sm:$0xff]
      %v1100 = vld [vmem:[#allocation2 + $0x40] sm:$0xff]
      %v1101 = vld [vmem:[#allocation2 + $0x48] sm:$0xff]
      %v1102 = vld [vmem:[#allocation2 + $0x50] sm:$0xff]
      %v1103 = vld [vmem:[#allocation2 + $0x58] sm:$0xff]
      %v1104 = vld [vmem:[#allocation2 + $0x60] sm:$0xff]
      %v1105 = vld [vmem:[#allocation2 + $0x68] sm:$0xff]
      %v1106 = vld [vmem:[#allocation2 + $0x70] sm:$0xff]
      %v1107 = vld [vmem:[#allocation2 + $0x78] sm:$0xff]
      %v1108 = vld [vmem:[#allocation2 + $0x80] sm:$0xff]
      %v1109 = vld [vmem:[#allocation2 + $0x88] sm:$0xff]
      %v1110 = vpack.c.bf16 %v1094, %v1092
      %v1111 = vpack.c.bf16 %v1095, %v1093
      %v1112 = vpack.c.bf16 %v1098, %v1096
      %v1113 = vpack.c.bf16 %v1099, %v1097
      %v1114 = vpack.c.bf16 %v1102, %v1100
      %v1115 = vpack.c.bf16 %v1103, %v1101
      %v1116 = vpack.c.bf16 %v1106, %v1104
      %v1117 = vpack.c.bf16 %v1107, %v1105
      %v1118 = vpack.c.bf16 %v1108, %v1108
      %v1119 = vpack.c.bf16 %v1109, %v1109
      %v1120 = vld [vmem:[%s10] sm:$0xff]
      %1122 = vset.pattern.permute.xlu0 0
      %1123 = vperm.xlu0 %1122, %v1120
      %v1124 = vpop.permute.xlu0 %1123
      %vm1126 = vcmask 588800
      %v1128 = vsel %vm1126, %v1091, 0
      %v1131 = vsel %vm646, %v1118, 0
      %v1134 = vsel %vm646, %v1119, 0
      %1136 = vmatprep.subr.bf16.mxu0 0
      %1137 = vmatpush1.bf16.msra.mxu0 0
      %1138 = vmatprep.subr.bf16.mxu0 0
      %1139 = vmatpush1.bf16.msra.mxu0 0
      %1140 = vmatprep.subr.bf16.mxu0 0
      %1141 = vmatpush1.bf16.msra.mxu0 0
      %1142 = vmatprep.subr.bf16.mxu0 %v1134
      %1143 = vmatpush1.bf16.msra.mxu0 %v1131
      %1144 = vmatprep.subr.bf16.mxu0 %v1117
      %1145 = vmatpush1.bf16.msra.mxu0 %v1116
      %1146 = vmatprep.subr.bf16.mxu0 %v1115
      %1147 = vmatpush1.bf16.msra.mxu0 %v1114
      %1148 = vmatprep.subr.bf16.mxu0 %v1113
      %1149 = vmatpush1.bf16.msra.mxu0 %v1112
      %1150 = vmatprep.subr.bf16.mxu0 %v1111
      %1151 = vmatpush1.bf16.msra.mxu0 %v1110
      %1152 = vmatprep.subr.bf16.mxu0 0
      %1153 = vmatpush2.bf16.msra.mxu0 0
      %1154 = vmatprep.subr.bf16.mxu0 0
      %1155 = vmatpush2.bf16.msra.mxu0 0
      %1156 = vmatprep.subr.bf16.mxu0 0
      %1157 = vmatpush2.bf16.msra.mxu0 0
      %1158 = vmatprep.subr.bf16.mxu0 0
      %1159 = vmatpush2.bf16.msra.mxu0 0
      %1160 = vmatprep.subr.bf16.mxu0 0
      %1161 = vmatpush2.bf16.msra.mxu0 0
      %1162 = vmatprep.subr.bf16.mxu0 0
      %1163 = vmatpush2.bf16.msra.mxu0 0
      %1164 = vmatprep.subr.bf16.mxu0 0
      %1165 = vmatpush2.bf16.msra.mxu0 0
      %1166 = vmatprep.subr.bf16.mxu0 0
      %1167 = vmatpush2.bf16.msra.mxu0 0
      %1168 = vmatprep.mubr.bf16.mxu0 0
      %1169 = vmatmul.mubr.bf16.gmra.mxu0 %v1128
      %v1170 = vpop.f32.mrf.mxu0
      %v1171 = vadd.f32 %v1124, %v1170
      %v1172 = vpop.f32.mrf.mxu0
      %v1173 = vadd.f32 %v1124, %v1172
      %v1174 = vpop.f32.mrf.mxu0
      %v1175 = vpop.f32.mrf.mxu0
      %1176 = vdwg.mxu0
      %v1177 = vld [vmem:[%s448] sm:$0xff]
      %v1178 = vld [vmem:[%s448 + $0x8] sm:$0xff]
      %v1179 = vadd.f32 %v1171, %v1177
      %v1180 = vadd.f32 %v1173, %v1178
      %1181 = vst [vmem:[%s453] sm:$0xff] %v1179
      %1182 = vst [vmem:[%s453 + $0x8] sm:$0xff] %v1180
      %p1183 = scmp.lt.s32.totalorder %s23, 1
      %s1184 = scalar_select %p1183, %s23, 1
      %s1185 = smul.addr %s1184, 2
      %s1186 = smul.addr %s1185, 8
      %s1187 = scalar_lea.vmem %s12, %s1186
      // Predicated region
      $region69: #{time_adapter_forward.12} parent=67 // pred_check
        %p1188 = pneg %p308
      $region70: #{time_adapter_forward.12} parent=67 // pred_check_branch
        %1190 = sbr.rel (%p1188) target = $region72
      $region71: #{time_adapter_forward.12} parent=67 // pred_region
        _
      $region72: #{time_adapter_forward.12} parent=67 // pred_fallthru
        _
    $region68: #{time_adapter_forward.12} parent=5 // pred_fallthru
      _
    %p1191 = scmp.le.s32.totalorder 2, %s18
    // Predicated region
    $region73: #{time_adapter_forward.12} parent=5 // pred_check
      %p1192 = pneg %p1191
    $region74: #{time_adapter_forward.12} parent=5 // pred_check_branch
      %1194 = sbr.rel (%p1192) target = $region76
    $region75: #{time_adapter_forward.12} parent=5 // pred_region
      %s1195 = ssub.s32 %s18, 2
      // Predicated region
      $region77: #{time_adapter_forward.12} parent=75 // pred_check
        %p1196 = pneg %p314
      $region78: #{time_adapter_forward.12} parent=75 // pred_check_branch
        %1198 = sbr.rel (%p1196) target = $region80
      $region79: #{time_adapter_forward.12} parent=75 // pred_region
        %p1199 = scmp.lt.s32.totalorder %s24, 1
        %s1200 = scalar_select %p1199, %s24, 1
        %s1201 = smul.addr %s1200, 2
        %s1202 = smul.addr %s1201, 8
        %s1203 = scalar_lea.vmem %s12, %s1202
      $region80: #{time_adapter_forward.12} parent=75 // pred_fallthru
        _
    $region76: #{time_adapter_forward.12} parent=5 // pred_fallthru
      _
  $region6: #{time_adapter_forward.12} parent=0 // loop_footer
    %s22 = sadd.s32 1, %s18
  $region7: #{time_adapter_forward.12} parent=0 // loop_footer_branch
    %17 = sbr.rel target = $region3
  $region8: #{time_adapter_forward.12} parent=0 // loop_exit
    _

// kernel: time_adapter_forward.15
$region0: #{time_adapter_forward.15}
  #allocation0 [shape = 'u32[]', space=smem, size = 0x4, offset = 0x4, fixed_abs, tag = 'smem constant byte address 0x4 - core index']
  #allocation1 [shape = 'u32[144,128]{1,0:T(1,128)}', space=vmem, size = 0x12000, scoped, tag = 'internal scratch']
  #allocation2 [shape = 'f32[72,64]{1,0:T(8,128)}', space=vmem, size = 0x9000, scoped, tag = 'scratch operand']
  %s0 = inlined_call_operand.vmem [shape: f32[2,8,256], index: 0, kind: input, shape index: {}]
  %s1 = inlined_call_operand.vmem [shape: f32[8,1], index: 1, kind: input, shape index: {}]
  %s2 = inlined_call_operand.vmem [shape: f32[8,1], index: 2, kind: input, shape index: {}]
  %s3 = inlined_call_operand.vmem [shape: f32[8,4], index: 3, kind: input, shape index: {}]
  %s4 = inlined_call_operand.vmem [shape: f32[4,8], index: 4, kind: input, shape index: {}]
  %s5 = inlined_call_operand.vmem [shape: f32[256,64], index: 5, kind: input, shape index: {}]
  %s6 = inlined_call_operand.vmem [shape: f32[9,64], index: 6, kind: input, shape index: {}]
  %s7 = inlined_call_operand.vmem [shape: bf16[16,72], index: 7, kind: input, shape index: {}]
  %s8 = inlined_call_operand.vmem [shape: f32[16,1], index: 8, kind: input, shape index: {}]
  %s9 = inlined_call_operand.vmem [shape: f32[2,16,64], index: 9, kind: output, shape index: {}]
  %s10 = sld [smem:[#allocation0]]
  $region69: #{time_adapter_forward.15} parent=0
    _
  %s12 = ssub.s32 1, %s10
  %s13 = scalar_select 0, %s12, %s10
  loop: start=0, step=1, limit=4
  $region2: #{time_adapter_forward.15} parent=0 // loop_pre_header
    _
  $region3: #{time_adapter_forward.15} parent=0 // loop_header
    %s15 = sphi 0, %s19
    %p16 = scmp.ge.s32.totalorder %s15, 4
    %s25 = sphi 0, %s27
    %s28 = sphi 0, %s25
    %s29 = sphi 0, %s28
    %s45 = sphi 0, %s29
    %s49 = sphi 0, %s49
    %s51 = sphi 0, %s49
    %s52 = sphi 0, %s51
    %s66 = sphi 0, %s52
    %s70 = sphi 0, %s70
    %s72 = sphi 0, %s70
    %s73 = sphi 0, %s72
    %s87 = sphi 0, %s73
    %s91 = sphi 0, %s91
    %s93 = sphi 0, %s91
    %s94 = sphi 0, %s93
    %s108 = sphi 0, %s94
    %s112 = sphi 0, %s112
    %s114 = sphi 0, %s112
    %s115 = sphi 0, %s114
    %s129 = sphi 0, %s115
    %s133 = sphi 0, %s133
    %s135 = sphi 0, %s133
    %s136 = sphi 0, %s135
    %s150 = sphi 0, %s136
    %s154 = sphi 0, %s154
    %s156 = sphi 0, %s154
    %s157 = sphi 0, %s156
    %s171 = sphi 0, %s157
    %s175 = sphi 0, %s175
    %s177 = sphi 0, %s175
    %s178 = sphi 0, %s177
    %s192 = sphi 0, %s178
    %s196 = sphi 0, %s196
    %s198 = sphi 0, %s196
    %s199 = sphi 0, %s198
    %s213 = sphi 0, %s199
    %s219 = sphi 0, %s221
    %s222 = sphi 0, %s219
    %s223 = sphi 0, %s222
    %s239 = sphi 0, %s223
  $region4: #{time_adapter_forward.15} parent=0 // loop_header_branch
    %18 = sbr.rel (%p16) target = $region8
  $region5: #{time_adapter_forward.15} parent=0 // loop_body
    %s20 = ssub.s32 %s15, 1
    %s21 = ssub.s32 %s15, 2
    %s22 = sadd.s32 %s15, 1
    %s23 = ssub.s32 %s15, %s22
    %p24 = scmp.eq.s32.totalorder %s23, 0
    %s26 = sadd.s32 %s25, 1
    %s27 = scalar_select %p24, %s25, %s26
    %p30 = pneg %p24
    %p31 = scmp.eq.s32.totalorder %s15, 1
    %p32 = por %p30, %p31
    %p33 = scmp.ne.s32.totalorder %s25, %s28
    %p34 = scmp.eq.s32.totalorder %s15, 0
    %p35 = por %p33, %p34
    %p36 = scmp.ne.s32.totalorder %s25, %s28
    %p37 = scmp.eq.s32.totalorder %s20, 1
    %p38 = por %p36, %p37
    %p39 = scmp.ne.s32.totalorder %s28, %s29
    %p40 = scmp.eq.s32.totalorder %s20, 0
    %p41 = por %p39, %p40
    %p42 = scmp.ne.s32.totalorder %s28, %s29
    %p43 = scmp.eq.s32.totalorder %s21, 1
    %p44 = por %p42, %p43
    %p46 = scmp.ne.s32.totalorder %s29, %s45
    %p47 = scmp.eq.s32.totalorder %s21, 0
    %p48 = por %p46, %p47
    %s50 = sadd.s32 %s49, 1
    %p53 = scmp.eq.s32.totalorder %s15, 1
    %p54 = scmp.ne.s32.totalorder %s49, %s51
    %p55 = scmp.eq.s32.totalorder %s15, 0
    %p56 = por %p54, %p55
    %p57 = scmp.ne.s32.totalorder %s49, %s51
    %p58 = scmp.eq.s32.totalorder %s20, 1
    %p59 = por %p57, %p58
    %p60 = scmp.ne.s32.totalorder %s51, %s52
    %p61 = scmp.eq.s32.totalorder %s20, 0
    %p62 = por %p60, %p61
    %p63 = scmp.ne.s32.totalorder %s51, %s52
    %p64 = scmp.eq.s32.totalorder %s21, 1
    %p65 = por %p63, %p64
    %p67 = scmp.ne.s32.totalorder %s52, %s66
    %p68 = scmp.eq.s32.totalorder %s21, 0
    %p69 = por %p67, %p68
    %s71 = sadd.s32 %s70, 1
    %p74 = scmp.eq.s32.totalorder %s15, 1
    %p75 = scmp.ne.s32.totalorder %s70, %s72
    %p76 = scmp.eq.s32.totalorder %s15, 0
    %p77 = por %p75, %p76
    %p78 = scmp.ne.s32.totalorder %s70, %s72
    %p79 = scmp.eq.s32.totalorder %s20, 1
    %p80 = por %p78, %p79
    %p81 = scmp.ne.s32.totalorder %s72, %s73
    %p82 = scmp.eq.s32.totalorder %s20, 0
    %p83 = por %p81, %p82
    %p84 = scmp.ne.s32.totalorder %s72, %s73
    %p85 = scmp.eq.s32.totalorder %s21, 1
    %p86 = por %p84, %p85
    %p88 = scmp.ne.s32.totalorder %s73, %s87
    %p89 = scmp.eq.s32.totalorder %s21, 0
    %p90 = por %p88, %p89
    %s92 = sadd.s32 %s91, 1
    %p95 = scmp.eq.s32.totalorder %s15, 1
    %p96 = scmp.ne.s32.totalorder %s91, %s93
    %p97 = scmp.eq.s32.totalorder %s15, 0
    %p98 = por %p96, %p97
    %p99 = scmp.ne.s32.totalorder %s91, %s93
    %p100 = scmp.eq.s32.totalorder %s20, 1
    %p101 = por %p99, %p100
    %p102 = scmp.ne.s32.totalorder %s93, %s94
    %p103 = scmp.eq.s32.totalorder %s20, 0
    %p104 = por %p102, %p103
    %p105 = scmp.ne.s32.totalorder %s93, %s94
    %p106 = scmp.eq.s32.totalorder %s21, 1
    %p107 = por %p105, %p106
    %p109 = scmp.ne.s32.totalorder %s94, %s108
    %p110 = scmp.eq.s32.totalorder %s21, 0
    %p111 = por %p109, %p110
    %s113 = sadd.s32 %s112, 1
    %p116 = scmp.eq.s32.totalorder %s15, 1
    %p117 = scmp.ne.s32.totalorder %s112, %s114
    %p118 = scmp.eq.s32.totalorder %s15, 0
    %p119 = por %p117, %p118
    %p120 = scmp.ne.s32.totalorder %s112, %s114
    %p121 = scmp.eq.s32.totalorder %s20, 1
    %p122 = por %p120, %p121
    %p123 = scmp.ne.s32.totalorder %s114, %s115
    %p124 = scmp.eq.s32.totalorder %s20, 0
    %p125 = por %p123, %p124
    %p126 = scmp.ne.s32.totalorder %s114, %s115
    %p127 = scmp.eq.s32.totalorder %s21, 1
    %p128 = por %p126, %p127
    %p130 = scmp.ne.s32.totalorder %s115, %s129
    %p131 = scmp.eq.s32.totalorder %s21, 0
    %p132 = por %p130, %p131
    %s134 = sadd.s32 %s133, 1
    %p137 = scmp.eq.s32.totalorder %s15, 1
    %p138 = scmp.ne.s32.totalorder %s133, %s135
    %p139 = scmp.eq.s32.totalorder %s15, 0
    %p140 = por %p138, %p139
    %p141 = scmp.ne.s32.totalorder %s133, %s135
    %p142 = scmp.eq.s32.totalorder %s20, 1
    %p143 = por %p141, %p142
    %p144 = scmp.ne.s32.totalorder %s135, %s136
    %p145 = scmp.eq.s32.totalorder %s20, 0
    %p146 = por %p144, %p145
    %p147 = scmp.ne.s32.totalorder %s135, %s136
    %p148 = scmp.eq.s32.totalorder %s21, 1
    %p149 = por %p147, %p148
    %p151 = scmp.ne.s32.totalorder %s136, %s150
    %p152 = scmp.eq.s32.totalorder %s21, 0
    %p153 = por %p151, %p152
    %s155 = sadd.s32 %s154, 1
    %p158 = scmp.eq.s32.totalorder %s15, 1
    %p159 = scmp.ne.s32.totalorder %s154, %s156
    %p160 = scmp.eq.s32.totalorder %s15, 0
    %p161 = por %p159, %p160
    %p162 = scmp.ne.s32.totalorder %s154, %s156
    %p163 = scmp.eq.s32.totalorder %s20, 1
    %p164 = por %p162, %p163
    %p165 = scmp.ne.s32.totalorder %s156, %s157
    %p166 = scmp.eq.s32.totalorder %s20, 0
    %p167 = por %p165, %p166
    %p168 = scmp.ne.s32.totalorder %s156, %s157
    %p169 = scmp.eq.s32.totalorder %s21, 1
    %p170 = por %p168, %p169
    %p172 = scmp.ne.s32.totalorder %s157, %s171
    %p173 = scmp.eq.s32.totalorder %s21, 0
    %p174 = por %p172, %p173
    %s176 = sadd.s32 %s175, 1
    %p179 = scmp.eq.s32.totalorder %s15, 1
    %p180 = scmp.ne.s32.totalorder %s175, %s177
    %p181 = scmp.eq.s32.totalorder %s15, 0
    %p182 = por %p180, %p181
    %p183 = scmp.ne.s32.totalorder %s175, %s177
    %p184 = scmp.eq.s32.totalorder %s20, 1
    %p185 = por %p183, %p184
    %p186 = scmp.ne.s32.totalorder %s177, %s178
    %p187 = scmp.eq.s32.totalorder %s20, 0
    %p188 = por %p186, %p187
    %p189 = scmp.ne.s32.totalorder %s177, %s178
    %p190 = scmp.eq.s32.totalorder %s21, 1
    %p191 = por %p189, %p190
    %p193 = scmp.ne.s32.totalorder %s178, %s192
    %p194 = scmp.eq.s32.totalorder %s21, 0
    %p195 = por %p193, %p194
    %s197 = sadd.s32 %s196, 1
    %p200 = scmp.eq.s32.totalorder %s15, 1
    %p201 = scmp.ne.s32.totalorder %s196, %s198
    %p202 = scmp.eq.s32.totalorder %s15, 0
    %p203 = por %p201, %p202
    %p204 = scmp.ne.s32.totalorder %s196, %s198
    %p205 = scmp.eq.s32.totalorder %s20, 1
    %p206 = por %p204, %p205
    %p207 = scmp.ne.s32.totalorder %s198, %s199
    %p208 = scmp.eq.s32.totalorder %s20, 0
    %p209 = por %p207, %p208
    %p210 = scmp.ne.s32.totalorder %s198, %s199
    %p211 = scmp.eq.s32.totalorder %s21, 1
    %p212 = por %p210, %p211
    %p214 = scmp.ne.s32.totalorder %s199, %s213
    %p215 = scmp.eq.s32.totalorder %s21, 0
    %p216 = por %p214, %p215
    %s217 = ssub.s32 %s15, %s22
    %p218 = scmp.eq.s32.totalorder %s217, 0
    %s220 = sadd.s32 %s219, 1
    %s221 = scalar_select %p218, %s219, %s220
    %p224 = pneg %p218
    %p225 = scmp.eq.s32.totalorder %s15, 1
    %p226 = por %p224, %p225
    %p227 = scmp.ne.s32.totalorder %s219, %s222
    %p228 = scmp.eq.s32.totalorder %s15, 0
    %p229 = por %p227, %p228
    %p230 = scmp.ne.s32.totalorder %s219, %s222
    %p231 = scmp.eq.s32.totalorder %s20, 1
    %p232 = por %p230, %p231
    %p233 = scmp.ne.s32.totalorder %s222, %s223
    %p234 = scmp.eq.s32.totalorder %s20, 0
    %p235 = por %p233, %p234
    %p236 = scmp.ne.s32.totalorder %s222, %s223
    %p237 = scmp.eq.s32.totalorder %s21, 1
    %p238 = por %p236, %p237
    %p240 = scmp.ne.s32.totalorder %s223, %s239
    %p241 = scmp.eq.s32.totalorder %s21, 0
    %p242 = por %p240, %p241
    %p243 = scmp.le.s32.totalorder 1, %s15
    %p244 = scmp.lt.s32.totalorder %s15, 3
    %p245 = pnand %p243, %p244
    %p246 = pneg %p245
    // Predicated region
    $region9: #{time_adapter_forward.15} parent=5 // pred_check
      _
    $region10: #{time_adapter_forward.15} parent=5 // pred_check_branch
      %248 = sbr.rel (%p245) target = $region12
    $region11: #{time_adapter_forward.15} parent=5 // pred_region
      %s249 = ssub.s32 %s15, 1
      // Predicated region
      $region13: #{time_adapter_forward.15} parent=11 // pred_check
        %p250 = pneg %p62
      $region14: #{time_adapter_forward.15} parent=11 // pred_check_branch
        %252 = sbr.rel (%p250) target = $region16
      $region15: #{time_adapter_forward.15} parent=11 // pred_region
        _
      $region16: #{time_adapter_forward.15} parent=11 // pred_fallthru
        _
      // Predicated region
      $region17: #{time_adapter_forward.15} parent=11 // pred_check
        %p253 = pneg %p83
      $region18: #{time_adapter_forward.15} parent=11 // pred_check_branch
        %255 = sbr.rel (%p253) target = $region20
      $region19: #{time_adapter_forward.15} parent=11 // pred_region
        _
      $region20: #{time_adapter_forward.15} parent=11 // pred_fallthru
        _
      // Predicated region
      $region21: #{time_adapter_forward.15} parent=11 // pred_check
        %p256 = pneg %p104
      $region22: #{time_adapter_forward.15} parent=11 // pred_check_branch
        %258 = sbr.rel (%p256) target = $region24
      $region23: #{time_adapter_forward.15} parent=11 // pred_region
        _
      $region24: #{time_adapter_forward.15} parent=11 // pred_fallthru
        _
      // Predicated region
      $region25: #{time_adapter_forward.15} parent=11 // pred_check
        %p259 = pneg %p125
      $region26: #{time_adapter_forward.15} parent=11 // pred_check_branch
        %261 = sbr.rel (%p259) target = $region28
      $region27: #{time_adapter_forward.15} parent=11 // pred_region
        _
      $region28: #{time_adapter_forward.15} parent=11 // pred_fallthru
        _
      // Predicated region
      $region29: #{time_adapter_forward.15} parent=11 // pred_check
        %p262 = pneg %p146
      $region30: #{time_adapter_forward.15} parent=11 // pred_check_branch
        %264 = sbr.rel (%p262) target = $region32
      $region31: #{time_adapter_forward.15} parent=11 // pred_region
        _
      $region32: #{time_adapter_forward.15} parent=11 // pred_fallthru
        _
      // Predicated region
      $region33: #{time_adapter_forward.15} parent=11 // pred_check
        %p265 = pneg %p167
      $region34: #{time_adapter_forward.15} parent=11 // pred_check_branch
        %267 = sbr.rel (%p265) target = $region36
      $region35: #{time_adapter_forward.15} parent=11 // pred_region
        _
      $region36: #{time_adapter_forward.15} parent=11 // pred_fallthru
        _
      // Predicated region
      $region37: #{time_adapter_forward.15} parent=11 // pred_check
        %p268 = pneg %p188
      $region38: #{time_adapter_forward.15} parent=11 // pred_check_branch
        %270 = sbr.rel (%p268) target = $region40
      $region39: #{time_adapter_forward.15} parent=11 // pred_region
        _
      $region40: #{time_adapter_forward.15} parent=11 // pred_fallthru
        _
      // Predicated region
      $region41: #{time_adapter_forward.15} parent=11 // pred_check
        %p271 = pneg %p209
      $region42: #{time_adapter_forward.15} parent=11 // pred_check_branch
        %273 = sbr.rel (%p271) target = $region44
      $region43: #{time_adapter_forward.15} parent=11 // pred_region
        _
      $region44: #{time_adapter_forward.15} parent=11 // pred_fallthru
        _
    $region12: #{time_adapter_forward.15} parent=5 // pred_fallthru
      _
    %p274 = scmp.lt.s32.totalorder %s15, 2
    // Predicated region
    $region45: #{time_adapter_forward.15} parent=5 // pred_check
      %p275 = pneg %p274
    $region46: #{time_adapter_forward.15} parent=5 // pred_check_branch
      %277 = sbr.rel (%p275) target = $region48
    $region47: #{time_adapter_forward.15} parent=5 // pred_region
      // Predicated region
      $region49: #{time_adapter_forward.15} parent=47 // pred_check
        %p278 = pneg %p35
      $region50: #{time_adapter_forward.15} parent=47 // pred_check_branch
        %280 = sbr.rel (%p278) target = $region52
      $region51: #{time_adapter_forward.15} parent=47 // pred_region
        %p281 = scmp.lt.s32.totalorder %s15, 1
        %s282 = scalar_select %p281, %s15, 1
        %s283 = smul.addr %s282, 2
        %s284 = smul.addr %s283, 8
        %s285 = scalar_lea.vmem %s0, %s284
      $region52: #{time_adapter_forward.15} parent=47 // pred_fallthru
        _
    $region48: #{time_adapter_forward.15} parent=5 // pred_fallthru
      _
    %p286 = scmp.le.s32.totalorder 1, %s15
    %p287 = scmp.lt.s32.totalorder %s15, 3
    %p288 = pnand %p286, %p287
    %p289 = pneg %p288
    // Predicated region
    $region53: #{time_adapter_forward.15} parent=5 // pred_check
      _
    $region54: #{time_adapter_forward.15} parent=5 // pred_check_branch
      %291 = sbr.rel (%p288) target = $region56
    $region55: #{time_adapter_forward.15} parent=5 // pred_region
      %s292 = ssub.s32 %s15, 1
      %p293 = scmp.lt.s32.totalorder %s20, 1
      %s294 = scalar_select %p293, %s20, 1
      %s295 = smul.addr %s294, 2
      %s296 = smul.addr %s295, 8
      %s297 = scalar_lea.vmem %s0, %s296
      %p298 = pneg %p41
      %p299 = pneg %p38
      %p300 = pneg %p62
      %p301 = pneg %p59
      %p302 = pneg %p83
      %p303 = pneg %p80
      %p304 = pneg %p104
      %p305 = pneg %p101
      %p306 = pneg %p125
      %p307 = pneg %p122
      %p308 = pneg %p146
      %p309 = pneg %p143
      %p310 = pneg %p167
      %p311 = pneg %p164
      %p312 = pneg %p188
      %p313 = pneg %p185
      %p314 = pneg %p209
      %p315 = pneg %p206
      %p316 = pneg %p235
      %p317 = pneg %p232
      %p318 = scmp.lt.s32.totalorder %s20, 1
      %s319 = scalar_select %p318, %s20, 1
      %s320 = smul.addr %s319, 2
      %s321 = smul.addr %s320, 8
      %s322 = scalar_lea.vmem %s9, %s321
      %p323 = scmp.lt.s32.totalorder %s20, 1
      %s324 = scalar_select %p323, %s20, 1
      %s325 = smul.addr %s324, 2
      %s326 = smul.addr %s325, 8
      %s327 = scalar_lea.vmem %s0, %s326
      %p328 = scmp.lt.s32.totalorder %s20, 1
      %s329 = scalar_select %p328, %s20, 1
      %s330 = smul.addr %s329, 2
      %s331 = smul.addr %s330, 8
      %s332 = scalar_lea.vmem %s9, %s331
      %v334 = vld [vmem:[%s327] sm:$0xff]
      %v335 = vld [vmem:[%s327 + $0x8] sm:$0xff]
      %v336 = vld [vmem:[%s3] sm:$0xff]
      %v337 = vld [vmem:[%s4] sm:$0xf]
      %vm338 = vcmask 64512
      %v340 = vsel %vm338, %v337, 0
      %342 = vmatprep.subr.mxu0 0.0
      %343 = vmatpush1.msra.mxu0 0.0
      %344 = vmatprep.subr.mxu0 0.0
      %345 = vmatpush1.msra.mxu0 0.0
      %346 = vmatprep.subr.mxu0 0.0
      %347 = vmatpush1.msra.mxu0 0.0
      %348 = vmatprep.subr.mxu0 0.0
      %349 = vmatpush1.msra.mxu0 0.0
      %350 = vmatprep.subr.mxu0 0.0
      %351 = vmatpush1.msra.mxu0 0.0
      %352 = vmatprep.subr.mxu0 0.0
      %353 = vmatpush1.msra.mxu0 0.0
      %354 = vmatprep.subr.mxu0 0.0
      %355 = vmatpush1.msra.mxu0 0.0
      %356 = vmatprep.subr.mxu0 0.0
      %357 = vmatpush1.msra.mxu0 0.0
      %358 = vmatprep.subr.mxu0 0.0
      %359 = vmatpush1.msra.mxu0 0.0
      %360 = vmatprep.subr.mxu0 0.0
      %361 = vmatpush1.msra.mxu0 0.0
      %362 = vmatprep.subr.mxu0 0.0
      %363 = vmatpush1.msra.mxu0 0.0
      %364 = vmatprep.subr.mxu0 0.0
      %365 = vmatpush1.msra.mxu0 0.0
      %366 = vmatprep.subr.mxu0 0.0
      %367 = vmatpush1.msra.mxu0 0.0
      %368 = vmatprep.subr.mxu0 0.0
      %369 = vmatpush1.msra.mxu0 0.0
      %370 = vmatprep.subr.mxu0 0.0
      %371 = vmatpush1.msra.mxu0 0.0
      %372 = vmatprep.subr.mxu0 %v335
      %373 = vmatpush1.msra.mxu0 %v334
      %374 = vmatprep.subr.mxu0 0.0
      %375 = vmatpush2.msra.mxu0 0.0
      %376 = vmatprep.subr.mxu0 0.0
      %377 = vmatpush2.msra.mxu0 0.0
      %378 = vmatprep.subr.mxu0 0.0
      %379 = vmatpush2.msra.mxu0 0.0
      %380 = vmatprep.subr.mxu0 0.0
      %381 = vmatpush2.msra.mxu0 0.0
      %382 = vmatprep.subr.mxu0 0.0
      %383 = vmatpush2.msra.mxu0 0.0
      %384 = vmatprep.subr.mxu0 0.0
      %385 = vmatpush2.msra.mxu0 0.0
      %386 = vmatprep.subr.mxu0 0.0
      %387 = vmatpush2.msra.mxu0 0.0
      %388 = vmatprep.subr.mxu0 0.0
      %389 = vmatpush2.msra.mxu0 0.0
      %390 = vmatprep.subr.mxu0 0.0
      %391 = vmatpush2.msra.mxu0 0.0
      %392 = vmatprep.subr.mxu0 0.0
      %393 = vmatpush2.msra.mxu0 0.0
      %394 = vmatprep.subr.mxu0 0.0
      %395 = vmatpush2.msra.mxu0 0.0
      %396 = vmatprep.subr.mxu0 0.0
      %397 = vmatpush2.msra.mxu0 0.0
      %398 = vmatprep.subr.mxu0 0.0
      %399 = vmatpush2.msra.mxu0 0.0
      %400 = vmatprep.subr.mxu0 0.0
      %401 = vmatpush2.msra.mxu0 0.0
      %402 = vmatprep.subr.mxu0 0.0
      %403 = vmatpush2.msra.mxu0 0.0
      %404 = vmatprep.subr.mxu0 0.0
      %405 = vmatpush2.msra.mxu0 0.0
      %406 = vmatprep.mubr.f32.mxu0 0.0
      %407 = vmatmul.mubr.f32.gmra.mxu0 %v340
      %v408 = vpop.f32.mrf.mxu0
      %v409 = vadd.f32 0.0, %v408
      %v410 = vpop.f32.mrf.mxu0
      %v411 = vadd.f32 0.0, %v410
      %412 = vdwg.mxu0
      %vm413 = vcmask 1043456
      %v414 = vsel %vm413, %v409, 0.0
      %v415 = vsel %vm413, %v411, 0.0
      %v416 = vadd.f32 %v414, %v415
      %417 = vadd.xlane.f32.xlu0 %v416
      %v418 = vpop.xlane.xlu0 %417
      %v419 = vrcp.pop 512.0
      %v420 = vmul.f32 %v418, %v419
      %vm422 = vcmask 31744
      %v424 = vsel %vm422, %v336, 0
      %v426 = vsel %vm413, %v420, 0
      %428 = vmatprep.subr.mxu0 0.0
      %429 = vmatpush1.msra.mxu0 0.0
      %430 = vmatprep.subr.mxu0 0.0
      %431 = vmatpush1.msra.mxu0 0.0
      %432 = vmatprep.subr.mxu0 0.0
      %433 = vmatpush1.msra.mxu0 0.0
      %434 = vmatprep.subr.mxu0 0.0
      %435 = vmatpush1.msra.mxu0 0.0
      %436 = vmatprep.subr.mxu0 0.0
      %437 = vmatpush1.msra.mxu0 0.0
      %438 = vmatprep.subr.mxu0 0.0
      %439 = vmatpush1.msra.mxu0 0.0
      %440 = vmatprep.subr.mxu0 0.0
      %441 = vmatpush1.msra.mxu0 0.0
      %442 = vmatprep.subr.mxu0 0.0
      %443 = vmatpush1.msra.mxu0 0.0
      %444 = vmatprep.subr.mxu0 0.0
      %445 = vmatpush1.msra.mxu0 0.0
      %446 = vmatprep.subr.mxu0 0.0
      %447 = vmatpush1.msra.mxu0 0.0
      %448 = vmatprep.subr.mxu0 0.0
      %449 = vmatpush1.msra.mxu0 0.0
      %450 = vmatprep.subr.mxu0 0.0
      %451 = vmatpush1.msra.mxu0 0.0
      %452 = vmatprep.subr.mxu0 0.0
      %453 = vmatpush1.msra.mxu0 0.0
      %454 = vmatprep.subr.mxu0 0.0
      %455 = vmatpush1.msra.mxu0 0.0
      %456 = vmatprep.subr.mxu0 0.0
      %457 = vmatpush1.msra.mxu0 0.0
      %458 = vmatprep.subr.mxu0 %v426
      %459 = vmatpush1.msra.mxu0 %v426
      %460 = vmatprep.subr.mxu0 0.0
      %461 = vmatpush2.msra.mxu0 0.0
      %462 = vmatprep.subr.mxu0 0.0
      %463 = vmatpush2.msra.mxu0 0.0
      %464 = vmatprep.subr.mxu0 0.0
      %465 = vmatpush2.msra.mxu0 0.0
      %466 = vmatprep.subr.mxu0 0.0
      %467 = vmatpush2.msra.mxu0 0.0
      %468 = vmatprep.subr.mxu0 0.0
      %469 = vmatpush2.msra.mxu0 0.0
      %470 = vmatprep.subr.mxu0 0.0
      %471 = vmatpush2.msra.mxu0 0.0
      %472 = vmatprep.subr.mxu0 0.0
      %473 = vmatpush2.msra.mxu0 0.0
      %474 = vmatprep.subr.mxu0 0.0
      %475 = vmatpush2.msra.mxu0 0.0
      %476 = vmatprep.subr.mxu0 0.0
      %477 = vmatpush2.msra.mxu0 0.0
      %478 = vmatprep.subr.mxu0 0.0
      %479 = vmatpush2.msra.mxu0 0.0
      %480 = vmatprep.subr.mxu0 0.0
      %481 = vmatpush2.msra.mxu0 0.0
      %482 = vmatprep.subr.mxu0 0.0
      %483 = vmatpush2.msra.mxu0 0.0
      %484 = vmatprep.subr.mxu0 0.0
      %485 = vmatpush2.msra.mxu0 0.0
      %486 = vmatprep.subr.mxu0 0.0
      %487 = vmatpush2.msra.mxu0 0.0
      %488 = vmatprep.subr.mxu0 0.0
      %489 = vmatpush2.msra.mxu0 0.0
      %490 = vmatprep.subr.mxu0 0.0
      %491 = vmatpush2.msra.mxu0 0.0
      %492 = vmatprep.mubr.f32.mxu0 0.0
      %493 = vmatmul.mubr.f32.gmra.mxu0 %v424
      %v494 = vpop.f32.mrf.mxu0
      %v495 = vadd.f32 0.0, %v494
      %v496 = vpop.f32.mrf.mxu0
      %v497 = vadd.f32 0.0, %v496
      %498 = vdwg.mxu0
      %v499 = vsub.f32 %v334, %v495
      %v500 = vsub.f32 %v335, %v497
      %v501 = vmul.f32 %v499, %v499
      %v502 = vmul.f32 %v500, %v500
      %503 = vmatprep.subr.mxu0 0.0
      %504 = vmatpush1.msra.mxu0 0.0
      %505 = vmatprep.subr.mxu0 0.0
      %506 = vmatpush1.msra.mxu0 0.0
      %507 = vmatprep.subr.mxu0 0.0
      %508 = vmatpush1.msra.mxu0 0.0
      %509 = vmatprep.subr.mxu0 0.0
      %510 = vmatpush1.msra.mxu0 0.0
      %511 = vmatprep.subr.mxu0 0.0
      %512 = vmatpush1.msra.mxu0 0.0
      %513 = vmatprep.subr.mxu0 0.0
      %514 = vmatpush1.msra.mxu0 0.0
      %515 = vmatprep.subr.mxu0 0.0
      %516 = vmatpush1.msra.mxu0 0.0
      %517 = vmatprep.subr.mxu0 0.0
      %518 = vmatpush1.msra.mxu0 0.0
      %519 = vmatprep.subr.mxu0 0.0
      %520 = vmatpush1.msra.mxu0 0.0
      %521 = vmatprep.subr.mxu0 0.0
      %522 = vmatpush1.msra.mxu0 0.0
      %523 = vmatprep.subr.mxu0 0.0
      %524 = vmatpush1.msra.mxu0 0.0
      %525 = vmatprep.subr.mxu0 0.0
      %526 = vmatpush1.msra.mxu0 0.0
      %527 = vmatprep.subr.mxu0 0.0
      %528 = vmatpush1.msra.mxu0 0.0
      %529 = vmatprep.subr.mxu0 0.0
      %530 = vmatpush1.msra.mxu0 0.0
      %531 = vmatprep.subr.mxu0 0.0
      %532 = vmatpush1.msra.mxu0 0.0
      %533 = vmatprep.subr.mxu0 %v502
      %534 = vmatpush1.msra.mxu0 %v501
      %535 = vmatprep.subr.mxu0 0.0
      %536 = vmatpush2.msra.mxu0 0.0
      %537 = vmatprep.subr.mxu0 0.0
      %538 = vmatpush2.msra.mxu0 0.0
      %539 = vmatprep.subr.mxu0 0.0
      %540 = vmatpush2.msra.mxu0 0.0
      %541 = vmatprep.subr.mxu0 0.0
      %542 = vmatpush2.msra.mxu0 0.0
      %543 = vmatprep.subr.mxu0 0.0
      %544 = vmatpush2.msra.mxu0 0.0
      %545 = vmatprep.subr.mxu0 0.0
      %546 = vmatpush2.msra.mxu0 0.0
      %547 = vmatprep.subr.mxu0 0.0
      %548 = vmatpush2.msra.mxu0 0.0
      %549 = vmatprep.subr.mxu0 0.0
      %550 = vmatpush2.msra.mxu0 0.0
      %551 = vmatprep.subr.mxu0 0.0
      %552 = vmatpush2.msra.mxu0 0.0
      %553 = vmatprep.subr.mxu0 0.0
      %554 = vmatpush2.msra.mxu0 0.0
      %555 = vmatprep.subr.mxu0 0.0
      %556 = vmatpush2.msra.mxu0 0.0
      %557 = vmatprep.subr.mxu0 0.0
      %558 = vmatpush2.msra.mxu0 0.0
      %559 = vmatprep.subr.mxu0 0.0
      %560 = vmatpush2.msra.mxu0 0.0
      %561 = vmatprep.subr.mxu0 0.0
      %562 = vmatpush2.msra.mxu0 0.0
      %563 = vmatprep.subr.mxu0 0.0
      %564 = vmatpush2.msra.mxu0 0.0
      %565 = vmatprep.subr.mxu0 0.0
      %566 = vmatpush2.msra.mxu0 0.0
      %567 = vmatprep.mubr.f32.mxu0 0.0
      %568 = vmatmul.mubr.f32.gmra.mxu0 %v340
      %v569 = vpop.f32.mrf.mxu0
      %v570 = vadd.f32 0.0, %v569
      %v571 = vpop.f32.mrf.mxu0
      %v572 = vadd.f32 0.0, %v571
      %573 = vdwg.mxu0
      %v574 = vsel %vm413, %v570, 0.0
      %v575 = vsel %vm413, %v572, 0.0
      %v576 = vadd.f32 %v574, %v575
      %577 = vadd.xlane.f32.xlu0 %v576
      %v578 = vpop.xlane.xlu0 %577
      %v579 = vmul.f32 %v578, %v419
      %v580 = vadd.f32 %v579, 1e-05
      %v581 = vrsqrt.pop %v580
      %v583 = vsel %vm413, %v581, 0
      %585 = vmatprep.subr.mxu0 0.0
      %586 = vmatpush1.msra.mxu0 0.0
      %587 = vmatprep.subr.mxu0 0.0
      %588 = vmatpush1.msra.mxu0 0.0
      %589 = vmatprep.subr.mxu0 0.0
      %590 = vmatpush1.msra.mxu0 0.0
      %591 = vmatprep.subr.mxu0 0.0
      %592 = vmatpush1.msra.mxu0 0.0
      %593 = vmatprep.subr.mxu0 0.0
      %594 = vmatpush1.msra.mxu0 0.0
      %595 = vmatprep.subr.mxu0 0.0
      %596 = vmatpush1.msra.mxu0 0.0
      %597 = vmatprep.subr.mxu0 0.0
      %598 = vmatpush1.msra.mxu0 0.0
      %599 = vmatprep.subr.mxu0 0.0
      %600 = vmatpush1.msra.mxu0 0.0
      %601 = vmatprep.subr.mxu0 0.0
      %602 = vmatpush1.msra.mxu0 0.0
      %603 = vmatprep.subr.mxu0 0.0
      %604 = vmatpush1.msra.mxu0 0.0
      %605 = vmatprep.subr.mxu0 0.0
      %606 = vmatpush1.msra.mxu0 0.0
      %607 = vmatprep.subr.mxu0 0.0
      %608 = vmatpush1.msra.mxu0 0.0
      %609 = vmatprep.subr.mxu0 0.0
      %610 = vmatpush1.msra.mxu0 0.0
      %611 = vmatprep.subr.mxu0 0.0
      %612 = vmatpush1.msra.mxu0 0.0
      %613 = vmatprep.subr.mxu0 0.0
      %614 = vmatpush1.msra.mxu0 0.0
      %615 = vmatprep.subr.mxu0 %v583
      %616 = vmatpush1.msra.mxu0 %v583
      %617 = vmatprep.subr.mxu0 0.0
      %618 = vmatpush2.msra.mxu0 0.0
      %619 = vmatprep.subr.mxu0 0.0
      %620 = vmatpush2.msra.mxu0 0.0
      %621 = vmatprep.subr.mxu0 0.0
      %622 = vmatpush2.msra.mxu0 0.0
      %623 = vmatprep.subr.mxu0 0.0
      %624 = vmatpush2.msra.mxu0 0.0
      %625 = vmatprep.subr.mxu0 0.0
      %626 = vmatpush2.msra.mxu0 0.0
      %627 = vmatprep.subr.mxu0 0.0
      %628 = vmatpush2.msra.mxu0 0.0
      %629 = vmatprep.subr.mxu0 0.0
      %630 = vmatpush2.msra.mxu0 0.0
      %631 = vmatprep.subr.mxu0 0.0
      %632 = vmatpush2.msra.mxu0 0.0
      %633 = vmatprep.subr.mxu0 0.0
      %634 = vmatpush2.msra.mxu0 0.0
      %635 = vmatprep.subr.mxu0 0.0
      %636 = vmatpush2.msra.mxu0 0.0
      %637 = vmatprep.subr.mxu0 0.0
      %638 = vmatpush2.msra.mxu0 0.0
      %639 = vmatprep.subr.mxu0 0.0
      %640 = vmatpush2.msra.mxu0 0.0
      %641 = vmatprep.subr.mxu0 0.0
      %642 = vmatpush2.msra.mxu0 0.0
      %643 = vmatprep.subr.mxu0 0.0
      %644 = vmatpush2.msra.mxu0 0.0
      %645 = vmatprep.subr.mxu0 0.0
      %646 = vmatpush2.msra.mxu0 0.0
      %647 = vmatprep.subr.mxu0 0.0
      %648 = vmatpush2.msra.mxu0 0.0
      %649 = vmatprep.mubr.f32.mxu0 0.0
      %650 = vmatmul.mubr.f32.gmra.mxu0 %v424
      %v651 = vpop.f32.mrf.mxu0
      %v652 = vadd.f32 0.0, %v651
      %v653 = vpop.f32.mrf.mxu0
      %v654 = vadd.f32 0.0, %v653
      %655 = vdwg.mxu0
      %v656 = vmul.f32 %v499, %v652
      %v657 = vmul.f32 %v500, %v654
      %v658 = vld [vmem:[%s1] sm:$0xff]
      %660 = vset.pattern.permute.xlu0 0
      %661 = vperm.xlu0 %660, %v658
      %v662 = vpop.permute.xlu0 %661
      %v664 = vmul.f32 %v656, %v662
      %v665 = vmul.f32 %v657, %v662
      %v666 = vld [vmem:[%s2] sm:$0xff]
      %668 = vset.pattern.permute.xlu0 0
      %669 = vperm.xlu0 %668, %v666
      %v670 = vpop.permute.xlu0 %669
      %v672 = vadd.f32 %v664, %v670
      %v673 = vadd.f32 %v665, %v670
      %v674 = vxor.u32 %v672, 2147483648
      %v675 = vxor.u32 %v673, 2147483648
      %v676 = vmul.f32 %v674, 1.442695
      %v677 = vpow.pop %v676
      %v678 = vmul.f32 %v675, 1.442695
      %v679 = vpow.pop %v678
      %v680 = vadd.f32 %v677, 1.0
      %v681 = vadd.f32 %v679, 1.0
      %v682 = vrcp.pop %v680
      %v683 = vmul.f32 1.0, %v682
      %v684 = vrcp.pop %v681
      %v685 = vmul.f32 1.0, %v684
      %v686 = vmul.f32 %v672, %v683
      %v687 = vmul.f32 %v673, %v685
      %v688 = vld [vmem:[%s5] sm:$0xff]
      %v689 = vld [vmem:[%s5 + $0x8] sm:$0xff]
      %v690 = vld [vmem:[%s5 + $0x10] sm:$0xff]
      %v691 = vld [vmem:[%s5 + $0x18] sm:$0xff]
      %v692 = vld [vmem:[%s5 + $0x20] sm:$0xff]
      %v693 = vld [vmem:[%s5 + $0x28] sm:$0xff]
      %v694 = vld [vmem:[%s5 + $0x30] sm:$0xff]
      %v695 = vld [vmem:[%s5 + $0x38] sm:$0xff]
      %v696 = vld [vmem:[%s5 + $0x40] sm:$0xff]
      %v697 = vld [vmem:[%s5 + $0x48] sm:$0xff]
      %v698 = vld [vmem:[%s5 + $0x50] sm:$0xff]
      %v699 = vld [vmem:[%s5 + $0x58] sm:$0xff]
      %v700 = vld [vmem:[%s5 + $0x60] sm:$0xff]
      %v701 = vld [vmem:[%s5 + $0x68] sm:$0xff]
      %v702 = vld [vmem:[%s5 + $0x70] sm:$0xff]
      %v703 = vld [vmem:[%s5 + $0x78] sm:$0xff]
      %v704 = vld [vmem:[%s5 + $0x80] sm:$0xff]
      %v705 = vld [vmem:[%s5 + $0x88] sm:$0xff]
      %v706 = vld [vmem:[%s5 + $0x90] sm:$0xff]
      %v707 = vld [vmem:[%s5 + $0x98] sm:$0xff]
      %v708 = vld [vmem:[%s5 + $0xa0] sm:$0xff]
      %v709 = vld [vmem:[%s5 + $0xa8] sm:$0xff]
      %v710 = vld [vmem:[%s5 + $0xb0] sm:$0xff]
      %v711 = vld [vmem:[%s5 + $0xb8] sm:$0xff]
      %v712 = vld [vmem:[%s5 + $0xc0] sm:$0xff]
      %v713 = vld [vmem:[%s5 + $0xc8] sm:$0xff]
      %v714 = vld [vmem:[%s5 + $0xd0] sm:$0xff]
      %v715 = vld [vmem:[%s5 + $0xd8] sm:$0xff]
      %v716 = vld [vmem:[%s5 + $0xe0] sm:$0xff]
      %v717 = vld [vmem:[%s5 + $0xe8] sm:$0xff]
      %v718 = vld [vmem:[%s5 + $0xf0] sm:$0xff]
      %v719 = vld [vmem:[%s5 + $0xf8] sm:$0xff]
      %720 = vmatprep.subr.mxu0 0.0
      %721 = vmatpush1.msra.mxu0 %v703
      %722 = vmatprep.subr.mxu0 0.0
      %723 = vmatpush1.msra.mxu0 %v702
      %724 = vmatprep.subr.mxu0 0.0
      %725 = vmatpush1.msra.mxu0 %v701
      %726 = vmatprep.subr.mxu0 0.0
      %727 = vmatpush1.msra.mxu0 %v700
      %728 = vmatprep.subr.mxu0 0.0
      %729 = vmatpush1.msra.mxu0 %v699
      %730 = vmatprep.subr.mxu0 0.0
      %731 = vmatpush1.msra.mxu0 %v698
      %732 = vmatprep.subr.mxu0 0.0
      %733 = vmatpush1.msra.mxu0 %v697
      %734 = vmatprep.subr.mxu0 0.0
      %735 = vmatpush1.msra.mxu0 %v696
      %736 = vmatprep.subr.mxu0 0.0
      %737 = vmatpush1.msra.mxu0 %v695
      %738 = vmatprep.subr.mxu0 0.0
      %739 = vmatpush1.msra.mxu0 %v694
      %740 = vmatprep.subr.mxu0 0.0
      %741 = vmatpush1.msra.mxu0 %v693
      %742 = vmatprep.subr.mxu0 0.0
      %743 = vmatpush1.msra.mxu0 %v692
      %744 = vmatprep.subr.mxu0 0.0
      %745 = vmatpush1.msra.mxu0 %v691
      %746 = vmatprep.subr.mxu0 0.0
      %747 = vmatpush1.msra.mxu0 %v690
      %748 = vmatprep.subr.mxu0 0.0
      %749 = vmatpush1.msra.mxu0 %v689
      %750 = vmatprep.subr.mxu0 0.0
      %751 = vmatpush1.msra.mxu0 %v688
      %752 = vmatprep.subr.mxu0 0.0
      %753 = vmatpush2.msra.mxu0 %v719
      %754 = vmatprep.subr.mxu0 0.0
      %755 = vmatpush2.msra.mxu0 %v718
      %756 = vmatprep.subr.mxu0 0.0
      %757 = vmatpush2.msra.mxu0 %v717
      %758 = vmatprep.subr.mxu0 0.0
      %759 = vmatpush2.msra.mxu0 %v716
      %760 = vmatprep.subr.mxu0 0.0
      %761 = vmatpush2.msra.mxu0 %v715
      %762 = vmatprep.subr.mxu0 0.0
      %763 = vmatpush2.msra.mxu0 %v714
      %764 = vmatprep.subr.mxu0 0.0
      %765 = vmatpush2.msra.mxu0 %v713
      %766 = vmatprep.subr.mxu0 0.0
      %767 = vmatpush2.msra.mxu0 %v712
      %768 = vmatprep.subr.mxu0 0.0
      %769 = vmatpush2.msra.mxu0 %v711
      %770 = vmatprep.subr.mxu0 0.0
      %771 = vmatpush2.msra.mxu0 %v710
      %772 = vmatprep.subr.mxu0 0.0
      %773 = vmatpush2.msra.mxu0 %v709
      %774 = vmatprep.subr.mxu0 0.0
      %775 = vmatpush2.msra.mxu0 %v708
      %776 = vmatprep.subr.mxu0 0.0
      %777 = vmatpush2.msra.mxu0 %v707
      %778 = vmatprep.subr.mxu0 0.0
      %779 = vmatpush2.msra.mxu0 %v706
      %780 = vmatprep.subr.mxu0 0.0
      %781 = vmatpush2.msra.mxu0 %v705
      %782 = vmatprep.subr.mxu0 0.0
      %783 = vmatpush2.msra.mxu0 %v704
      %784 = vmatprep.mubr.f32.mxu0 %v687
      %785 = vmatmul.mubr.f32.gmra.mxu0 %v686
      %v786 = vpop.f32.mrf.mxu0
      %v787 = vadd.f32 0.0, %v786
      %v788 = vpop.f32.mrf.mxu0
      %789 = vdwg.mxu0
      %v790 = vld [vmem:[%s6] sm:$0xff]
      %v791 = vld [vmem:[%s6 + $0x8] sm:$0x1]
      %vm792 = vcmask 1048064
      %793 = vrot.lane.b32.xlu0 %v787, 64
      %v794 = vpop.permute.xlu0 %793
      %v795 = vsel %vm792, %v794, %v787
      %796 = vrot.lane.b32.xlu0 %v795, 64
      %v797 = vpop.permute.xlu0 %796
      %v798 = vsel %vm792, %v797, %v787
      %v799 = vlaneseq
      %v800 = vshrl.u32 %v799, 7
      %v801 = vsub.s32 0, %v800
      %v802 = vrot.slane %v790, %v801
      %804 = vrot.lane.b32.xlu0 %v802, 55
      %v805 = vpop.permute.xlu0 %804
      %v807 = vmul.f32 %v798, %v805
      %809 = vrot.lane.b32.xlu0 %v807, 73
      %v810 = vpop.permute.xlu0 %809
      %vm812 = vcmask 523264
      %813 = vst.msk [vmem:[#allocation2] sm:$0xff] %vm812, %v810
      %v814 = vlaneseq
      %v815 = vshrl.u32 %v814, 7
      %v816 = vsub.s32 1, %v815
      %v817 = vrot.slane %v790, %v816
      %819 = vrot.lane.b32.xlu0 %v817, 56
      %v820 = vpop.permute.xlu0 %819
      %v822 = vmul.f32 %v798, %v820
      %824 = vrot.lane.b32.xlu0 %v822, 72
      %v825 = vpop.permute.xlu0 %824
      %827 = vst.msk [vmem:[#allocation2 + $0x8] sm:$0xff] %vm812, %v825
      %v828 = vlaneseq
      %v829 = vshrl.u32 %v828, 7
      %v830 = vsub.s32 2, %v829
      %v831 = vrot.slane %v790, %v830
      %833 = vrot.lane.b32.xlu0 %v831, 57
      %v834 = vpop.permute.xlu0 %833
      %v836 = vmul.f32 %v798, %v834
      %838 = vrot.lane.b32.xlu0 %v836, 71
      %v839 = vpop.permute.xlu0 %838
      %841 = vst.msk [vmem:[#allocation2 + $0x10] sm:$0xff] %vm812, %v839
      %v842 = vlaneseq
      %v843 = vshrl.u32 %v842, 7
      %v844 = vsub.s32 3, %v843
      %v845 = vrot.slane %v790, %v844
      %847 = vrot.lane.b32.xlu0 %v845, 63
      %v848 = vpop.permute.xlu0 %847
      %v850 = vmul.f32 %v798, %v848
      %852 = vrot.lane.b32.xlu0 %v850, 65
      %v853 = vpop.permute.xlu0 %852
      %855 = vst.msk [vmem:[#allocation2 + $0x18] sm:$0xff] %vm812, %v853
      %v856 = vlaneseq
      %v857 = vshrl.u32 %v856, 7
      %v858 = vsub.s32 4, %v857
      %v859 = vrot.slane %v790, %v858
      %v860 = vmul.f32 %v787, %v859
      %861 = vst.msk [vmem:[#allocation2 + $0x20] sm:$0xff] %vm812, %v860
      %v862 = vlaneseq
      %v863 = vshrl.u32 %v862, 7
      %v864 = vsub.s32 5, %v863
      %v865 = vrot.slane %v790, %v864
      %867 = vrot.lane.b32.xlu0 %v865, 1
      %v868 = vpop.permute.xlu0 %867
      %v870 = vmul.f32 %v798, %v868
      %872 = vrot.lane.b32.xlu0 %v870, 127
      %v873 = vpop.permute.xlu0 %872
      %875 = vst.msk [vmem:[#allocation2 + $0x28] sm:$0xff] %vm812, %v873
      %v876 = vlaneseq
      %v877 = vshrl.u32 %v876, 7
      %v878 = vsub.s32 6, %v877
      %v879 = vrot.slane %v790, %v878
      %881 = vrot.lane.b32.xlu0 %v879, 7
      %v882 = vpop.permute.xlu0 %881
      %v884 = vmul.f32 %v798, %v882
      %886 = vrot.lane.b32.xlu0 %v884, 121
      %v887 = vpop.permute.xlu0 %886
      %889 = vst.msk [vmem:[#allocation2 + $0x30] sm:$0xff] %vm812, %v887
      %v890 = vlaneseq
      %v891 = vshrl.u32 %v890, 7
      %v892 = vsub.s32 7, %v891
      %v893 = vrot.slane %v790, %v892
      %895 = vrot.lane.b32.xlu0 %v893, 8
      %v896 = vpop.permute.xlu0 %895
      %v898 = vmul.f32 %v798, %v896
      %900 = vrot.lane.b32.xlu0 %v898, 120
      %v901 = vpop.permute.xlu0 %900
      %903 = vst.msk [vmem:[#allocation2 + $0x38] sm:$0xff] %vm812, %v901
      %v904 = vlaneseq
      %v905 = vshrl.u32 %v904, 7
      %v906 = vsub.s32 0, %v905
      %v907 = vrot.slane %v791, %v906
      %909 = vrot.lane.b32.xlu0 %v907, 9
      %v910 = vpop.permute.xlu0 %909
      %v912 = vmul.f32 %v798, %v910
      %914 = vrot.lane.b32.xlu0 %v912, 119
      %v915 = vpop.permute.xlu0 %914
      %917 = vst.msk [vmem:[#allocation2 + $0x40] sm:$0xff] %vm812, %v915
      %v918 = vld [vmem:[%s7] sm:$0xf]
      %v919 = vld [vmem:[%s7 + $0x4] sm:$0xf]
      %v920 = vld [vmem:[#allocation2] sm:$0xff]
      %v921 = vld [vmem:[#allocation2 + $0x8] sm:$0xff]
      %v922 = vld [vmem:[#allocation2 + $0x10] sm:$0xff]
      %v923 = vld [vmem:[#allocation2 + $0x18] sm:$0xff]
      %v924 = vld [vmem:[#allocation2 + $0x20] sm:$0xff]
      %v925 = vld [vmem:[#allocation2 + $0x28] sm:$0xff]
      %v926 = vld [vmem:[#allocation2 + $0x30] sm:$0xff]
      %v927 = vld [vmem:[#allocation2 + $0x38] sm:$0xff]
      %v928 = vld [vmem:[#allocation2 + $0x40] sm:$0xff]
      %v929 = vpack.c.bf16 %v921, %v920
      %v930 = vpack.c.bf16 %v923, %v922
      %v931 = vpack.c.bf16 %v925, %v924
      %v932 = vpack.c.bf16 %v927, %v926
      %v933 = vpack.c.bf16 %v928, %v928
      %v934 = vld [vmem:[%s8] sm:$0xff]
      %v935 = vld [vmem:[%s8 + $0x8] sm:$0xff]
      %937 = vset.pattern.permute.xlu0 0
      %938 = vperm.xlu0 %937, %v934
      %v939 = vpop.permute.xlu0 %938
      %942 = vset.pattern.permute.xlu0 0
      %943 = vperm.xlu0 %942, %v935
      %v944 = vpop.permute.xlu0 %943
      %v948 = vunpack.c.l.b16 %v918
      %v949 = vunpack.c.l.b16 %v919
      %v950 = vpack.c.b16 %v949, %v948
      %vm951 = vcmask 588800
      %v953 = vsel %vm951, %v950, 0
      %v956 = vsel %vm413, %v933, 0
      %958 = vmatprep.subr.bf16.mxu0 0
      %959 = vmatpush1.bf16.msra.mxu0 0
      %960 = vmatprep.subr.bf16.mxu0 0
      %961 = vmatpush1.bf16.msra.mxu0 0
      %962 = vmatprep.subr.bf16.mxu0 0
      %963 = vmatpush1.bf16.msra.mxu0 0
      %964 = vmatprep.subr.bf16.mxu0 0
      %965 = vmatpush1.bf16.msra.mxu0 %v956
      %966 = vmatprep.subr.bf16.mxu0 0
      %967 = vmatpush1.bf16.msra.mxu0 %v932
      %968 = vmatprep.subr.bf16.mxu0 0
      %969 = vmatpush1.bf16.msra.mxu0 %v931
      %970 = vmatprep.subr.bf16.mxu0 0
      %971 = vmatpush1.bf16.msra.mxu0 %v930
      %972 = vmatprep.subr.bf16.mxu0 0
      %973 = vmatpush1.bf16.msra.mxu0 %v929
      %974 = vmatprep.subr.bf16.mxu0 0
      %975 = vmatpush2.bf16.msra.mxu0 0
      %976 = vmatprep.subr.bf16.mxu0 0
      %977 = vmatpush2.bf16.msra.mxu0 0
      %978 = vmatprep.subr.bf16.mxu0 0
      %979 = vmatpush2.bf16.msra.mxu0 0
      %980 = vmatprep.subr.bf16.mxu0 0
      %981 = vmatpush2.bf16.msra.mxu0 0
      %982 = vmatprep.subr.bf16.mxu0 0
      %983 = vmatpush2.bf16.msra.mxu0 0
      %984 = vmatprep.subr.bf16.mxu0 0
      %985 = vmatpush2.bf16.msra.mxu0 0
      %986 = vmatprep.subr.bf16.mxu0 0
      %987 = vmatpush2.bf16.msra.mxu0 0
      %988 = vmatprep.subr.bf16.mxu0 0
      %989 = vmatpush2.bf16.msra.mxu0 0
      %990 = vmatprep.mubr.bf16.mxu0 0
      %991 = vmatmul.mubr.bf16.gmra.mxu0 %v953
      %v992 = vpop.f32.mrf.mxu0
      %v993 = vadd.f32 %v939, %v992
      %v994 = vpop.f32.mrf.mxu0
      %v995 = vpop.f32.mrf.mxu0
      %v996 = vadd.f32 %v944, %v995
      %v997 = vpop.f32.mrf.mxu0
      %998 = vdwg.mxu0
      %999 = vst.msk [vmem:[%s332] sm:$0xff] %vm812, %v993
      %1000 = vst.msk [vmem:[%s332 + $0x8] sm:$0xff] %vm812, %v996
      %p1001 = scmp.lt.s32.totalorder %s20, 1
      %s1002 = scalar_select %p1001, %s20, 1
      %s1003 = smul.addr %s1002, 2
      %s1004 = smul.addr %s1003, 8
      %s1005 = scalar_lea.vmem %s9, %s1004
      // Predicated region
      $region57: #{time_adapter_forward.15} parent=55 // pred_check
        %p1006 = pneg %p232
      $region58: #{time_adapter_forward.15} parent=55 // pred_check_branch
        %1008 = sbr.rel (%p1006) target = $region60
      $region59: #{time_adapter_forward.15} parent=55 // pred_region
        _
      $region60: #{time_adapter_forward.15} parent=55 // pred_fallthru
        _
    $region56: #{time_adapter_forward.15} parent=5 // pred_fallthru
      _
    %p1009 = scmp.le.s32.totalorder 2, %s15
    // Predicated region
    $region61: #{time_adapter_forward.15} parent=5 // pred_check
      %p1010 = pneg %p1009
    $region62: #{time_adapter_forward.15} parent=5 // pred_check_branch
      %1012 = sbr.rel (%p1010) target = $region64
    $region63: #{time_adapter_forward.15} parent=5 // pred_region
      %s1013 = ssub.s32 %s15, 2
      // Predicated region
      $region65: #{time_adapter_forward.15} parent=63 // pred_check
        %p1014 = pneg %p238
      $region66: #{time_adapter_forward.15} parent=63 // pred_check_branch
        %1016 = sbr.rel (%p1014) target = $region68
      $region67: #{time_adapter_forward.15} parent=63 // pred_region
        %p1017 = scmp.lt.s32.totalorder %s21, 1
        %s1018 = scalar_select %p1017, %s21, 1
        %s1019 = smul.addr %s1018, 2
        %s1020 = smul.addr %s1019, 8
        %s1021 = scalar_lea.vmem %s9, %s1020
      $region68: #{time_adapter_forward.15} parent=63 // pred_fallthru
        _
    $region64: #{time_adapter_forward.15} parent=5 // pred_fallthru
      _
  $region6: #{time_adapter_forward.15} parent=0 // loop_footer
    %s19 = sadd.s32 1, %s15
  $region7: #{time_adapter_forward.15} parent=0 // loop_footer_branch
    %14 = sbr.rel target = $region3
  $region8: #{time_adapter_forward.15} parent=0 // loop_exit
    _

// kernel: time_adapter_forward.17
$region0: #{time_adapter_forward.17}
  #allocation0 [shape = 'u32[]', space=smem, size = 0x4, offset = 0x4, fixed_abs, tag = 'smem constant byte address 0x4 - core index']
  #allocation1 [shape = 'u32[144,128]{1,0:T(1,128)}', space=vmem, size = 0x12000, scoped, tag = 'internal scratch']
  #allocation2 [shape = 'f32[72,64]{1,0:T(8,128)}', space=vmem, size = 0x9000, scoped, tag = 'scratch operand']
  %s0 = inlined_call_operand.vmem [shape: f32[2,8,256], index: 0, kind: input, shape index: {}]
  %s1 = inlined_call_operand.vmem [shape: f32[256,64], index: 1, kind: input, shape index: {}]
  %s2 = inlined_call_operand.vmem [shape: f32[9,64], index: 2, kind: input, shape index: {}]
  %s3 = inlined_call_operand.vmem [shape: bf16[16,72], index: 3, kind: input, shape index: {}]
  %s4 = inlined_call_operand.vmem [shape: f32[16,1], index: 4, kind: input, shape index: {}]
  %s5 = inlined_call_operand.vmem [shape: f32[2,16,64], index: 5, kind: input, shape index: {}]
  %s6 = inlined_call_operand.vmem [shape: f32[2,16,64], index: 6, kind: output, shape index: {}]
  %s7 = sld [smem:[#allocation0]]
  $region57: #{time_adapter_forward.17} parent=0
    _
  %s9 = ssub.s32 1, %s7
  %s10 = scalar_select 0, %s9, %s7
  loop: start=0, step=1, limit=4
  $region2: #{time_adapter_forward.17} parent=0 // loop_pre_header
    _
  $region3: #{time_adapter_forward.17} parent=0 // loop_header
    %s12 = sphi 0, %s16
    %p13 = scmp.ge.s32.totalorder %s12, 4
    %s22 = sphi 0, %s24
    %s25 = sphi 0, %s22
    %s26 = sphi 0, %s25
    %s42 = sphi 0, %s26
    %s46 = sphi 0, %s46
    %s48 = sphi 0, %s46
    %s49 = sphi 0, %s48
    %s63 = sphi 0, %s49
    %s67 = sphi 0, %s67
    %s69 = sphi 0, %s67
    %s70 = sphi 0, %s69
    %s84 = sphi 0, %s70
    %s88 = sphi 0, %s88
    %s90 = sphi 0, %s88
    %s91 = sphi 0, %s90
    %s105 = sphi 0, %s91
    %s109 = sphi 0, %s109
    %s111 = sphi 0, %s109
    %s112 = sphi 0, %s111
    %s126 = sphi 0, %s112
    %s132 = sphi 0, %s134
    %s135 = sphi 0, %s132
    %s136 = sphi 0, %s135
    %s152 = sphi 0, %s136
    %s158 = sphi 0, %s160
    %s161 = sphi 0, %s158
    %s162 = sphi 0, %s161
    %s178 = sphi 0, %s162
  $region4: #{time_adapter_forward.17} parent=0 // loop_header_branch
    %15 = sbr.rel (%p13) target = $region8
  $region5: #{time_adapter_forward.17} parent=0 // loop_body
    %s17 = ssub.s32 %s12, 1
    %s18 = ssub.s32 %s12, 2
    %s19 = sadd.s32 %s12, 1
    %s20 = ssub.s32 %s12, %s19
    %p21 = scmp.eq.s32.totalorder %s20, 0
    %s23 = sadd.s32 %s22, 1
    %s24 = scalar_select %p21, %s22, %s23
    %p27 = pneg %p21
    %p28 = scmp.eq.s32.totalorder %s12, 1
    %p29 = por %p27, %p28
    %p30 = scmp.ne.s32.totalorder %s22, %s25
    %p31 = scmp.eq.s32.totalorder %s12, 0
    %p32 = por %p30, %p31
    %p33 = scmp.ne.s32.totalorder %s22, %s25
    %p34 = scmp.eq.s32.totalorder %s17, 1
    %p35 = por %p33, %p34
    %p36 = scmp.ne.s32.totalorder %s25, %s26
    %p37 = scmp.eq.s32.totalorder %s17, 0
    %p38 = por %p36, %p37
    %p39 = scmp.ne.s32.totalorder %s25, %s26
    %p40 = scmp.eq.s32.totalorder %s18, 1
    %p41 = por %p39, %p40
    %p43 = scmp.ne.s32.totalorder %s26, %s42
    %p44 = scmp.eq.s32.totalorder %s18, 0
    %p45 = por %p43, %p44
    %s47 = sadd.s32 %s46, 1
    %p50 = scmp.eq.s32.totalorder %s12, 1
    %p51 = scmp.ne.s32.totalorder %s46, %s48
    %p52 = scmp.eq.s32.totalorder %s12, 0
    %p53 = por %p51, %p52
    %p54 = scmp.ne.s32.totalorder %s46, %s48
    %p55 = scmp.eq.s32.totalorder %s17, 1
    %p56 = por %p54, %p55
    %p57 = scmp.ne.s32.totalorder %s48, %s49
    %p58 = scmp.eq.s32.totalorder %s17, 0
    %p59 = por %p57, %p58
    %p60 = scmp.ne.s32.totalorder %s48, %s49
    %p61 = scmp.eq.s32.totalorder %s18, 1
    %p62 = por %p60, %p61
    %p64 = scmp.ne.s32.totalorder %s49, %s63
    %p65 = scmp.eq.s32.totalorder %s18, 0
    %p66 = por %p64, %p65
    %s68 = sadd.s32 %s67, 1
    %p71 = scmp.eq.s32.totalorder %s12, 1
    %p72 = scmp.ne.s32.totalorder %s67, %s69
    %p73 = scmp.eq.s32.totalorder %s12, 0
    %p74 = por %p72, %p73
    %p75 = scmp.ne.s32.totalorder %s67, %s69
    %p76 = scmp.eq.s32.totalorder %s17, 1
    %p77 = por %p75, %p76
    %p78 = scmp.ne.s32.totalorder %s69, %s70
    %p79 = scmp.eq.s32.totalorder %s17, 0
    %p80 = por %p78, %p79
    %p81 = scmp.ne.s32.totalorder %s69, %s70
    %p82 = scmp.eq.s32.totalorder %s18, 1
    %p83 = por %p81, %p82
    %p85 = scmp.ne.s32.totalorder %s70, %s84
    %p86 = scmp.eq.s32.totalorder %s18, 0
    %p87 = por %p85, %p86
    %s89 = sadd.s32 %s88, 1
    %p92 = scmp.eq.s32.totalorder %s12, 1
    %p93 = scmp.ne.s32.totalorder %s88, %s90
    %p94 = scmp.eq.s32.totalorder %s12, 0
    %p95 = por %p93, %p94
    %p96 = scmp.ne.s32.totalorder %s88, %s90
    %p97 = scmp.eq.s32.totalorder %s17, 1
    %p98 = por %p96, %p97
    %p99 = scmp.ne.s32.totalorder %s90, %s91
    %p100 = scmp.eq.s32.totalorder %s17, 0
    %p101 = por %p99, %p100
    %p102 = scmp.ne.s32.totalorder %s90, %s91
    %p103 = scmp.eq.s32.totalorder %s18, 1
    %p104 = por %p102, %p103
    %p106 = scmp.ne.s32.totalorder %s91, %s105
    %p107 = scmp.eq.s32.totalorder %s18, 0
    %p108 = por %p106, %p107
    %s110 = sadd.s32 %s109, 1
    %p113 = scmp.eq.s32.totalorder %s12, 1
    %p114 = scmp.ne.s32.totalorder %s109, %s111
    %p115 = scmp.eq.s32.totalorder %s12, 0
    %p116 = por %p114, %p115
    %p117 = scmp.ne.s32.totalorder %s109, %s111
    %p118 = scmp.eq.s32.totalorder %s17, 1
    %p119 = por %p117, %p118
    %p120 = scmp.ne.s32.totalorder %s111, %s112
    %p121 = scmp.eq.s32.totalorder %s17, 0
    %p122 = por %p120, %p121
    %p123 = scmp.ne.s32.totalorder %s111, %s112
    %p124 = scmp.eq.s32.totalorder %s18, 1
    %p125 = por %p123, %p124
    %p127 = scmp.ne.s32.totalorder %s112, %s126
    %p128 = scmp.eq.s32.totalorder %s18, 0
    %p129 = por %p127, %p128
    %s130 = ssub.s32 %s12, %s19
    %p131 = scmp.eq.s32.totalorder %s130, 0
    %s133 = sadd.s32 %s132, 1
    %s134 = scalar_select %p131, %s132, %s133
    %p137 = pneg %p131
    %p138 = scmp.eq.s32.totalorder %s12, 1
    %p139 = por %p137, %p138
    %p140 = scmp.ne.s32.totalorder %s132, %s135
    %p141 = scmp.eq.s32.totalorder %s12, 0
    %p142 = por %p140, %p141
    %p143 = scmp.ne.s32.totalorder %s132, %s135
    %p144 = scmp.eq.s32.totalorder %s17, 1
    %p145 = por %p143, %p144
    %p146 = scmp.ne.s32.totalorder %s135, %s136
    %p147 = scmp.eq.s32.totalorder %s17, 0
    %p148 = por %p146, %p147
    %p149 = scmp.ne.s32.totalorder %s135, %s136
    %p150 = scmp.eq.s32.totalorder %s18, 1
    %p151 = por %p149, %p150
    %p153 = scmp.ne.s32.totalorder %s136, %s152
    %p154 = scmp.eq.s32.totalorder %s18, 0
    %p155 = por %p153, %p154
    %s156 = ssub.s32 %s12, %s19
    %p157 = scmp.eq.s32.totalorder %s156, 0
    %s159 = sadd.s32 %s158, 1
    %s160 = scalar_select %p157, %s158, %s159
    %p163 = pneg %p157
    %p164 = scmp.eq.s32.totalorder %s12, 1
    %p165 = por %p163, %p164
    %p166 = scmp.ne.s32.totalorder %s158, %s161
    %p167 = scmp.eq.s32.totalorder %s12, 0
    %p168 = por %p166, %p167
    %p169 = scmp.ne.s32.totalorder %s158, %s161
    %p170 = scmp.eq.s32.totalorder %s17, 1
    %p171 = por %p169, %p170
    %p172 = scmp.ne.s32.totalorder %s161, %s162
    %p173 = scmp.eq.s32.totalorder %s17, 0
    %p174 = por %p172, %p173
    %p175 = scmp.ne.s32.totalorder %s161, %s162
    %p176 = scmp.eq.s32.totalorder %s18, 1
    %p177 = por %p175, %p176
    %p179 = scmp.ne.s32.totalorder %s162, %s178
    %p180 = scmp.eq.s32.totalorder %s18, 0
    %p181 = por %p179, %p180
    %p182 = scmp.le.s32.totalorder 1, %s12
    %p183 = scmp.lt.s32.totalorder %s12, 3
    %p184 = pnand %p182, %p183
    %p185 = pneg %p184
    // Predicated region
    $region9: #{time_adapter_forward.17} parent=5 // pred_check
      _
    $region10: #{time_adapter_forward.17} parent=5 // pred_check_branch
      %187 = sbr.rel (%p184) target = $region12
    $region11: #{time_adapter_forward.17} parent=5 // pred_region
      %s188 = ssub.s32 %s12, 1
      // Predicated region
      $region13: #{time_adapter_forward.17} parent=11 // pred_check
        %p189 = pneg %p59
      $region14: #{time_adapter_forward.17} parent=11 // pred_check_branch
        %191 = sbr.rel (%p189) target = $region16
      $region15: #{time_adapter_forward.17} parent=11 // pred_region
        _
      $region16: #{time_adapter_forward.17} parent=11 // pred_fallthru
        _
      // Predicated region
      $region17: #{time_adapter_forward.17} parent=11 // pred_check
        %p192 = pneg %p80
      $region18: #{time_adapter_forward.17} parent=11 // pred_check_branch
        %194 = sbr.rel (%p192) target = $region20
      $region19: #{time_adapter_forward.17} parent=11 // pred_region
        _
      $region20: #{time_adapter_forward.17} parent=11 // pred_fallthru
        _
      // Predicated region
      $region21: #{time_adapter_forward.17} parent=11 // pred_check
        %p195 = pneg %p101
      $region22: #{time_adapter_forward.17} parent=11 // pred_check_branch
        %197 = sbr.rel (%p195) target = $region24
      $region23: #{time_adapter_forward.17} parent=11 // pred_region
        _
      $region24: #{time_adapter_forward.17} parent=11 // pred_fallthru
        _
      // Predicated region
      $region25: #{time_adapter_forward.17} parent=11 // pred_check
        %p198 = pneg %p122
      $region26: #{time_adapter_forward.17} parent=11 // pred_check_branch
        %200 = sbr.rel (%p198) target = $region28
      $region27: #{time_adapter_forward.17} parent=11 // pred_region
        _
      $region28: #{time_adapter_forward.17} parent=11 // pred_fallthru
        _
    $region12: #{time_adapter_forward.17} parent=5 // pred_fallthru
      _
    %p201 = scmp.lt.s32.totalorder %s12, 2
    // Predicated region
    $region29: #{time_adapter_forward.17} parent=5 // pred_check
      %p202 = pneg %p201
    $region30: #{time_adapter_forward.17} parent=5 // pred_check_branch
      %204 = sbr.rel (%p202) target = $region32
    $region31: #{time_adapter_forward.17} parent=5 // pred_region
      // Predicated region
      $region33: #{time_adapter_forward.17} parent=31 // pred_check
        %p205 = pneg %p32
      $region34: #{time_adapter_forward.17} parent=31 // pred_check_branch
        %207 = sbr.rel (%p205) target = $region36
      $region35: #{time_adapter_forward.17} parent=31 // pred_region
        %p208 = scmp.lt.s32.totalorder %s12, 1
        %s209 = scalar_select %p208, %s12, 1
        %s210 = smul.addr %s209, 2
        %s211 = smul.addr %s210, 8
        %s212 = scalar_lea.vmem %s0, %s211
      $region36: #{time_adapter_forward.17} parent=31 // pred_fallthru
        _
      // Predicated region
      $region37: #{time_adapter_forward.17} parent=31 // pred_check
        %p213 = pneg %p142
      $region38: #{time_adapter_forward.17} parent=31 // pred_check_branch
        %215 = sbr.rel (%p213) target = $region40
      $region39: #{time_adapter_forward.17} parent=31 // pred_region
        %p216 = scmp.lt.s32.totalorder %s12, 1
        %s217 = scalar_select %p216, %s12, 1
        %s218 = smul.addr %s217, 2
        %s219 = smul.addr %s218, 8
        %s220 = scalar_lea.vmem %s5, %s219
      $region40: #{time_adapter_forward.17} parent=31 // pred_fallthru
        _
    $region32: #{time_adapter_forward.17} parent=5 // pred_fallthru
      _
    %p221 = scmp.le.s32.totalorder 1, %s12
    %p222 = scmp.lt.s32.totalorder %s12, 3
    %p223 = pnand %p221, %p222
    %p224 = pneg %p223
    // Predicated region
    $region41: #{time_adapter_forward.17} parent=5 // pred_check
      _
    $region42: #{time_adapter_forward.17} parent=5 // pred_check_branch
      %226 = sbr.rel (%p223) target = $region44
    $region43: #{time_adapter_forward.17} parent=5 // pred_region
      %s227 = ssub.s32 %s12, 1
      %p228 = scmp.lt.s32.totalorder %s17, 1
      %s229 = scalar_select %p228, %s17, 1
      %s230 = smul.addr %s229, 2
      %s231 = smul.addr %s230, 8
      %s232 = scalar_lea.vmem %s0, %s231
      %p233 = pneg %p38
      %p234 = pneg %p35
      %p235 = pneg %p59
      %p236 = pneg %p56
      %p237 = pneg %p80
      %p238 = pneg %p77
      %p239 = pneg %p101
      %p240 = pneg %p98
      %p241 = pneg %p122
      %p242 = pneg %p119
      %p243 = scmp.lt.s32.totalorder %s17, 1
      %s244 = scalar_select %p243, %s17, 1
      %s245 = smul.addr %s244, 2
      %s246 = smul.addr %s245, 8
      %s247 = scalar_lea.vmem %s5, %s246
      %p248 = pneg %p148
      %p249 = pneg %p145
      %p250 = pneg %p174
      %p251 = pneg %p171
      %p252 = scmp.lt.s32.totalorder %s17, 1
      %s253 = scalar_select %p252, %s17, 1
      %s254 = smul.addr %s253, 2
      %s255 = smul.addr %s254, 8
      %s256 = scalar_lea.vmem %s6, %s255
      %p257 = scmp.lt.s32.totalorder %s17, 1
      %s258 = scalar_select %p257, %s17, 1
      %s259 = smul.addr %s258, 2
      %s260 = smul.addr %s259, 8
      %s261 = scalar_lea.vmem %s0, %s260
      %p262 = scmp.lt.s32.totalorder %s17, 1
      %s263 = scalar_select %p262, %s17, 1
      %s264 = smul.addr %s263, 2
      %s265 = smul.addr %s264, 8
      %s266 = scalar_lea.vmem %s5, %s265
      %p267 = scmp.lt.s32.totalorder %s17, 1
      %s268 = scalar_select %p267, %s17, 1
      %s269 = smul.addr %s268, 2
      %s270 = smul.addr %s269, 8
      %s271 = scalar_lea.vmem %s6, %s270
      %v273 = vld [vmem:[%s261] sm:$0xff]
      %v274 = vld [vmem:[%s261 + $0x8] sm:$0xff]
      %v275 = vld [vmem:[%s1] sm:$0xff]
      %v276 = vld [vmem:[%s1 + $0x8] sm:$0xff]
      %v277 = vld [vmem:[%s1 + $0x10] sm:$0xff]
      %v278 = vld [vmem:[%s1 + $0x18] sm:$0xff]
      %v279 = vld [vmem:[%s1 + $0x20] sm:$0xff]
      %v280 = vld [vmem:[%s1 + $0x28] sm:$0xff]
      %v281 = vld [vmem:[%s1 + $0x30] sm:$0xff]
      %v282 = vld [vmem:[%s1 + $0x38] sm:$0xff]
      %v283 = vld [vmem:[%s1 + $0x40] sm:$0xff]
      %v284 = vld [vmem:[%s1 + $0x48] sm:$0xff]
      %v285 = vld [vmem:[%s1 + $0x50] sm:$0xff]
      %v286 = vld [vmem:[%s1 + $0x58] sm:$0xff]
      %v287 = vld [vmem:[%s1 + $0x60] sm:$0xff]
      %v288 = vld [vmem:[%s1 + $0x68] sm:$0xff]
      %v289 = vld [vmem:[%s1 + $0x70] sm:$0xff]
      %v290 = vld [vmem:[%s1 + $0x78] sm:$0xff]
      %v291 = vld [vmem:[%s1 + $0x80] sm:$0xff]
      %v292 = vld [vmem:[%s1 + $0x88] sm:$0xff]
      %v293 = vld [vmem:[%s1 + $0x90] sm:$0xff]
      %v294 = vld [vmem:[%s1 + $0x98] sm:$0xff]
      %v295 = vld [vmem:[%s1 + $0xa0] sm:$0xff]
      %v296 = vld [vmem:[%s1 + $0xa8] sm:$0xff]
      %v297 = vld [vmem:[%s1 + $0xb0] sm:$0xff]
      %v298 = vld [vmem:[%s1 + $0xb8] sm:$0xff]
      %v299 = vld [vmem:[%s1 + $0xc0] sm:$0xff]
      %v300 = vld [vmem:[%s1 + $0xc8] sm:$0xff]
      %v301 = vld [vmem:[%s1 + $0xd0] sm:$0xff]
      %v302 = vld [vmem:[%s1 + $0xd8] sm:$0xff]
      %v303 = vld [vmem:[%s1 + $0xe0] sm:$0xff]
      %v304 = vld [vmem:[%s1 + $0xe8] sm:$0xff]
      %v305 = vld [vmem:[%s1 + $0xf0] sm:$0xff]
      %v306 = vld [vmem:[%s1 + $0xf8] sm:$0xff]
      %307 = vmatprep.subr.mxu0 0.0
      %308 = vmatpush1.msra.mxu0 %v290
      %309 = vmatprep.subr.mxu0 0.0
      %310 = vmatpush1.msra.mxu0 %v289
      %311 = vmatprep.subr.mxu0 0.0
      %312 = vmatpush1.msra.mxu0 %v288
      %313 = vmatprep.subr.mxu0 0.0
      %314 = vmatpush1.msra.mxu0 %v287
      %315 = vmatprep.subr.mxu0 0.0
      %316 = vmatpush1.msra.mxu0 %v286
      %317 = vmatprep.subr.mxu0 0.0
      %318 = vmatpush1.msra.mxu0 %v285
      %319 = vmatprep.subr.mxu0 0.0
      %320 = vmatpush1.msra.mxu0 %v284
      %321 = vmatprep.subr.mxu0 0.0
      %322 = vmatpush1.msra.mxu0 %v283
      %323 = vmatprep.subr.mxu0 0.0
      %324 = vmatpush1.msra.mxu0 %v282
      %325 = vmatprep.subr.mxu0 0.0
      %326 = vmatpush1.msra.mxu0 %v281
      %327 = vmatprep.subr.mxu0 0.0
      %328 = vmatpush1.msra.mxu0 %v280
      %329 = vmatprep.subr.mxu0 0.0
      %330 = vmatpush1.msra.mxu0 %v279
      %331 = vmatprep.subr.mxu0 0.0
      %332 = vmatpush1.msra.mxu0 %v278
      %333 = vmatprep.subr.mxu0 0.0
      %334 = vmatpush1.msra.mxu0 %v277
      %335 = vmatprep.subr.mxu0 0.0
      %336 = vmatpush1.msra.mxu0 %v276
      %337 = vmatprep.subr.mxu0 0.0
      %338 = vmatpush1.msra.mxu0 %v275
      %339 = vmatprep.subr.mxu0 0.0
      %340 = vmatpush2.msra.mxu0 %v306
      %341 = vmatprep.subr.mxu0 0.0
      %342 = vmatpush2.msra.mxu0 %v305
      %343 = vmatprep.subr.mxu0 0.0
      %344 = vmatpush2.msra.mxu0 %v304
      %345 = vmatprep.subr.mxu0 0.0
      %346 = vmatpush2.msra.mxu0 %v303
      %347 = vmatprep.subr.mxu0 0.0
      %348 = vmatpush2.msra.mxu0 %v302
      %349 = vmatprep.subr.mxu0 0.0
      %350 = vmatpush2.msra.mxu0 %v301
      %351 = vmatprep.subr.mxu0 0.0
      %352 = vmatpush2.msra.mxu0 %v300
      %353 = vmatprep.subr.mxu0 0.0
      %354 = vmatpush2.msra.mxu0 %v299
      %355 = vmatprep.subr.mxu0 0.0
      %356 = vmatpush2.msra.mxu0 %v298
      %357 = vmatprep.subr.mxu0 0.0
      %358 = vmatpush2.msra.mxu0 %v297
      %359 = vmatprep.subr.mxu0 0.0
      %360 = vmatpush2.msra.mxu0 %v296
      %361 = vmatprep.subr.mxu0 0.0
      %362 = vmatpush2.msra.mxu0 %v295
      %363 = vmatprep.subr.mxu0 0.0
      %364 = vmatpush2.msra.mxu0 %v294
      %365 = vmatprep.subr.mxu0 0.0
      %366 = vmatpush2.msra.mxu0 %v293
      %367 = vmatprep.subr.mxu0 0.0
      %368 = vmatpush2.msra.mxu0 %v292
      %369 = vmatprep.subr.mxu0 0.0
      %370 = vmatpush2.msra.mxu0 %v291
      %371 = vmatprep.mubr.f32.mxu0 %v274
      %372 = vmatmul.mubr.f32.gmra.mxu0 %v273
      %v373 = vpop.f32.mrf.mxu0
      %v374 = vadd.f32 0.0, %v373
      %v375 = vpop.f32.mrf.mxu0
      %376 = vdwg.mxu0
      %v377 = vld [vmem:[%s2] sm:$0xff]
      %v378 = vld [vmem:[%s2 + $0x8] sm:$0x1]
      %vm379 = vcmask 1048064
      %380 = vrot.lane.b32.xlu0 %v374, 64
      %v381 = vpop.permute.xlu0 %380
      %v382 = vsel %vm379, %v381, %v374
      %383 = vrot.lane.b32.xlu0 %v382, 64
      %v384 = vpop.permute.xlu0 %383
      %v385 = vsel %vm379, %v384, %v374
      %v386 = vlaneseq
      %v387 = vshrl.u32 %v386, 7
      %v388 = vsub.s32 0, %v387
      %v389 = vrot.slane %v377, %v388
      %391 = vrot.lane.b32.xlu0 %v389, 55
      %v392 = vpop.permute.xlu0 %391
      %v394 = vmul.f32 %v385, %v392
      %396 = vrot.lane.b32.xlu0 %v394, 73
      %v397 = vpop.permute.xlu0 %396
      %vm399 = vcmask 523264
      %400 = vst.msk [vmem:[#allocation2] sm:$0xff] %vm399, %v397
      %v401 = vlaneseq
      %v402 = vshrl.u32 %v401, 7
      %v403 = vsub.s32 1, %v402
      %v404 = vrot.slane %v377, %v403
      %406 = vrot.lane.b32.xlu0 %v404, 56
      %v407 = vpop.permute.xlu0 %406
      %v409 = vmul.f32 %v385, %v407
      %411 = vrot.lane.b32.xlu0 %v409, 72
      %v412 = vpop.permute.xlu0 %411
      %414 = vst.msk [vmem:[#allocation2 + $0x8] sm:$0xff] %vm399, %v412
      %v415 = vlaneseq
      %v416 = vshrl.u32 %v415, 7
      %v417 = vsub.s32 2, %v416
      %v418 = vrot.slane %v377, %v417
      %420 = vrot.lane.b32.xlu0 %v418, 57
      %v421 = vpop.permute.xlu0 %420
      %v423 = vmul.f32 %v385, %v421
      %425 = vrot.lane.b32.xlu0 %v423, 71
      %v426 = vpop.permute.xlu0 %425
      %428 = vst.msk [vmem:[#allocation2 + $0x10] sm:$0xff] %vm399, %v426
      %v429 = vlaneseq
      %v430 = vshrl.u32 %v429, 7
      %v431 = vsub.s32 3, %v430
      %v432 = vrot.slane %v377, %v431
      %434 = vrot.lane.b32.xlu0 %v432, 63
      %v435 = vpop.permute.xlu0 %434
      %v437 = vmul.f32 %v385, %v435
      %439 = vrot.lane.b32.xlu0 %v437, 65
      %v440 = vpop.permute.xlu0 %439
      %442 = vst.msk [vmem:[#allocation2 + $0x18] sm:$0xff] %vm399, %v440
      %v443 = vlaneseq
      %v444 = vshrl.u32 %v443, 7
      %v445 = vsub.s32 4, %v444
      %v446 = vrot.slane %v377, %v445
      %v447 = vmul.f32 %v374, %v446
      %448 = vst.msk [vmem:[#allocation2 + $0x20] sm:$0xff] %vm399, %v447
      %v449 = vlaneseq
      %v450 = vshrl.u32 %v449, 7
      %v451 = vsub.s32 5, %v450
      %v452 = vrot.slane %v377, %v451
      %454 = vrot.lane.b32.xlu0 %v452, 1
      %v455 = vpop.permute.xlu0 %454
      %v457 = vmul.f32 %v385, %v455
      %459 = vrot.lane.b32.xlu0 %v457, 127
      %v460 = vpop.permute.xlu0 %459
      %462 = vst.msk [vmem:[#allocation2 + $0x28] sm:$0xff] %vm399, %v460
      %v463 = vlaneseq
      %v464 = vshrl.u32 %v463, 7
      %v465 = vsub.s32 6, %v464
      %v466 = vrot.slane %v377, %v465
      %468 = vrot.lane.b32.xlu0 %v466, 7
      %v469 = vpop.permute.xlu0 %468
      %v471 = vmul.f32 %v385, %v469
      %473 = vrot.lane.b32.xlu0 %v471, 121
      %v474 = vpop.permute.xlu0 %473
      %476 = vst.msk [vmem:[#allocation2 + $0x30] sm:$0xff] %vm399, %v474
      %v477 = vlaneseq
      %v478 = vshrl.u32 %v477, 7
      %v479 = vsub.s32 7, %v478
      %v480 = vrot.slane %v377, %v479
      %482 = vrot.lane.b32.xlu0 %v480, 8
      %v483 = vpop.permute.xlu0 %482
      %v485 = vmul.f32 %v385, %v483
      %487 = vrot.lane.b32.xlu0 %v485, 120
      %v488 = vpop.permute.xlu0 %487
      %490 = vst.msk [vmem:[#allocation2 + $0x38] sm:$0xff] %vm399, %v488
      %v491 = vlaneseq
      %v492 = vshrl.u32 %v491, 7
      %v493 = vsub.s32 0, %v492
      %v494 = vrot.slane %v378, %v493
      %496 = vrot.lane.b32.xlu0 %v494, 9
      %v497 = vpop.permute.xlu0 %496
      %v499 = vmul.f32 %v385, %v497
      %501 = vrot.lane.b32.xlu0 %v499, 119
      %v502 = vpop.permute.xlu0 %501
      %504 = vst.msk [vmem:[#allocation2 + $0x40] sm:$0xff] %vm399, %v502
      %v505 = vld [vmem:[%s3] sm:$0xf]
      %v506 = vld [vmem:[%s3 + $0x4] sm:$0xf]
      %v507 = vld [vmem:[#allocation2] sm:$0xff]
      %v508 = vld [vmem:[#allocation2 + $0x8] sm:$0xff]
      %v509 = vld [vmem:[#allocation2 + $0x10] sm:$0xff]
      %v510 = vld [vmem:[#allocation2 + $0x18] sm:$0xff]
      %v511 = vld [vmem:[#allocation2 + $0x20] sm:$0xff]
      %v512 = vld [vmem:[#allocation2 + $0x28] sm:$0xff]
      %v513 = vld [vmem:[#allocation2 + $0x30] sm:$0xff]
      %v514 = vld [vmem:[#allocation2 + $0x38] sm:$0xff]
      %v515 = vld [vmem:[#allocation2 + $0x40] sm:$0xff]
      %v516 = vpack.c.bf16 %v508, %v507
      %v517 = vpack.c.bf16 %v510, %v509
      %v518 = vpack.c.bf16 %v512, %v511
      %v519 = vpack.c.bf16 %v514, %v513
      %v520 = vpack.c.bf16 %v515, %v515
      %v521 = vld [vmem:[%s4] sm:$0xff]
      %v522 = vld [vmem:[%s4 + $0x8] sm:$0xff]
      %524 = vset.pattern.permute.xlu0 0
      %525 = vperm.xlu0 %524, %v521
      %v526 = vpop.permute.xlu0 %525
      %529 = vset.pattern.permute.xlu0 0
      %530 = vperm.xlu0 %529, %v522
      %v531 = vpop.permute.xlu0 %530
      %v535 = vunpack.c.l.b16 %v505
      %v536 = vunpack.c.l.b16 %v506
      %v537 = vpack.c.b16 %v536, %v535
      %vm538 = vcmask 588800
      %v540 = vsel %vm538, %v537, 0
      %vm542 = vcmask 1043456
      %v544 = vsel %vm542, %v520, 0
      %546 = vmatprep.subr.bf16.mxu0 0
      %547 = vmatpush1.bf16.msra.mxu0 0
      %548 = vmatprep.subr.bf16.mxu0 0
      %549 = vmatpush1.bf16.msra.mxu0 0
      %550 = vmatprep.subr.bf16.mxu0 0
      %551 = vmatpush1.bf16.msra.mxu0 0
      %552 = vmatprep.subr.bf16.mxu0 0
      %553 = vmatpush1.bf16.msra.mxu0 %v544
      %554 = vmatprep.subr.bf16.mxu0 0
      %555 = vmatpush1.bf16.msra.mxu0 %v519
      %556 = vmatprep.subr.bf16.mxu0 0
      %557 = vmatpush1.bf16.msra.mxu0 %v518
      %558 = vmatprep.subr.bf16.mxu0 0
      %559 = vmatpush1.bf16.msra.mxu0 %v517
      %560 = vmatprep.subr.bf16.mxu0 0
      %561 = vmatpush1.bf16.msra.mxu0 %v516
      %562 = vmatprep.subr.bf16.mxu0 0
      %563 = vmatpush2.bf16.msra.mxu0 0
      %564 = vmatprep.subr.bf16.mxu0 0
      %565 = vmatpush2.bf16.msra.mxu0 0
      %566 = vmatprep.subr.bf16.mxu0 0
      %567 = vmatpush2.bf16.msra.mxu0 0
      %568 = vmatprep.subr.bf16.mxu0 0
      %569 = vmatpush2.bf16.msra.mxu0 0
      %570 = vmatprep.subr.bf16.mxu0 0
      %571 = vmatpush2.bf16.msra.mxu0 0
      %572 = vmatprep.subr.bf16.mxu0 0
      %573 = vmatpush2.bf16.msra.mxu0 0
      %574 = vmatprep.subr.bf16.mxu0 0
      %575 = vmatpush2.bf16.msra.mxu0 0
      %576 = vmatprep.subr.bf16.mxu0 0
      %577 = vmatpush2.bf16.msra.mxu0 0
      %578 = vmatprep.mubr.bf16.mxu0 0
      %579 = vmatmul.mubr.bf16.gmra.mxu0 %v540
      %v580 = vpop.f32.mrf.mxu0
      %v581 = vadd.f32 %v526, %v580
      %v582 = vpop.f32.mrf.mxu0
      %v583 = vpop.f32.mrf.mxu0
      %v584 = vadd.f32 %v531, %v583
      %v585 = vpop.f32.mrf.mxu0
      %586 = vdwg.mxu0
      %v587 = vld [vmem:[%s266] sm:$0xff]
      %v588 = vld [vmem:[%s266 + $0x8] sm:$0xff]
      %v589 = vadd.f32 %v581, %v587
      %v590 = vadd.f32 %v584, %v588
      %591 = vst.msk [vmem:[%s271] sm:$0xff] %vm399, %v589
      %592 = vst.msk [vmem:[%s271 + $0x8] sm:$0xff] %vm399, %v590
      %p593 = scmp.lt.s32.totalorder %s17, 1
      %s594 = scalar_select %p593, %s17, 1
      %s595 = smul.addr %s594, 2
      %s596 = smul.addr %s595, 8
      %s597 = scalar_lea.vmem %s6, %s596
      // Predicated region
      $region45: #{time_adapter_forward.17} parent=43 // pred_check
        %p598 = pneg %p171
      $region46: #{time_adapter_forward.17} parent=43 // pred_check_branch
        %600 = sbr.rel (%p598) target = $region48
      $region47: #{time_adapter_forward.17} parent=43 // pred_region
        _
      $region48: #{time_adapter_forward.17} parent=43 // pred_fallthru
        _
    $region44: #{time_adapter_forward.17} parent=5 // pred_fallthru
      _
    %p601 = scmp.le.s32.totalorder 2, %s12
    // Predicated region
    $region49: #{time_adapter_forward.17} parent=5 // pred_check
      %p602 = pneg %p601
    $region50: #{time_adapter_forward.17} parent=5 // pred_check_branch
      %604 = sbr.rel (%p602) target = $region52
    $region51: #{time_adapter_forward.17} parent=5 // pred_region
      %s605 = ssub.s32 %s12, 2
      // Predicated region
      $region53: #{time_adapter_forward.17} parent=51 // pred_check
        %p606 = pneg %p177
      $region54: #{time_adapter_forward.17} parent=51 // pred_check_branch
        %608 = sbr.rel (%p606) target = $region56
      $region55: #{time_adapter_forward.17} parent=51 // pred_region
        %p609 = scmp.lt.s32.totalorder %s18, 1
        %s610 = scalar_select %p609, %s18, 1
        %s611 = smul.addr %s610, 2
        %s612 = smul.addr %s611, 8
        %s613 = scalar_lea.vmem %s6, %s612
      $region56: #{time_adapter_forward.17} parent=51 // pred_fallthru
        _
    $region52: #{time_adapter_forward.17} parent=5 // pred_fallthru
      _
  $region6: #{time_adapter_forward.17} parent=0 // loop_footer
    %s16 = sadd.s32 1, %s12
  $region7: #{time_adapter_forward.17} parent=0 // loop_footer_branch
    %11 = sbr.rel target = $region3
  $region8: #{time_adapter_forward.17} parent=0 // loop_exit
    _

// kernel: time_adapter_forward.16
$region0: #{time_adapter_forward.16}
  #allocation0 [shape = 'u32[]', space=smem, size = 0x4, offset = 0x4, fixed_abs, tag = 'smem constant byte address 0x4 - core index']
  #allocation1 [shape = 'u32[144,128]{1,0:T(1,128)}', space=vmem, size = 0x12000, scoped, tag = 'internal scratch']
  #allocation2 [shape = 'f32[144,64]{1,0:T(8,128)}', space=vmem, size = 0x12000, scoped, tag = 'scratch operand']
  %s0 = inlined_call_operand.vmem [shape: f32[2,16,64], index: 0, kind: input, shape index: {}]
  %s1 = inlined_call_operand.vmem [shape: f32[16,1], index: 1, kind: input, shape index: {}]
  %s2 = inlined_call_operand.vmem [shape: f32[16,1], index: 2, kind: input, shape index: {}]
  %s3 = inlined_call_operand.vmem [shape: f32[16,4], index: 3, kind: input, shape index: {}]
  %s4 = inlined_call_operand.vmem [shape: f32[4,16], index: 4, kind: input, shape index: {}]
  %s5 = inlined_call_operand.vmem [shape: f32[2,16,1], index: 5, kind: input, shape index: {}]
  %s6 = inlined_call_operand.vmem [shape: f32[16,16], index: 6, kind: input, shape index: {}]
  %s7 = inlined_call_operand.vmem [shape: f32[16,1], index: 7, kind: input, shape index: {}]
  %s8 = inlined_call_operand.vmem [shape: f32[9,64], index: 8, kind: input, shape index: {}]
  %s9 = inlined_call_operand.vmem [shape: bf16[16,144], index: 9, kind: input, shape index: {}]
  %s10 = inlined_call_operand.vmem [shape: f32[16,1], index: 10, kind: input, shape index: {}]
  %s11 = inlined_call_operand.vmem [shape: f32[2,16,64], index: 11, kind: output, shape index: {}]
  %s12 = sld [smem:[#allocation0]]
  $region77: #{time_adapter_forward.16} parent=0
    _
  %s14 = ssub.s32 1, %s12
  %s15 = scalar_select 0, %s14, %s12
  loop: start=0, step=1, limit=4
  $region2: #{time_adapter_forward.16} parent=0 // loop_pre_header
    _
  $region3: #{time_adapter_forward.16} parent=0 // loop_header
    %s17 = sphi 0, %s21
    %p18 = scmp.ge.s32.totalorder %s17, 4
    %s27 = sphi 0, %s29
    %s30 = sphi 0, %s27
    %s31 = sphi 0, %s30
    %s47 = sphi 0, %s31
    %s51 = sphi 0, %s51
    %s53 = sphi 0, %s51
    %s54 = sphi 0, %s53
    %s68 = sphi 0, %s54
    %s72 = sphi 0, %s72
    %s74 = sphi 0, %s72
    %s75 = sphi 0, %s74
    %s89 = sphi 0, %s75
    %s93 = sphi 0, %s93
    %s95 = sphi 0, %s93
    %s96 = sphi 0, %s95
    %s110 = sphi 0, %s96
    %s114 = sphi 0, %s114
    %s116 = sphi 0, %s114
    %s117 = sphi 0, %s116
    %s131 = sphi 0, %s117
    %s137 = sphi 0, %s139
    %s140 = sphi 0, %s137
    %s141 = sphi 0, %s140
    %s157 = sphi 0, %s141
    %s161 = sphi 0, %s161
    %s163 = sphi 0, %s161
    %s164 = sphi 0, %s163
    %s178 = sphi 0, %s164
    %s182 = sphi 0, %s182
    %s184 = sphi 0, %s182
    %s185 = sphi 0, %s184
    %s199 = sphi 0, %s185
    %s203 = sphi 0, %s203
    %s205 = sphi 0, %s203
    %s206 = sphi 0, %s205
    %s220 = sphi 0, %s206
    %s224 = sphi 0, %s224
    %s226 = sphi 0, %s224
    %s227 = sphi 0, %s226
    %s241 = sphi 0, %s227
    %s245 = sphi 0, %s245
    %s247 = sphi 0, %s245
    %s248 = sphi 0, %s247
    %s262 = sphi 0, %s248
    %s268 = sphi 0, %s270
    %s271 = sphi 0, %s268
    %s272 = sphi 0, %s271
    %s288 = sphi 0, %s272
  $region4: #{time_adapter_forward.16} parent=0 // loop_header_branch
    %20 = sbr.rel (%p18) target = $region8
  $region5: #{time_adapter_forward.16} parent=0 // loop_body
    %s22 = ssub.s32 %s17, 1
    %s23 = ssub.s32 %s17, 2
    %s24 = sadd.s32 %s17, 1
    %s25 = ssub.s32 %s17, %s24
    %p26 = scmp.eq.s32.totalorder %s25, 0
    %s28 = sadd.s32 %s27, 1
    %s29 = scalar_select %p26, %s27, %s28
    %p32 = pneg %p26
    %p33 = scmp.eq.s32.totalorder %s17, 1
    %p34 = por %p32, %p33
    %p35 = scmp.ne.s32.totalorder %s27, %s30
    %p36 = scmp.eq.s32.totalorder %s17, 0
    %p37 = por %p35, %p36
    %p38 = scmp.ne.s32.totalorder %s27, %s30
    %p39 = scmp.eq.s32.totalorder %s22, 1
    %p40 = por %p38, %p39
    %p41 = scmp.ne.s32.totalorder %s30, %s31
    %p42 = scmp.eq.s32.totalorder %s22, 0
    %p43 = por %p41, %p42
    %p44 = scmp.ne.s32.totalorder %s30, %s31
    %p45 = scmp.eq.s32.totalorder %s23, 1
    %p46 = por %p44, %p45
    %p48 = scmp.ne.s32.totalorder %s31, %s47
    %p49 = scmp.eq.s32.totalorder %s23, 0
    %p50 = por %p48, %p49
    %s52 = sadd.s32 %s51, 1
    %p55 = scmp.eq.s32.totalorder %s17, 1
    %p56 = scmp.ne.s32.totalorder %s51, %s53
    %p57 = scmp.eq.s32.totalorder %s17, 0
    %p58 = por %p56, %p57
    %p59 = scmp.ne.s32.totalorder %s51, %s53
    %p60 = scmp.eq.s32.totalorder %s22, 1
    %p61 = por %p59, %p60
    %p62 = scmp.ne.s32.totalorder %s53, %s54
    %p63 = scmp.eq.s32.totalorder %s22, 0
    %p64 = por %p62, %p63
    %p65 = scmp.ne.s32.totalorder %s53, %s54
    %p66 = scmp.eq.s32.totalorder %s23, 1
    %p67 = por %p65, %p66
    %p69 = scmp.ne.s32.totalorder %s54, %s68
    %p70 = scmp.eq.s32.totalorder %s23, 0
    %p71 = por %p69, %p70
    %s73 = sadd.s32 %s72, 1
    %p76 = scmp.eq.s32.totalorder %s17, 1
    %p77 = scmp.ne.s32.totalorder %s72, %s74
    %p78 = scmp.eq.s32.totalorder %s17, 0
    %p79 = por %p77, %p78
    %p80 = scmp.ne.s32.totalorder %s72, %s74
    %p81 = scmp.eq.s32.totalorder %s22, 1
    %p82 = por %p80, %p81
    %p83 = scmp.ne.s32.totalorder %s74, %s75
    %p84 = scmp.eq.s32.totalorder %s22, 0
    %p85 = por %p83, %p84
    %p86 = scmp.ne.s32.totalorder %s74, %s75
    %p87 = scmp.eq.s32.totalorder %s23, 1
    %p88 = por %p86, %p87
    %p90 = scmp.ne.s32.totalorder %s75, %s89
    %p91 = scmp.eq.s32.totalorder %s23, 0
    %p92 = por %p90, %p91
    %s94 = sadd.s32 %s93, 1
    %p97 = scmp.eq.s32.totalorder %s17, 1
    %p98 = scmp.ne.s32.totalorder %s93, %s95
    %p99 = scmp.eq.s32.totalorder %s17, 0
    %p100 = por %p98, %p99
    %p101 = scmp.ne.s32.totalorder %s93, %s95
    %p102 = scmp.eq.s32.totalorder %s22, 1
    %p103 = por %p101, %p102
    %p104 = scmp.ne.s32.totalorder %s95, %s96
    %p105 = scmp.eq.s32.totalorder %s22, 0
    %p106 = por %p104, %p105
    %p107 = scmp.ne.s32.totalorder %s95, %s96
    %p108 = scmp.eq.s32.totalorder %s23, 1
    %p109 = por %p107, %p108
    %p111 = scmp.ne.s32.totalorder %s96, %s110
    %p112 = scmp.eq.s32.totalorder %s23, 0
    %p113 = por %p111, %p112
    %s115 = sadd.s32 %s114, 1
    %p118 = scmp.eq.s32.totalorder %s17, 1
    %p119 = scmp.ne.s32.totalorder %s114, %s116
    %p120 = scmp.eq.s32.totalorder %s17, 0
    %p121 = por %p119, %p120
    %p122 = scmp.ne.s32.totalorder %s114, %s116
    %p123 = scmp.eq.s32.totalorder %s22, 1
    %p124 = por %p122, %p123
    %p125 = scmp.ne.s32.totalorder %s116, %s117
    %p126 = scmp.eq.s32.totalorder %s22, 0
    %p127 = por %p125, %p126
    %p128 = scmp.ne.s32.totalorder %s116, %s117
    %p129 = scmp.eq.s32.totalorder %s23, 1
    %p130 = por %p128, %p129
    %p132 = scmp.ne.s32.totalorder %s117, %s131
    %p133 = scmp.eq.s32.totalorder %s23, 0
    %p134 = por %p132, %p133
    %s135 = ssub.s32 %s17, %s24
    %p136 = scmp.eq.s32.totalorder %s135, 0
    %s138 = sadd.s32 %s137, 1
    %s139 = scalar_select %p136, %s137, %s138
    %p142 = pneg %p136
    %p143 = scmp.eq.s32.totalorder %s17, 1
    %p144 = por %p142, %p143
    %p145 = scmp.ne.s32.totalorder %s137, %s140
    %p146 = scmp.eq.s32.totalorder %s17, 0
    %p147 = por %p145, %p146
    %p148 = scmp.ne.s32.totalorder %s137, %s140
    %p149 = scmp.eq.s32.totalorder %s22, 1
    %p150 = por %p148, %p149
    %p151 = scmp.ne.s32.totalorder %s140, %s141
    %p152 = scmp.eq.s32.totalorder %s22, 0
    %p153 = por %p151, %p152
    %p154 = scmp.ne.s32.totalorder %s140, %s141
    %p155 = scmp.eq.s32.totalorder %s23, 1
    %p156 = por %p154, %p155
    %p158 = scmp.ne.s32.totalorder %s141, %s157
    %p159 = scmp.eq.s32.totalorder %s23, 0
    %p160 = por %p158, %p159
    %s162 = sadd.s32 %s161, 1
    %p165 = scmp.eq.s32.totalorder %s17, 1
    %p166 = scmp.ne.s32.totalorder %s161, %s163
    %p167 = scmp.eq.s32.totalorder %s17, 0
    %p168 = por %p166, %p167
    %p169 = scmp.ne.s32.totalorder %s161, %s163
    %p170 = scmp.eq.s32.totalorder %s22, 1
    %p171 = por %p169, %p170
    %p172 = scmp.ne.s32.totalorder %s163, %s164
    %p173 = scmp.eq.s32.totalorder %s22, 0
    %p174 = por %p172, %p173
    %p175 = scmp.ne.s32.totalorder %s163, %s164
    %p176 = scmp.eq.s32.totalorder %s23, 1
    %p177 = por %p175, %p176
    %p179 = scmp.ne.s32.totalorder %s164, %s178
    %p180 = scmp.eq.s32.totalorder %s23, 0
    %p181 = por %p179, %p180
    %s183 = sadd.s32 %s182, 1
    %p186 = scmp.eq.s32.totalorder %s17, 1
    %p187 = scmp.ne.s32.totalorder %s182, %s184
    %p188 = scmp.eq.s32.totalorder %s17, 0
    %p189 = por %p187, %p188
    %p190 = scmp.ne.s32.totalorder %s182, %s184
    %p191 = scmp.eq.s32.totalorder %s22, 1
    %p192 = por %p190, %p191
    %p193 = scmp.ne.s32.totalorder %s184, %s185
    %p194 = scmp.eq.s32.totalorder %s22, 0
    %p195 = por %p193, %p194
    %p196 = scmp.ne.s32.totalorder %s184, %s185
    %p197 = scmp.eq.s32.totalorder %s23, 1
    %p198 = por %p196, %p197
    %p200 = scmp.ne.s32.totalorder %s185, %s199
    %p201 = scmp.eq.s32.totalorder %s23, 0
    %p202 = por %p200, %p201
    %s204 = sadd.s32 %s203, 1
    %p207 = scmp.eq.s32.totalorder %s17, 1
    %p208 = scmp.ne.s32.totalorder %s203, %s205
    %p209 = scmp.eq.s32.totalorder %s17, 0
    %p210 = por %p208, %p209
    %p211 = scmp.ne.s32.totalorder %s203, %s205
    %p212 = scmp.eq.s32.totalorder %s22, 1
    %p213 = por %p211, %p212
    %p214 = scmp.ne.s32.totalorder %s205, %s206
    %p215 = scmp.eq.s32.totalorder %s22, 0
    %p216 = por %p214, %p215
    %p217 = scmp.ne.s32.totalorder %s205, %s206
    %p218 = scmp.eq.s32.totalorder %s23, 1
    %p219 = por %p217, %p218
    %p221 = scmp.ne.s32.totalorder %s206, %s220
    %p222 = scmp.eq.s32.totalorder %s23, 0
    %p223 = por %p221, %p222
    %s225 = sadd.s32 %s224, 1
    %p228 = scmp.eq.s32.totalorder %s17, 1
    %p229 = scmp.ne.s32.totalorder %s224, %s226
    %p230 = scmp.eq.s32.totalorder %s17, 0
    %p231 = por %p229, %p230
    %p232 = scmp.ne.s32.totalorder %s224, %s226
    %p233 = scmp.eq.s32.totalorder %s22, 1
    %p234 = por %p232, %p233
    %p235 = scmp.ne.s32.totalorder %s226, %s227
    %p236 = scmp.eq.s32.totalorder %s22, 0
    %p237 = por %p235, %p236
    %p238 = scmp.ne.s32.totalorder %s226, %s227
    %p239 = scmp.eq.s32.totalorder %s23, 1
    %p240 = por %p238, %p239
    %p242 = scmp.ne.s32.totalorder %s227, %s241
    %p243 = scmp.eq.s32.totalorder %s23, 0
    %p244 = por %p242, %p243
    %s246 = sadd.s32 %s245, 1
    %p249 = scmp.eq.s32.totalorder %s17, 1
    %p250 = scmp.ne.s32.totalorder %s245, %s247
    %p251 = scmp.eq.s32.totalorder %s17, 0
    %p252 = por %p250, %p251
    %p253 = scmp.ne.s32.totalorder %s245, %s247
    %p254 = scmp.eq.s32.totalorder %s22, 1
    %p255 = por %p253, %p254
    %p256 = scmp.ne.s32.totalorder %s247, %s248
    %p257 = scmp.eq.s32.totalorder %s22, 0
    %p258 = por %p256, %p257
    %p259 = scmp.ne.s32.totalorder %s247, %s248
    %p260 = scmp.eq.s32.totalorder %s23, 1
    %p261 = por %p259, %p260
    %p263 = scmp.ne.s32.totalorder %s248, %s262
    %p264 = scmp.eq.s32.totalorder %s23, 0
    %p265 = por %p263, %p264
    %s266 = ssub.s32 %s17, %s24
    %p267 = scmp.eq.s32.totalorder %s266, 0
    %s269 = sadd.s32 %s268, 1
    %s270 = scalar_select %p267, %s268, %s269
    %p273 = pneg %p267
    %p274 = scmp.eq.s32.totalorder %s17, 1
    %p275 = por %p273, %p274
    %p276 = scmp.ne.s32.totalorder %s268, %s271
    %p277 = scmp.eq.s32.totalorder %s17, 0
    %p278 = por %p276, %p277
    %p279 = scmp.ne.s32.totalorder %s268, %s271
    %p280 = scmp.eq.s32.totalorder %s22, 1
    %p281 = por %p279, %p280
    %p282 = scmp.ne.s32.totalorder %s271, %s272
    %p283 = scmp.eq.s32.totalorder %s22, 0
    %p284 = por %p282, %p283
    %p285 = scmp.ne.s32.totalorder %s271, %s272
    %p286 = scmp.eq.s32.totalorder %s23, 1
    %p287 = por %p285, %p286
    %p289 = scmp.ne.s32.totalorder %s272, %s288
    %p290 = scmp.eq.s32.totalorder %s23, 0
    %p291 = por %p289, %p290
    %p292 = scmp.le.s32.totalorder 1, %s17
    %p293 = scmp.lt.s32.totalorder %s17, 3
    %p294 = pnand %p292, %p293
    %p295 = pneg %p294
    // Predicated region
    $region9: #{time_adapter_forward.16} parent=5 // pred_check
      _
    $region10: #{time_adapter_forward.16} parent=5 // pred_check_branch
      %297 = sbr.rel (%p294) target = $region12
    $region11: #{time_adapter_forward.16} parent=5 // pred_region
      %s298 = ssub.s32 %s17, 1
      // Predicated region
      $region13: #{time_adapter_forward.16} parent=11 // pred_check
        %p299 = pneg %p64
      $region14: #{time_adapter_forward.16} parent=11 // pred_check_branch
        %301 = sbr.rel (%p299) target = $region16
      $region15: #{time_adapter_forward.16} parent=11 // pred_region
        _
      $region16: #{time_adapter_forward.16} parent=11 // pred_fallthru
        _
      // Predicated region
      $region17: #{time_adapter_forward.16} parent=11 // pred_check
        %p302 = pneg %p85
      $region18: #{time_adapter_forward.16} parent=11 // pred_check_branch
        %304 = sbr.rel (%p302) target = $region20
      $region19: #{time_adapter_forward.16} parent=11 // pred_region
        _
      $region20: #{time_adapter_forward.16} parent=11 // pred_fallthru
        _
      // Predicated region
      $region21: #{time_adapter_forward.16} parent=11 // pred_check
        %p305 = pneg %p106
      $region22: #{time_adapter_forward.16} parent=11 // pred_check_branch
        %307 = sbr.rel (%p305) target = $region24
      $region23: #{time_adapter_forward.16} parent=11 // pred_region
        _
      $region24: #{time_adapter_forward.16} parent=11 // pred_fallthru
        _
      // Predicated region
      $region25: #{time_adapter_forward.16} parent=11 // pred_check
        %p308 = pneg %p127
      $region26: #{time_adapter_forward.16} parent=11 // pred_check_branch
        %310 = sbr.rel (%p308) target = $region28
      $region27: #{time_adapter_forward.16} parent=11 // pred_region
        _
      $region28: #{time_adapter_forward.16} parent=11 // pred_fallthru
        _
      // Predicated region
      $region29: #{time_adapter_forward.16} parent=11 // pred_check
        %p311 = pneg %p174
      $region30: #{time_adapter_forward.16} parent=11 // pred_check_branch
        %313 = sbr.rel (%p311) target = $region32
      $region31: #{time_adapter_forward.16} parent=11 // pred_region
        _
      $region32: #{time_adapter_forward.16} parent=11 // pred_fallthru
        _
      // Predicated region
      $region33: #{time_adapter_forward.16} parent=11 // pred_check
        %p314 = pneg %p195
      $region34: #{time_adapter_forward.16} parent=11 // pred_check_branch
        %316 = sbr.rel (%p314) target = $region36
      $region35: #{time_adapter_forward.16} parent=11 // pred_region
        _
      $region36: #{time_adapter_forward.16} parent=11 // pred_fallthru
        _
      // Predicated region
      $region37: #{time_adapter_forward.16} parent=11 // pred_check
        %p317 = pneg %p216
      $region38: #{time_adapter_forward.16} parent=11 // pred_check_branch
        %319 = sbr.rel (%p317) target = $region40
      $region39: #{time_adapter_forward.16} parent=11 // pred_region
        _
      $region40: #{time_adapter_forward.16} parent=11 // pred_fallthru
        _
      // Predicated region
      $region41: #{time_adapter_forward.16} parent=11 // pred_check
        %p320 = pneg %p237
      $region42: #{time_adapter_forward.16} parent=11 // pred_check_branch
        %322 = sbr.rel (%p320) target = $region44
      $region43: #{time_adapter_forward.16} parent=11 // pred_region
        _
      $region44: #{time_adapter_forward.16} parent=11 // pred_fallthru
        _
      // Predicated region
      $region45: #{time_adapter_forward.16} parent=11 // pred_check
        %p323 = pneg %p258
      $region46: #{time_adapter_forward.16} parent=11 // pred_check_branch
        %325 = sbr.rel (%p323) target = $region48
      $region47: #{time_adapter_forward.16} parent=11 // pred_region
        _
      $region48: #{time_adapter_forward.16} parent=11 // pred_fallthru
        _
    $region12: #{time_adapter_forward.16} parent=5 // pred_fallthru
      _
    %p326 = scmp.lt.s32.totalorder %s17, 2
    // Predicated region
    $region49: #{time_adapter_forward.16} parent=5 // pred_check
      %p327 = pneg %p326
    $region50: #{time_adapter_forward.16} parent=5 // pred_check_branch
      %329 = sbr.rel (%p327) target = $region52
    $region51: #{time_adapter_forward.16} parent=5 // pred_region
      // Predicated region
      $region53: #{time_adapter_forward.16} parent=51 // pred_check
        %p330 = pneg %p37
      $region54: #{time_adapter_forward.16} parent=51 // pred_check_branch
        %332 = sbr.rel (%p330) target = $region56
      $region55: #{time_adapter_forward.16} parent=51 // pred_region
        %p333 = scmp.lt.s32.totalorder %s17, 1
        %s334 = scalar_select %p333, %s17, 1
        %s335 = smul.addr %s334, 2
        %s336 = smul.addr %s335, 8
        %s337 = scalar_lea.vmem %s0, %s336
      $region56: #{time_adapter_forward.16} parent=51 // pred_fallthru
        _
      // Predicated region
      $region57: #{time_adapter_forward.16} parent=51 // pred_check
        %p338 = pneg %p147
      $region58: #{time_adapter_forward.16} parent=51 // pred_check_branch
        %340 = sbr.rel (%p338) target = $region60
      $region59: #{time_adapter_forward.16} parent=51 // pred_region
        %p341 = scmp.lt.s32.totalorder %s17, 1
        %s342 = scalar_select %p341, %s17, 1
        %s343 = smul.addr %s342, 2
        %s344 = smul.addr %s343, 8
        %s345 = scalar_lea.vmem %s5, %s344
      $region60: #{time_adapter_forward.16} parent=51 // pred_fallthru
        _
    $region52: #{time_adapter_forward.16} parent=5 // pred_fallthru
      _
    %p346 = scmp.le.s32.totalorder 1, %s17
    %p347 = scmp.lt.s32.totalorder %s17, 3
    %p348 = pnand %p346, %p347
    %p349 = pneg %p348
    // Predicated region
    $region61: #{time_adapter_forward.16} parent=5 // pred_check
      _
    $region62: #{time_adapter_forward.16} parent=5 // pred_check_branch
      %351 = sbr.rel (%p348) target = $region64
    $region63: #{time_adapter_forward.16} parent=5 // pred_region
      %s352 = ssub.s32 %s17, 1
      %p353 = scmp.lt.s32.totalorder %s22, 1
      %s354 = scalar_select %p353, %s22, 1
      %s355 = smul.addr %s354, 2
      %s356 = smul.addr %s355, 8
      %s357 = scalar_lea.vmem %s0, %s356
      %p358 = pneg %p43
      %p359 = pneg %p40
      %p360 = pneg %p64
      %p361 = pneg %p61
      %p362 = pneg %p85
      %p363 = pneg %p82
      %p364 = pneg %p106
      %p365 = pneg %p103
      %p366 = pneg %p127
      %p367 = pneg %p124
      %p368 = scmp.lt.s32.totalorder %s22, 1
      %s369 = scalar_select %p368, %s22, 1
      %s370 = smul.addr %s369, 2
      %s371 = smul.addr %s370, 8
      %s372 = scalar_lea.vmem %s5, %s371
      %p373 = pneg %p153
      %p374 = pneg %p150
      %p375 = pneg %p174
      %p376 = pneg %p171
      %p377 = pneg %p195
      %p378 = pneg %p192
      %p379 = pneg %p216
      %p380 = pneg %p213
      %p381 = pneg %p237
      %p382 = pneg %p234
      %p383 = pneg %p258
      %p384 = pneg %p255
      %p385 = pneg %p284
      %p386 = pneg %p281
      %p387 = scmp.lt.s32.totalorder %s22, 1
      %s388 = scalar_select %p387, %s22, 1
      %s389 = smul.addr %s388, 2
      %s390 = smul.addr %s389, 8
      %s391 = scalar_lea.vmem %s11, %s390
      %p392 = scmp.lt.s32.totalorder %s22, 1
      %s393 = scalar_select %p392, %s22, 1
      %s394 = smul.addr %s393, 2
      %s395 = smul.addr %s394, 8
      %s396 = scalar_lea.vmem %s0, %s395
      %p397 = scmp.lt.s32.totalorder %s22, 1
      %s398 = scalar_select %p397, %s22, 1
      %s399 = smul.addr %s398, 2
      %s400 = smul.addr %s399, 8
      %s401 = scalar_lea.vmem %s5, %s400
      %p402 = scmp.lt.s32.totalorder %s22, 1
      %s403 = scalar_select %p402, %s22, 1
      %s404 = smul.addr %s403, 2
      %s405 = smul.addr %s404, 8
      %s406 = scalar_lea.vmem %s11, %s405
      %v408 = vld [vmem:[%s396] sm:$0xff]
      %v409 = vld [vmem:[%s396 + $0x8] sm:$0xff]
      %v410 = vld [vmem:[%s401] sm:$0xff]
      %v411 = vld [vmem:[%s401 + $0x8] sm:$0xff]
      %v412 = vxor.u32 %v410, 2147483648
      %v413 = vxor.u32 %v411, 2147483648
      %v414 = vmul.f32 %v412, 1.442695
      %v415 = vpow.pop %v414
      %v416 = vmul.f32 %v413, 1.442695
      %v417 = vpow.pop %v416
      %v418 = vadd.f32 %v415, 1.0
      %v419 = vadd.f32 %v417, 1.0
      %v420 = vrcp.pop %v418
      %v421 = vmul.f32 1.0, %v420
      %v422 = vrcp.pop %v419
      %v423 = vmul.f32 1.0, %v422
      %v424 = vmul.f32 %v410, %v421
      %v425 = vmul.f32 %v411, %v423
      %427 = vset.pattern.permute.xlu0 0
      %428 = vperm.xlu0 %427, %v424
      %v429 = vpop.permute.xlu0 %428
      %432 = vset.pattern.permute.xlu0 0
      %433 = vperm.xlu0 %432, %v425
      %v434 = vpop.permute.xlu0 %433
      %v436 = vld [vmem:[%s6] sm:$0xff]
      %v437 = vld [vmem:[%s6 + $0x8] sm:$0xff]
      %vm438 = vcmask 130048
      %v440 = vsel %vm438, %v436, 0
      %v443 = vsel %vm438, %v437, 0
      %445 = vmatprep.subr.mxu0 0.0
      %446 = vmatpush1.msra.mxu0 0.0
      %447 = vmatprep.subr.mxu0 0.0
      %448 = vmatpush1.msra.mxu0 0.0
      %449 = vmatprep.subr.mxu0 0.0
      %450 = vmatpush1.msra.mxu0 0.0
      %451 = vmatprep.subr.mxu0 0.0
      %452 = vmatpush1.msra.mxu0 0.0
      %453 = vmatprep.subr.mxu0 0.0
      %454 = vmatpush1.msra.mxu0 0.0
      %455 = vmatprep.subr.mxu0 0.0
      %456 = vmatpush1.msra.mxu0 0.0
      %457 = vmatprep.subr.mxu0 0.0
      %458 = vmatpush1.msra.mxu0 0.0
      %459 = vmatprep.subr.mxu0 0.0
      %460 = vmatpush1.msra.mxu0 0.0
      %461 = vmatprep.subr.mxu0 0.0
      %462 = vmatpush1.msra.mxu0 0.0
      %463 = vmatprep.subr.mxu0 0.0
      %464 = vmatpush1.msra.mxu0 0.0
      %465 = vmatprep.subr.mxu0 0.0
      %466 = vmatpush1.msra.mxu0 0.0
      %467 = vmatprep.subr.mxu0 0.0
      %468 = vmatpush1.msra.mxu0 0.0
      %469 = vmatprep.subr.mxu0 0.0
      %470 = vmatpush1.msra.mxu0 0.0
      %471 = vmatprep.subr.mxu0 0.0
      %472 = vmatpush1.msra.mxu0 0.0
      %473 = vmatprep.subr.mxu0 0.0
      %474 = vmatpush1.msra.mxu0 %v434
      %475 = vmatprep.subr.mxu0 0.0
      %476 = vmatpush1.msra.mxu0 %v429
      %477 = vmatprep.subr.mxu0 0.0
      %478 = vmatpush2.msra.mxu0 0.0
      %479 = vmatprep.subr.mxu0 0.0
      %480 = vmatpush2.msra.mxu0 0.0
      %481 = vmatprep.subr.mxu0 0.0
      %482 = vmatpush2.msra.mxu0 0.0
      %483 = vmatprep.subr.mxu0 0.0
      %484 = vmatpush2.msra.mxu0 0.0
      %485 = vmatprep.subr.mxu0 0.0
      %486 = vmatpush2.msra.mxu0 0.0
      %487 = vmatprep.subr.mxu0 0.0
      %488 = vmatpush2.msra.mxu0 0.0
      %489 = vmatprep.subr.mxu0 0.0
      %490 = vmatpush2.msra.mxu0 0.0
      %491 = vmatprep.subr.mxu0 0.0
      %492 = vmatpush2.msra.mxu0 0.0
      %493 = vmatprep.subr.mxu0 0.0
      %494 = vmatpush2.msra.mxu0 0.0
      %495 = vmatprep.subr.mxu0 0.0
      %496 = vmatpush2.msra.mxu0 0.0
      %497 = vmatprep.subr.mxu0 0.0
      %498 = vmatpush2.msra.mxu0 0.0
      %499 = vmatprep.subr.mxu0 0.0
      %500 = vmatpush2.msra.mxu0 0.0
      %501 = vmatprep.subr.mxu0 0.0
      %502 = vmatpush2.msra.mxu0 0.0
      %503 = vmatprep.subr.mxu0 0.0
      %504 = vmatpush2.msra.mxu0 0.0
      %505 = vmatprep.subr.mxu0 0.0
      %506 = vmatpush2.msra.mxu0 0.0
      %507 = vmatprep.subr.mxu0 0.0
      %508 = vmatpush2.msra.mxu0 0.0
      %509 = vmatprep.mubr.f32.mxu0 0.0
      %510 = vmatmul.mubr.f32.gmra.mxu0 %v440
      %v511 = vpop.f32.mrf.mxu0
      %v512 = vadd.f32 0.0, %v511
      %v513 = vpop.f32.mrf.mxu0
      %514 = vmatprep.mubr.f32.mxu0 0.0
      %515 = vmatmul.mubr.f32.gmra.mxu0 %v443
      %v516 = vpop.f32.mrf.mxu0
      %v517 = vadd.f32 0.0, %v516
      %v518 = vpop.f32.mrf.mxu0
      %519 = vdwg.mxu0
      %v520 = vadd.f32 %v408, %v512
      %v521 = vadd.f32 %v409, %v517
      %v522 = vld [vmem:[%s7] sm:$0xff]
      %v523 = vld [vmem:[%s7 + $0x8] sm:$0xff]
      %525 = vset.pattern.permute.xlu0 0
      %526 = vperm.xlu0 %525, %v522
      %v527 = vpop.permute.xlu0 %526
      %530 = vset.pattern.permute.xlu0 0
      %531 = vperm.xlu0 %530, %v523
      %v532 = vpop.permute.xlu0 %531
      %v534 = vadd.f32 %v520, %v527
      %v535 = vadd.f32 %v521, %v532
      %v536 = vld [vmem:[%s3] sm:$0xff]
      %v537 = vld [vmem:[%s3 + $0x8] sm:$0xff]
      %v538 = vld [vmem:[%s4] sm:$0xf]
      %v540 = vsel %vm438, %v538, 0
      %542 = vmatprep.subr.mxu0 0.0
      %543 = vmatpush1.msra.mxu0 0.0
      %544 = vmatprep.subr.mxu0 0.0
      %545 = vmatpush1.msra.mxu0 0.0
      %546 = vmatprep.subr.mxu0 0.0
      %547 = vmatpush1.msra.mxu0 0.0
      %548 = vmatprep.subr.mxu0 0.0
      %549 = vmatpush1.msra.mxu0 0.0
      %550 = vmatprep.subr.mxu0 0.0
      %551 = vmatpush1.msra.mxu0 0.0
      %552 = vmatprep.subr.mxu0 0.0
      %553 = vmatpush1.msra.mxu0 0.0
      %554 = vmatprep.subr.mxu0 0.0
      %555 = vmatpush1.msra.mxu0 0.0
      %556 = vmatprep.subr.mxu0 0.0
      %557 = vmatpush1.msra.mxu0 0.0
      %558 = vmatprep.subr.mxu0 0.0
      %559 = vmatpush1.msra.mxu0 0.0
      %560 = vmatprep.subr.mxu0 0.0
      %561 = vmatpush1.msra.mxu0 0.0
      %562 = vmatprep.subr.mxu0 0.0
      %563 = vmatpush1.msra.mxu0 0.0
      %564 = vmatprep.subr.mxu0 0.0
      %565 = vmatpush1.msra.mxu0 0.0
      %566 = vmatprep.subr.mxu0 0.0
      %567 = vmatpush1.msra.mxu0 0.0
      %568 = vmatprep.subr.mxu0 0.0
      %569 = vmatpush1.msra.mxu0 0.0
      %570 = vmatprep.subr.mxu0 0.0
      %571 = vmatpush1.msra.mxu0 %v535
      %572 = vmatprep.subr.mxu0 0.0
      %573 = vmatpush1.msra.mxu0 %v534
      %574 = vmatprep.subr.mxu0 0.0
      %575 = vmatpush2.msra.mxu0 0.0
      %576 = vmatprep.subr.mxu0 0.0
      %577 = vmatpush2.msra.mxu0 0.0
      %578 = vmatprep.subr.mxu0 0.0
      %579 = vmatpush2.msra.mxu0 0.0
      %580 = vmatprep.subr.mxu0 0.0
      %581 = vmatpush2.msra.mxu0 0.0
      %582 = vmatprep.subr.mxu0 0.0
      %583 = vmatpush2.msra.mxu0 0.0
      %584 = vmatprep.subr.mxu0 0.0
      %585 = vmatpush2.msra.mxu0 0.0
      %586 = vmatprep.subr.mxu0 0.0
      %587 = vmatpush2.msra.mxu0 0.0
      %588 = vmatprep.subr.mxu0 0.0
      %589 = vmatpush2.msra.mxu0 0.0
      %590 = vmatprep.subr.mxu0 0.0
      %591 = vmatpush2.msra.mxu0 0.0
      %592 = vmatprep.subr.mxu0 0.0
      %593 = vmatpush2.msra.mxu0 0.0
      %594 = vmatprep.subr.mxu0 0.0
      %595 = vmatpush2.msra.mxu0 0.0
      %596 = vmatprep.subr.mxu0 0.0
      %597 = vmatpush2.msra.mxu0 0.0
      %598 = vmatprep.subr.mxu0 0.0
      %599 = vmatpush2.msra.mxu0 0.0
      %600 = vmatprep.subr.mxu0 0.0
      %601 = vmatpush2.msra.mxu0 0.0
      %602 = vmatprep.subr.mxu0 0.0
      %603 = vmatpush2.msra.mxu0 0.0
      %604 = vmatprep.subr.mxu0 0.0
      %605 = vmatpush2.msra.mxu0 0.0
      %606 = vmatprep.mubr.f32.mxu0 0.0
      %607 = vmatmul.mubr.f32.gmra.mxu0 %v540
      %v608 = vpop.f32.mrf.mxu0
      %v609 = vadd.f32 0.0, %v608
      %v610 = vpop.f32.mrf.mxu0
      %611 = vdwg.mxu0
      %vm612 = vcmask 519168
      %v613 = vsel %vm612, %v609, 0.0
      %614 = vadd.xlane.f32.xlu0 %v613
      %v615 = vpop.xlane.xlu0 %614
      %v616 = vrcp.pop 256.0
      %v617 = vmul.f32 %v615, %v616
      %vm618 = vcmask 31744
      %v620 = vsel %vm618, %v536, 0
      %v623 = vsel %vm618, %v537, 0
      %vm625 = vcmask 1043456
      %v627 = vsel %vm625, %v617, 0
      %629 = vmatprep.subr.mxu0 0.0
      %630 = vmatpush1.msra.mxu0 0.0
      %631 = vmatprep.subr.mxu0 0.0
      %632 = vmatpush1.msra.mxu0 0.0
      %633 = vmatprep.subr.mxu0 0.0
      %634 = vmatpush1.msra.mxu0 0.0
      %635 = vmatprep.subr.mxu0 0.0
      %636 = vmatpush1.msra.mxu0 0.0
      %637 = vmatprep.subr.mxu0 0.0
      %638 = vmatpush1.msra.mxu0 0.0
      %639 = vmatprep.subr.mxu0 0.0
      %640 = vmatpush1.msra.mxu0 0.0
      %641 = vmatprep.subr.mxu0 0.0
      %642 = vmatpush1.msra.mxu0 0.0
      %643 = vmatprep.subr.mxu0 0.0
      %644 = vmatpush1.msra.mxu0 0.0
      %645 = vmatprep.subr.mxu0 0.0
      %646 = vmatpush1.msra.mxu0 0.0
      %647 = vmatprep.subr.mxu0 0.0
      %648 = vmatpush1.msra.mxu0 0.0
      %649 = vmatprep.subr.mxu0 0.0
      %650 = vmatpush1.msra.mxu0 0.0
      %651 = vmatprep.subr.mxu0 0.0
      %652 = vmatpush1.msra.mxu0 0.0
      %653 = vmatprep.subr.mxu0 0.0
      %654 = vmatpush1.msra.mxu0 0.0
      %655 = vmatprep.subr.mxu0 0.0
      %656 = vmatpush1.msra.mxu0 0.0
      %657 = vmatprep.subr.mxu0 0.0
      %658 = vmatpush1.msra.mxu0 0.0
      %659 = vmatprep.subr.mxu0 0.0
      %660 = vmatpush1.msra.mxu0 %v627
      %661 = vmatprep.subr.mxu0 0.0
      %662 = vmatpush2.msra.mxu0 0.0
      %663 = vmatprep.subr.mxu0 0.0
      %664 = vmatpush2.msra.mxu0 0.0
      %665 = vmatprep.subr.mxu0 0.0
      %666 = vmatpush2.msra.mxu0 0.0
      %667 = vmatprep.subr.mxu0 0.0
      %668 = vmatpush2.msra.mxu0 0.0
      %669 = vmatprep.subr.mxu0 0.0
      %670 = vmatpush2.msra.mxu0 0.0
      %671 = vmatprep.subr.mxu0 0.0
      %672 = vmatpush2.msra.mxu0 0.0
      %673 = vmatprep.subr.mxu0 0.0
      %674 = vmatpush2.msra.mxu0 0.0
      %675 = vmatprep.subr.mxu0 0.0
      %676 = vmatpush2.msra.mxu0 0.0
      %677 = vmatprep.subr.mxu0 0.0
      %678 = vmatpush2.msra.mxu0 0.0
      %679 = vmatprep.subr.mxu0 0.0
      %680 = vmatpush2.msra.mxu0 0.0
      %681 = vmatprep.subr.mxu0 0.0
      %682 = vmatpush2.msra.mxu0 0.0
      %683 = vmatprep.subr.mxu0 0.0
      %684 = vmatpush2.msra.mxu0 0.0
      %685 = vmatprep.subr.mxu0 0.0
      %686 = vmatpush2.msra.mxu0 0.0
      %687 = vmatprep.subr.mxu0 0.0
      %688 = vmatpush2.msra.mxu0 0.0
      %689 = vmatprep.subr.mxu0 0.0
      %690 = vmatpush2.msra.mxu0 0.0
      %691 = vmatprep.subr.mxu0 0.0
      %692 = vmatpush2.msra.mxu0 0.0
      %693 = vmatprep.mubr.f32.mxu0 0.0
      %694 = vmatmul.mubr.f32.gmra.mxu0 %v620
      %v695 = vpop.f32.mrf.mxu0
      %v696 = vadd.f32 0.0, %v695
      %v697 = vpop.f32.mrf.mxu0
      %698 = vmatprep.mubr.f32.mxu0 0.0
      %699 = vmatmul.mubr.f32.gmra.mxu0 %v623
      %v700 = vpop.f32.mrf.mxu0
      %v701 = vadd.f32 0.0, %v700
      %v702 = vpop.f32.mrf.mxu0
      %703 = vdwg.mxu0
      %v704 = vsub.f32 %v534, %v696
      %v705 = vsub.f32 %v535, %v701
      %v706 = vmul.f32 %v704, %v704
      %v707 = vmul.f32 %v705, %v705
      %708 = vmatprep.subr.mxu0 0.0
      %709 = vmatpush1.msra.mxu0 0.0
      %710 = vmatprep.subr.mxu0 0.0
      %711 = vmatpush1.msra.mxu0 0.0
      %712 = vmatprep.subr.mxu0 0.0
      %713 = vmatpush1.msra.mxu0 0.0
      %714 = vmatprep.subr.mxu0 0.0
      %715 = vmatpush1.msra.mxu0 0.0
      %716 = vmatprep.subr.mxu0 0.0
      %717 = vmatpush1.msra.mxu0 0.0
      %718 = vmatprep.subr.mxu0 0.0
      %719 = vmatpush1.msra.mxu0 0.0
      %720 = vmatprep.subr.mxu0 0.0
      %721 = vmatpush1.msra.mxu0 0.0
      %722 = vmatprep.subr.mxu0 0.0
      %723 = vmatpush1.msra.mxu0 0.0
      %724 = vmatprep.subr.mxu0 0.0
      %725 = vmatpush1.msra.mxu0 0.0
      %726 = vmatprep.subr.mxu0 0.0
      %727 = vmatpush1.msra.mxu0 0.0
      %728 = vmatprep.subr.mxu0 0.0
      %729 = vmatpush1.msra.mxu0 0.0
      %730 = vmatprep.subr.mxu0 0.0
      %731 = vmatpush1.msra.mxu0 0.0
      %732 = vmatprep.subr.mxu0 0.0
      %733 = vmatpush1.msra.mxu0 0.0
      %734 = vmatprep.subr.mxu0 0.0
      %735 = vmatpush1.msra.mxu0 0.0
      %736 = vmatprep.subr.mxu0 0.0
      %737 = vmatpush1.msra.mxu0 %v707
      %738 = vmatprep.subr.mxu0 0.0
      %739 = vmatpush1.msra.mxu0 %v706
      %740 = vmatprep.subr.mxu0 0.0
      %741 = vmatpush2.msra.mxu0 0.0
      %742 = vmatprep.subr.mxu0 0.0
      %743 = vmatpush2.msra.mxu0 0.0
      %744 = vmatprep.subr.mxu0 0.0
      %745 = vmatpush2.msra.mxu0 0.0
      %746 = vmatprep.subr.mxu0 0.0
      %747 = vmatpush2.msra.mxu0 0.0
      %748 = vmatprep.subr.mxu0 0.0
      %749 = vmatpush2.msra.mxu0 0.0
      %750 = vmatprep.subr.mxu0 0.0
      %751 = vmatpush2.msra.mxu0 0.0
      %752 = vmatprep.subr.mxu0 0.0
      %753 = vmatpush2.msra.mxu0 0.0
      %754 = vmatprep.subr.mxu0 0.0
      %755 = vmatpush2.msra.mxu0 0.0
      %756 = vmatprep.subr.mxu0 0.0
      %757 = vmatpush2.msra.mxu0 0.0
      %758 = vmatprep.subr.mxu0 0.0
      %759 = vmatpush2.msra.mxu0 0.0
      %760 = vmatprep.subr.mxu0 0.0
      %761 = vmatpush2.msra.mxu0 0.0
      %762 = vmatprep.subr.mxu0 0.0
      %763 = vmatpush2.msra.mxu0 0.0
      %764 = vmatprep.subr.mxu0 0.0
      %765 = vmatpush2.msra.mxu0 0.0
      %766 = vmatprep.subr.mxu0 0.0
      %767 = vmatpush2.msra.mxu0 0.0
      %768 = vmatprep.subr.mxu0 0.0
      %769 = vmatpush2.msra.mxu0 0.0
      %770 = vmatprep.subr.mxu0 0.0
      %771 = vmatpush2.msra.mxu0 0.0
      %772 = vmatprep.mubr.f32.mxu0 0.0
      %773 = vmatmul.mubr.f32.gmra.mxu0 %v540
      %v774 = vpop.f32.mrf.mxu0
      %v775 = vadd.f32 0.0, %v774
      %v776 = vpop.f32.mrf.mxu0
      %777 = vdwg.mxu0
      %v778 = vsel %vm612, %v775, 0.0
      %779 = vadd.xlane.f32.xlu0 %v778
      %v780 = vpop.xlane.xlu0 %779
      %v781 = vmul.f32 %v780, %v616
      %v782 = vadd.f32 %v781, 1e-05
      %v783 = vrsqrt.pop %v782
      %v785 = vsel %vm625, %v783, 0
      %787 = vmatprep.subr.mxu0 0.0
      %788 = vmatpush1.msra.mxu0 0.0
      %789 = vmatprep.subr.mxu0 0.0
      %790 = vmatpush1.msra.mxu0 0.0
      %791 = vmatprep.subr.mxu0 0.0
      %792 = vmatpush1.msra.mxu0 0.0
      %793 = vmatprep.subr.mxu0 0.0
      %794 = vmatpush1.msra.mxu0 0.0
      %795 = vmatprep.subr.mxu0 0.0
      %796 = vmatpush1.msra.mxu0 0.0
      %797 = vmatprep.subr.mxu0 0.0
      %798 = vmatpush1.msra.mxu0 0.0
      %799 = vmatprep.subr.mxu0 0.0
      %800 = vmatpush1.msra.mxu0 0.0
      %801 = vmatprep.subr.mxu0 0.0
      %802 = vmatpush1.msra.mxu0 0.0
      %803 = vmatprep.subr.mxu0 0.0
      %804 = vmatpush1.msra.mxu0 0.0
      %805 = vmatprep.subr.mxu0 0.0
      %806 = vmatpush1.msra.mxu0 0.0
      %807 = vmatprep.subr.mxu0 0.0
      %808 = vmatpush1.msra.mxu0 0.0
      %809 = vmatprep.subr.mxu0 0.0
      %810 = vmatpush1.msra.mxu0 0.0
      %811 = vmatprep.subr.mxu0 0.0
      %812 = vmatpush1.msra.mxu0 0.0
      %813 = vmatprep.subr.mxu0 0.0
      %814 = vmatpush1.msra.mxu0 0.0
      %815 = vmatprep.subr.mxu0 0.0
      %816 = vmatpush1.msra.mxu0 0.0
      %817 = vmatprep.subr.mxu0 0.0
      %818 = vmatpush1.msra.mxu0 %v785
      %819 = vmatprep.subr.mxu0 0.0
      %820 = vmatpush2.msra.mxu0 0.0
      %821 = vmatprep.subr.mxu0 0.0
      %822 = vmatpush2.msra.mxu0 0.0
      %823 = vmatprep.subr.mxu0 0.0
      %824 = vmatpush2.msra.mxu0 0.0
      %825 = vmatprep.subr.mxu0 0.0
      %826 = vmatpush2.msra.mxu0 0.0
      %827 = vmatprep.subr.mxu0 0.0
      %828 = vmatpush2.msra.mxu0 0.0
      %829 = vmatprep.subr.mxu0 0.0
      %830 = vmatpush2.msra.mxu0 0.0
      %831 = vmatprep.subr.mxu0 0.0
      %832 = vmatpush2.msra.mxu0 0.0
      %833 = vmatprep.subr.mxu0 0.0
      %834 = vmatpush2.msra.mxu0 0.0
      %835 = vmatprep.subr.mxu0 0.0
      %836 = vmatpush2.msra.mxu0 0.0
      %837 = vmatprep.subr.mxu0 0.0
      %838 = vmatpush2.msra.mxu0 0.0
      %839 = vmatprep.subr.mxu0 0.0
      %840 = vmatpush2.msra.mxu0 0.0
      %841 = vmatprep.subr.mxu0 0.0
      %842 = vmatpush2.msra.mxu0 0.0
      %843 = vmatprep.subr.mxu0 0.0
      %844 = vmatpush2.msra.mxu0 0.0
      %845 = vmatprep.subr.mxu0 0.0
      %846 = vmatpush2.msra.mxu0 0.0
      %847 = vmatprep.subr.mxu0 0.0
      %848 = vmatpush2.msra.mxu0 0.0
      %849 = vmatprep.subr.mxu0 0.0
      %850 = vmatpush2.msra.mxu0 0.0
      %851 = vmatprep.mubr.f32.mxu0 0.0
      %852 = vmatmul.mubr.f32.gmra.mxu0 %v620
      %v853 = vpop.f32.mrf.mxu0
      %v854 = vadd.f32 0.0, %v853
      %v855 = vpop.f32.mrf.mxu0
      %856 = vmatprep.mubr.f32.mxu0 0.0
      %857 = vmatmul.mubr.f32.gmra.mxu0 %v623
      %v858 = vpop.f32.mrf.mxu0
      %v859 = vadd.f32 0.0, %v858
      %v860 = vpop.f32.mrf.mxu0
      %861 = vdwg.mxu0
      %v862 = vmul.f32 %v704, %v854
      %v863 = vmul.f32 %v705, %v859
      %v864 = vld [vmem:[%s1] sm:$0xff]
      %v865 = vld [vmem:[%s1 + $0x8] sm:$0xff]
      %867 = vset.pattern.permute.xlu0 0
      %868 = vperm.xlu0 %867, %v864
      %v869 = vpop.permute.xlu0 %868
      %872 = vset.pattern.permute.xlu0 0
      %873 = vperm.xlu0 %872, %v865
      %v874 = vpop.permute.xlu0 %873
      %v876 = vmul.f32 %v862, %v869
      %v877 = vmul.f32 %v863, %v874
      %v878 = vld [vmem:[%s2] sm:$0xff]
      %v879 = vld [vmem:[%s2 + $0x8] sm:$0xff]
      %881 = vset.pattern.permute.xlu0 0
      %882 = vperm.xlu0 %881, %v878
      %v883 = vpop.permute.xlu0 %882
      %886 = vset.pattern.permute.xlu0 0
      %887 = vperm.xlu0 %886, %v879
      %v888 = vpop.permute.xlu0 %887
      %v890 = vadd.f32 %v876, %v883
      %v891 = vadd.f32 %v877, %v888
      %v892 = vxor.u32 %v890, 2147483648
      %v893 = vxor.u32 %v891, 2147483648
      %v894 = vmul.f32 %v892, 1.442695
      %v895 = vpow.pop %v894
      %v896 = vmul.f32 %v893, 1.442695
      %v897 = vpow.pop %v896
      %v898 = vadd.f32 %v895, 1.0
      %v899 = vadd.f32 %v897, 1.0
      %v900 = vrcp.pop %v898
      %v901 = vmul.f32 1.0, %v900
      %v902 = vrcp.pop %v899
      %v903 = vmul.f32 1.0, %v902
      %v904 = vmul.f32 %v890, %v901
      %v905 = vmul.f32 %v891, %v903
      %v906 = vld [vmem:[%s8] sm:$0xff]
      %v907 = vld [vmem:[%s8 + $0x8] sm:$0x1]
      %vm908 = vcmask 1048064
      %909 = vrot.lane.b32.xlu0 %v904, 64
      %v910 = vpop.permute.xlu0 %909
      %v911 = vsel %vm908, %v910, %v904
      %912 = vrot.lane.b32.xlu0 %v905, 64
      %v913 = vpop.permute.xlu0 %912
      %v914 = vsel %vm908, %v913, %v905
      %915 = vrot.lane.b32.xlu0 %v911, 64
      %v916 = vpop.permute.xlu0 %915
      %917 = vrot.lane.b32.xlu0 %v914, 64
      %v918 = vpop.permute.xlu0 %917
      %v919 = vsel %vm908, %v916, %v904
      %v920 = vsel %vm908, %v918, %v905
      %v921 = vlaneseq
      %v922 = vshrl.u32 %v921, 7
      %v923 = vsub.s32 0, %v922
      %v924 = vrot.slane %v906, %v923
      %926 = vrot.lane.b32.xlu0 %v924, 55
      %v927 = vpop.permute.xlu0 %926
      %v929 = vmul.f32 %v919, %v927
      %v930 = vmul.f32 %v920, %v927
      %933 = vrot.lane.b32.xlu0 %v929, 73
      %v934 = vpop.permute.xlu0 %933
      %935 = vrot.lane.b32.xlu0 %v930, 73
      %v936 = vpop.permute.xlu0 %935
      %vm939 = vcmask 523264
      %940 = vst.msk [vmem:[#allocation2] sm:$0xff] %vm939, %v934
      %941 = vst.msk [vmem:[#allocation2 + $0x8] sm:$0xff] %vm939, %v936
      %v942 = vlaneseq
      %v943 = vshrl.u32 %v942, 7
      %v944 = vsub.s32 1, %v943
      %v945 = vrot.slane %v906, %v944
      %947 = vrot.lane.b32.xlu0 %v945, 56
      %v948 = vpop.permute.xlu0 %947
      %v950 = vmul.f32 %v919, %v948
      %v951 = vmul.f32 %v920, %v948
      %954 = vrot.lane.b32.xlu0 %v950, 72
      %v955 = vpop.permute.xlu0 %954
      %956 = vrot.lane.b32.xlu0 %v951, 72
      %v957 = vpop.permute.xlu0 %956
      %960 = vst.msk [vmem:[#allocation2 + $0x10] sm:$0xff] %vm939, %v955
      %961 = vst.msk [vmem:[#allocation2 + $0x18] sm:$0xff] %vm939, %v957
      %v962 = vlaneseq
      %v963 = vshrl.u32 %v962, 7
      %v964 = vsub.s32 2, %v963
      %v965 = vrot.slane %v906, %v964
      %967 = vrot.lane.b32.xlu0 %v965, 57
      %v968 = vpop.permute.xlu0 %967
      %v970 = vmul.f32 %v919, %v968
      %v971 = vmul.f32 %v920, %v968
      %974 = vrot.lane.b32.xlu0 %v970, 71
      %v975 = vpop.permute.xlu0 %974
      %976 = vrot.lane.b32.xlu0 %v971, 71
      %v977 = vpop.permute.xlu0 %976
      %980 = vst.msk [vmem:[#allocation2 + $0x20] sm:$0xff] %vm939, %v975
      %981 = vst.msk [vmem:[#allocation2 + $0x28] sm:$0xff] %vm939, %v977
      %v982 = vlaneseq
      %v983 = vshrl.u32 %v982, 7
      %v984 = vsub.s32 3, %v983
      %v985 = vrot.slane %v906, %v984
      %987 = vrot.lane.b32.xlu0 %v985, 63
      %v988 = vpop.permute.xlu0 %987
      %v990 = vmul.f32 %v919, %v988
      %v991 = vmul.f32 %v920, %v988
      %994 = vrot.lane.b32.xlu0 %v990, 65
      %v995 = vpop.permute.xlu0 %994
      %996 = vrot.lane.b32.xlu0 %v991, 65
      %v997 = vpop.permute.xlu0 %996
      %1000 = vst.msk [vmem:[#allocation2 + $0x30] sm:$0xff] %vm939, %v995
      %1001 = vst.msk [vmem:[#allocation2 + $0x38] sm:$0xff] %vm939, %v997
      %v1002 = vlaneseq
      %v1003 = vshrl.u32 %v1002, 7
      %v1004 = vsub.s32 4, %v1003
      %v1005 = vrot.slane %v906, %v1004
      %v1006 = vmul.f32 %v904, %v1005
      %v1007 = vmul.f32 %v905, %v1005
      %1008 = vst.msk [vmem:[#allocation2 + $0x40] sm:$0xff] %vm939, %v1006
      %1009 = vst.msk [vmem:[#allocation2 + $0x48] sm:$0xff] %vm939, %v1007
      %v1010 = vlaneseq
      %v1011 = vshrl.u32 %v1010, 7
      %v1012 = vsub.s32 5, %v1011
      %v1013 = vrot.slane %v906, %v1012
      %1015 = vrot.lane.b32.xlu0 %v1013, 1
      %v1016 = vpop.permute.xlu0 %1015
      %v1018 = vmul.f32 %v919, %v1016
      %v1019 = vmul.f32 %v920, %v1016
      %1022 = vrot.lane.b32.xlu0 %v1018, 127
      %v1023 = vpop.permute.xlu0 %1022
      %1024 = vrot.lane.b32.xlu0 %v1019, 127
      %v1025 = vpop.permute.xlu0 %1024
      %1028 = vst.msk [vmem:[#allocation2 + $0x50] sm:$0xff] %vm939, %v1023
      %1029 = vst.msk [vmem:[#allocation2 + $0x58] sm:$0xff] %vm939, %v1025
      %v1030 = vlaneseq
      %v1031 = vshrl.u32 %v1030, 7
      %v1032 = vsub.s32 6, %v1031
      %v1033 = vrot.slane %v906, %v1032
      %1035 = vrot.lane.b32.xlu0 %v1033, 7
      %v1036 = vpop.permute.xlu0 %1035
      %v1038 = vmul.f32 %v919, %v1036
      %v1039 = vmul.f32 %v920, %v1036
      %1042 = vrot.lane.b32.xlu0 %v1038, 121
      %v1043 = vpop.permute.xlu0 %1042
      %1044 = vrot.lane.b32.xlu0 %v1039, 121
      %v1045 = vpop.permute.xlu0 %1044
      %1048 = vst.msk [vmem:[#allocation2 + $0x60] sm:$0xff] %vm939, %v1043
      %1049 = vst.msk [vmem:[#allocation2 + $0x68] sm:$0xff] %vm939, %v1045
      %v1050 = vlaneseq
      %v1051 = vshrl.u32 %v1050, 7
      %v1052 = vsub.s32 7, %v1051
      %v1053 = vrot.slane %v906, %v1052
      %1055 = vrot.lane.b32.xlu0 %v1053, 8
      %v1056 = vpop.permute.xlu0 %1055
      %v1058 = vmul.f32 %v919, %v1056
      %v1059 = vmul.f32 %v920, %v1056
      %1062 = vrot.lane.b32.xlu0 %v1058, 120
      %v1063 = vpop.permute.xlu0 %1062
      %1064 = vrot.lane.b32.xlu0 %v1059, 120
      %v1065 = vpop.permute.xlu0 %1064
      %1068 = vst.msk [vmem:[#allocation2 + $0x70] sm:$0xff] %vm939, %v1063
      %1069 = vst.msk [vmem:[#allocation2 + $0x78] sm:$0xff] %vm939, %v1065
      %v1070 = vlaneseq
      %v1071 = vshrl.u32 %v1070, 7
      %v1072 = vsub.s32 0, %v1071
      %v1073 = vrot.slane %v907, %v1072
      %1075 = vrot.lane.b32.xlu0 %v1073, 9
      %v1076 = vpop.permute.xlu0 %1075
      %v1078 = vmul.f32 %v919, %v1076
      %v1079 = vmul.f32 %v920, %v1076
      %1082 = vrot.lane.b32.xlu0 %v1078, 119
      %v1083 = vpop.permute.xlu0 %1082
      %1084 = vrot.lane.b32.xlu0 %v1079, 119
      %v1085 = vpop.permute.xlu0 %1084
      %1088 = vst.msk [vmem:[#allocation2 + $0x80] sm:$0xff] %vm939, %v1083
      %1089 = vst.msk [vmem:[#allocation2 + $0x88] sm:$0xff] %vm939, %v1085
      %v1090 = vld [vmem:[%s9] sm:$0xff]
      %v1091 = vld [vmem:[%s9 + $0x8] sm:$0xff]
      %v1092 = vld [vmem:[#allocation2] sm:$0xff]
      %v1093 = vld [vmem:[#allocation2 + $0x8] sm:$0xff]
      %v1094 = vld [vmem:[#allocation2 + $0x10] sm:$0xff]
      %v1095 = vld [vmem:[#allocation2 + $0x18] sm:$0xff]
      %v1096 = vld [vmem:[#allocation2 + $0x20] sm:$0xff]
      %v1097 = vld [vmem:[#allocation2 + $0x28] sm:$0xff]
      %v1098 = vld [vmem:[#allocation2 + $0x30] sm:$0xff]
      %v1099 = vld [vmem:[#allocation2 + $0x38] sm:$0xff]
      %v1100 = vld [vmem:[#allocation2 + $0x40] sm:$0xff]
      %v1101 = vld [vmem:[#allocation2 + $0x48] sm:$0xff]
      %v1102 = vld [vmem:[#allocation2 + $0x50] sm:$0xff]
      %v1103 = vld [vmem:[#allocation2 + $0x58] sm:$0xff]
      %v1104 = vld [vmem:[#allocation2 + $0x60] sm:$0xff]
      %v1105 = vld [vmem:[#allocation2 + $0x68] sm:$0xff]
      %v1106 = vld [vmem:[#allocation2 + $0x70] sm:$0xff]
      %v1107 = vld [vmem:[#allocation2 + $0x78] sm:$0xff]
      %v1108 = vld [vmem:[#allocation2 + $0x80] sm:$0xff]
      %v1109 = vld [vmem:[#allocation2 + $0x88] sm:$0xff]
      %v1110 = vpack.c.bf16 %v1093, %v1092
      %v1111 = vpack.c.bf16 %v1095, %v1094
      %v1112 = vpack.c.bf16 %v1097, %v1096
      %v1113 = vpack.c.bf16 %v1099, %v1098
      %v1114 = vpack.c.bf16 %v1101, %v1100
      %v1115 = vpack.c.bf16 %v1103, %v1102
      %v1116 = vpack.c.bf16 %v1105, %v1104
      %v1117 = vpack.c.bf16 %v1107, %v1106
      %v1118 = vpack.c.bf16 %v1109, %v1108
      %v1119 = vld [vmem:[%s10] sm:$0xff]
      %v1120 = vld [vmem:[%s10 + $0x8] sm:$0xff]
      %1122 = vset.pattern.permute.xlu0 0
      %1123 = vperm.xlu0 %1122, %v1119
      %v1124 = vpop.permute.xlu0 %1123
      %1127 = vset.pattern.permute.xlu0 0
      %1128 = vperm.xlu0 %1127, %v1120
      %v1129 = vpop.permute.xlu0 %1128
      %v1133 = vunpack.c.l.b16 %v1090
      %v1134 = vunpack.c.h.b16 %v1090
      %v1135 = vunpack.c.l.b16 %v1091
      %v1136 = vunpack.c.h.b16 %v1091
      %v1137 = vpack.c.b16 %v1135, %v1133
      %v1138 = vpack.c.b16 %v1136, %v1134
      %v1141 = vsel %vm438, %v1138, 0
      %1143 = vmatprep.subr.bf16.mxu0 0
      %1144 = vmatpush1.bf16.msra.mxu0 %v1117
      %1145 = vmatprep.subr.bf16.mxu0 0
      %1146 = vmatpush1.bf16.msra.mxu0 %v1116
      %1147 = vmatprep.subr.bf16.mxu0 0
      %1148 = vmatpush1.bf16.msra.mxu0 %v1115
      %1149 = vmatprep.subr.bf16.mxu0 0
      %1150 = vmatpush1.bf16.msra.mxu0 %v1114
      %1151 = vmatprep.subr.bf16.mxu0 0
      %1152 = vmatpush1.bf16.msra.mxu0 %v1113
      %1153 = vmatprep.subr.bf16.mxu0 0
      %1154 = vmatpush1.bf16.msra.mxu0 %v1112
      %1155 = vmatprep.subr.bf16.mxu0 0
      %1156 = vmatpush1.bf16.msra.mxu0 %v1111
      %1157 = vmatprep.subr.bf16.mxu0 0
      %1158 = vmatpush1.bf16.msra.mxu0 %v1110
      %1159 = vmatprep.subr.bf16.mxu0 0
      %1160 = vmatpush2.bf16.msra.mxu0 0
      %1161 = vmatprep.subr.bf16.mxu0 0
      %1162 = vmatpush2.bf16.msra.mxu0 0
      %1163 = vmatprep.subr.bf16.mxu0 0
      %1164 = vmatpush2.bf16.msra.mxu0 0
      %1165 = vmatprep.subr.bf16.mxu0 0
      %1166 = vmatpush2.bf16.msra.mxu0 0
      %1167 = vmatprep.subr.bf16.mxu0 0
      %1168 = vmatpush2.bf16.msra.mxu0 0
      %1169 = vmatprep.subr.bf16.mxu0 0
      %1170 = vmatpush2.bf16.msra.mxu0 0
      %1171 = vmatprep.subr.bf16.mxu0 0
      %1172 = vmatpush2.bf16.msra.mxu0 0
      %1173 = vmatprep.subr.bf16.mxu0 0
      %1174 = vmatpush2.bf16.msra.mxu0 %v1118
      %1175 = vmatprep.mubr.bf16.mxu0 %v1141
      %1176 = vmatmul.mubr.bf16.gmra.mxu0 %v1137
      %v1177 = vpop.f32.mrf.mxu0
      %v1178 = vadd.f32 %v1124, %v1177
      %v1179 = vpop.f32.mrf.mxu0
      %v1180 = vpop.f32.mrf.mxu0
      %v1181 = vadd.f32 %v1129, %v1180
      %v1182 = vpop.f32.mrf.mxu0
      %1183 = vdwg.mxu0
      %1184 = vst.msk [vmem:[%s406] sm:$0xff] %vm939, %v1178
      %1185 = vst.msk [vmem:[%s406 + $0x8] sm:$0xff] %vm939, %v1181
      %p1186 = scmp.lt.s32.totalorder %s22, 1
      %s1187 = scalar_select %p1186, %s22, 1
      %s1188 = smul.addr %s1187, 2
      %s1189 = smul.addr %s1188, 8
      %s1190 = scalar_lea.vmem %s11, %s1189
      // Predicated region
      $region65: #{time_adapter_forward.16} parent=63 // pred_check
        %p1191 = pneg %p281
      $region66: #{time_adapter_forward.16} parent=63 // pred_check_branch
        %1193 = sbr.rel (%p1191) target = $region68
      $region67: #{time_adapter_forward.16} parent=63 // pred_region
        _
      $region68: #{time_adapter_forward.16} parent=63 // pred_fallthru
        _
    $region64: #{time_adapter_forward.16} parent=5 // pred_fallthru
      _
    %p1194 = scmp.le.s32.totalorder 2, %s17
    // Predicated region
    $region69: #{time_adapter_forward.16} parent=5 // pred_check
      %p1195 = pneg %p1194
    $region70: #{time_adapter_forward.16} parent=5 // pred_check_branch
      %1197 = sbr.rel (%p1195) target = $region72
    $region71: #{time_adapter_forward.16} parent=5 // pred_region
      %s1198 = ssub.s32 %s17, 2
      // Predicated region
      $region73: #{time_adapter_forward.16} parent=71 // pred_check
        %p1199 = pneg %p287
      $region74: #{time_adapter_forward.16} parent=71 // pred_check_branch
        %1201 = sbr.rel (%p1199) target = $region76
      $region75: #{time_adapter_forward.16} parent=71 // pred_region
        %p1202 = scmp.lt.s32.totalorder %s23, 1
        %s1203 = scalar_select %p1202, %s23, 1
        %s1204 = smul.addr %s1203, 2
        %s1205 = smul.addr %s1204, 8
        %s1206 = scalar_lea.vmem %s11, %s1205
      $region76: #{time_adapter_forward.16} parent=71 // pred_fallthru
        _
    $region72: #{time_adapter_forward.16} parent=5 // pred_fallthru
      _
  $region6: #{time_adapter_forward.16} parent=0 // loop_footer
    %s21 = sadd.s32 1, %s17
  $region7: #{time_adapter_forward.16} parent=0 // loop_footer_branch
    %16 = sbr.rel target = $region3
  $region8: #{time_adapter_forward.16} parent=0 // loop_exit
    _

// kernel: time_adapter_forward.19
$region0: #{time_adapter_forward.19}
  #allocation0 [shape = 'u32[]', space=smem, size = 0x4, offset = 0x4, fixed_abs, tag = 'smem constant byte address 0x4 - core index']
  #allocation1 [shape = 'u32[144,128]{1,0:T(1,128)}', space=vmem, size = 0x12000, scoped, tag = 'internal scratch']
  #allocation2 [shape = 'f32[144,64]{1,0:T(8,128)}', space=vmem, size = 0x12000, scoped, tag = 'scratch operand']
  %s0 = inlined_call_operand.vmem [shape: f32[2,16,64], index: 0, kind: input, shape index: {}]
  %s1 = inlined_call_operand.vmem [shape: f32[16,1], index: 1, kind: input, shape index: {}]
  %s2 = inlined_call_operand.vmem [shape: f32[16,1], index: 2, kind: input, shape index: {}]
  %s3 = inlined_call_operand.vmem [shape: f32[16,4], index: 3, kind: input, shape index: {}]
  %s4 = inlined_call_operand.vmem [shape: f32[4,16], index: 4, kind: input, shape index: {}]
  %s5 = inlined_call_operand.vmem [shape: f32[2,16,1], index: 5, kind: input, shape index: {}]
  %s6 = inlined_call_operand.vmem [shape: f32[16,16], index: 6, kind: input, shape index: {}]
  %s7 = inlined_call_operand.vmem [shape: f32[16,1], index: 7, kind: input, shape index: {}]
  %s8 = inlined_call_operand.vmem [shape: f32[9,64], index: 8, kind: input, shape index: {}]
  %s9 = inlined_call_operand.vmem [shape: bf16[16,144], index: 9, kind: input, shape index: {}]
  %s10 = inlined_call_operand.vmem [shape: f32[16,1], index: 10, kind: input, shape index: {}]
  %s11 = inlined_call_operand.vmem [shape: f32[2,16,64], index: 11, kind: input, shape index: {}]
  %s12 = inlined_call_operand.vmem [shape: f32[2,16,64], index: 12, kind: output, shape index: {}]
  %s13 = sld [smem:[#allocation0]]
  $region81: #{time_adapter_forward.19} parent=0
    _
  %s15 = ssub.s32 1, %s13
  %s16 = scalar_select 0, %s15, %s13
  loop: start=0, step=1, limit=4
  $region2: #{time_adapter_forward.19} parent=0 // loop_pre_header
    _
  $region3: #{time_adapter_forward.19} parent=0 // loop_header
    %s18 = sphi 0, %s22
    %p19 = scmp.ge.s32.totalorder %s18, 4
    %s28 = sphi 0, %s30
    %s31 = sphi 0, %s28
    %s32 = sphi 0, %s31
    %s48 = sphi 0, %s32
    %s52 = sphi 0, %s52
    %s54 = sphi 0, %s52
    %s55 = sphi 0, %s54
    %s69 = sphi 0, %s55
    %s73 = sphi 0, %s73
    %s75 = sphi 0, %s73
    %s76 = sphi 0, %s75
    %s90 = sphi 0, %s76
    %s94 = sphi 0, %s94
    %s96 = sphi 0, %s94
    %s97 = sphi 0, %s96
    %s111 = sphi 0, %s97
    %s115 = sphi 0, %s115
    %s117 = sphi 0, %s115
    %s118 = sphi 0, %s117
    %s132 = sphi 0, %s118
    %s138 = sphi 0, %s140
    %s141 = sphi 0, %s138
    %s142 = sphi 0, %s141
    %s158 = sphi 0, %s142
    %s162 = sphi 0, %s162
    %s164 = sphi 0, %s162
    %s165 = sphi 0, %s164
    %s179 = sphi 0, %s165
    %s183 = sphi 0, %s183
    %s185 = sphi 0, %s183
    %s186 = sphi 0, %s185
    %s200 = sphi 0, %s186
    %s204 = sphi 0, %s204
    %s206 = sphi 0, %s204
    %s207 = sphi 0, %s206
    %s221 = sphi 0, %s207
    %s225 = sphi 0, %s225
    %s227 = sphi 0, %s225
    %s228 = sphi 0, %s227
    %s242 = sphi 0, %s228
    %s246 = sphi 0, %s246
    %s248 = sphi 0, %s246
    %s249 = sphi 0, %s248
    %s263 = sphi 0, %s249
    %s269 = sphi 0, %s271
    %s272 = sphi 0, %s269
    %s273 = sphi 0, %s272
    %s289 = sphi 0, %s273
    %s295 = sphi 0, %s297
    %s298 = sphi 0, %s295
    %s299 = sphi 0, %s298
    %s315 = sphi 0, %s299
  $region4: #{time_adapter_forward.19} parent=0 // loop_header_branch
    %21 = sbr.rel (%p19) target = $region8
  $region5: #{time_adapter_forward.19} parent=0 // loop_body
    %s23 = ssub.s32 %s18, 1
    %s24 = ssub.s32 %s18, 2
    %s25 = sadd.s32 %s18, 1
    %s26 = ssub.s32 %s18, %s25
    %p27 = scmp.eq.s32.totalorder %s26, 0
    %s29 = sadd.s32 %s28, 1
    %s30 = scalar_select %p27, %s28, %s29
    %p33 = pneg %p27
    %p34 = scmp.eq.s32.totalorder %s18, 1
    %p35 = por %p33, %p34
    %p36 = scmp.ne.s32.totalorder %s28, %s31
    %p37 = scmp.eq.s32.totalorder %s18, 0
    %p38 = por %p36, %p37
    %p39 = scmp.ne.s32.totalorder %s28, %s31
    %p40 = scmp.eq.s32.totalorder %s23, 1
    %p41 = por %p39, %p40
    %p42 = scmp.ne.s32.totalorder %s31, %s32
    %p43 = scmp.eq.s32.totalorder %s23, 0
    %p44 = por %p42, %p43
    %p45 = scmp.ne.s32.totalorder %s31, %s32
    %p46 = scmp.eq.s32.totalorder %s24, 1
    %p47 = por %p45, %p46
    %p49 = scmp.ne.s32.totalorder %s32, %s48
    %p50 = scmp.eq.s32.totalorder %s24, 0
    %p51 = por %p49, %p50
    %s53 = sadd.s32 %s52, 1
    %p56 = scmp.eq.s32.totalorder %s18, 1
    %p57 = scmp.ne.s32.totalorder %s52, %s54
    %p58 = scmp.eq.s32.totalorder %s18, 0
    %p59 = por %p57, %p58
    %p60 = scmp.ne.s32.totalorder %s52, %s54
    %p61 = scmp.eq.s32.totalorder %s23, 1
    %p62 = por %p60, %p61
    %p63 = scmp.ne.s32.totalorder %s54, %s55
    %p64 = scmp.eq.s32.totalorder %s23, 0
    %p65 = por %p63, %p64
    %p66 = scmp.ne.s32.totalorder %s54, %s55
    %p67 = scmp.eq.s32.totalorder %s24, 1
    %p68 = por %p66, %p67
    %p70 = scmp.ne.s32.totalorder %s55, %s69
    %p71 = scmp.eq.s32.totalorder %s24, 0
    %p72 = por %p70, %p71
    %s74 = sadd.s32 %s73, 1
    %p77 = scmp.eq.s32.totalorder %s18, 1
    %p78 = scmp.ne.s32.totalorder %s73, %s75
    %p79 = scmp.eq.s32.totalorder %s18, 0
    %p80 = por %p78, %p79
    %p81 = scmp.ne.s32.totalorder %s73, %s75
    %p82 = scmp.eq.s32.totalorder %s23, 1
    %p83 = por %p81, %p82
    %p84 = scmp.ne.s32.totalorder %s75, %s76
    %p85 = scmp.eq.s32.totalorder %s23, 0
    %p86 = por %p84, %p85
    %p87 = scmp.ne.s32.totalorder %s75, %s76
    %p88 = scmp.eq.s32.totalorder %s24, 1
    %p89 = por %p87, %p88
    %p91 = scmp.ne.s32.totalorder %s76, %s90
    %p92 = scmp.eq.s32.totalorder %s24, 0
    %p93 = por %p91, %p92
    %s95 = sadd.s32 %s94, 1
    %p98 = scmp.eq.s32.totalorder %s18, 1
    %p99 = scmp.ne.s32.totalorder %s94, %s96
    %p100 = scmp.eq.s32.totalorder %s18, 0
    %p101 = por %p99, %p100
    %p102 = scmp.ne.s32.totalorder %s94, %s96
    %p103 = scmp.eq.s32.totalorder %s23, 1
    %p104 = por %p102, %p103
    %p105 = scmp.ne.s32.totalorder %s96, %s97
    %p106 = scmp.eq.s32.totalorder %s23, 0
    %p107 = por %p105, %p106
    %p108 = scmp.ne.s32.totalorder %s96, %s97
    %p109 = scmp.eq.s32.totalorder %s24, 1
    %p110 = por %p108, %p109
    %p112 = scmp.ne.s32.totalorder %s97, %s111
    %p113 = scmp.eq.s32.totalorder %s24, 0
    %p114 = por %p112, %p113
    %s116 = sadd.s32 %s115, 1
    %p119 = scmp.eq.s32.totalorder %s18, 1
    %p120 = scmp.ne.s32.totalorder %s115, %s117
    %p121 = scmp.eq.s32.totalorder %s18, 0
    %p122 = por %p120, %p121
    %p123 = scmp.ne.s32.totalorder %s115, %s117
    %p124 = scmp.eq.s32.totalorder %s23, 1
    %p125 = por %p123, %p124
    %p126 = scmp.ne.s32.totalorder %s117, %s118
    %p127 = scmp.eq.s32.totalorder %s23, 0
    %p128 = por %p126, %p127
    %p129 = scmp.ne.s32.totalorder %s117, %s118
    %p130 = scmp.eq.s32.totalorder %s24, 1
    %p131 = por %p129, %p130
    %p133 = scmp.ne.s32.totalorder %s118, %s132
    %p134 = scmp.eq.s32.totalorder %s24, 0
    %p135 = por %p133, %p134
    %s136 = ssub.s32 %s18, %s25
    %p137 = scmp.eq.s32.totalorder %s136, 0
    %s139 = sadd.s32 %s138, 1
    %s140 = scalar_select %p137, %s138, %s139
    %p143 = pneg %p137
    %p144 = scmp.eq.s32.totalorder %s18, 1
    %p145 = por %p143, %p144
    %p146 = scmp.ne.s32.totalorder %s138, %s141
    %p147 = scmp.eq.s32.totalorder %s18, 0
    %p148 = por %p146, %p147
    %p149 = scmp.ne.s32.totalorder %s138, %s141
    %p150 = scmp.eq.s32.totalorder %s23, 1
    %p151 = por %p149, %p150
    %p152 = scmp.ne.s32.totalorder %s141, %s142
    %p153 = scmp.eq.s32.totalorder %s23, 0
    %p154 = por %p152, %p153
    %p155 = scmp.ne.s32.totalorder %s141, %s142
    %p156 = scmp.eq.s32.totalorder %s24, 1
    %p157 = por %p155, %p156
    %p159 = scmp.ne.s32.totalorder %s142, %s158
    %p160 = scmp.eq.s32.totalorder %s24, 0
    %p161 = por %p159, %p160
    %s163 = sadd.s32 %s162, 1
    %p166 = scmp.eq.s32.totalorder %s18, 1
    %p167 = scmp.ne.s32.totalorder %s162, %s164
    %p168 = scmp.eq.s32.totalorder %s18, 0
    %p169 = por %p167, %p168
    %p170 = scmp.ne.s32.totalorder %s162, %s164
    %p171 = scmp.eq.s32.totalorder %s23, 1
    %p172 = por %p170, %p171
    %p173 = scmp.ne.s32.totalorder %s164, %s165
    %p174 = scmp.eq.s32.totalorder %s23, 0
    %p175 = por %p173, %p174
    %p176 = scmp.ne.s32.totalorder %s164, %s165
    %p177 = scmp.eq.s32.totalorder %s24, 1
    %p178 = por %p176, %p177
    %p180 = scmp.ne.s32.totalorder %s165, %s179
    %p181 = scmp.eq.s32.totalorder %s24, 0
    %p182 = por %p180, %p181
    %s184 = sadd.s32 %s183, 1
    %p187 = scmp.eq.s32.totalorder %s18, 1
    %p188 = scmp.ne.s32.totalorder %s183, %s185
    %p189 = scmp.eq.s32.totalorder %s18, 0
    %p190 = por %p188, %p189
    %p191 = scmp.ne.s32.totalorder %s183, %s185
    %p192 = scmp.eq.s32.totalorder %s23, 1
    %p193 = por %p191, %p192
    %p194 = scmp.ne.s32.totalorder %s185, %s186
    %p195 = scmp.eq.s32.totalorder %s23, 0
    %p196 = por %p194, %p195
    %p197 = scmp.ne.s32.totalorder %s185, %s186
    %p198 = scmp.eq.s32.totalorder %s24, 1
    %p199 = por %p197, %p198
    %p201 = scmp.ne.s32.totalorder %s186, %s200
    %p202 = scmp.eq.s32.totalorder %s24, 0
    %p203 = por %p201, %p202
    %s205 = sadd.s32 %s204, 1
    %p208 = scmp.eq.s32.totalorder %s18, 1
    %p209 = scmp.ne.s32.totalorder %s204, %s206
    %p210 = scmp.eq.s32.totalorder %s18, 0
    %p211 = por %p209, %p210
    %p212 = scmp.ne.s32.totalorder %s204, %s206
    %p213 = scmp.eq.s32.totalorder %s23, 1
    %p214 = por %p212, %p213
    %p215 = scmp.ne.s32.totalorder %s206, %s207
    %p216 = scmp.eq.s32.totalorder %s23, 0
    %p217 = por %p215, %p216
    %p218 = scmp.ne.s32.totalorder %s206, %s207
    %p219 = scmp.eq.s32.totalorder %s24, 1
    %p220 = por %p218, %p219
    %p222 = scmp.ne.s32.totalorder %s207, %s221
    %p223 = scmp.eq.s32.totalorder %s24, 0
    %p224 = por %p222, %p223
    %s226 = sadd.s32 %s225, 1
    %p229 = scmp.eq.s32.totalorder %s18, 1
    %p230 = scmp.ne.s32.totalorder %s225, %s227
    %p231 = scmp.eq.s32.totalorder %s18, 0
    %p232 = por %p230, %p231
    %p233 = scmp.ne.s32.totalorder %s225, %s227
    %p234 = scmp.eq.s32.totalorder %s23, 1
    %p235 = por %p233, %p234
    %p236 = scmp.ne.s32.totalorder %s227, %s228
    %p237 = scmp.eq.s32.totalorder %s23, 0
    %p238 = por %p236, %p237
    %p239 = scmp.ne.s32.totalorder %s227, %s228
    %p240 = scmp.eq.s32.totalorder %s24, 1
    %p241 = por %p239, %p240
    %p243 = scmp.ne.s32.totalorder %s228, %s242
    %p244 = scmp.eq.s32.totalorder %s24, 0
    %p245 = por %p243, %p244
    %s247 = sadd.s32 %s246, 1
    %p250 = scmp.eq.s32.totalorder %s18, 1
    %p251 = scmp.ne.s32.totalorder %s246, %s248
    %p252 = scmp.eq.s32.totalorder %s18, 0
    %p253 = por %p251, %p252
    %p254 = scmp.ne.s32.totalorder %s246, %s248
    %p255 = scmp.eq.s32.totalorder %s23, 1
    %p256 = por %p254, %p255
    %p257 = scmp.ne.s32.totalorder %s248, %s249
    %p258 = scmp.eq.s32.totalorder %s23, 0
    %p259 = por %p257, %p258
    %p260 = scmp.ne.s32.totalorder %s248, %s249
    %p261 = scmp.eq.s32.totalorder %s24, 1
    %p262 = por %p260, %p261
    %p264 = scmp.ne.s32.totalorder %s249, %s263
    %p265 = scmp.eq.s32.totalorder %s24, 0
    %p266 = por %p264, %p265
    %s267 = ssub.s32 %s18, %s25
    %p268 = scmp.eq.s32.totalorder %s267, 0
    %s270 = sadd.s32 %s269, 1
    %s271 = scalar_select %p268, %s269, %s270
    %p274 = pneg %p268
    %p275 = scmp.eq.s32.totalorder %s18, 1
    %p276 = por %p274, %p275
    %p277 = scmp.ne.s32.totalorder %s269, %s272
    %p278 = scmp.eq.s32.totalorder %s18, 0
    %p279 = por %p277, %p278
    %p280 = scmp.ne.s32.totalorder %s269, %s272
    %p281 = scmp.eq.s32.totalorder %s23, 1
    %p282 = por %p280, %p281
    %p283 = scmp.ne.s32.totalorder %s272, %s273
    %p284 = scmp.eq.s32.totalorder %s23, 0
    %p285 = por %p283, %p284
    %p286 = scmp.ne.s32.totalorder %s272, %s273
    %p287 = scmp.eq.s32.totalorder %s24, 1
    %p288 = por %p286, %p287
    %p290 = scmp.ne.s32.totalorder %s273, %s289
    %p291 = scmp.eq.s32.totalorder %s24, 0
    %p292 = por %p290, %p291
    %s293 = ssub.s32 %s18, %s25
    %p294 = scmp.eq.s32.totalorder %s293, 0
    %s296 = sadd.s32 %s295, 1
    %s297 = scalar_select %p294, %s295, %s296
    %p300 = pneg %p294
    %p301 = scmp.eq.s32.totalorder %s18, 1
    %p302 = por %p300, %p301
    %p303 = scmp.ne.s32.totalorder %s295, %s298
    %p304 = scmp.eq.s32.totalorder %s18, 0
    %p305 = por %p303, %p304
    %p306 = scmp.ne.s32.totalorder %s295, %s298
    %p307 = scmp.eq.s32.totalorder %s23, 1
    %p308 = por %p306, %p307
    %p309 = scmp.ne.s32.totalorder %s298, %s299
    %p310 = scmp.eq.s32.totalorder %s23, 0
    %p311 = por %p309, %p310
    %p312 = scmp.ne.s32.totalorder %s298, %s299
    %p313 = scmp.eq.s32.totalorder %s24, 1
    %p314 = por %p312, %p313
    %p316 = scmp.ne.s32.totalorder %s299, %s315
    %p317 = scmp.eq.s32.totalorder %s24, 0
    %p318 = por %p316, %p317
    %p319 = scmp.le.s32.totalorder 1, %s18
    %p320 = scmp.lt.s32.totalorder %s18, 3
    %p321 = pnand %p319, %p320
    %p322 = pneg %p321
    // Predicated region
    $region9: #{time_adapter_forward.19} parent=5 // pred_check
      _
    $region10: #{time_adapter_forward.19} parent=5 // pred_check_branch
      %324 = sbr.rel (%p321) target = $region12
    $region11: #{time_adapter_forward.19} parent=5 // pred_region
      %s325 = ssub.s32 %s18, 1
      // Predicated region
      $region13: #{time_adapter_forward.19} parent=11 // pred_check
        %p326 = pneg %p65
      $region14: #{time_adapter_forward.19} parent=11 // pred_check_branch
        %328 = sbr.rel (%p326) target = $region16
      $region15: #{time_adapter_forward.19} parent=11 // pred_region
        _
      $region16: #{time_adapter_forward.19} parent=11 // pred_fallthru
        _
      // Predicated region
      $region17: #{time_adapter_forward.19} parent=11 // pred_check
        %p329 = pneg %p86
      $region18: #{time_adapter_forward.19} parent=11 // pred_check_branch
        %331 = sbr.rel (%p329) target = $region20
      $region19: #{time_adapter_forward.19} parent=11 // pred_region
        _
      $region20: #{time_adapter_forward.19} parent=11 // pred_fallthru
        _
      // Predicated region
      $region21: #{time_adapter_forward.19} parent=11 // pred_check
        %p332 = pneg %p107
      $region22: #{time_adapter_forward.19} parent=11 // pred_check_branch
        %334 = sbr.rel (%p332) target = $region24
      $region23: #{time_adapter_forward.19} parent=11 // pred_region
        _
      $region24: #{time_adapter_forward.19} parent=11 // pred_fallthru
        _
      // Predicated region
      $region25: #{time_adapter_forward.19} parent=11 // pred_check
        %p335 = pneg %p128
      $region26: #{time_adapter_forward.19} parent=11 // pred_check_branch
        %337 = sbr.rel (%p335) target = $region28
      $region27: #{time_adapter_forward.19} parent=11 // pred_region
        _
      $region28: #{time_adapter_forward.19} parent=11 // pred_fallthru
        _
      // Predicated region
      $region29: #{time_adapter_forward.19} parent=11 // pred_check
        %p338 = pneg %p175
      $region30: #{time_adapter_forward.19} parent=11 // pred_check_branch
        %340 = sbr.rel (%p338) target = $region32
      $region31: #{time_adapter_forward.19} parent=11 // pred_region
        _
      $region32: #{time_adapter_forward.19} parent=11 // pred_fallthru
        _
      // Predicated region
      $region33: #{time_adapter_forward.19} parent=11 // pred_check
        %p341 = pneg %p196
      $region34: #{time_adapter_forward.19} parent=11 // pred_check_branch
        %343 = sbr.rel (%p341) target = $region36
      $region35: #{time_adapter_forward.19} parent=11 // pred_region
        _
      $region36: #{time_adapter_forward.19} parent=11 // pred_fallthru
        _
      // Predicated region
      $region37: #{time_adapter_forward.19} parent=11 // pred_check
        %p344 = pneg %p217
      $region38: #{time_adapter_forward.19} parent=11 // pred_check_branch
        %346 = sbr.rel (%p344) target = $region40
      $region39: #{time_adapter_forward.19} parent=11 // pred_region
        _
      $region40: #{time_adapter_forward.19} parent=11 // pred_fallthru
        _
      // Predicated region
      $region41: #{time_adapter_forward.19} parent=11 // pred_check
        %p347 = pneg %p238
      $region42: #{time_adapter_forward.19} parent=11 // pred_check_branch
        %349 = sbr.rel (%p347) target = $region44
      $region43: #{time_adapter_forward.19} parent=11 // pred_region
        _
      $region44: #{time_adapter_forward.19} parent=11 // pred_fallthru
        _
      // Predicated region
      $region45: #{time_adapter_forward.19} parent=11 // pred_check
        %p350 = pneg %p259
      $region46: #{time_adapter_forward.19} parent=11 // pred_check_branch
        %352 = sbr.rel (%p350) target = $region48
      $region47: #{time_adapter_forward.19} parent=11 // pred_region
        _
      $region48: #{time_adapter_forward.19} parent=11 // pred_fallthru
        _
    $region12: #{time_adapter_forward.19} parent=5 // pred_fallthru
      _
    %p353 = scmp.lt.s32.totalorder %s18, 2
    // Predicated region
    $region49: #{time_adapter_forward.19} parent=5 // pred_check
      %p354 = pneg %p353
    $region50: #{time_adapter_forward.19} parent=5 // pred_check_branch
      %356 = sbr.rel (%p354) target = $region52
    $region51: #{time_adapter_forward.19} parent=5 // pred_region
      // Predicated region
      $region53: #{time_adapter_forward.19} parent=51 // pred_check
        %p357 = pneg %p38
      $region54: #{time_adapter_forward.19} parent=51 // pred_check_branch
        %359 = sbr.rel (%p357) target = $region56
      $region55: #{time_adapter_forward.19} parent=51 // pred_region
        %p360 = scmp.lt.s32.totalorder %s18, 1
        %s361 = scalar_select %p360, %s18, 1
        %s362 = smul.addr %s361, 2
        %s363 = smul.addr %s362, 8
        %s364 = scalar_lea.vmem %s0, %s363
      $region56: #{time_adapter_forward.19} parent=51 // pred_fallthru
        _
      // Predicated region
      $region57: #{time_adapter_forward.19} parent=51 // pred_check
        %p365 = pneg %p148
      $region58: #{time_adapter_forward.19} parent=51 // pred_check_branch
        %367 = sbr.rel (%p365) target = $region60
      $region59: #{time_adapter_forward.19} parent=51 // pred_region
        %p368 = scmp.lt.s32.totalorder %s18, 1
        %s369 = scalar_select %p368, %s18, 1
        %s370 = smul.addr %s369, 2
        %s371 = smul.addr %s370, 8
        %s372 = scalar_lea.vmem %s5, %s371
      $region60: #{time_adapter_forward.19} parent=51 // pred_fallthru
        _
      // Predicated region
      $region61: #{time_adapter_forward.19} parent=51 // pred_check
        %p373 = pneg %p279
      $region62: #{time_adapter_forward.19} parent=51 // pred_check_branch
        %375 = sbr.rel (%p373) target = $region64
      $region63: #{time_adapter_forward.19} parent=51 // pred_region
        %p376 = scmp.lt.s32.totalorder %s18, 1
        %s377 = scalar_select %p376, %s18, 1
        %s378 = smul.addr %s377, 2
        %s379 = smul.addr %s378, 8
        %s380 = scalar_lea.vmem %s11, %s379
      $region64: #{time_adapter_forward.19} parent=51 // pred_fallthru
        _
    $region52: #{time_adapter_forward.19} parent=5 // pred_fallthru
      _
    %p381 = scmp.le.s32.totalorder 1, %s18
    %p382 = scmp.lt.s32.totalorder %s18, 3
    %p383 = pnand %p381, %p382
    %p384 = pneg %p383
    // Predicated region
    $region65: #{time_adapter_forward.19} parent=5 // pred_check
      _
    $region66: #{time_adapter_forward.19} parent=5 // pred_check_branch
      %386 = sbr.rel (%p383) target = $region68
    $region67: #{time_adapter_forward.19} parent=5 // pred_region
      %s387 = ssub.s32 %s18, 1
      %p388 = scmp.lt.s32.totalorder %s23, 1
      %s389 = scalar_select %p388, %s23, 1
      %s390 = smul.addr %s389, 2
      %s391 = smul.addr %s390, 8
      %s392 = scalar_lea.vmem %s0, %s391
      %p393 = pneg %p44
      %p394 = pneg %p41
      %p395 = pneg %p65
      %p396 = pneg %p62
      %p397 = pneg %p86
      %p398 = pneg %p83
      %p399 = pneg %p107
      %p400 = pneg %p104
      %p401 = pneg %p128
      %p402 = pneg %p125
      %p403 = scmp.lt.s32.totalorder %s23, 1
      %s404 = scalar_select %p403, %s23, 1
      %s405 = smul.addr %s404, 2
      %s406 = smul.addr %s405, 8
      %s407 = scalar_lea.vmem %s5, %s406
      %p408 = pneg %p154
      %p409 = pneg %p151
      %p410 = pneg %p175
      %p411 = pneg %p172
      %p412 = pneg %p196
      %p413 = pneg %p193
      %p414 = pneg %p217
      %p415 = pneg %p214
      %p416 = pneg %p238
      %p417 = pneg %p235
      %p418 = pneg %p259
      %p419 = pneg %p256
      %p420 = scmp.lt.s32.totalorder %s23, 1
      %s421 = scalar_select %p420, %s23, 1
      %s422 = smul.addr %s421, 2
      %s423 = smul.addr %s422, 8
      %s424 = scalar_lea.vmem %s11, %s423
      %p425 = pneg %p285
      %p426 = pneg %p282
      %p427 = pneg %p311
      %p428 = pneg %p308
      %p429 = scmp.lt.s32.totalorder %s23, 1
      %s430 = scalar_select %p429, %s23, 1
      %s431 = smul.addr %s430, 2
      %s432 = smul.addr %s431, 8
      %s433 = scalar_lea.vmem %s12, %s432
      %p434 = scmp.lt.s32.totalorder %s23, 1
      %s435 = scalar_select %p434, %s23, 1
      %s436 = smul.addr %s435, 2
      %s437 = smul.addr %s436, 8
      %s438 = scalar_lea.vmem %s0, %s437
      %p439 = scmp.lt.s32.totalorder %s23, 1
      %s440 = scalar_select %p439, %s23, 1
      %s441 = smul.addr %s440, 2
      %s442 = smul.addr %s441, 8
      %s443 = scalar_lea.vmem %s5, %s442
      %p444 = scmp.lt.s32.totalorder %s23, 1
      %s445 = scalar_select %p444, %s23, 1
      %s446 = smul.addr %s445, 2
      %s447 = smul.addr %s446, 8
      %s448 = scalar_lea.vmem %s11, %s447
      %p449 = scmp.lt.s32.totalorder %s23, 1
      %s450 = scalar_select %p449, %s23, 1
      %s451 = smul.addr %s450, 2
      %s452 = smul.addr %s451, 8
      %s453 = scalar_lea.vmem %s12, %s452
      %v455 = vld [vmem:[%s438] sm:$0xff]
      %v456 = vld [vmem:[%s438 + $0x8] sm:$0xff]
      %v457 = vld [vmem:[%s443] sm:$0xff]
      %v458 = vld [vmem:[%s443 + $0x8] sm:$0xff]
      %v459 = vxor.u32 %v457, 2147483648
      %v460 = vxor.u32 %v458, 2147483648
      %v461 = vmul.f32 %v459, 1.442695
      %v462 = vpow.pop %v461
      %v463 = vmul.f32 %v460, 1.442695
      %v464 = vpow.pop %v463
      %v465 = vadd.f32 %v462, 1.0
      %v466 = vadd.f32 %v464, 1.0
      %v467 = vrcp.pop %v465
      %v468 = vmul.f32 1.0, %v467
      %v469 = vrcp.pop %v466
      %v470 = vmul.f32 1.0, %v469
      %v471 = vmul.f32 %v457, %v468
      %v472 = vmul.f32 %v458, %v470
      %474 = vset.pattern.permute.xlu0 0
      %475 = vperm.xlu0 %474, %v471
      %v476 = vpop.permute.xlu0 %475
      %479 = vset.pattern.permute.xlu0 0
      %480 = vperm.xlu0 %479, %v472
      %v481 = vpop.permute.xlu0 %480
      %v483 = vld [vmem:[%s6] sm:$0xff]
      %v484 = vld [vmem:[%s6 + $0x8] sm:$0xff]
      %vm485 = vcmask 130048
      %v487 = vsel %vm485, %v483, 0
      %v490 = vsel %vm485, %v484, 0
      %492 = vmatprep.subr.mxu0 0.0
      %493 = vmatpush1.msra.mxu0 0.0
      %494 = vmatprep.subr.mxu0 0.0
      %495 = vmatpush1.msra.mxu0 0.0
      %496 = vmatprep.subr.mxu0 0.0
      %497 = vmatpush1.msra.mxu0 0.0
      %498 = vmatprep.subr.mxu0 0.0
      %499 = vmatpush1.msra.mxu0 0.0
      %500 = vmatprep.subr.mxu0 0.0
      %501 = vmatpush1.msra.mxu0 0.0
      %502 = vmatprep.subr.mxu0 0.0
      %503 = vmatpush1.msra.mxu0 0.0
      %504 = vmatprep.subr.mxu0 0.0
      %505 = vmatpush1.msra.mxu0 0.0
      %506 = vmatprep.subr.mxu0 0.0
      %507 = vmatpush1.msra.mxu0 0.0
      %508 = vmatprep.subr.mxu0 0.0
      %509 = vmatpush1.msra.mxu0 0.0
      %510 = vmatprep.subr.mxu0 0.0
      %511 = vmatpush1.msra.mxu0 0.0
      %512 = vmatprep.subr.mxu0 0.0
      %513 = vmatpush1.msra.mxu0 0.0
      %514 = vmatprep.subr.mxu0 0.0
      %515 = vmatpush1.msra.mxu0 0.0
      %516 = vmatprep.subr.mxu0 0.0
      %517 = vmatpush1.msra.mxu0 0.0
      %518 = vmatprep.subr.mxu0 0.0
      %519 = vmatpush1.msra.mxu0 0.0
      %520 = vmatprep.subr.mxu0 0.0
      %521 = vmatpush1.msra.mxu0 %v481
      %522 = vmatprep.subr.mxu0 0.0
      %523 = vmatpush1.msra.mxu0 %v476
      %524 = vmatprep.subr.mxu0 0.0
      %525 = vmatpush2.msra.mxu0 0.0
      %526 = vmatprep.subr.mxu0 0.0
      %527 = vmatpush2.msra.mxu0 0.0
      %528 = vmatprep.subr.mxu0 0.0
      %529 = vmatpush2.msra.mxu0 0.0
      %530 = vmatprep.subr.mxu0 0.0
      %531 = vmatpush2.msra.mxu0 0.0
      %532 = vmatprep.subr.mxu0 0.0
      %533 = vmatpush2.msra.mxu0 0.0
      %534 = vmatprep.subr.mxu0 0.0
      %535 = vmatpush2.msra.mxu0 0.0
      %536 = vmatprep.subr.mxu0 0.0
      %537 = vmatpush2.msra.mxu0 0.0
      %538 = vmatprep.subr.mxu0 0.0
      %539 = vmatpush2.msra.mxu0 0.0
      %540 = vmatprep.subr.mxu0 0.0
      %541 = vmatpush2.msra.mxu0 0.0
      %542 = vmatprep.subr.mxu0 0.0
      %543 = vmatpush2.msra.mxu0 0.0
      %544 = vmatprep.subr.mxu0 0.0
      %545 = vmatpush2.msra.mxu0 0.0
      %546 = vmatprep.subr.mxu0 0.0
      %547 = vmatpush2.msra.mxu0 0.0
      %548 = vmatprep.subr.mxu0 0.0
      %549 = vmatpush2.msra.mxu0 0.0
      %550 = vmatprep.subr.mxu0 0.0
      %551 = vmatpush2.msra.mxu0 0.0
      %552 = vmatprep.subr.mxu0 0.0
      %553 = vmatpush2.msra.mxu0 0.0
      %554 = vmatprep.subr.mxu0 0.0
      %555 = vmatpush2.msra.mxu0 0.0
      %556 = vmatprep.mubr.f32.mxu0 0.0
      %557 = vmatmul.mubr.f32.gmra.mxu0 %v487
      %v558 = vpop.f32.mrf.mxu0
      %v559 = vadd.f32 0.0, %v558
      %v560 = vpop.f32.mrf.mxu0
      %561 = vmatprep.mubr.f32.mxu0 0.0
      %562 = vmatmul.mubr.f32.gmra.mxu0 %v490
      %v563 = vpop.f32.mrf.mxu0
      %v564 = vadd.f32 0.0, %v563
      %v565 = vpop.f32.mrf.mxu0
      %566 = vdwg.mxu0
      %v567 = vadd.f32 %v455, %v559
      %v568 = vadd.f32 %v456, %v564
      %v569 = vld [vmem:[%s7] sm:$0xff]
      %v570 = vld [vmem:[%s7 + $0x8] sm:$0xff]
      %572 = vset.pattern.permute.xlu0 0
      %573 = vperm.xlu0 %572, %v569
      %v574 = vpop.permute.xlu0 %573
      %577 = vset.pattern.permute.xlu0 0
      %578 = vperm.xlu0 %577, %v570
      %v579 = vpop.permute.xlu0 %578
      %v581 = vadd.f32 %v567, %v574
      %v582 = vadd.f32 %v568, %v579
      %v583 = vld [vmem:[%s3] sm:$0xff]
      %v584 = vld [vmem:[%s3 + $0x8] sm:$0xff]
      %v585 = vld [vmem:[%s4] sm:$0xf]
      %v587 = vsel %vm485, %v585, 0
      %589 = vmatprep.subr.mxu0 0.0
      %590 = vmatpush1.msra.mxu0 0.0
      %591 = vmatprep.subr.mxu0 0.0
      %592 = vmatpush1.msra.mxu0 0.0
      %593 = vmatprep.subr.mxu0 0.0
      %594 = vmatpush1.msra.mxu0 0.0
      %595 = vmatprep.subr.mxu0 0.0
      %596 = vmatpush1.msra.mxu0 0.0
      %597 = vmatprep.subr.mxu0 0.0
      %598 = vmatpush1.msra.mxu0 0.0
      %599 = vmatprep.subr.mxu0 0.0
      %600 = vmatpush1.msra.mxu0 0.0
      %601 = vmatprep.subr.mxu0 0.0
      %602 = vmatpush1.msra.mxu0 0.0
      %603 = vmatprep.subr.mxu0 0.0
      %604 = vmatpush1.msra.mxu0 0.0
      %605 = vmatprep.subr.mxu0 0.0
      %606 = vmatpush1.msra.mxu0 0.0
      %607 = vmatprep.subr.mxu0 0.0
      %608 = vmatpush1.msra.mxu0 0.0
      %609 = vmatprep.subr.mxu0 0.0
      %610 = vmatpush1.msra.mxu0 0.0
      %611 = vmatprep.subr.mxu0 0.0
      %612 = vmatpush1.msra.mxu0 0.0
      %613 = vmatprep.subr.mxu0 0.0
      %614 = vmatpush1.msra.mxu0 0.0
      %615 = vmatprep.subr.mxu0 0.0
      %616 = vmatpush1.msra.mxu0 0.0
      %617 = vmatprep.subr.mxu0 0.0
      %618 = vmatpush1.msra.mxu0 %v582
      %619 = vmatprep.subr.mxu0 0.0
      %620 = vmatpush1.msra.mxu0 %v581
      %621 = vmatprep.subr.mxu0 0.0
      %622 = vmatpush2.msra.mxu0 0.0
      %623 = vmatprep.subr.mxu0 0.0
      %624 = vmatpush2.msra.mxu0 0.0
      %625 = vmatprep.subr.mxu0 0.0
      %626 = vmatpush2.msra.mxu0 0.0
      %627 = vmatprep.subr.mxu0 0.0
      %628 = vmatpush2.msra.mxu0 0.0
      %629 = vmatprep.subr.mxu0 0.0
      %630 = vmatpush2.msra.mxu0 0.0
      %631 = vmatprep.subr.mxu0 0.0
      %632 = vmatpush2.msra.mxu0 0.0
      %633 = vmatprep.subr.mxu0 0.0
      %634 = vmatpush2.msra.mxu0 0.0
      %635 = vmatprep.subr.mxu0 0.0
      %636 = vmatpush2.msra.mxu0 0.0
      %637 = vmatprep.subr.mxu0 0.0
      %638 = vmatpush2.msra.mxu0 0.0
      %639 = vmatprep.subr.mxu0 0.0
      %640 = vmatpush2.msra.mxu0 0.0
      %641 = vmatprep.subr.mxu0 0.0
      %642 = vmatpush2.msra.mxu0 0.0
      %643 = vmatprep.subr.mxu0 0.0
      %644 = vmatpush2.msra.mxu0 0.0
      %645 = vmatprep.subr.mxu0 0.0
      %646 = vmatpush2.msra.mxu0 0.0
      %647 = vmatprep.subr.mxu0 0.0
      %648 = vmatpush2.msra.mxu0 0.0
      %649 = vmatprep.subr.mxu0 0.0
      %650 = vmatpush2.msra.mxu0 0.0
      %651 = vmatprep.subr.mxu0 0.0
      %652 = vmatpush2.msra.mxu0 0.0
      %653 = vmatprep.mubr.f32.mxu0 0.0
      %654 = vmatmul.mubr.f32.gmra.mxu0 %v587
      %v655 = vpop.f32.mrf.mxu0
      %v656 = vadd.f32 0.0, %v655
      %v657 = vpop.f32.mrf.mxu0
      %658 = vdwg.mxu0
      %vm659 = vcmask 519168
      %v660 = vsel %vm659, %v656, 0.0
      %661 = vadd.xlane.f32.xlu0 %v660
      %v662 = vpop.xlane.xlu0 %661
      %v663 = vrcp.pop 256.0
      %v664 = vmul.f32 %v662, %v663
      %vm665 = vcmask 31744
      %v667 = vsel %vm665, %v583, 0
      %v670 = vsel %vm665, %v584, 0
      %vm672 = vcmask 1043456
      %v674 = vsel %vm672, %v664, 0
      %676 = vmatprep.subr.mxu0 0.0
      %677 = vmatpush1.msra.mxu0 0.0
      %678 = vmatprep.subr.mxu0 0.0
      %679 = vmatpush1.msra.mxu0 0.0
      %680 = vmatprep.subr.mxu0 0.0
      %681 = vmatpush1.msra.mxu0 0.0
      %682 = vmatprep.subr.mxu0 0.0
      %683 = vmatpush1.msra.mxu0 0.0
      %684 = vmatprep.subr.mxu0 0.0
      %685 = vmatpush1.msra.mxu0 0.0
      %686 = vmatprep.subr.mxu0 0.0
      %687 = vmatpush1.msra.mxu0 0.0
      %688 = vmatprep.subr.mxu0 0.0
      %689 = vmatpush1.msra.mxu0 0.0
      %690 = vmatprep.subr.mxu0 0.0
      %691 = vmatpush1.msra.mxu0 0.0
      %692 = vmatprep.subr.mxu0 0.0
      %693 = vmatpush1.msra.mxu0 0.0
      %694 = vmatprep.subr.mxu0 0.0
      %695 = vmatpush1.msra.mxu0 0.0
      %696 = vmatprep.subr.mxu0 0.0
      %697 = vmatpush1.msra.mxu0 0.0
      %698 = vmatprep.subr.mxu0 0.0
      %699 = vmatpush1.msra.mxu0 0.0
      %700 = vmatprep.subr.mxu0 0.0
      %701 = vmatpush1.msra.mxu0 0.0
      %702 = vmatprep.subr.mxu0 0.0
      %703 = vmatpush1.msra.mxu0 0.0
      %704 = vmatprep.subr.mxu0 0.0
      %705 = vmatpush1.msra.mxu0 0.0
      %706 = vmatprep.subr.mxu0 0.0
      %707 = vmatpush1.msra.mxu0 %v674
      %708 = vmatprep.subr.mxu0 0.0
      %709 = vmatpush2.msra.mxu0 0.0
      %710 = vmatprep.subr.mxu0 0.0
      %711 = vmatpush2.msra.mxu0 0.0
      %712 = vmatprep.subr.mxu0 0.0
      %713 = vmatpush2.msra.mxu0 0.0
      %714 = vmatprep.subr.mxu0 0.0
      %715 = vmatpush2.msra.mxu0 0.0
      %716 = vmatprep.subr.mxu0 0.0
      %717 = vmatpush2.msra.mxu0 0.0
      %718 = vmatprep.subr.mxu0 0.0
      %719 = vmatpush2.msra.mxu0 0.0
      %720 = vmatprep.subr.mxu0 0.0
      %721 = vmatpush2.msra.mxu0 0.0
      %722 = vmatprep.subr.mxu0 0.0
      %723 = vmatpush2.msra.mxu0 0.0
      %724 = vmatprep.subr.mxu0 0.0
      %725 = vmatpush2.msra.mxu0 0.0
      %726 = vmatprep.subr.mxu0 0.0
      %727 = vmatpush2.msra.mxu0 0.0
      %728 = vmatprep.subr.mxu0 0.0
      %729 = vmatpush2.msra.mxu0 0.0
      %730 = vmatprep.subr.mxu0 0.0
      %731 = vmatpush2.msra.mxu0 0.0
      %732 = vmatprep.subr.mxu0 0.0
      %733 = vmatpush2.msra.mxu0 0.0
      %734 = vmatprep.subr.mxu0 0.0
      %735 = vmatpush2.msra.mxu0 0.0
      %736 = vmatprep.subr.mxu0 0.0
      %737 = vmatpush2.msra.mxu0 0.0
      %738 = vmatprep.subr.mxu0 0.0
      %739 = vmatpush2.msra.mxu0 0.0
      %740 = vmatprep.mubr.f32.mxu0 0.0
      %741 = vmatmul.mubr.f32.gmra.mxu0 %v667
      %v742 = vpop.f32.mrf.mxu0
      %v743 = vadd.f32 0.0, %v742
      %v744 = vpop.f32.mrf.mxu0
      %745 = vmatprep.mubr.f32.mxu0 0.0
      %746 = vmatmul.mubr.f32.gmra.mxu0 %v670
      %v747 = vpop.f32.mrf.mxu0
      %v748 = vadd.f32 0.0, %v747
      %v749 = vpop.f32.mrf.mxu0
      %750 = vdwg.mxu0
      %v751 = vsub.f32 %v581, %v743
      %v752 = vsub.f32 %v582, %v748
      %v753 = vmul.f32 %v751, %v751
      %v754 = vmul.f32 %v752, %v752
      %755 = vmatprep.subr.mxu0 0.0
      %756 = vmatpush1.msra.mxu0 0.0
      %757 = vmatprep.subr.mxu0 0.0
      %758 = vmatpush1.msra.mxu0 0.0
      %759 = vmatprep.subr.mxu0 0.0
      %760 = vmatpush1.msra.mxu0 0.0
      %761 = vmatprep.subr.mxu0 0.0
      %762 = vmatpush1.msra.mxu0 0.0
      %763 = vmatprep.subr.mxu0 0.0
      %764 = vmatpush1.msra.mxu0 0.0
      %765 = vmatprep.subr.mxu0 0.0
      %766 = vmatpush1.msra.mxu0 0.0
      %767 = vmatprep.subr.mxu0 0.0
      %768 = vmatpush1.msra.mxu0 0.0
      %769 = vmatprep.subr.mxu0 0.0
      %770 = vmatpush1.msra.mxu0 0.0
      %771 = vmatprep.subr.mxu0 0.0
      %772 = vmatpush1.msra.mxu0 0.0
      %773 = vmatprep.subr.mxu0 0.0
      %774 = vmatpush1.msra.mxu0 0.0
      %775 = vmatprep.subr.mxu0 0.0
      %776 = vmatpush1.msra.mxu0 0.0
      %777 = vmatprep.subr.mxu0 0.0
      %778 = vmatpush1.msra.mxu0 0.0
      %779 = vmatprep.subr.mxu0 0.0
      %780 = vmatpush1.msra.mxu0 0.0
      %781 = vmatprep.subr.mxu0 0.0
      %782 = vmatpush1.msra.mxu0 0.0
      %783 = vmatprep.subr.mxu0 0.0
      %784 = vmatpush1.msra.mxu0 %v754
      %785 = vmatprep.subr.mxu0 0.0
      %786 = vmatpush1.msra.mxu0 %v753
      %787 = vmatprep.subr.mxu0 0.0
      %788 = vmatpush2.msra.mxu0 0.0
      %789 = vmatprep.subr.mxu0 0.0
      %790 = vmatpush2.msra.mxu0 0.0
      %791 = vmatprep.subr.mxu0 0.0
      %792 = vmatpush2.msra.mxu0 0.0
      %793 = vmatprep.subr.mxu0 0.0
      %794 = vmatpush2.msra.mxu0 0.0
      %795 = vmatprep.subr.mxu0 0.0
      %796 = vmatpush2.msra.mxu0 0.0
      %797 = vmatprep.subr.mxu0 0.0
      %798 = vmatpush2.msra.mxu0 0.0
      %799 = vmatprep.subr.mxu0 0.0
      %800 = vmatpush2.msra.mxu0 0.0
      %801 = vmatprep.subr.mxu0 0.0
      %802 = vmatpush2.msra.mxu0 0.0
      %803 = vmatprep.subr.mxu0 0.0
      %804 = vmatpush2.msra.mxu0 0.0
      %805 = vmatprep.subr.mxu0 0.0
      %806 = vmatpush2.msra.mxu0 0.0
      %807 = vmatprep.subr.mxu0 0.0
      %808 = vmatpush2.msra.mxu0 0.0
      %809 = vmatprep.subr.mxu0 0.0
      %810 = vmatpush2.msra.mxu0 0.0
      %811 = vmatprep.subr.mxu0 0.0
      %812 = vmatpush2.msra.mxu0 0.0
      %813 = vmatprep.subr.mxu0 0.0
      %814 = vmatpush2.msra.mxu0 0.0
      %815 = vmatprep.subr.mxu0 0.0
      %816 = vmatpush2.msra.mxu0 0.0
      %817 = vmatprep.subr.mxu0 0.0
      %818 = vmatpush2.msra.mxu0 0.0
      %819 = vmatprep.mubr.f32.mxu0 0.0
      %820 = vmatmul.mubr.f32.gmra.mxu0 %v587
      %v821 = vpop.f32.mrf.mxu0
      %v822 = vadd.f32 0.0, %v821
      %v823 = vpop.f32.mrf.mxu0
      %824 = vdwg.mxu0
      %v825 = vsel %vm659, %v822, 0.0
      %826 = vadd.xlane.f32.xlu0 %v825
      %v827 = vpop.xlane.xlu0 %826
      %v828 = vmul.f32 %v827, %v663
      %v829 = vadd.f32 %v828, 1e-05
      %v830 = vrsqrt.pop %v829
      %v832 = vsel %vm672, %v830, 0
      %834 = vmatprep.subr.mxu0 0.0
      %835 = vmatpush1.msra.mxu0 0.0
      %836 = vmatprep.subr.mxu0 0.0
      %837 = vmatpush1.msra.mxu0 0.0
      %838 = vmatprep.subr.mxu0 0.0
      %839 = vmatpush1.msra.mxu0 0.0
      %840 = vmatprep.subr.mxu0 0.0
      %841 = vmatpush1.msra.mxu0 0.0
      %842 = vmatprep.subr.mxu0 0.0
      %843 = vmatpush1.msra.mxu0 0.0
      %844 = vmatprep.subr.mxu0 0.0
      %845 = vmatpush1.msra.mxu0 0.0
      %846 = vmatprep.subr.mxu0 0.0
      %847 = vmatpush1.msra.mxu0 0.0
      %848 = vmatprep.subr.mxu0 0.0
      %849 = vmatpush1.msra.mxu0 0.0
      %850 = vmatprep.subr.mxu0 0.0
      %851 = vmatpush1.msra.mxu0 0.0
      %852 = vmatprep.subr.mxu0 0.0
      %853 = vmatpush1.msra.mxu0 0.0
      %854 = vmatprep.subr.mxu0 0.0
      %855 = vmatpush1.msra.mxu0 0.0
      %856 = vmatprep.subr.mxu0 0.0
      %857 = vmatpush1.msra.mxu0 0.0
      %858 = vmatprep.subr.mxu0 0.0
      %859 = vmatpush1.msra.mxu0 0.0
      %860 = vmatprep.subr.mxu0 0.0
      %861 = vmatpush1.msra.mxu0 0.0
      %862 = vmatprep.subr.mxu0 0.0
      %863 = vmatpush1.msra.mxu0 0.0
      %864 = vmatprep.subr.mxu0 0.0
      %865 = vmatpush1.msra.mxu0 %v832
      %866 = vmatprep.subr.mxu0 0.0
      %867 = vmatpush2.msra.mxu0 0.0
      %868 = vmatprep.subr.mxu0 0.0
      %869 = vmatpush2.msra.mxu0 0.0
      %870 = vmatprep.subr.mxu0 0.0
      %871 = vmatpush2.msra.mxu0 0.0
      %872 = vmatprep.subr.mxu0 0.0
      %873 = vmatpush2.msra.mxu0 0.0
      %874 = vmatprep.subr.mxu0 0.0
      %875 = vmatpush2.msra.mxu0 0.0
      %876 = vmatprep.subr.mxu0 0.0
      %877 = vmatpush2.msra.mxu0 0.0
      %878 = vmatprep.subr.mxu0 0.0
      %879 = vmatpush2.msra.mxu0 0.0
      %880 = vmatprep.subr.mxu0 0.0
      %881 = vmatpush2.msra.mxu0 0.0
      %882 = vmatprep.subr.mxu0 0.0
      %883 = vmatpush2.msra.mxu0 0.0
      %884 = vmatprep.subr.mxu0 0.0
      %885 = vmatpush2.msra.mxu0 0.0
      %886 = vmatprep.subr.mxu0 0.0
      %887 = vmatpush2.msra.mxu0 0.0
      %888 = vmatprep.subr.mxu0 0.0
      %889 = vmatpush2.msra.mxu0 0.0
      %890 = vmatprep.subr.mxu0 0.0
      %891 = vmatpush2.msra.mxu0 0.0
      %892 = vmatprep.subr.mxu0 0.0
      %893 = vmatpush2.msra.mxu0 0.0
      %894 = vmatprep.subr.mxu0 0.0
      %895 = vmatpush2.msra.mxu0 0.0
      %896 = vmatprep.subr.mxu0 0.0
      %897 = vmatpush2.msra.mxu0 0.0
      %898 = vmatprep.mubr.f32.mxu0 0.0
      %899 = vmatmul.mubr.f32.gmra.mxu0 %v667
      %v900 = vpop.f32.mrf.mxu0
      %v901 = vadd.f32 0.0, %v900
      %v902 = vpop.f32.mrf.mxu0
      %903 = vmatprep.mubr.f32.mxu0 0.0
      %904 = vmatmul.mubr.f32.gmra.mxu0 %v670
      %v905 = vpop.f32.mrf.mxu0
      %v906 = vadd.f32 0.0, %v905
      %v907 = vpop.f32.mrf.mxu0
      %908 = vdwg.mxu0
      %v909 = vmul.f32 %v751, %v901
      %v910 = vmul.f32 %v752, %v906
      %v911 = vld [vmem:[%s1] sm:$0xff]
      %v912 = vld [vmem:[%s1 + $0x8] sm:$0xff]
      %914 = vset.pattern.permute.xlu0 0
      %915 = vperm.xlu0 %914, %v911
      %v916 = vpop.permute.xlu0 %915
      %919 = vset.pattern.permute.xlu0 0
      %920 = vperm.xlu0 %919, %v912
      %v921 = vpop.permute.xlu0 %920
      %v923 = vmul.f32 %v909, %v916
      %v924 = vmul.f32 %v910, %v921
      %v925 = vld [vmem:[%s2] sm:$0xff]
      %v926 = vld [vmem:[%s2 + $0x8] sm:$0xff]
      %928 = vset.pattern.permute.xlu0 0
      %929 = vperm.xlu0 %928, %v925
      %v930 = vpop.permute.xlu0 %929
      %933 = vset.pattern.permute.xlu0 0
      %934 = vperm.xlu0 %933, %v926
      %v935 = vpop.permute.xlu0 %934
      %v937 = vadd.f32 %v923, %v930
      %v938 = vadd.f32 %v924, %v935
      %v939 = vxor.u32 %v937, 2147483648
      %v940 = vxor.u32 %v938, 2147483648
      %v941 = vmul.f32 %v939, 1.442695
      %v942 = vpow.pop %v941
      %v943 = vmul.f32 %v940, 1.442695
      %v944 = vpow.pop %v943
      %v945 = vadd.f32 %v942, 1.0
      %v946 = vadd.f32 %v944, 1.0
      %v947 = vrcp.pop %v945
      %v948 = vmul.f32 1.0, %v947
      %v949 = vrcp.pop %v946
      %v950 = vmul.f32 1.0, %v949
      %v951 = vmul.f32 %v937, %v948
      %v952 = vmul.f32 %v938, %v950
      %v953 = vld [vmem:[%s8] sm:$0xff]
      %v954 = vld [vmem:[%s8 + $0x8] sm:$0x1]
      %vm955 = vcmask 1048064
      %956 = vrot.lane.b32.xlu0 %v951, 64
      %v957 = vpop.permute.xlu0 %956
      %v958 = vsel %vm955, %v957, %v951
      %959 = vrot.lane.b32.xlu0 %v952, 64
      %v960 = vpop.permute.xlu0 %959
      %v961 = vsel %vm955, %v960, %v952
      %962 = vrot.lane.b32.xlu0 %v958, 64
      %v963 = vpop.permute.xlu0 %962
      %964 = vrot.lane.b32.xlu0 %v961, 64
      %v965 = vpop.permute.xlu0 %964
      %v966 = vsel %vm955, %v963, %v951
      %v967 = vsel %vm955, %v965, %v952
      %v968 = vlaneseq
      %v969 = vshrl.u32 %v968, 7
      %v970 = vsub.s32 0, %v969
      %v971 = vrot.slane %v953, %v970
      %973 = vrot.lane.b32.xlu0 %v971, 55
      %v974 = vpop.permute.xlu0 %973
      %v976 = vmul.f32 %v966, %v974
      %v977 = vmul.f32 %v967, %v974
      %980 = vrot.lane.b32.xlu0 %v976, 73
      %v981 = vpop.permute.xlu0 %980
      %982 = vrot.lane.b32.xlu0 %v977, 73
      %v983 = vpop.permute.xlu0 %982
      %vm986 = vcmask 523264
      %987 = vst.msk [vmem:[#allocation2] sm:$0xff] %vm986, %v981
      %988 = vst.msk [vmem:[#allocation2 + $0x8] sm:$0xff] %vm986, %v983
      %v989 = vlaneseq
      %v990 = vshrl.u32 %v989, 7
      %v991 = vsub.s32 1, %v990
      %v992 = vrot.slane %v953, %v991
      %994 = vrot.lane.b32.xlu0 %v992, 56
      %v995 = vpop.permute.xlu0 %994
      %v997 = vmul.f32 %v966, %v995
      %v998 = vmul.f32 %v967, %v995
      %1001 = vrot.lane.b32.xlu0 %v997, 72
      %v1002 = vpop.permute.xlu0 %1001
      %1003 = vrot.lane.b32.xlu0 %v998, 72
      %v1004 = vpop.permute.xlu0 %1003
      %1007 = vst.msk [vmem:[#allocation2 + $0x10] sm:$0xff] %vm986, %v1002
      %1008 = vst.msk [vmem:[#allocation2 + $0x18] sm:$0xff] %vm986, %v1004
      %v1009 = vlaneseq
      %v1010 = vshrl.u32 %v1009, 7
      %v1011 = vsub.s32 2, %v1010
      %v1012 = vrot.slane %v953, %v1011
      %1014 = vrot.lane.b32.xlu0 %v1012, 57
      %v1015 = vpop.permute.xlu0 %1014
      %v1017 = vmul.f32 %v966, %v1015
      %v1018 = vmul.f32 %v967, %v1015
      %1021 = vrot.lane.b32.xlu0 %v1017, 71
      %v1022 = vpop.permute.xlu0 %1021
      %1023 = vrot.lane.b32.xlu0 %v1018, 71
      %v1024 = vpop.permute.xlu0 %1023
      %1027 = vst.msk [vmem:[#allocation2 + $0x20] sm:$0xff] %vm986, %v1022
      %1028 = vst.msk [vmem:[#allocation2 + $0x28] sm:$0xff] %vm986, %v1024
      %v1029 = vlaneseq
      %v1030 = vshrl.u32 %v1029, 7
      %v1031 = vsub.s32 3, %v1030
      %v1032 = vrot.slane %v953, %v1031
      %1034 = vrot.lane.b32.xlu0 %v1032, 63
      %v1035 = vpop.permute.xlu0 %1034
      %v1037 = vmul.f32 %v966, %v1035
      %v1038 = vmul.f32 %v967, %v1035
      %1041 = vrot.lane.b32.xlu0 %v1037, 65
      %v1042 = vpop.permute.xlu0 %1041
      %1043 = vrot.lane.b32.xlu0 %v1038, 65
      %v1044 = vpop.permute.xlu0 %1043
      %1047 = vst.msk [vmem:[#allocation2 + $0x30] sm:$0xff] %vm986, %v1042
      %1048 = vst.msk [vmem:[#allocation2 + $0x38] sm:$0xff] %vm986, %v1044
      %v1049 = vlaneseq
      %v1050 = vshrl.u32 %v1049, 7
      %v1051 = vsub.s32 4, %v1050
      %v1052 = vrot.slane %v953, %v1051
      %v1053 = vmul.f32 %v951, %v1052
      %v1054 = vmul.f32 %v952, %v1052
      %1055 = vst.msk [vmem:[#allocation2 + $0x40] sm:$0xff] %vm986, %v1053
      %1056 = vst.msk [vmem:[#allocation2 + $0x48] sm:$0xff] %vm986, %v1054
      %v1057 = vlaneseq
      %v1058 = vshrl.u32 %v1057, 7
      %v1059 = vsub.s32 5, %v1058
      %v1060 = vrot.slane %v953, %v1059
      %1062 = vrot.lane.b32.xlu0 %v1060, 1
      %v1063 = vpop.permute.xlu0 %1062
      %v1065 = vmul.f32 %v966, %v1063
      %v1066 = vmul.f32 %v967, %v1063
      %1069 = vrot.lane.b32.xlu0 %v1065, 127
      %v1070 = vpop.permute.xlu0 %1069
      %1071 = vrot.lane.b32.xlu0 %v1066, 127
      %v1072 = vpop.permute.xlu0 %1071
      %1075 = vst.msk [vmem:[#allocation2 + $0x50] sm:$0xff] %vm986, %v1070
      %1076 = vst.msk [vmem:[#allocation2 + $0x58] sm:$0xff] %vm986, %v1072
      %v1077 = vlaneseq
      %v1078 = vshrl.u32 %v1077, 7
      %v1079 = vsub.s32 6, %v1078
      %v1080 = vrot.slane %v953, %v1079
      %1082 = vrot.lane.b32.xlu0 %v1080, 7
      %v1083 = vpop.permute.xlu0 %1082
      %v1085 = vmul.f32 %v966, %v1083
      %v1086 = vmul.f32 %v967, %v1083
      %1089 = vrot.lane.b32.xlu0 %v1085, 121
      %v1090 = vpop.permute.xlu0 %1089
      %1091 = vrot.lane.b32.xlu0 %v1086, 121
      %v1092 = vpop.permute.xlu0 %1091
      %1095 = vst.msk [vmem:[#allocation2 + $0x60] sm:$0xff] %vm986, %v1090
      %1096 = vst.msk [vmem:[#allocation2 + $0x68] sm:$0xff] %vm986, %v1092
      %v1097 = vlaneseq
      %v1098 = vshrl.u32 %v1097, 7
      %v1099 = vsub.s32 7, %v1098
      %v1100 = vrot.slane %v953, %v1099
      %1102 = vrot.lane.b32.xlu0 %v1100, 8
      %v1103 = vpop.permute.xlu0 %1102
      %v1105 = vmul.f32 %v966, %v1103
      %v1106 = vmul.f32 %v967, %v1103
      %1109 = vrot.lane.b32.xlu0 %v1105, 120
      %v1110 = vpop.permute.xlu0 %1109
      %1111 = vrot.lane.b32.xlu0 %v1106, 120
      %v1112 = vpop.permute.xlu0 %1111
      %1115 = vst.msk [vmem:[#allocation2 + $0x70] sm:$0xff] %vm986, %v1110
      %1116 = vst.msk [vmem:[#allocation2 + $0x78] sm:$0xff] %vm986, %v1112
      %v1117 = vlaneseq
      %v1118 = vshrl.u32 %v1117, 7
      %v1119 = vsub.s32 0, %v1118
      %v1120 = vrot.slane %v954, %v1119
      %1122 = vrot.lane.b32.xlu0 %v1120, 9
      %v1123 = vpop.permute.xlu0 %1122
      %v1125 = vmul.f32 %v966, %v1123
      %v1126 = vmul.f32 %v967, %v1123
      %1129 = vrot.lane.b32.xlu0 %v1125, 119
      %v1130 = vpop.permute.xlu0 %1129
      %1131 = vrot.lane.b32.xlu0 %v1126, 119
      %v1132 = vpop.permute.xlu0 %1131
      %1135 = vst.msk [vmem:[#allocation2 + $0x80] sm:$0xff] %vm986, %v1130
      %1136 = vst.msk [vmem:[#allocation2 + $0x88] sm:$0xff] %vm986, %v1132
      %v1137 = vld [vmem:[%s9] sm:$0xff]
      %v1138 = vld [vmem:[%s9 + $0x8] sm:$0xff]
      %v1139 = vld [vmem:[#allocation2] sm:$0xff]
      %v1140 = vld [vmem:[#allocation2 + $0x8] sm:$0xff]
      %v1141 = vld [vmem:[#allocation2 + $0x10] sm:$0xff]
      %v1142 = vld [vmem:[#allocation2 + $0x18] sm:$0xff]
      %v1143 = vld [vmem:[#allocation2 + $0x20] sm:$0xff]
      %v1144 = vld [vmem:[#allocation2 + $0x28] sm:$0xff]
      %v1145 = vld [vmem:[#allocation2 + $0x30] sm:$0xff]
      %v1146 = vld [vmem:[#allocation2 + $0x38] sm:$0xff]
      %v1147 = vld [vmem:[#allocation2 + $0x40] sm:$0xff]
      %v1148 = vld [vmem:[#allocation2 + $0x48] sm:$0xff]
      %v1149 = vld [vmem:[#allocation2 + $0x50] sm:$0xff]
      %v1150 = vld [vmem:[#allocation2 + $0x58] sm:$0xff]
      %v1151 = vld [vmem:[#allocation2 + $0x60] sm:$0xff]
      %v1152 = vld [vmem:[#allocation2 + $0x68] sm:$0xff]
      %v1153 = vld [vmem:[#allocation2 + $0x70] sm:$0xff]
      %v1154 = vld [vmem:[#allocation2 + $0x78] sm:$0xff]
      %v1155 = vld [vmem:[#allocation2 + $0x80] sm:$0xff]
      %v1156 = vld [vmem:[#allocation2 + $0x88] sm:$0xff]
      %v1157 = vpack.c.bf16 %v1140, %v1139
      %v1158 = vpack.c.bf16 %v1142, %v1141
      %v1159 = vpack.c.bf16 %v1144, %v1143
      %v1160 = vpack.c.bf16 %v1146, %v1145
      %v1161 = vpack.c.bf16 %v1148, %v1147
      %v1162 = vpack.c.bf16 %v1150, %v1149
      %v1163 = vpack.c.bf16 %v1152, %v1151
      %v1164 = vpack.c.bf16 %v1154, %v1153
      %v1165 = vpack.c.bf16 %v1156, %v1155
      %v1166 = vld [vmem:[%s10] sm:$0xff]
      %v1167 = vld [vmem:[%s10 + $0x8] sm:$0xff]
      %1169 = vset.pattern.permute.xlu0 0
      %1170 = vperm.xlu0 %1169, %v1166
      %v1171 = vpop.permute.xlu0 %1170
      %1174 = vset.pattern.permute.xlu0 0
      %1175 = vperm.xlu0 %1174, %v1167
      %v1176 = vpop.permute.xlu0 %1175
      %v1180 = vunpack.c.l.b16 %v1137
      %v1181 = vunpack.c.h.b16 %v1137
      %v1182 = vunpack.c.l.b16 %v1138
      %v1183 = vunpack.c.h.b16 %v1138
      %v1184 = vpack.c.b16 %v1182, %v1180
      %v1185 = vpack.c.b16 %v1183, %v1181
      %v1188 = vsel %vm485, %v1185, 0
      %1190 = vmatprep.subr.bf16.mxu0 0
      %1191 = vmatpush1.bf16.msra.mxu0 %v1164
      %1192 = vmatprep.subr.bf16.mxu0 0
      %1193 = vmatpush1.bf16.msra.mxu0 %v1163
      %1194 = vmatprep.subr.bf16.mxu0 0
      %1195 = vmatpush1.bf16.msra.mxu0 %v1162
      %1196 = vmatprep.subr.bf16.mxu0 0
      %1197 = vmatpush1.bf16.msra.mxu0 %v1161
      %1198 = vmatprep.subr.bf16.mxu0 0
      %1199 = vmatpush1.bf16.msra.mxu0 %v1160
      %1200 = vmatprep.subr.bf16.mxu0 0
      %1201 = vmatpush1.bf16.msra.mxu0 %v1159
      %1202 = vmatprep.subr.bf16.mxu0 0
      %1203 = vmatpush1.bf16.msra.mxu0 %v1158
      %1204 = vmatprep.subr.bf16.mxu0 0
      %1205 = vmatpush1.bf16.msra.mxu0 %v1157
      %1206 = vmatprep.subr.bf16.mxu0 0
      %1207 = vmatpush2.bf16.msra.mxu0 0
      %1208 = vmatprep.subr.bf16.mxu0 0
      %1209 = vmatpush2.bf16.msra.mxu0 0
      %1210 = vmatprep.subr.bf16.mxu0 0
      %1211 = vmatpush2.bf16.msra.mxu0 0
      %1212 = vmatprep.subr.bf16.mxu0 0
      %1213 = vmatpush2.bf16.msra.mxu0 0
      %1214 = vmatprep.subr.bf16.mxu0 0
      %1215 = vmatpush2.bf16.msra.mxu0 0
      %1216 = vmatprep.subr.bf16.mxu0 0
      %1217 = vmatpush2.bf16.msra.mxu0 0
      %1218 = vmatprep.subr.bf16.mxu0 0
      %1219 = vmatpush2.bf16.msra.mxu0 0
      %1220 = vmatprep.subr.bf16.mxu0 0
      %1221 = vmatpush2.bf16.msra.mxu0 %v1165
      %1222 = vmatprep.mubr.bf16.mxu0 %v1188
      %1223 = vmatmul.mubr.bf16.gmra.mxu0 %v1184
      %v1224 = vpop.f32.mrf.mxu0
      %v1225 = vadd.f32 %v1171, %v1224
      %v1226 = vpop.f32.mrf.mxu0
      %v1227 = vpop.f32.mrf.mxu0
      %v1228 = vadd.f32 %v1176, %v1227
      %v1229 = vpop.f32.mrf.mxu0
      %1230 = vdwg.mxu0
      %v1231 = vld [vmem:[%s448] sm:$0xff]
      %v1232 = vld [vmem:[%s448 + $0x8] sm:$0xff]
      %v1233 = vadd.f32 %v1225, %v1231
      %v1234 = vadd.f32 %v1228, %v1232
      %1235 = vst.msk [vmem:[%s453] sm:$0xff] %vm986, %v1233
      %1236 = vst.msk [vmem:[%s453 + $0x8] sm:$0xff] %vm986, %v1234
      %p1237 = scmp.lt.s32.totalorder %s23, 1
      %s1238 = scalar_select %p1237, %s23, 1
      %s1239 = smul.addr %s1238, 2
      %s1240 = smul.addr %s1239, 8
      %s1241 = scalar_lea.vmem %s12, %s1240
      // Predicated region
      $region69: #{time_adapter_forward.19} parent=67 // pred_check
        %p1242 = pneg %p308
      $region70: #{time_adapter_forward.19} parent=67 // pred_check_branch
        %1244 = sbr.rel (%p1242) target = $region72
      $region71: #{time_adapter_forward.19} parent=67 // pred_region
        _
      $region72: #{time_adapter_forward.19} parent=67 // pred_fallthru
        _
    $region68: #{time_adapter_forward.19} parent=5 // pred_fallthru
      _
    %p1245 = scmp.le.s32.totalorder 2, %s18
    // Predicated region
    $region73: #{time_adapter_forward.19} parent=5 // pred_check
      %p1246 = pneg %p1245
    $region74: #{time_adapter_forward.19} parent=5 // pred_check_branch
      %1248 = sbr.rel (%p1246) target = $region76
    $region75: #{time_adapter_forward.19} parent=5 // pred_region
      %s1249 = ssub.s32 %s18, 2
      // Predicated region
      $region77: #{time_adapter_forward.19} parent=75 // pred_check
        %p1250 = pneg %p314
      $region78: #{time_adapter_forward.19} parent=75 // pred_check_branch
        %1252 = sbr.rel (%p1250) target = $region80
      $region79: #{time_adapter_forward.19} parent=75 // pred_region
        %p1253 = scmp.lt.s32.totalorder %s24, 1
        %s1254 = scalar_select %p1253, %s24, 1
        %s1255 = smul.addr %s1254, 2
        %s1256 = smul.addr %s1255, 8
        %s1257 = scalar_lea.vmem %s12, %s1256
      $region80: #{time_adapter_forward.19} parent=75 // pred_fallthru
        _
    $region76: #{time_adapter_forward.19} parent=5 // pred_fallthru
      _
  $region6: #{time_adapter_forward.19} parent=0 // loop_footer
    %s22 = sadd.s32 1, %s18
  $region7: #{time_adapter_forward.19} parent=0 // loop_footer_branch
    %17 = sbr.rel target = $region3
  $region8: #{time_adapter_forward.19} parent=0 // loop_exit
    _

// kernel: time_adapter_forward.18
$region0: #{time_adapter_forward.18}
  #allocation0 [shape = 'u32[]', space=smem, size = 0x4, offset = 0x4, fixed_abs, tag = 'smem constant byte address 0x4 - core index']
  #allocation1 [shape = 'u32[144,128]{1,0:T(1,128)}', space=vmem, size = 0x12000, scoped, tag = 'internal scratch']
  #allocation2 [shape = 'f32[144,64]{1,0:T(8,128)}', space=vmem, size = 0x12000, scoped, tag = 'scratch operand']
  %s0 = inlined_call_operand.vmem [shape: f32[2,16,64], index: 0, kind: input, shape index: {}]
  %s1 = inlined_call_operand.vmem [shape: f32[16,1], index: 1, kind: input, shape index: {}]
  %s2 = inlined_call_operand.vmem [shape: f32[16,1], index: 2, kind: input, shape index: {}]
  %s3 = inlined_call_operand.vmem [shape: f32[16,4], index: 3, kind: input, shape index: {}]
  %s4 = inlined_call_operand.vmem [shape: f32[4,16], index: 4, kind: input, shape index: {}]
  %s5 = inlined_call_operand.vmem [shape: f32[9,64], index: 5, kind: input, shape index: {}]
  %s6 = inlined_call_operand.vmem [shape: bf16[16,144], index: 6, kind: input, shape index: {}]
  %s7 = inlined_call_operand.vmem [shape: f32[16,1], index: 7, kind: input, shape index: {}]
  %s8 = inlined_call_operand.vmem [shape: f32[2,16,64], index: 8, kind: output, shape index: {}]
  %s9 = sld [smem:[#allocation0]]
  $region65: #{time_adapter_forward.18} parent=0
    _
  %s11 = ssub.s32 1, %s9
  %s12 = scalar_select 0, %s11, %s9
  loop: start=0, step=1, limit=4
  $region2: #{time_adapter_forward.18} parent=0 // loop_pre_header
    _
  $region3: #{time_adapter_forward.18} parent=0 // loop_header
    %s14 = sphi 0, %s18
    %p15 = scmp.ge.s32.totalorder %s14, 4
    %s24 = sphi 0, %s26
    %s27 = sphi 0, %s24
    %s28 = sphi 0, %s27
    %s44 = sphi 0, %s28
    %s48 = sphi 0, %s48
    %s50 = sphi 0, %s48
    %s51 = sphi 0, %s50
    %s65 = sphi 0, %s51
    %s69 = sphi 0, %s69
    %s71 = sphi 0, %s69
    %s72 = sphi 0, %s71
    %s86 = sphi 0, %s72
    %s90 = sphi 0, %s90
    %s92 = sphi 0, %s90
    %s93 = sphi 0, %s92
    %s107 = sphi 0, %s93
    %s111 = sphi 0, %s111
    %s113 = sphi 0, %s111
    %s114 = sphi 0, %s113
    %s128 = sphi 0, %s114
    %s132 = sphi 0, %s132
    %s134 = sphi 0, %s132
    %s135 = sphi 0, %s134
    %s149 = sphi 0, %s135
    %s153 = sphi 0, %s153
    %s155 = sphi 0, %s153
    %s156 = sphi 0, %s155
    %s170 = sphi 0, %s156
    %s174 = sphi 0, %s174
    %s176 = sphi 0, %s174
    %s177 = sphi 0, %s176
    %s191 = sphi 0, %s177
    %s197 = sphi 0, %s199
    %s200 = sphi 0, %s197
    %s201 = sphi 0, %s200
    %s217 = sphi 0, %s201
  $region4: #{time_adapter_forward.18} parent=0 // loop_header_branch
    %17 = sbr.rel (%p15) target = $region8
  $region5: #{time_adapter_forward.18} parent=0 // loop_body
    %s19 = ssub.s32 %s14, 1
    %s20 = ssub.s32 %s14, 2
    %s21 = sadd.s32 %s14, 1
    %s22 = ssub.s32 %s14, %s21
    %p23 = scmp.eq.s32.totalorder %s22, 0
    %s25 = sadd.s32 %s24, 1
    %s26 = scalar_select %p23, %s24, %s25
    %p29 = pneg %p23
    %p30 = scmp.eq.s32.totalorder %s14, 1
    %p31 = por %p29, %p30
    %p32 = scmp.ne.s32.totalorder %s24, %s27
    %p33 = scmp.eq.s32.totalorder %s14, 0
    %p34 = por %p32, %p33
    %p35 = scmp.ne.s32.totalorder %s24, %s27
    %p36 = scmp.eq.s32.totalorder %s19, 1
    %p37 = por %p35, %p36
    %p38 = scmp.ne.s32.totalorder %s27, %s28
    %p39 = scmp.eq.s32.totalorder %s19, 0
    %p40 = por %p38, %p39
    %p41 = scmp.ne.s32.totalorder %s27, %s28
    %p42 = scmp.eq.s32.totalorder %s20, 1
    %p43 = por %p41, %p42
    %p45 = scmp.ne.s32.totalorder %s28, %s44
    %p46 = scmp.eq.s32.totalorder %s20, 0
    %p47 = por %p45, %p46
    %s49 = sadd.s32 %s48, 1
    %p52 = scmp.eq.s32.totalorder %s14, 1
    %p53 = scmp.ne.s32.totalorder %s48, %s50
    %p54 = scmp.eq.s32.totalorder %s14, 0
    %p55 = por %p53, %p54
    %p56 = scmp.ne.s32.totalorder %s48, %s50
    %p57 = scmp.eq.s32.totalorder %s19, 1
    %p58 = por %p56, %p57
    %p59 = scmp.ne.s32.totalorder %s50, %s51
    %p60 = scmp.eq.s32.totalorder %s19, 0
    %p61 = por %p59, %p60
    %p62 = scmp.ne.s32.totalorder %s50, %s51
    %p63 = scmp.eq.s32.totalorder %s20, 1
    %p64 = por %p62, %p63
    %p66 = scmp.ne.s32.totalorder %s51, %s65
    %p67 = scmp.eq.s32.totalorder %s20, 0
    %p68 = por %p66, %p67
    %s70 = sadd.s32 %s69, 1
    %p73 = scmp.eq.s32.totalorder %s14, 1
    %p74 = scmp.ne.s32.totalorder %s69, %s71
    %p75 = scmp.eq.s32.totalorder %s14, 0
    %p76 = por %p74, %p75
    %p77 = scmp.ne.s32.totalorder %s69, %s71
    %p78 = scmp.eq.s32.totalorder %s19, 1
    %p79 = por %p77, %p78
    %p80 = scmp.ne.s32.totalorder %s71, %s72
    %p81 = scmp.eq.s32.totalorder %s19, 0
    %p82 = por %p80, %p81
    %p83 = scmp.ne.s32.totalorder %s71, %s72
    %p84 = scmp.eq.s32.totalorder %s20, 1
    %p85 = por %p83, %p84
    %p87 = scmp.ne.s32.totalorder %s72, %s86
    %p88 = scmp.eq.s32.totalorder %s20, 0
    %p89 = por %p87, %p88
    %s91 = sadd.s32 %s90, 1
    %p94 = scmp.eq.s32.totalorder %s14, 1
    %p95 = scmp.ne.s32.totalorder %s90, %s92
    %p96 = scmp.eq.s32.totalorder %s14, 0
    %p97 = por %p95, %p96
    %p98 = scmp.ne.s32.totalorder %s90, %s92
    %p99 = scmp.eq.s32.totalorder %s19, 1
    %p100 = por %p98, %p99
    %p101 = scmp.ne.s32.totalorder %s92, %s93
    %p102 = scmp.eq.s32.totalorder %s19, 0
    %p103 = por %p101, %p102
    %p104 = scmp.ne.s32.totalorder %s92, %s93
    %p105 = scmp.eq.s32.totalorder %s20, 1
    %p106 = por %p104, %p105
    %p108 = scmp.ne.s32.totalorder %s93, %s107
    %p109 = scmp.eq.s32.totalorder %s20, 0
    %p110 = por %p108, %p109
    %s112 = sadd.s32 %s111, 1
    %p115 = scmp.eq.s32.totalorder %s14, 1
    %p116 = scmp.ne.s32.totalorder %s111, %s113
    %p117 = scmp.eq.s32.totalorder %s14, 0
    %p118 = por %p116, %p117
    %p119 = scmp.ne.s32.totalorder %s111, %s113
    %p120 = scmp.eq.s32.totalorder %s19, 1
    %p121 = por %p119, %p120
    %p122 = scmp.ne.s32.totalorder %s113, %s114
    %p123 = scmp.eq.s32.totalorder %s19, 0
    %p124 = por %p122, %p123
    %p125 = scmp.ne.s32.totalorder %s113, %s114
    %p126 = scmp.eq.s32.totalorder %s20, 1
    %p127 = por %p125, %p126
    %p129 = scmp.ne.s32.totalorder %s114, %s128
    %p130 = scmp.eq.s32.totalorder %s20, 0
    %p131 = por %p129, %p130
    %s133 = sadd.s32 %s132, 1
    %p136 = scmp.eq.s32.totalorder %s14, 1
    %p137 = scmp.ne.s32.totalorder %s132, %s134
    %p138 = scmp.eq.s32.totalorder %s14, 0
    %p139 = por %p137, %p138
    %p140 = scmp.ne.s32.totalorder %s132, %s134
    %p141 = scmp.eq.s32.totalorder %s19, 1
    %p142 = por %p140, %p141
    %p143 = scmp.ne.s32.totalorder %s134, %s135
    %p144 = scmp.eq.s32.totalorder %s19, 0
    %p145 = por %p143, %p144
    %p146 = scmp.ne.s32.totalorder %s134, %s135
    %p147 = scmp.eq.s32.totalorder %s20, 1
    %p148 = por %p146, %p147
    %p150 = scmp.ne.s32.totalorder %s135, %s149
    %p151 = scmp.eq.s32.totalorder %s20, 0
    %p152 = por %p150, %p151
    %s154 = sadd.s32 %s153, 1
    %p157 = scmp.eq.s32.totalorder %s14, 1
    %p158 = scmp.ne.s32.totalorder %s153, %s155
    %p159 = scmp.eq.s32.totalorder %s14, 0
    %p160 = por %p158, %p159
    %p161 = scmp.ne.s32.totalorder %s153, %s155
    %p162 = scmp.eq.s32.totalorder %s19, 1
    %p163 = por %p161, %p162
    %p164 = scmp.ne.s32.totalorder %s155, %s156
    %p165 = scmp.eq.s32.totalorder %s19, 0
    %p166 = por %p164, %p165
    %p167 = scmp.ne.s32.totalorder %s155, %s156
    %p168 = scmp.eq.s32.totalorder %s20, 1
    %p169 = por %p167, %p168
    %p171 = scmp.ne.s32.totalorder %s156, %s170
    %p172 = scmp.eq.s32.totalorder %s20, 0
    %p173 = por %p171, %p172
    %s175 = sadd.s32 %s174, 1
    %p178 = scmp.eq.s32.totalorder %s14, 1
    %p179 = scmp.ne.s32.totalorder %s174, %s176
    %p180 = scmp.eq.s32.totalorder %s14, 0
    %p181 = por %p179, %p180
    %p182 = scmp.ne.s32.totalorder %s174, %s176
    %p183 = scmp.eq.s32.totalorder %s19, 1
    %p184 = por %p182, %p183
    %p185 = scmp.ne.s32.totalorder %s176, %s177
    %p186 = scmp.eq.s32.totalorder %s19, 0
    %p187 = por %p185, %p186
    %p188 = scmp.ne.s32.totalorder %s176, %s177
    %p189 = scmp.eq.s32.totalorder %s20, 1
    %p190 = por %p188, %p189
    %p192 = scmp.ne.s32.totalorder %s177, %s191
    %p193 = scmp.eq.s32.totalorder %s20, 0
    %p194 = por %p192, %p193
    %s195 = ssub.s32 %s14, %s21
    %p196 = scmp.eq.s32.totalorder %s195, 0
    %s198 = sadd.s32 %s197, 1
    %s199 = scalar_select %p196, %s197, %s198
    %p202 = pneg %p196
    %p203 = scmp.eq.s32.totalorder %s14, 1
    %p204 = por %p202, %p203
    %p205 = scmp.ne.s32.totalorder %s197, %s200
    %p206 = scmp.eq.s32.totalorder %s14, 0
    %p207 = por %p205, %p206
    %p208 = scmp.ne.s32.totalorder %s197, %s200
    %p209 = scmp.eq.s32.totalorder %s19, 1
    %p210 = por %p208, %p209
    %p211 = scmp.ne.s32.totalorder %s200, %s201
    %p212 = scmp.eq.s32.totalorder %s19, 0
    %p213 = por %p211, %p212
    %p214 = scmp.ne.s32.totalorder %s200, %s201
    %p215 = scmp.eq.s32.totalorder %s20, 1
    %p216 = por %p214, %p215
    %p218 = scmp.ne.s32.totalorder %s201, %s217
    %p219 = scmp.eq.s32.totalorder %s20, 0
    %p220 = por %p218, %p219
    %p221 = scmp.le.s32.totalorder 1, %s14
    %p222 = scmp.lt.s32.totalorder %s14, 3
    %p223 = pnand %p221, %p222
    %p224 = pneg %p223
    // Predicated region
    $region9: #{time_adapter_forward.18} parent=5 // pred_check
      _
    $region10: #{time_adapter_forward.18} parent=5 // pred_check_branch
      %226 = sbr.rel (%p223) target = $region12
    $region11: #{time_adapter_forward.18} parent=5 // pred_region
      %s227 = ssub.s32 %s14, 1
      // Predicated region
      $region13: #{time_adapter_forward.18} parent=11 // pred_check
        %p228 = pneg %p61
      $region14: #{time_adapter_forward.18} parent=11 // pred_check_branch
        %230 = sbr.rel (%p228) target = $region16
      $region15: #{time_adapter_forward.18} parent=11 // pred_region
        _
      $region16: #{time_adapter_forward.18} parent=11 // pred_fallthru
        _
      // Predicated region
      $region17: #{time_adapter_forward.18} parent=11 // pred_check
        %p231 = pneg %p82
      $region18: #{time_adapter_forward.18} parent=11 // pred_check_branch
        %233 = sbr.rel (%p231) target = $region20
      $region19: #{time_adapter_forward.18} parent=11 // pred_region
        _
      $region20: #{time_adapter_forward.18} parent=11 // pred_fallthru
        _
      // Predicated region
      $region21: #{time_adapter_forward.18} parent=11 // pred_check
        %p234 = pneg %p103
      $region22: #{time_adapter_forward.18} parent=11 // pred_check_branch
        %236 = sbr.rel (%p234) target = $region24
      $region23: #{time_adapter_forward.18} parent=11 // pred_region
        _
      $region24: #{time_adapter_forward.18} parent=11 // pred_fallthru
        _
      // Predicated region
      $region25: #{time_adapter_forward.18} parent=11 // pred_check
        %p237 = pneg %p124
      $region26: #{time_adapter_forward.18} parent=11 // pred_check_branch
        %239 = sbr.rel (%p237) target = $region28
      $region27: #{time_adapter_forward.18} parent=11 // pred_region
        _
      $region28: #{time_adapter_forward.18} parent=11 // pred_fallthru
        _
      // Predicated region
      $region29: #{time_adapter_forward.18} parent=11 // pred_check
        %p240 = pneg %p145
      $region30: #{time_adapter_forward.18} parent=11 // pred_check_branch
        %242 = sbr.rel (%p240) target = $region32
      $region31: #{time_adapter_forward.18} parent=11 // pred_region
        _
      $region32: #{time_adapter_forward.18} parent=11 // pred_fallthru
        _
      // Predicated region
      $region33: #{time_adapter_forward.18} parent=11 // pred_check
        %p243 = pneg %p166
      $region34: #{time_adapter_forward.18} parent=11 // pred_check_branch
        %245 = sbr.rel (%p243) target = $region36
      $region35: #{time_adapter_forward.18} parent=11 // pred_region
        _
      $region36: #{time_adapter_forward.18} parent=11 // pred_fallthru
        _
      // Predicated region
      $region37: #{time_adapter_forward.18} parent=11 // pred_check
        %p246 = pneg %p187
      $region38: #{time_adapter_forward.18} parent=11 // pred_check_branch
        %248 = sbr.rel (%p246) target = $region40
      $region39: #{time_adapter_forward.18} parent=11 // pred_region
        _
      $region40: #{time_adapter_forward.18} parent=11 // pred_fallthru
        _
    $region12: #{time_adapter_forward.18} parent=5 // pred_fallthru
      _
    %p249 = scmp.lt.s32.totalorder %s14, 2
    // Predicated region
    $region41: #{time_adapter_forward.18} parent=5 // pred_check
      %p250 = pneg %p249
    $region42: #{time_adapter_forward.18} parent=5 // pred_check_branch
      %252 = sbr.rel (%p250) target = $region44
    $region43: #{time_adapter_forward.18} parent=5 // pred_region
      // Predicated region
      $region45: #{time_adapter_forward.18} parent=43 // pred_check
        %p253 = pneg %p34
      $region46: #{time_adapter_forward.18} parent=43 // pred_check_branch
        %255 = sbr.rel (%p253) target = $region48
      $region47: #{time_adapter_forward.18} parent=43 // pred_region
        %p256 = scmp.lt.s32.totalorder %s14, 1
        %s257 = scalar_select %p256, %s14, 1
        %s258 = smul.addr %s257, 2
        %s259 = smul.addr %s258, 8
        %s260 = scalar_lea.vmem %s0, %s259
      $region48: #{time_adapter_forward.18} parent=43 // pred_fallthru
        _
    $region44: #{time_adapter_forward.18} parent=5 // pred_fallthru
      _
    %p261 = scmp.le.s32.totalorder 1, %s14
    %p262 = scmp.lt.s32.totalorder %s14, 3
    %p263 = pnand %p261, %p262
    %p264 = pneg %p263
    // Predicated region
    $region49: #{time_adapter_forward.18} parent=5 // pred_check
      _
    $region50: #{time_adapter_forward.18} parent=5 // pred_check_branch
      %266 = sbr.rel (%p263) target = $region52
    $region51: #{time_adapter_forward.18} parent=5 // pred_region
      %s267 = ssub.s32 %s14, 1
      %p268 = scmp.lt.s32.totalorder %s19, 1
      %s269 = scalar_select %p268, %s19, 1
      %s270 = smul.addr %s269, 2
      %s271 = smul.addr %s270, 8
      %s272 = scalar_lea.vmem %s0, %s271
      %p273 = pneg %p40
      %p274 = pneg %p37
      %p275 = pneg %p61
      %p276 = pneg %p58
      %p277 = pneg %p82
      %p278 = pneg %p79
      %p279 = pneg %p103
      %p280 = pneg %p100
      %p281 = pneg %p124
      %p282 = pneg %p121
      %p283 = pneg %p145
      %p284 = pneg %p142
      %p285 = pneg %p166
      %p286 = pneg %p163
      %p287 = pneg %p187
      %p288 = pneg %p184
      %p289 = pneg %p213
      %p290 = pneg %p210
      %p291 = scmp.lt.s32.totalorder %s19, 1
      %s292 = scalar_select %p291, %s19, 1
      %s293 = smul.addr %s292, 2
      %s294 = smul.addr %s293, 8
      %s295 = scalar_lea.vmem %s8, %s294
      %p296 = scmp.lt.s32.totalorder %s19, 1
      %s297 = scalar_select %p296, %s19, 1
      %s298 = smul.addr %s297, 2
      %s299 = smul.addr %s298, 8
      %s300 = scalar_lea.vmem %s0, %s299
      %p301 = scmp.lt.s32.totalorder %s19, 1
      %s302 = scalar_select %p301, %s19, 1
      %s303 = smul.addr %s302, 2
      %s304 = smul.addr %s303, 8
      %s305 = scalar_lea.vmem %s8, %s304
      %v307 = vld [vmem:[%s300] sm:$0xff]
      %v308 = vld [vmem:[%s300 + $0x8] sm:$0xff]
      %v309 = vld [vmem:[%s3] sm:$0xff]
      %v310 = vld [vmem:[%s3 + $0x8] sm:$0xff]
      %v311 = vld [vmem:[%s4] sm:$0xf]
      %vm312 = vcmask 130048
      %v314 = vsel %vm312, %v311, 0
      %316 = vmatprep.subr.mxu0 0.0
      %317 = vmatpush1.msra.mxu0 0.0
      %318 = vmatprep.subr.mxu0 0.0
      %319 = vmatpush1.msra.mxu0 0.0
      %320 = vmatprep.subr.mxu0 0.0
      %321 = vmatpush1.msra.mxu0 0.0
      %322 = vmatprep.subr.mxu0 0.0
      %323 = vmatpush1.msra.mxu0 0.0
      %324 = vmatprep.subr.mxu0 0.0
      %325 = vmatpush1.msra.mxu0 0.0
      %326 = vmatprep.subr.mxu0 0.0
      %327 = vmatpush1.msra.mxu0 0.0
      %328 = vmatprep.subr.mxu0 0.0
      %329 = vmatpush1.msra.mxu0 0.0
      %330 = vmatprep.subr.mxu0 0.0
      %331 = vmatpush1.msra.mxu0 0.0
      %332 = vmatprep.subr.mxu0 0.0
      %333 = vmatpush1.msra.mxu0 0.0
      %334 = vmatprep.subr.mxu0 0.0
      %335 = vmatpush1.msra.mxu0 0.0
      %336 = vmatprep.subr.mxu0 0.0
      %337 = vmatpush1.msra.mxu0 0.0
      %338 = vmatprep.subr.mxu0 0.0
      %339 = vmatpush1.msra.mxu0 0.0
      %340 = vmatprep.subr.mxu0 0.0
      %341 = vmatpush1.msra.mxu0 0.0
      %342 = vmatprep.subr.mxu0 0.0
      %343 = vmatpush1.msra.mxu0 0.0
      %344 = vmatprep.subr.mxu0 0.0
      %345 = vmatpush1.msra.mxu0 %v308
      %346 = vmatprep.subr.mxu0 0.0
      %347 = vmatpush1.msra.mxu0 %v307
      %348 = vmatprep.subr.mxu0 0.0
      %349 = vmatpush2.msra.mxu0 0.0
      %350 = vmatprep.subr.mxu0 0.0
      %351 = vmatpush2.msra.mxu0 0.0
      %352 = vmatprep.subr.mxu0 0.0
      %353 = vmatpush2.msra.mxu0 0.0
      %354 = vmatprep.subr.mxu0 0.0
      %355 = vmatpush2.msra.mxu0 0.0
      %356 = vmatprep.subr.mxu0 0.0
      %357 = vmatpush2.msra.mxu0 0.0
      %358 = vmatprep.subr.mxu0 0.0
      %359 = vmatpush2.msra.mxu0 0.0
      %360 = vmatprep.subr.mxu0 0.0
      %361 = vmatpush2.msra.mxu0 0.0
      %362 = vmatprep.subr.mxu0 0.0
      %363 = vmatpush2.msra.mxu0 0.0
      %364 = vmatprep.subr.mxu0 0.0
      %365 = vmatpush2.msra.mxu0 0.0
      %366 = vmatprep.subr.mxu0 0.0
      %367 = vmatpush2.msra.mxu0 0.0
      %368 = vmatprep.subr.mxu0 0.0
      %369 = vmatpush2.msra.mxu0 0.0
      %370 = vmatprep.subr.mxu0 0.0
      %371 = vmatpush2.msra.mxu0 0.0
      %372 = vmatprep.subr.mxu0 0.0
      %373 = vmatpush2.msra.mxu0 0.0
      %374 = vmatprep.subr.mxu0 0.0
      %375 = vmatpush2.msra.mxu0 0.0
      %376 = vmatprep.subr.mxu0 0.0
      %377 = vmatpush2.msra.mxu0 0.0
      %378 = vmatprep.subr.mxu0 0.0
      %379 = vmatpush2.msra.mxu0 0.0
      %380 = vmatprep.mubr.f32.mxu0 0.0
      %381 = vmatmul.mubr.f32.gmra.mxu0 %v314
      %v382 = vpop.f32.mrf.mxu0
      %v383 = vadd.f32 0.0, %v382
      %v384 = vpop.f32.mrf.mxu0
      %385 = vdwg.mxu0
      %vm386 = vcmask 519168
      %v387 = vsel %vm386, %v383, 0.0
      %388 = vadd.xlane.f32.xlu0 %v387
      %v389 = vpop.xlane.xlu0 %388
      %v390 = vrcp.pop 256.0
      %v391 = vmul.f32 %v389, %v390
      %vm392 = vcmask 31744
      %v394 = vsel %vm392, %v309, 0
      %v397 = vsel %vm392, %v310, 0
      %vm399 = vcmask 1043456
      %v401 = vsel %vm399, %v391, 0
      %403 = vmatprep.subr.mxu0 0.0
      %404 = vmatpush1.msra.mxu0 0.0
      %405 = vmatprep.subr.mxu0 0.0
      %406 = vmatpush1.msra.mxu0 0.0
      %407 = vmatprep.subr.mxu0 0.0
      %408 = vmatpush1.msra.mxu0 0.0
      %409 = vmatprep.subr.mxu0 0.0
      %410 = vmatpush1.msra.mxu0 0.0
      %411 = vmatprep.subr.mxu0 0.0
      %412 = vmatpush1.msra.mxu0 0.0
      %413 = vmatprep.subr.mxu0 0.0
      %414 = vmatpush1.msra.mxu0 0.0
      %415 = vmatprep.subr.mxu0 0.0
      %416 = vmatpush1.msra.mxu0 0.0
      %417 = vmatprep.subr.mxu0 0.0
      %418 = vmatpush1.msra.mxu0 0.0
      %419 = vmatprep.subr.mxu0 0.0
      %420 = vmatpush1.msra.mxu0 0.0
      %421 = vmatprep.subr.mxu0 0.0
      %422 = vmatpush1.msra.mxu0 0.0
      %423 = vmatprep.subr.mxu0 0.0
      %424 = vmatpush1.msra.mxu0 0.0
      %425 = vmatprep.subr.mxu0 0.0
      %426 = vmatpush1.msra.mxu0 0.0
      %427 = vmatprep.subr.mxu0 0.0
      %428 = vmatpush1.msra.mxu0 0.0
      %429 = vmatprep.subr.mxu0 0.0
      %430 = vmatpush1.msra.mxu0 0.0
      %431 = vmatprep.subr.mxu0 0.0
      %432 = vmatpush1.msra.mxu0 0.0
      %433 = vmatprep.subr.mxu0 0.0
      %434 = vmatpush1.msra.mxu0 %v401
      %435 = vmatprep.subr.mxu0 0.0
      %436 = vmatpush2.msra.mxu0 0.0
      %437 = vmatprep.subr.mxu0 0.0
      %438 = vmatpush2.msra.mxu0 0.0
      %439 = vmatprep.subr.mxu0 0.0
      %440 = vmatpush2.msra.mxu0 0.0
      %441 = vmatprep.subr.mxu0 0.0
      %442 = vmatpush2.msra.mxu0 0.0
      %443 = vmatprep.subr.mxu0 0.0
      %444 = vmatpush2.msra.mxu0 0.0
      %445 = vmatprep.subr.mxu0 0.0
      %446 = vmatpush2.msra.mxu0 0.0
      %447 = vmatprep.subr.mxu0 0.0
      %448 = vmatpush2.msra.mxu0 0.0
      %449 = vmatprep.subr.mxu0 0.0
      %450 = vmatpush2.msra.mxu0 0.0
      %451 = vmatprep.subr.mxu0 0.0
      %452 = vmatpush2.msra.mxu0 0.0
      %453 = vmatprep.subr.mxu0 0.0
      %454 = vmatpush2.msra.mxu0 0.0
      %455 = vmatprep.subr.mxu0 0.0
      %456 = vmatpush2.msra.mxu0 0.0
      %457 = vmatprep.subr.mxu0 0.0
      %458 = vmatpush2.msra.mxu0 0.0
      %459 = vmatprep.subr.mxu0 0.0
      %460 = vmatpush2.msra.mxu0 0.0
      %461 = vmatprep.subr.mxu0 0.0
      %462 = vmatpush2.msra.mxu0 0.0
      %463 = vmatprep.subr.mxu0 0.0
      %464 = vmatpush2.msra.mxu0 0.0
      %465 = vmatprep.subr.mxu0 0.0
      %466 = vmatpush2.msra.mxu0 0.0
      %467 = vmatprep.mubr.f32.mxu0 0.0
      %468 = vmatmul.mubr.f32.gmra.mxu0 %v394
      %v469 = vpop.f32.mrf.mxu0
      %v470 = vadd.f32 0.0, %v469
      %v471 = vpop.f32.mrf.mxu0
      %472 = vmatprep.mubr.f32.mxu0 0.0
      %473 = vmatmul.mubr.f32.gmra.mxu0 %v397
      %v474 = vpop.f32.mrf.mxu0
      %v475 = vadd.f32 0.0, %v474
      %v476 = vpop.f32.mrf.mxu0
      %477 = vdwg.mxu0
      %v478 = vsub.f32 %v307, %v470
      %v479 = vsub.f32 %v308, %v475
      %v480 = vmul.f32 %v478, %v478
      %v481 = vmul.f32 %v479, %v479
      %482 = vmatprep.subr.mxu0 0.0
      %483 = vmatpush1.msra.mxu0 0.0
      %484 = vmatprep.subr.mxu0 0.0
      %485 = vmatpush1.msra.mxu0 0.0
      %486 = vmatprep.subr.mxu0 0.0
      %487 = vmatpush1.msra.mxu0 0.0
      %488 = vmatprep.subr.mxu0 0.0
      %489 = vmatpush1.msra.mxu0 0.0
      %490 = vmatprep.subr.mxu0 0.0
      %491 = vmatpush1.msra.mxu0 0.0
      %492 = vmatprep.subr.mxu0 0.0
      %493 = vmatpush1.msra.mxu0 0.0
      %494 = vmatprep.subr.mxu0 0.0
      %495 = vmatpush1.msra.mxu0 0.0
      %496 = vmatprep.subr.mxu0 0.0
      %497 = vmatpush1.msra.mxu0 0.0
      %498 = vmatprep.subr.mxu0 0.0
      %499 = vmatpush1.msra.mxu0 0.0
      %500 = vmatprep.subr.mxu0 0.0
      %501 = vmatpush1.msra.mxu0 0.0
      %502 = vmatprep.subr.mxu0 0.0
      %503 = vmatpush1.msra.mxu0 0.0
      %504 = vmatprep.subr.mxu0 0.0
      %505 = vmatpush1.msra.mxu0 0.0
      %506 = vmatprep.subr.mxu0 0.0
      %507 = vmatpush1.msra.mxu0 0.0
      %508 = vmatprep.subr.mxu0 0.0
      %509 = vmatpush1.msra.mxu0 0.0
      %510 = vmatprep.subr.mxu0 0.0
      %511 = vmatpush1.msra.mxu0 %v481
      %512 = vmatprep.subr.mxu0 0.0
      %513 = vmatpush1.msra.mxu0 %v480
      %514 = vmatprep.subr.mxu0 0.0
      %515 = vmatpush2.msra.mxu0 0.0
      %516 = vmatprep.subr.mxu0 0.0
      %517 = vmatpush2.msra.mxu0 0.0
      %518 = vmatprep.subr.mxu0 0.0
      %519 = vmatpush2.msra.mxu0 0.0
      %520 = vmatprep.subr.mxu0 0.0
      %521 = vmatpush2.msra.mxu0 0.0
      %522 = vmatprep.subr.mxu0 0.0
      %523 = vmatpush2.msra.mxu0 0.0
      %524 = vmatprep.subr.mxu0 0.0
      %525 = vmatpush2.msra.mxu0 0.0
      %526 = vmatprep.subr.mxu0 0.0
      %527 = vmatpush2.msra.mxu0 0.0
      %528 = vmatprep.subr.mxu0 0.0
      %529 = vmatpush2.msra.mxu0 0.0
      %530 = vmatprep.subr.mxu0 0.0
      %531 = vmatpush2.msra.mxu0 0.0
      %532 = vmatprep.subr.mxu0 0.0
      %533 = vmatpush2.msra.mxu0 0.0
      %534 = vmatprep.subr.mxu0 0.0
      %535 = vmatpush2.msra.mxu0 0.0
      %536 = vmatprep.subr.mxu0 0.0
      %537 = vmatpush2.msra.mxu0 0.0
      %538 = vmatprep.subr.mxu0 0.0
      %539 = vmatpush2.msra.mxu0 0.0
      %540 = vmatprep.subr.mxu0 0.0
      %541 = vmatpush2.msra.mxu0 0.0
      %542 = vmatprep.subr.mxu0 0.0
      %543 = vmatpush2.msra.mxu0 0.0
      %544 = vmatprep.subr.mxu0 0.0
      %545 = vmatpush2.msra.mxu0 0.0
      %546 = vmatprep.mubr.f32.mxu0 0.0
      %547 = vmatmul.mubr.f32.gmra.mxu0 %v314
      %v548 = vpop.f32.mrf.mxu0
      %v549 = vadd.f32 0.0, %v548
      %v550 = vpop.f32.mrf.mxu0
      %551 = vdwg.mxu0
      %v552 = vsel %vm386, %v549, 0.0
      %553 = vadd.xlane.f32.xlu0 %v552
      %v554 = vpop.xlane.xlu0 %553
      %v555 = vmul.f32 %v554, %v390
      %v556 = vadd.f32 %v555, 1e-05
      %v557 = vrsqrt.pop %v556
      %v559 = vsel %vm399, %v557, 0
      %561 = vmatprep.subr.mxu0 0.0
      %562 = vmatpush1.msra.mxu0 0.0
      %563 = vmatprep.subr.mxu0 0.0
      %564 = vmatpush1.msra.mxu0 0.0
      %565 = vmatprep.subr.mxu0 0.0
      %566 = vmatpush1.msra.mxu0 0.0
      %567 = vmatprep.subr.mxu0 0.0
      %568 = vmatpush1.msra.mxu0 0.0
      %569 = vmatprep.subr.mxu0 0.0
      %570 = vmatpush1.msra.mxu0 0.0
      %571 = vmatprep.subr.mxu0 0.0
      %572 = vmatpush1.msra.mxu0 0.0
      %573 = vmatprep.subr.mxu0 0.0
      %574 = vmatpush1.msra.mxu0 0.0
      %575 = vmatprep.subr.mxu0 0.0
      %576 = vmatpush1.msra.mxu0 0.0
      %577 = vmatprep.subr.mxu0 0.0
      %578 = vmatpush1.msra.mxu0 0.0
      %579 = vmatprep.subr.mxu0 0.0
      %580 = vmatpush1.msra.mxu0 0.0
      %581 = vmatprep.subr.mxu0 0.0
      %582 = vmatpush1.msra.mxu0 0.0
      %583 = vmatprep.subr.mxu0 0.0
      %584 = vmatpush1.msra.mxu0 0.0
      %585 = vmatprep.subr.mxu0 0.0
      %586 = vmatpush1.msra.mxu0 0.0
      %587 = vmatprep.subr.mxu0 0.0
      %588 = vmatpush1.msra.mxu0 0.0
      %589 = vmatprep.subr.mxu0 0.0
      %590 = vmatpush1.msra.mxu0 0.0
      %591 = vmatprep.subr.mxu0 0.0
      %592 = vmatpush1.msra.mxu0 %v559
      %593 = vmatprep.subr.mxu0 0.0
      %594 = vmatpush2.msra.mxu0 0.0
      %595 = vmatprep.subr.mxu0 0.0
      %596 = vmatpush2.msra.mxu0 0.0
      %597 = vmatprep.subr.mxu0 0.0
      %598 = vmatpush2.msra.mxu0 0.0
      %599 = vmatprep.subr.mxu0 0.0
      %600 = vmatpush2.msra.mxu0 0.0
      %601 = vmatprep.subr.mxu0 0.0
      %602 = vmatpush2.msra.mxu0 0.0
      %603 = vmatprep.subr.mxu0 0.0
      %604 = vmatpush2.msra.mxu0 0.0
      %605 = vmatprep.subr.mxu0 0.0
      %606 = vmatpush2.msra.mxu0 0.0
      %607 = vmatprep.subr.mxu0 0.0
      %608 = vmatpush2.msra.mxu0 0.0
      %609 = vmatprep.subr.mxu0 0.0
      %610 = vmatpush2.msra.mxu0 0.0
      %611 = vmatprep.subr.mxu0 0.0
      %612 = vmatpush2.msra.mxu0 0.0
      %613 = vmatprep.subr.mxu0 0.0
      %614 = vmatpush2.msra.mxu0 0.0
      %615 = vmatprep.subr.mxu0 0.0
      %616 = vmatpush2.msra.mxu0 0.0
      %617 = vmatprep.subr.mxu0 0.0
      %618 = vmatpush2.msra.mxu0 0.0
      %619 = vmatprep.subr.mxu0 0.0
      %620 = vmatpush2.msra.mxu0 0.0
      %621 = vmatprep.subr.mxu0 0.0
      %622 = vmatpush2.msra.mxu0 0.0
      %623 = vmatprep.subr.mxu0 0.0
      %624 = vmatpush2.msra.mxu0 0.0
      %625 = vmatprep.mubr.f32.mxu0 0.0
      %626 = vmatmul.mubr.f32.gmra.mxu0 %v394
      %v627 = vpop.f32.mrf.mxu0
      %v628 = vadd.f32 0.0, %v627
      %v629 = vpop.f32.mrf.mxu0
      %630 = vmatprep.mubr.f32.mxu0 0.0
      %631 = vmatmul.mubr.f32.gmra.mxu0 %v397
      %v632 = vpop.f32.mrf.mxu0
      %v633 = vadd.f32 0.0, %v632
      %v634 = vpop.f32.mrf.mxu0
      %635 = vdwg.mxu0
      %v636 = vmul.f32 %v478, %v628
      %v637 = vmul.f32 %v479, %v633
      %v638 = vld [vmem:[%s1] sm:$0xff]
      %v639 = vld [vmem:[%s1 + $0x8] sm:$0xff]
      %641 = vset.pattern.permute.xlu0 0
      %642 = vperm.xlu0 %641, %v638
      %v643 = vpop.permute.xlu0 %642
      %646 = vset.pattern.permute.xlu0 0
      %647 = vperm.xlu0 %646, %v639
      %v648 = vpop.permute.xlu0 %647
      %v650 = vmul.f32 %v636, %v643
      %v651 = vmul.f32 %v637, %v648
      %v652 = vld [vmem:[%s2] sm:$0xff]
      %v653 = vld [vmem:[%s2 + $0x8] sm:$0xff]
      %655 = vset.pattern.permute.xlu0 0
      %656 = vperm.xlu0 %655, %v652
      %v657 = vpop.permute.xlu0 %656
      %660 = vset.pattern.permute.xlu0 0
      %661 = vperm.xlu0 %660, %v653
      %v662 = vpop.permute.xlu0 %661
      %v664 = vadd.f32 %v650, %v657
      %v665 = vadd.f32 %v651, %v662
      %v666 = vxor.u32 %v664, 2147483648
      %v667 = vxor.u32 %v665, 2147483648
      %v668 = vmul.f32 %v666, 1.442695
      %v669 = vpow.pop %v668
      %v670 = vmul.f32 %v667, 1.442695
      %v671 = vpow.pop %v670
      %v672 = vadd.f32 %v669, 1.0
      %v673 = vadd.f32 %v671, 1.0
      %v674 = vrcp.pop %v672
      %v675 = vmul.f32 1.0, %v674
      %v676 = vrcp.pop %v673
      %v677 = vmul.f32 1.0, %v676
      %v678 = vmul.f32 %v664, %v675
      %v679 = vmul.f32 %v665, %v677
      %v680 = vld [vmem:[%s5] sm:$0xff]
      %v681 = vld [vmem:[%s5 + $0x8] sm:$0x1]
      %vm682 = vcmask 1048064
      %683 = vrot.lane.b32.xlu0 %v678, 64
      %v684 = vpop.permute.xlu0 %683
      %v685 = vsel %vm682, %v684, %v678
      %686 = vrot.lane.b32.xlu0 %v679, 64
      %v687 = vpop.permute.xlu0 %686
      %v688 = vsel %vm682, %v687, %v679
      %689 = vrot.lane.b32.xlu0 %v685, 64
      %v690 = vpop.permute.xlu0 %689
      %691 = vrot.lane.b32.xlu0 %v688, 64
      %v692 = vpop.permute.xlu0 %691
      %v693 = vsel %vm682, %v690, %v678
      %v694 = vsel %vm682, %v692, %v679
      %v695 = vlaneseq
      %v696 = vshrl.u32 %v695, 7
      %v697 = vsub.s32 0, %v696
      %v698 = vrot.slane %v680, %v697
      %700 = vrot.lane.b32.xlu0 %v698, 55
      %v701 = vpop.permute.xlu0 %700
      %v703 = vmul.f32 %v693, %v701
      %v704 = vmul.f32 %v694, %v701
      %707 = vrot.lane.b32.xlu0 %v703, 73
      %v708 = vpop.permute.xlu0 %707
      %709 = vrot.lane.b32.xlu0 %v704, 73
      %v710 = vpop.permute.xlu0 %709
      %vm713 = vcmask 523264
      %714 = vst.msk [vmem:[#allocation2] sm:$0xff] %vm713, %v708
      %715 = vst.msk [vmem:[#allocation2 + $0x8] sm:$0xff] %vm713, %v710
      %v716 = vlaneseq
      %v717 = vshrl.u32 %v716, 7
      %v718 = vsub.s32 1, %v717
      %v719 = vrot.slane %v680, %v718
      %721 = vrot.lane.b32.xlu0 %v719, 56
      %v722 = vpop.permute.xlu0 %721
      %v724 = vmul.f32 %v693, %v722
      %v725 = vmul.f32 %v694, %v722
      %728 = vrot.lane.b32.xlu0 %v724, 72
      %v729 = vpop.permute.xlu0 %728
      %730 = vrot.lane.b32.xlu0 %v725, 72
      %v731 = vpop.permute.xlu0 %730
      %734 = vst.msk [vmem:[#allocation2 + $0x10] sm:$0xff] %vm713, %v729
      %735 = vst.msk [vmem:[#allocation2 + $0x18] sm:$0xff] %vm713, %v731
      %v736 = vlaneseq
      %v737 = vshrl.u32 %v736, 7
      %v738 = vsub.s32 2, %v737
      %v739 = vrot.slane %v680, %v738
      %741 = vrot.lane.b32.xlu0 %v739, 57
      %v742 = vpop.permute.xlu0 %741
      %v744 = vmul.f32 %v693, %v742
      %v745 = vmul.f32 %v694, %v742
      %748 = vrot.lane.b32.xlu0 %v744, 71
      %v749 = vpop.permute.xlu0 %748
      %750 = vrot.lane.b32.xlu0 %v745, 71
      %v751 = vpop.permute.xlu0 %750
      %754 = vst.msk [vmem:[#allocation2 + $0x20] sm:$0xff] %vm713, %v749
      %755 = vst.msk [vmem:[#allocation2 + $0x28] sm:$0xff] %vm713, %v751
      %v756 = vlaneseq
      %v757 = vshrl.u32 %v756, 7
      %v758 = vsub.s32 3, %v757
      %v759 = vrot.slane %v680, %v758
      %761 = vrot.lane.b32.xlu0 %v759, 63
      %v762 = vpop.permute.xlu0 %761
      %v764 = vmul.f32 %v693, %v762
      %v765 = vmul.f32 %v694, %v762
      %768 = vrot.lane.b32.xlu0 %v764, 65
      %v769 = vpop.permute.xlu0 %768
      %770 = vrot.lane.b32.xlu0 %v765, 65
      %v771 = vpop.permute.xlu0 %770
      %774 = vst.msk [vmem:[#allocation2 + $0x30] sm:$0xff] %vm713, %v769
      %775 = vst.msk [vmem:[#allocation2 + $0x38] sm:$0xff] %vm713, %v771
      %v776 = vlaneseq
      %v777 = vshrl.u32 %v776, 7
      %v778 = vsub.s32 4, %v777
      %v779 = vrot.slane %v680, %v778
      %v780 = vmul.f32 %v678, %v779
      %v781 = vmul.f32 %v679, %v779
      %782 = vst.msk [vmem:[#allocation2 + $0x40] sm:$0xff] %vm713, %v780
      %783 = vst.msk [vmem:[#allocation2 + $0x48] sm:$0xff] %vm713, %v781
      %v784 = vlaneseq
      %v785 = vshrl.u32 %v784, 7
      %v786 = vsub.s32 5, %v785
      %v787 = vrot.slane %v680, %v786
      %789 = vrot.lane.b32.xlu0 %v787, 1
      %v790 = vpop.permute.xlu0 %789
      %v792 = vmul.f32 %v693, %v790
      %v793 = vmul.f32 %v694, %v790
      %796 = vrot.lane.b32.xlu0 %v792, 127
      %v797 = vpop.permute.xlu0 %796
      %798 = vrot.lane.b32.xlu0 %v793, 127
      %v799 = vpop.permute.xlu0 %798
      %802 = vst.msk [vmem:[#allocation2 + $0x50] sm:$0xff] %vm713, %v797
      %803 = vst.msk [vmem:[#allocation2 + $0x58] sm:$0xff] %vm713, %v799
      %v804 = vlaneseq
      %v805 = vshrl.u32 %v804, 7
      %v806 = vsub.s32 6, %v805
      %v807 = vrot.slane %v680, %v806
      %809 = vrot.lane.b32.xlu0 %v807, 7
      %v810 = vpop.permute.xlu0 %809
      %v812 = vmul.f32 %v693, %v810
      %v813 = vmul.f32 %v694, %v810
      %816 = vrot.lane.b32.xlu0 %v812, 121
      %v817 = vpop.permute.xlu0 %816
      %818 = vrot.lane.b32.xlu0 %v813, 121
      %v819 = vpop.permute.xlu0 %818
      %822 = vst.msk [vmem:[#allocation2 + $0x60] sm:$0xff] %vm713, %v817
      %823 = vst.msk [vmem:[#allocation2 + $0x68] sm:$0xff] %vm713, %v819
      %v824 = vlaneseq
      %v825 = vshrl.u32 %v824, 7
      %v826 = vsub.s32 7, %v825
      %v827 = vrot.slane %v680, %v826
      %829 = vrot.lane.b32.xlu0 %v827, 8
      %v830 = vpop.permute.xlu0 %829
      %v832 = vmul.f32 %v693, %v830
      %v833 = vmul.f32 %v694, %v830
      %836 = vrot.lane.b32.xlu0 %v832, 120
      %v837 = vpop.permute.xlu0 %836
      %838 = vrot.lane.b32.xlu0 %v833, 120
      %v839 = vpop.permute.xlu0 %838
      %842 = vst.msk [vmem:[#allocation2 + $0x70] sm:$0xff] %vm713, %v837
      %843 = vst.msk [vmem:[#allocation2 + $0x78] sm:$0xff] %vm713, %v839
      %v844 = vlaneseq
      %v845 = vshrl.u32 %v844, 7
      %v846 = vsub.s32 0, %v845
      %v847 = vrot.slane %v681, %v846
      %849 = vrot.lane.b32.xlu0 %v847, 9
      %v850 = vpop.permute.xlu0 %849
      %v852 = vmul.f32 %v693, %v850
      %v853 = vmul.f32 %v694, %v850
      %856 = vrot.lane.b32.xlu0 %v852, 119
      %v857 = vpop.permute.xlu0 %856
      %858 = vrot.lane.b32.xlu0 %v853, 119
      %v859 = vpop.permute.xlu0 %858
      %862 = vst.msk [vmem:[#allocation2 + $0x80] sm:$0xff] %vm713, %v857
      %863 = vst.msk [vmem:[#allocation2 + $0x88] sm:$0xff] %vm713, %v859
      %v864 = vld [vmem:[%s6] sm:$0xff]
      %v865 = vld [vmem:[%s6 + $0x8] sm:$0xff]
      %v866 = vld [vmem:[#allocation2] sm:$0xff]
      %v867 = vld [vmem:[#allocation2 + $0x8] sm:$0xff]
      %v868 = vld [vmem:[#allocation2 + $0x10] sm:$0xff]
      %v869 = vld [vmem:[#allocation2 + $0x18] sm:$0xff]
      %v870 = vld [vmem:[#allocation2 + $0x20] sm:$0xff]
      %v871 = vld [vmem:[#allocation2 + $0x28] sm:$0xff]
      %v872 = vld [vmem:[#allocation2 + $0x30] sm:$0xff]
      %v873 = vld [vmem:[#allocation2 + $0x38] sm:$0xff]
      %v874 = vld [vmem:[#allocation2 + $0x40] sm:$0xff]
      %v875 = vld [vmem:[#allocation2 + $0x48] sm:$0xff]
      %v876 = vld [vmem:[#allocation2 + $0x50] sm:$0xff]
      %v877 = vld [vmem:[#allocation2 + $0x58] sm:$0xff]
      %v878 = vld [vmem:[#allocation2 + $0x60] sm:$0xff]
      %v879 = vld [vmem:[#allocation2 + $0x68] sm:$0xff]
      %v880 = vld [vmem:[#allocation2 + $0x70] sm:$0xff]
      %v881 = vld [vmem:[#allocation2 + $0x78] sm:$0xff]
      %v882 = vld [vmem:[#allocation2 + $0x80] sm:$0xff]
      %v883 = vld [vmem:[#allocation2 + $0x88] sm:$0xff]
      %v884 = vpack.c.bf16 %v867, %v866
      %v885 = vpack.c.bf16 %v869, %v868
      %v886 = vpack.c.bf16 %v871, %v870
      %v887 = vpack.c.bf16 %v873, %v872
      %v888 = vpack.c.bf16 %v875, %v874
      %v889 = vpack.c.bf16 %v877, %v876
      %v890 = vpack.c.bf16 %v879, %v878
      %v891 = vpack.c.bf16 %v881, %v880
      %v892 = vpack.c.bf16 %v883, %v882
      %v893 = vld [vmem:[%s7] sm:$0xff]
      %v894 = vld [vmem:[%s7 + $0x8] sm:$0xff]
      %896 = vset.pattern.permute.xlu0 0
      %897 = vperm.xlu0 %896, %v893
      %v898 = vpop.permute.xlu0 %897
      %901 = vset.pattern.permute.xlu0 0
      %902 = vperm.xlu0 %901, %v894
      %v903 = vpop.permute.xlu0 %902
      %v907 = vunpack.c.l.b16 %v864
      %v908 = vunpack.c.h.b16 %v864
      %v909 = vunpack.c.l.b16 %v865
      %v910 = vunpack.c.h.b16 %v865
      %v911 = vpack.c.b16 %v909, %v907
      %v912 = vpack.c.b16 %v910, %v908
      %v915 = vsel %vm312, %v912, 0
      %917 = vmatprep.subr.bf16.mxu0 0
      %918 = vmatpush1.bf16.msra.mxu0 %v891
      %919 = vmatprep.subr.bf16.mxu0 0
      %920 = vmatpush1.bf16.msra.mxu0 %v890
      %921 = vmatprep.subr.bf16.mxu0 0
      %922 = vmatpush1.bf16.msra.mxu0 %v889
      %923 = vmatprep.subr.bf16.mxu0 0
      %924 = vmatpush1.bf16.msra.mxu0 %v888
      %925 = vmatprep.subr.bf16.mxu0 0
      %926 = vmatpush1.bf16.msra.mxu0 %v887
      %927 = vmatprep.subr.bf16.mxu0 0
      %928 = vmatpush1.bf16.msra.mxu0 %v886
      %929 = vmatprep.subr.bf16.mxu0 0
      %930 = vmatpush1.bf16.msra.mxu0 %v885
      %931 = vmatprep.subr.bf16.mxu0 0
      %932 = vmatpush1.bf16.msra.mxu0 %v884
      %933 = vmatprep.subr.bf16.mxu0 0
      %934 = vmatpush2.bf16.msra.mxu0 0
      %935 = vmatprep.subr.bf16.mxu0 0
      %936 = vmatpush2.bf16.msra.mxu0 0
      %937 = vmatprep.subr.bf16.mxu0 0
      %938 = vmatpush2.bf16.msra.mxu0 0
      %939 = vmatprep.subr.bf16.mxu0 0
      %940 = vmatpush2.bf16.msra.mxu0 0
      %941 = vmatprep.subr.bf16.mxu0 0
      %942 = vmatpush2.bf16.msra.mxu0 0
      %943 = vmatprep.subr.bf16.mxu0 0
      %944 = vmatpush2.bf16.msra.mxu0 0
      %945 = vmatprep.subr.bf16.mxu0 0
      %946 = vmatpush2.bf16.msra.mxu0 0
      %947 = vmatprep.subr.bf16.mxu0 0
      %948 = vmatpush2.bf16.msra.mxu0 %v892
      %949 = vmatprep.mubr.bf16.mxu0 %v915
      %950 = vmatmul.mubr.bf16.gmra.mxu0 %v911
      %v951 = vpop.f32.mrf.mxu0
      %v952 = vadd.f32 %v898, %v951
      %v953 = vpop.f32.mrf.mxu0
      %v954 = vpop.f32.mrf.mxu0
      %v955 = vadd.f32 %v903, %v954
      %v956 = vpop.f32.mrf.mxu0
      %957 = vdwg.mxu0
      %958 = vst.msk [vmem:[%s305] sm:$0xff] %vm713, %v952
      %959 = vst.msk [vmem:[%s305 + $0x8] sm:$0xff] %vm713, %v955
      %p960 = scmp.lt.s32.totalorder %s19, 1
      %s961 = scalar_select %p960, %s19, 1
      %s962 = smul.addr %s961, 2
      %s963 = smul.addr %s962, 8
      %s964 = scalar_lea.vmem %s8, %s963
      // Predicated region
      $region53: #{time_adapter_forward.18} parent=51 // pred_check
        %p965 = pneg %p210
      $region54: #{time_adapter_forward.18} parent=51 // pred_check_branch
        %967 = sbr.rel (%p965) target = $region56
      $region55: #{time_adapter_forward.18} parent=51 // pred_region
        _
      $region56: #{time_adapter_forward.18} parent=51 // pred_fallthru
        _
    $region52: #{time_adapter_forward.18} parent=5 // pred_fallthru
      _
    %p968 = scmp.le.s32.totalorder 2, %s14
    // Predicated region
    $region57: #{time_adapter_forward.18} parent=5 // pred_check
      %p969 = pneg %p968
    $region58: #{time_adapter_forward.18} parent=5 // pred_check_branch
      %971 = sbr.rel (%p969) target = $region60
    $region59: #{time_adapter_forward.18} parent=5 // pred_region
      %s972 = ssub.s32 %s14, 2
      // Predicated region
      $region61: #{time_adapter_forward.18} parent=59 // pred_check
        %p973 = pneg %p216
      $region62: #{time_adapter_forward.18} parent=59 // pred_check_branch
        %975 = sbr.rel (%p973) target = $region64
      $region63: #{time_adapter_forward.18} parent=59 // pred_region
        %p976 = scmp.lt.s32.totalorder %s20, 1
        %s977 = scalar_select %p976, %s20, 1
        %s978 = smul.addr %s977, 2
        %s979 = smul.addr %s978, 8
        %s980 = scalar_lea.vmem %s8, %s979
      $region64: #{time_adapter_forward.18} parent=59 // pred_fallthru
        _
    $region60: #{time_adapter_forward.18} parent=5 // pred_fallthru
      _
  $region6: #{time_adapter_forward.18} parent=0 // loop_footer
    %s18 = sadd.s32 1, %s14
  $region7: #{time_adapter_forward.18} parent=0 // loop_footer_branch
    %13 = sbr.rel target = $region3
  $region8: #{time_adapter_forward.18} parent=0 // loop_exit
    _

</llo_original>
